<compile_context>
chip_gen: v7x
topology: tpu7x:2x2x1
jax: 0.10.0
libtpu: 0.0.40
codegen_flags: <defaults>
</compile_context>

<pallas_src>
import functools

import jax
import jax.numpy as jnp
from jax.experimental import pallas as pl
from jax.experimental.pallas import tpu as pltpu

_HIGHEST = jax.lax.Precision.HIGHEST


def _sdpa_kernel(q_ref, k_ref, v_ref, a_ref, b_ref, perm_ref, sum_ref, o_ref,
                 *, H, D):
    """q/k/v/o: (tile, H*D); a: (H, H*D, H*H); b: (H, H*H, H*D);
    perm/sum: (H*H, H*H)."""
    f32 = jnp.float32
    q = q_ref[...].astype(f32)
    k = k_ref[...].astype(f32)
    v = v_ref[...].astype(f32)

    # ---- scores, packed as (tile, H*H) -------------------------------------
    # Column t*H + i holds S[token, head i, key (i -/+ t) % H]; the actual roll
    # direction is irrelevant because K and V use the same rolls and every t
    # is covered.  A_t segment-sums the D lanes of each head pair and places
    # the result into column block t (scale d_h**-0.5 is folded into A_t).
    s_cat = None
    for t in range(H):
        kt = k if t == 0 else pltpu.roll(k, shift=t * D, axis=1)
        part = jnp.dot(q * kt, a_ref[t], precision=_HIGHEST,
                       preferred_element_type=f32)
        s_cat = part if s_cat is None else s_cat + part

    # ---- numerically stable softmax on the packed layout --------------------
    # Per-head max, broadcast over packed columns, via H-1 column-roll
    # permutation matmuls (0/1 permutation; exact to ~1 ulp under HIGHEST).
    m = s_cat
    r = s_cat
    for _ in range(H - 1):
        r = jnp.dot(r, perm_ref[...], precision=_HIGHEST,
                    preferred_element_type=f32)
        m = jnp.maximum(m, r)
    e = jnp.exp(s_cat - m)                      # one EUP pass over (tile, H*H)
    l = jnp.dot(e, sum_ref[...], precision=_HIGHEST,
                preferred_element_type=f32)     # per-head sums, broadcast
    p = e * pl.reciprocal(l, approx=False)

    # ---- P @ V, fused per-t (no (tile, H*HD) intermediate) -------------------
    acc = None
    for t in range(H):
        vt = v if t == 0 else pltpu.roll(v, shift=t * D, axis=1)
        pe = jnp.dot(p, b_ref[t], precision=_HIGHEST,
                     preferred_element_type=f32)   # broadcast prob over D lanes
        term = pe * vt
        acc = term if acc is None else acc + term

    o_ref[...] = acc.astype(o_ref.dtype)


def _round_up(x, m):
    return (x + m - 1) // m * m


def _default_tile_and_vmem():
    """Per-generation (tile rows, scoped-VMEM limit)."""
    kind = ""
    try:
        kind = jax.devices()[0].device_kind.lower()
    except Exception:
        pass
    if any(t in kind for t in ("v4", "v5", "v6")):     # 128 MiB VMEM parts
        return 4096, 96 * 1024 * 1024
    # v7x (64 MiB VMEM) or unknown: stay conservative.
    return 2048, 48 * 1024 * 1024


def scaled_dot_product_attentions(q, k, v, *, batch_tile=None):
    """q, k, v: (b, n, num_heads, d_h). Returns (b, n, num_heads, d_h)."""
    b, n, H, D = q.shape
    assert k.shape == q.shape and v.shape == q.shape
    HD, HH = H * D, H * H
    B = b * n
    scale = float(D) ** (-0.5)
    # NOTE: HD % 128 == 0 (e.g. 4 heads x 32 dims) gives fully lane-dense,
    # unmasked stores; other head configs remain correct but relayout-heavier.

    # Lane-dense 2-D layout (pure metadata reshapes, no copies).
    qf = q.reshape(B, HD)
    kf = k.reshape(B, HD)
    vf = v.reshape(B, HD)

    # Constant segment / permutation matrices, hoisted out of the kernel and
    # DMA'd once thanks to their constant index_map.
    f32 = jnp.float32
    head_of_lane = jnp.arange(HD, dtype=jnp.int32) // D           # (HD,)
    col = jnp.arange(HH, dtype=jnp.int32)                         # (HH,)
    a_all = jnp.stack(                                            # (H, HD, HH)
        [(col[None, :] == t * H + head_of_lane[:, None]).astype(f32) * scale
         for t in range(H)])
    b_all = jnp.stack(                                            # (H, HH, HD)
        [(col[:, None] == t * H + head_of_lane[None, :]).astype(f32)
         for t in range(H)])
    perm = (col[None, :] == (col[:, None] + H) % HH).astype(f32)  # (HH, HH)
    seg_sum = ((col[:, None] % H) == (col[None, :] % H)).astype(f32)

    # Per-generation tile sizing; dtype-dependent sublane alignment.
    default_tile, vmem_limit = _default_tile_and_vmem()
    if batch_tile is None:
        batch_tile = default_tile
    itemsize = jnp.dtype(q.dtype).itemsize
    align = {4: 8, 2: 16, 1: 32}.get(itemsize, 8)

    num_tiles = max(1, -(-B // batch_tile))
    if num_tiles == 1 and B >= 2048:
        num_tiles = 2                     # let both TensorCores take a tile
    if num_tiles > 1 and num_tiles % 2:
        num_tiles += 1                    # even grid for dual-TC (v7x) parts
    tb = _round_up(max(1, -(-B // num_tiles)), align)
    tb = min(tb, _round_up(B, align))
    grid = max(1, -(-B // tb))            # ragged last block clipped by Pallas

    data_spec = pl.BlockSpec((tb, HD), lambda i: (i, 0))
    a_spec = pl.BlockSpec((H, HD, HH), lambda i: (0, 0, 0))
    b_spec = pl.BlockSpec((H, HH, HD), lambda i: (0, 0, 0))
    sq_spec = pl.BlockSpec((HH, HH), lambda i: (0, 0))

    cost = pl.CostEstimate(
        flops=4 * B * HH * D + 8 * B * HH,       # QK^T + PV + softmax arith
        transcendentals=B * HH,                  # exp per score entry
        bytes_accessed=4 * B * HD * itemsize,    # q, k, v in + out
    )

    out = pl.pallas_call(
        functools.partial(_sdpa_kernel, H=H, D=D),
        out_shape=jax.ShapeDtypeStruct((B, HD), q.dtype),
        grid_spec=pltpu.PrefetchScalarGridSpec(
            num_scalar_prefetch=0,
            grid=(grid,),
            in_specs=[data_spec, data_spec, data_spec,
                      a_spec, b_spec, sq_spec, sq_spec],
            out_specs=data_spec,
        ),
        compiler_params=pltpu.CompilerParams(
            dimension_semantics=("parallel",),
            vmem_limit_bytes=vmem_limit,
        ),
        cost_estimate=cost,
    )(qf, kf, vf, a_all, b_all, perm, seg_sum)

    return out.reshape(b, n, H, D)


def _reference(q, k, v):
    D = q.shape[-1]
    s = jnp.einsum("bnhd,bngd->bnhg", q, k,
                   precision=_HIGHEST) * (float(D) ** -0.5)
    p = jax.nn.softmax(s, axis=-1)
    return jnp.einsum("bnhg,bngd->bnhd", p, v, precision=_HIGHEST)


if __name__ == "__main__":
    # Small deterministic inputs consistent with the module:
    # (b, n, num_heads, d_h) = (2, 8, 4, 32)
    b, n, num_heads, d_h = 2, 8, 4, 32
    key = jax.random.PRNGKey(0)
    kq, kk, kv = jax.random.split(key, 3)
    q = jax.random.normal(kq, (b, n, num_heads, d_h), dtype=jnp.float32)
    k = jax.random.normal(kk, (b, n, num_heads, d_h), dtype=jnp.float32)
    v = jax.random.normal(kv, (b, n, num_heads, d_h), dtype=jnp.float32)

    out = jax.block_until_ready(scaled_dot_product_attentions(q, k, v))
    ref = _reference(q, k, v)
    assert out.shape == (b, n, num_heads, d_h)
    assert jnp.allclose(out, ref, atol=2e-5, rtol=2e-5)

    # Ragged multi-tile grid: B = 26 rows, tile = 16 -> grid of 2 with a
    # clipped last block (no host-side padding and no output slicing).
    b2, n2 = 2, 13
    k2q, k2k, k2v = jax.random.split(jax.random.PRNGKey(1), 3)
    q2 = jax.random.normal(k2q, (b2, n2, num_heads, d_h), dtype=jnp.float32)
    k2 = jax.random.normal(k2k, (b2, n2, num_heads, d_h), dtype=jnp.float32)
    v2 = jax.random.normal(k2v, (b2, n2, num_heads, d_h), dtype=jnp.float32)
    out2 = jax.block_until_ready(
        scaled_dot_product_attentions(q2, k2, v2, batch_tile=16))
    ref2 = _reference(q2, k2, v2)
    assert jnp.allclose(out2, ref2, atol=2e-5, rtol=2e-5)

    print("KERNEL_OK")
</pallas_src>

<mosaic_0001>
module attributes {stable_mosaic.version = 11 : i64} {
  func.func @_sdpa_kernel(%arg0: i32, %arg1: memref<16x128xf32, #tpu.memory_space<vmem>>, %arg2: memref<16x128xf32, #tpu.memory_space<vmem>>, %arg3: memref<16x128xf32, #tpu.memory_space<vmem>>, %arg4: memref<4x128x16xf32, #tpu.memory_space<vmem>>, %arg5: memref<4x16x128xf32, #tpu.memory_space<vmem>>, %arg6: memref<16x16xf32, #tpu.memory_space<vmem>>, %arg7: memref<16x16xf32, #tpu.memory_space<vmem>>, %arg8: memref<16x128xf32, #tpu.memory_space<vmem>>) attributes {dimension_semantics = [#tpu.dimension_semantics<parallel>], iteration_bounds = array<i64: 1>, scalar_prefetch = 0 : i64, scratch_operands = 0 : i64, tpu.core_type = #tpu.core_type<tc>, window_params = [{transform_indices = @transform_0, window_bounds = array<i64: 16, 128>}, {transform_indices = @transform_1, window_bounds = array<i64: 16, 128>}, {transform_indices = @transform_2, window_bounds = array<i64: 16, 128>}, {pipeline_mode = #tpu.pipeline_mode<synchronous>, transform_indices = @transform_3, window_bounds = array<i64: 4, 128, 16>}, {pipeline_mode = #tpu.pipeline_mode<synchronous>, transform_indices = @transform_4, window_bounds = array<i64: 4, 16, 128>}, {pipeline_mode = #tpu.pipeline_mode<synchronous>, transform_indices = @transform_5, window_bounds = array<i64: 16, 16>}, {pipeline_mode = #tpu.pipeline_mode<synchronous>, transform_indices = @transform_6, window_bounds = array<i64: 16, 16>}, {transform_indices = @transform_7, window_bounds = array<i64: 16, 128>}]} {
    %c0 = arith.constant 0 : index
    %c0_0 = arith.constant 0 : index
    %0 = vector.load %arg1[%c0, %c0_0] : memref<16x128xf32, #tpu.memory_space<vmem>>, vector<16x128xf32>
    %c0_1 = arith.constant 0 : index
    %c0_2 = arith.constant 0 : index
    %1 = vector.load %arg2[%c0_1, %c0_2] : memref<16x128xf32, #tpu.memory_space<vmem>>, vector<16x128xf32>
    %c0_3 = arith.constant 0 : index
    %c0_4 = arith.constant 0 : index
    %2 = vector.load %arg3[%c0_3, %c0_4] : memref<16x128xf32, #tpu.memory_space<vmem>>, vector<16x128xf32>
    %3 = arith.mulf %0, %1 : vector<16x128xf32>
    %c0_5 = arith.constant 0 : index
    %c0_6 = arith.constant 0 : index
    %c0_7 = arith.constant 0 : index
    %4 = vector.load %arg4[%c0_5, %c0_6, %c0_7] : memref<4x128x16xf32, #tpu.memory_space<vmem>>, vector<1x128x16xf32>
    %5 = vector.shape_cast %4 : vector<1x128x16xf32> to vector<128x16xf32>
    %cst = arith.constant dense<0.000000e+00> : vector<16x16xf32>
    %6 = tpu.matmul %3, %5, %cst {dimension_numbers = #tpu.dot_dimension_numbers<[1], [0], [0], [1], [0, 0, 1, 1], [], []>, precision = #tpu.contract_precision<fp32>} : vector<16x128xf32>, vector<128x16xf32>, vector<16x16xf32> -> vector<16x16xf32>
    %c32_i32 = arith.constant 32 : i32
    %7 = tpu.dynamic_rotate %1 by %c32_i32 dim 1 : vector<16x128xf32>, i32 -> vector<16x128xf32>
    %8 = arith.mulf %0, %7 : vector<16x128xf32>
    %c1 = arith.constant 1 : index
    %c0_8 = arith.constant 0 : index
    %c0_9 = arith.constant 0 : index
    %9 = vector.load %arg4[%c1, %c0_8, %c0_9] : memref<4x128x16xf32, #tpu.memory_space<vmem>>, vector<1x128x16xf32>
    %10 = vector.shape_cast %9 : vector<1x128x16xf32> to vector<128x16xf32>
    %cst_10 = arith.constant dense<0.000000e+00> : vector<16x16xf32>
    %11 = tpu.matmul %8, %10, %cst_10 {dimension_numbers = #tpu.dot_dimension_numbers<[1], [0], [0], [1], [0, 0, 1, 1], [], []>, precision = #tpu.contract_precision<fp32>} : vector<16x128xf32>, vector<128x16xf32>, vector<16x16xf32> -> vector<16x16xf32>
    %12 = arith.addf %6, %11 : vector<16x16xf32>
    %c64_i32 = arith.constant 64 : i32
    %13 = tpu.dynamic_rotate %1 by %c64_i32 dim 1 : vector<16x128xf32>, i32 -> vector<16x128xf32>
    %14 = arith.mulf %0, %13 : vector<16x128xf32>
    %c2 = arith.constant 2 : index
    %c0_11 = arith.constant 0 : index
    %c0_12 = arith.constant 0 : index
    %15 = vector.load %arg4[%c2, %c0_11, %c0_12] : memref<4x128x16xf32, #tpu.memory_space<vmem>>, vector<1x128x16xf32>
    %16 = vector.shape_cast %15 : vector<1x128x16xf32> to vector<128x16xf32>
    %cst_13 = arith.constant dense<0.000000e+00> : vector<16x16xf32>
    %17 = tpu.matmul %14, %16, %cst_13 {dimension_numbers = #tpu.dot_dimension_numbers<[1], [0], [0], [1], [0, 0, 1, 1], [], []>, precision = #tpu.contract_precision<fp32>} : vector<16x128xf32>, vector<128x16xf32>, vector<16x16xf32> -> vector<16x16xf32>
    %18 = arith.addf %12, %17 : vector<16x16xf32>
    %c96_i32 = arith.constant 96 : i32
    %19 = tpu.dynamic_rotate %1 by %c96_i32 dim 1 : vector<16x128xf32>, i32 -> vector<16x128xf32>
    %20 = arith.mulf %0, %19 : vector<16x128xf32>
    %c3 = arith.constant 3 : index
    %c0_14 = arith.constant 0 : index
    %c0_15 = arith.constant 0 : index
    %21 = vector.load %arg4[%c3, %c0_14, %c0_15] : memref<4x128x16xf32, #tpu.memory_space<vmem>>, vector<1x128x16xf32>
    %22 = vector.shape_cast %21 : vector<1x128x16xf32> to vector<128x16xf32>
    %cst_16 = arith.constant dense<0.000000e+00> : vector<16x16xf32>
    %23 = tpu.matmul %20, %22, %cst_16 {dimension_numbers = #tpu.dot_dimension_numbers<[1], [0], [0], [1], [0, 0, 1, 1], [], []>, precision = #tpu.contract_precision<fp32>} : vector<16x128xf32>, vector<128x16xf32>, vector<16x16xf32> -> vector<16x16xf32>
    %24 = arith.addf %18, %23 : vector<16x16xf32>
    %c0_17 = arith.constant 0 : index
    %c0_18 = arith.constant 0 : index
    %25 = vector.load %arg6[%c0_17, %c0_18] : memref<16x16xf32, #tpu.memory_space<vmem>>, vector<16x16xf32>
    %cst_19 = arith.constant dense<0.000000e+00> : vector<16x16xf32>
    %26 = tpu.matmul %24, %25, %cst_19 {dimension_numbers = #tpu.dot_dimension_numbers<[1], [0], [0], [1], [0, 0, 1, 1], [], []>, precision = #tpu.contract_precision<fp32>} : vector<16x16xf32>, vector<16x16xf32>, vector<16x16xf32> -> vector<16x16xf32>
    %27 = arith.maximumf %24, %26 : vector<16x16xf32>
    %c0_20 = arith.constant 0 : index
    %c0_21 = arith.constant 0 : index
    %28 = vector.load %arg6[%c0_20, %c0_21] : memref<16x16xf32, #tpu.memory_space<vmem>>, vector<16x16xf32>
    %cst_22 = arith.constant dense<0.000000e+00> : vector<16x16xf32>
    %29 = tpu.matmul %26, %28, %cst_22 {dimension_numbers = #tpu.dot_dimension_numbers<[1], [0], [0], [1], [0, 0, 1, 1], [], []>, precision = #tpu.contract_precision<fp32>} : vector<16x16xf32>, vector<16x16xf32>, vector<16x16xf32> -> vector<16x16xf32>
    %30 = arith.maximumf %27, %29 : vector<16x16xf32>
    %c0_23 = arith.constant 0 : index
    %c0_24 = arith.constant 0 : index
    %31 = vector.load %arg6[%c0_23, %c0_24] : memref<16x16xf32, #tpu.memory_space<vmem>>, vector<16x16xf32>
    %cst_25 = arith.constant dense<0.000000e+00> : vector<16x16xf32>
    %32 = tpu.matmul %29, %31, %cst_25 {dimension_numbers = #tpu.dot_dimension_numbers<[1], [0], [0], [1], [0, 0, 1, 1], [], []>, precision = #tpu.contract_precision<fp32>} : vector<16x16xf32>, vector<16x16xf32>, vector<16x16xf32> -> vector<16x16xf32>
    %33 = arith.maximumf %30, %32 : vector<16x16xf32>
    %34 = arith.subf %24, %33 : vector<16x16xf32>
    %35 = math.exp %34 : vector<16x16xf32>
    %c0_26 = arith.constant 0 : index
    %c0_27 = arith.constant 0 : index
    %36 = vector.load %arg7[%c0_26, %c0_27] : memref<16x16xf32, #tpu.memory_space<vmem>>, vector<16x16xf32>
    %cst_28 = arith.constant dense<0.000000e+00> : vector<16x16xf32>
    %37 = tpu.matmul %35, %36, %cst_28 {dimension_numbers = #tpu.dot_dimension_numbers<[1], [0], [0], [1], [0, 0, 1, 1], [], []>, precision = #tpu.contract_precision<fp32>} : vector<16x16xf32>, vector<16x16xf32>, vector<16x16xf32> -> vector<16x16xf32>
    %38 = tpu.reciprocal %37 : vector<16x16xf32> -> vector<16x16xf32>
    %39 = arith.mulf %35, %38 : vector<16x16xf32>
    %c0_29 = arith.constant 0 : index
    %c0_30 = arith.constant 0 : index
    %c0_31 = arith.constant 0 : index
    %40 = vector.load %arg5[%c0_29, %c0_30, %c0_31] : memref<4x16x128xf32, #tpu.memory_space<vmem>>, vector<1x16x128xf32>
    %41 = vector.shape_cast %40 : vector<1x16x128xf32> to vector<16x128xf32>
    %cst_32 = arith.constant dense<0.000000e+00> : vector<16x128xf32>
    %42 = tpu.matmul %39, %41, %cst_32 {dimension_numbers = #tpu.dot_dimension_numbers<[1], [0], [0], [1], [0, 0, 1, 1], [], []>, precision = #tpu.contract_precision<fp32>} : vector<16x16xf32>, vector<16x128xf32>, vector<16x128xf32> -> vector<16x128xf32>
    %43 = arith.mulf %42, %2 : vector<16x128xf32>
    %c32_i32_33 = arith.constant 32 : i32
    %44 = tpu.dynamic_rotate %2 by %c32_i32_33 dim 1 : vector<16x128xf32>, i32 -> vector<16x128xf32>
    %c1_34 = arith.constant 1 : index
    %c0_35 = arith.constant 0 : index
    %c0_36 = arith.constant 0 : index
    %45 = vector.load %arg5[%c1_34, %c0_35, %c0_36] : memref<4x16x128xf32, #tpu.memory_space<vmem>>, vector<1x16x128xf32>
    %46 = vector.shape_cast %45 : vector<1x16x128xf32> to vector<16x128xf32>
    %cst_37 = arith.constant dense<0.000000e+00> : vector<16x128xf32>
    %47 = tpu.matmul %39, %46, %cst_37 {dimension_numbers = #tpu.dot_dimension_numbers<[1], [0], [0], [1], [0, 0, 1, 1], [], []>, precision = #tpu.contract_precision<fp32>} : vector<16x16xf32>, vector<16x128xf32>, vector<16x128xf32> -> vector<16x128xf32>
    %48 = arith.mulf %47, %44 : vector<16x128xf32>
    %49 = arith.addf %43, %48 : vector<16x128xf32>
    %c64_i32_38 = arith.constant 64 : i32
    %50 = tpu.dynamic_rotate %2 by %c64_i32_38 dim 1 : vector<16x128xf32>, i32 -> vector<16x128xf32>
    %c2_39 = arith.constant 2 : index
    %c0_40 = arith.constant 0 : index
    %c0_41 = arith.constant 0 : index
    %51 = vector.load %arg5[%c2_39, %c0_40, %c0_41] : memref<4x16x128xf32, #tpu.memory_space<vmem>>, vector<1x16x128xf32>
    %52 = vector.shape_cast %51 : vector<1x16x128xf32> to vector<16x128xf32>
    %cst_42 = arith.constant dense<0.000000e+00> : vector<16x128xf32>
    %53 = tpu.matmul %39, %52, %cst_42 {dimension_numbers = #tpu.dot_dimension_numbers<[1], [0], [0], [1], [0, 0, 1, 1], [], []>, precision = #tpu.contract_precision<fp32>} : vector<16x16xf32>, vector<16x128xf32>, vector<16x128xf32> -> vector<16x128xf32>
    %54 = arith.mulf %53, %50 : vector<16x128xf32>
    %55 = arith.addf %49, %54 : vector<16x128xf32>
    %c96_i32_43 = arith.constant 96 : i32
    %56 = tpu.dynamic_rotate %2 by %c96_i32_43 dim 1 : vector<16x128xf32>, i32 -> vector<16x128xf32>
    %c3_44 = arith.constant 3 : index
    %c0_45 = arith.constant 0 : index
    %c0_46 = arith.constant 0 : index
    %57 = vector.load %arg5[%c3_44, %c0_45, %c0_46] : memref<4x16x128xf32, #tpu.memory_space<vmem>>, vector<1x16x128xf32>
    %58 = vector.shape_cast %57 : vector<1x16x128xf32> to vector<16x128xf32>
    %cst_47 = arith.constant dense<0.000000e+00> : vector<16x128xf32>
    %59 = tpu.matmul %39, %58, %cst_47 {dimension_numbers = #tpu.dot_dimension_numbers<[1], [0], [0], [1], [0, 0, 1, 1], [], []>, precision = #tpu.contract_precision<fp32>} : vector<16x16xf32>, vector<16x128xf32>, vector<16x128xf32> -> vector<16x128xf32>
    %60 = arith.mulf %59, %56 : vector<16x128xf32>
    %61 = arith.addf %55, %60 : vector<16x128xf32>
    %c0_48 = arith.constant 0 : index
    %c0_49 = arith.constant 0 : index
    %62 = vector.load %arg8[%c0_48, %c0_49] : memref<16x128xf32, #tpu.memory_space<vmem>>, vector<16x128xf32>
    tpu.vector_store %arg8[%c0_48, %c0_49], %61 {strides = array<i32>} : memref<16x128xf32, #tpu.memory_space<vmem>>, vector<16x128xf32>,
    return
  }
  func.func @transform_0(%arg0: i32) -> (i32, i32) {
    %c0_i32 = arith.constant 0 : i32
    %c0_i32_0 = arith.constant 0 : i32
    return %arg0, %c0_i32 : i32, i32
  }
  func.func @transform_1(%arg0: i32) -> (i32, i32) {
    %c0_i32 = arith.constant 0 : i32
    %c0_i32_0 = arith.constant 0 : i32
    return %arg0, %c0_i32 : i32, i32
  }
  func.func @transform_2(%arg0: i32) -> (i32, i32) {
    %c0_i32 = arith.constant 0 : i32
    %c0_i32_0 = arith.constant 0 : i32
    return %arg0, %c0_i32 : i32, i32
  }
  func.func @transform_3(%arg0: i32) -> (i32, i32, i32) {
    %c0_i32 = arith.constant 0 : i32
    %c0_i32_0 = arith.constant 0 : i32
    %c0_i32_1 = arith.constant 0 : i32
    %c0_i32_2 = arith.constant 0 : i32
    return %c0_i32, %c0_i32_0, %c0_i32_1 : i32, i32, i32
  }
  func.func @transform_4(%arg0: i32) -> (i32, i32, i32) {
    %c0_i32 = arith.constant 0 : i32
    %c0_i32_0 = arith.constant 0 : i32
    %c0_i32_1 = arith.constant 0 : i32
    %c0_i32_2 = arith.constant 0 : i32
    return %c0_i32, %c0_i32_0, %c0_i32_1 : i32, i32, i32
  }
  func.func @transform_5(%arg0: i32) -> (i32, i32) {
    %c0_i32 = arith.constant 0 : i32
    %c0_i32_0 = arith.constant 0 : i32
    %c0_i32_1 = arith.constant 0 : i32
    return %c0_i32, %c0_i32_0 : i32, i32
  }
  func.func @transform_6(%arg0: i32) -> (i32, i32) {
    %c0_i32 = arith.constant 0 : i32
    %c0_i32_0 = arith.constant 0 : i32
    %c0_i32_1 = arith.constant 0 : i32
    return %c0_i32, %c0_i32_0 : i32, i32
  }
  func.func @transform_7(%arg0: i32) -> (i32, i32) {
    %c0_i32 = arith.constant 0 : i32
    %c0_i32_0 = arith.constant 0 : i32
    return %arg0, %c0_i32 : i32, i32
  }
}

</mosaic_0001>

<llo_original>
// kernel: tpu_custom_call.1
$region0: #{tpu_custom_call.1}
  #allocation0 [shape = 'u32[]', space=smem, size = 0x4, offset = 0x4, fixed_abs, tag = 'smem constant byte address 0x4 - core index']
  #allocation1 [shape = 'u32[144,128]{1,0:T(1,128)}', space=vmem, size = 0x12000, scoped, tag = 'internal scratch']
  %s0 = inlined_call_operand.vmem [shape: f32[16,128], index: 0, kind: input, shape index: {}]
  %s1 = inlined_call_operand.vmem [shape: f32[16,128], index: 1, kind: input, shape index: {}]
  %s2 = inlined_call_operand.vmem [shape: f32[16,128], index: 2, kind: input, shape index: {}]
  %s3 = inlined_call_operand.vmem [shape: f32[4,128,16], index: 3, kind: input, shape index: {}]
  %s4 = inlined_call_operand.vmem [shape: f32[4,16,128], index: 4, kind: input, shape index: {}]
  %s5 = inlined_call_operand.vmem [shape: f32[16,16], index: 5, kind: input, shape index: {}]
  %s6 = inlined_call_operand.vmem [shape: f32[16,16], index: 6, kind: input, shape index: {}]
  %s7 = inlined_call_operand.hbm [shape: f32[16,128], index: 7, kind: output, shape index: {}]
  %s8 = sld [smem:[#allocation0]]
  $region38: #{tpu_custom_call.1} parent=0
    _
  %s10 = ssub.s32 1, %s8
  %s11 = scalar_select 0, %s10, %s8
  $region1: #{tpu_custom_call.1} parent=0
    #allocation2 [shape = 'u8[8192]{0}', space=vmem, size = 0x2000, scoped, tag = 'output window, operand 0, single buffered']
    #allocation3 [shape = 's32[1]{0}', space=sflag, size = 0x4, scoped, tag = 'scoped memory for tpu_custom_call.1']
    %12 = vsyncpa [#allocation3], 0
    // Predicated region
    $region2: #{tpu_custom_call.1} parent=1 // pred_check
      _
    $region3: #{tpu_custom_call.1} parent=1 // pred_check_branch
      %14 = sbr.rel (0) target = $region5
    $region4: #{tpu_custom_call.1} parent=1 // pred_region
      _
    $region5: #{tpu_custom_call.1} parent=1 // pred_fallthru
      _
    // Predicated region
    $region6: #{tpu_custom_call.1} parent=1 // pred_check
      _
    $region7: #{tpu_custom_call.1} parent=1 // pred_check_branch
      %16 = sbr.rel (0) target = $region9
    $region8: #{tpu_custom_call.1} parent=1 // pred_region
      _
    $region9: #{tpu_custom_call.1} parent=1 // pred_fallthru
      _
    // Predicated region
    $region10: #{tpu_custom_call.1} parent=1 // pred_check
      _
    $region11: #{tpu_custom_call.1} parent=1 // pred_check_branch
      %18 = sbr.rel (0) target = $region13
    $region12: #{tpu_custom_call.1} parent=1 // pred_region
      _
    $region13: #{tpu_custom_call.1} parent=1 // pred_fallthru
      _
    // Predicated region
    $region14: #{tpu_custom_call.1} parent=1 // pred_check
      _
    $region15: #{tpu_custom_call.1} parent=1 // pred_check_branch
      %20 = sbr.rel (0) target = $region17
    $region16: #{tpu_custom_call.1} parent=1 // pred_region
      _
    $region17: #{tpu_custom_call.1} parent=1 // pred_fallthru
      _
    // Predicated region
    $region18: #{tpu_custom_call.1} parent=1 // pred_check
      _
    $region19: #{tpu_custom_call.1} parent=1 // pred_check_branch
      %22 = sbr.rel (0) target = $region21
    $region20: #{tpu_custom_call.1} parent=1 // pred_region
      _
    $region21: #{tpu_custom_call.1} parent=1 // pred_fallthru
      _
    // Predicated region
    $region22: #{tpu_custom_call.1} parent=1 // pred_check
      _
    $region23: #{tpu_custom_call.1} parent=1 // pred_check_branch
      %24 = sbr.rel (0) target = $region25
    $region24: #{tpu_custom_call.1} parent=1 // pred_region
      _
    $region25: #{tpu_custom_call.1} parent=1 // pred_fallthru
      _
    // Predicated region
    $region26: #{tpu_custom_call.1} parent=1 // pred_check
      _
    $region27: #{tpu_custom_call.1} parent=1 // pred_check_branch
      %26 = sbr.rel (0) target = $region29
    $region28: #{tpu_custom_call.1} parent=1 // pred_region
      _
    $region29: #{tpu_custom_call.1} parent=1 // pred_fallthru
      _
    %v27 = vld [vmem:[%s0] sm:$0xff]
    %v28 = vld [vmem:[%s0 + $0x8] sm:$0xff]
    %v29 = vld [vmem:[%s1] sm:$0xff]
    %v30 = vld [vmem:[%s1 + $0x8] sm:$0xff]
    %v31 = vld [vmem:[%s2] sm:$0xff]
    %v32 = vld [vmem:[%s2 + $0x8] sm:$0xff]
    %v33 = vmul.f32 %v27, %v29
    %v34 = vmul.f32 %v28, %v30
    %v35 = vld [vmem:[%s3] sm:$0xff]
    %v36 = vld [vmem:[%s3 + $0x8] sm:$0xff]
    %v37 = vld [vmem:[%s3 + $0x10] sm:$0xff]
    %v38 = vld [vmem:[%s3 + $0x18] sm:$0xff]
    %v39 = vld [vmem:[%s3 + $0x20] sm:$0xff]
    %v40 = vld [vmem:[%s3 + $0x28] sm:$0xff]
    %v41 = vld [vmem:[%s3 + $0x30] sm:$0xff]
    %v42 = vld [vmem:[%s3 + $0x38] sm:$0xff]
    %v43 = vld [vmem:[%s3 + $0x40] sm:$0xff]
    %v44 = vld [vmem:[%s3 + $0x48] sm:$0xff]
    %v45 = vld [vmem:[%s3 + $0x50] sm:$0xff]
    %v46 = vld [vmem:[%s3 + $0x58] sm:$0xff]
    %v47 = vld [vmem:[%s3 + $0x60] sm:$0xff]
    %v48 = vld [vmem:[%s3 + $0x68] sm:$0xff]
    %v49 = vld [vmem:[%s3 + $0x70] sm:$0xff]
    %v50 = vld [vmem:[%s3 + $0x78] sm:$0xff]
    %51 = vrot.lane.b32.xlu0 %v29, 32
    %v52 = vpop.permute.xlu0 %51
    %53 = vrot.lane.b32.xlu0 %v30, 32
    %v54 = vpop.permute.xlu0 %53
    %v55 = vmul.f32 %v27, %v52
    %v56 = vmul.f32 %v28, %v54
    %s57 = scalar_lea.vmem %s3, 128
    %v58 = vld [vmem:[%s57] sm:$0xff]
    %v59 = vld [vmem:[%s57 + $0x8] sm:$0xff]
    %v60 = vld [vmem:[%s57 + $0x10] sm:$0xff]
    %v61 = vld [vmem:[%s57 + $0x18] sm:$0xff]
    %v62 = vld [vmem:[%s57 + $0x20] sm:$0xff]
    %v63 = vld [vmem:[%s57 + $0x28] sm:$0xff]
    %v64 = vld [vmem:[%s57 + $0x30] sm:$0xff]
    %v65 = vld [vmem:[%s57 + $0x38] sm:$0xff]
    %v66 = vld [vmem:[%s57 + $0x40] sm:$0xff]
    %v67 = vld [vmem:[%s57 + $0x48] sm:$0xff]
    %v68 = vld [vmem:[%s57 + $0x50] sm:$0xff]
    %v69 = vld [vmem:[%s57 + $0x58] sm:$0xff]
    %v70 = vld [vmem:[%s57 + $0x60] sm:$0xff]
    %v71 = vld [vmem:[%s57 + $0x68] sm:$0xff]
    %v72 = vld [vmem:[%s57 + $0x70] sm:$0xff]
    %v73 = vld [vmem:[%s57 + $0x78] sm:$0xff]
    %74 = vmatprep.subr.mxu0 0.0
    %v75 = vand.u32 %v58, 4294901760
    %76 = vmatpush1.msra.mxu0 %v75
    %77 = vmatprep.subr.mxu0 0.0
    %v78 = vand.u32 %v59, 4294901760
    %79 = vmatpush1.msra.mxu0 %v78
    %80 = vmatprep.subr.mxu0 0.0
    %v81 = vand.u32 %v60, 4294901760
    %82 = vmatpush1.msra.mxu0 %v81
    %83 = vmatprep.subr.mxu0 0.0
    %v84 = vand.u32 %v61, 4294901760
    %85 = vmatpush1.msra.mxu0 %v84
    %86 = vmatprep.subr.mxu0 0.0
    %v87 = vand.u32 %v62, 4294901760
    %88 = vmatpush1.msra.mxu0 %v87
    %89 = vmatprep.subr.mxu0 0.0
    %v90 = vand.u32 %v63, 4294901760
    %91 = vmatpush1.msra.mxu0 %v90
    %92 = vmatprep.subr.mxu0 0.0
    %v93 = vand.u32 %v64, 4294901760
    %94 = vmatpush1.msra.mxu0 %v93
    %95 = vmatprep.subr.mxu0 0.0
    %v96 = vand.u32 %v65, 4294901760
    %97 = vmatpush1.msra.mxu0 %v96
    %98 = vmatprep.subr.mxu0 0.0
    %v99 = vand.u32 %v66, 4294901760
    %100 = vmatpush1.msra.mxu0 %v99
    %101 = vmatprep.subr.mxu0 0.0
    %v102 = vand.u32 %v67, 4294901760
    %103 = vmatpush1.msra.mxu0 %v102
    %104 = vmatprep.subr.mxu0 0.0
    %v105 = vand.u32 %v68, 4294901760
    %106 = vmatpush1.msra.mxu0 %v105
    %107 = vmatprep.subr.mxu0 0.0
    %v108 = vand.u32 %v69, 4294901760
    %109 = vmatpush1.msra.mxu0 %v108
    %110 = vmatprep.subr.mxu0 0.0
    %v111 = vand.u32 %v70, 4294901760
    %112 = vmatpush1.msra.mxu0 %v111
    %113 = vmatprep.subr.mxu0 0.0
    %v114 = vand.u32 %v71, 4294901760
    %115 = vmatpush1.msra.mxu0 %v114
    %116 = vmatprep.subr.mxu0 0.0
    %v117 = vand.u32 %v72, 4294901760
    %118 = vmatpush1.msra.mxu0 %v117
    %119 = vmatprep.subr.mxu0 0.0
    %v120 = vand.u32 %v73, 4294901760
    %121 = vmatpush1.msra.mxu0 %v120
    %122 = vmatprep.subr.mxu0 0.0
    %123 = vmatpush1.msra.mxu0 0.0
    %124 = vmatprep.subr.mxu0 0.0
    %125 = vmatpush1.msra.mxu0 0.0
    %126 = vmatprep.subr.mxu0 0.0
    %127 = vmatpush1.msra.mxu0 0.0
    %128 = vmatprep.subr.mxu0 0.0
    %129 = vmatpush1.msra.mxu0 0.0
    %130 = vmatprep.subr.mxu0 0.0
    %131 = vmatpush1.msra.mxu0 0.0
    %132 = vmatprep.subr.mxu0 0.0
    %133 = vmatpush1.msra.mxu0 0.0
    %134 = vmatprep.subr.mxu0 0.0
    %135 = vmatpush1.msra.mxu0 0.0
    %136 = vmatprep.subr.mxu0 0.0
    %137 = vmatpush1.msra.mxu0 0.0
    %138 = vmatprep.subr.mxu0 0.0
    %139 = vmatpush1.msra.mxu0 0.0
    %140 = vmatprep.subr.mxu0 0.0
    %141 = vmatpush1.msra.mxu0 0.0
    %142 = vmatprep.subr.mxu0 0.0
    %143 = vmatpush1.msra.mxu0 0.0
    %144 = vmatprep.subr.mxu0 0.0
    %145 = vmatpush1.msra.mxu0 0.0
    %146 = vmatprep.subr.mxu0 0.0
    %147 = vmatpush1.msra.mxu0 0.0
    %148 = vmatprep.subr.mxu0 0.0
    %149 = vmatpush1.msra.mxu0 0.0
    %150 = vmatprep.subr.mxu0 0.0
    %151 = vmatpush1.msra.mxu0 0.0
    %152 = vmatprep.subr.mxu0 0.0
    %153 = vmatpush1.msra.mxu0 0.0
    %154 = vmatprep.mubr.f32.mxu0 0.0
    %v155 = vand.u32 %v55, 4294901760
    %v156 = vsub.f32 %v55, %v155
    %v157 = vand.u32 %v156, 4294901760
    %v158 = vsub.f32 %v156, %v157
    %v159 = vand.u32 %v158, 4294901760
    %160 = vmatmul.mubr.f32.gmra.mrb[0].mxu0 %v159
    %v161 = vpop.f32.mrb[0].mxu0
    %v162 = vadd.f32 0.0, %v161
    %v163 = vpop.f32.mrb[0].mxu0
    %164 = vmatprep.mubr.f32.mxu0 0.0
    %v165 = vand.u32 %v56, 4294901760
    %v166 = vsub.f32 %v56, %v165
    %v167 = vand.u32 %v166, 4294901760
    %v168 = vsub.f32 %v166, %v167
    %v169 = vand.u32 %v168, 4294901760
    %170 = vmatmul.mubr.f32.gmra.mrb[0].mxu0 %v169
    %v171 = vpop.f32.mrb[0].mxu0
    %v172 = vadd.f32 0.0, %v171
    %v173 = vpop.f32.mrb[0].mxu0
    %174 = vdwg.mxu0
    %175 = vmatprep.subr.mxu0 0.0
    %v176 = vand.u32 %v58, 4294901760
    %v177 = vsub.f32 %v58, %v176
    %v178 = vand.u32 %v177, 4294901760
    %v179 = vsub.f32 %v177, %v178
    %v180 = vand.u32 %v179, 4294901760
    %181 = vmatpush1.msra.mxu0 %v180
    %182 = vmatprep.subr.mxu0 0.0
    %v183 = vand.u32 %v59, 4294901760
    %v184 = vsub.f32 %v59, %v183
    %v185 = vand.u32 %v184, 4294901760
    %v186 = vsub.f32 %v184, %v185
    %v187 = vand.u32 %v186, 4294901760
    %188 = vmatpush1.msra.mxu0 %v187
    %189 = vmatprep.subr.mxu0 0.0
    %v190 = vand.u32 %v60, 4294901760
    %v191 = vsub.f32 %v60, %v190
    %v192 = vand.u32 %v191, 4294901760
    %v193 = vsub.f32 %v191, %v192
    %v194 = vand.u32 %v193, 4294901760
    %195 = vmatpush1.msra.mxu0 %v194
    %196 = vmatprep.subr.mxu0 0.0
    %v197 = vand.u32 %v61, 4294901760
    %v198 = vsub.f32 %v61, %v197
    %v199 = vand.u32 %v198, 4294901760
    %v200 = vsub.f32 %v198, %v199
    %v201 = vand.u32 %v200, 4294901760
    %202 = vmatpush1.msra.mxu0 %v201
    %203 = vmatprep.subr.mxu0 0.0
    %v204 = vand.u32 %v62, 4294901760
    %v205 = vsub.f32 %v62, %v204
    %v206 = vand.u32 %v205, 4294901760
    %v207 = vsub.f32 %v205, %v206
    %v208 = vand.u32 %v207, 4294901760
    %209 = vmatpush1.msra.mxu0 %v208
    %210 = vmatprep.subr.mxu0 0.0
    %v211 = vand.u32 %v63, 4294901760
    %v212 = vsub.f32 %v63, %v211
    %v213 = vand.u32 %v212, 4294901760
    %v214 = vsub.f32 %v212, %v213
    %v215 = vand.u32 %v214, 4294901760
    %216 = vmatpush1.msra.mxu0 %v215
    %217 = vmatprep.subr.mxu0 0.0
    %v218 = vand.u32 %v64, 4294901760
    %v219 = vsub.f32 %v64, %v218
    %v220 = vand.u32 %v219, 4294901760
    %v221 = vsub.f32 %v219, %v220
    %v222 = vand.u32 %v221, 4294901760
    %223 = vmatpush1.msra.mxu0 %v222
    %224 = vmatprep.subr.mxu0 0.0
    %v225 = vand.u32 %v65, 4294901760
    %v226 = vsub.f32 %v65, %v225
    %v227 = vand.u32 %v226, 4294901760
    %v228 = vsub.f32 %v226, %v227
    %v229 = vand.u32 %v228, 4294901760
    %230 = vmatpush1.msra.mxu0 %v229
    %231 = vmatprep.subr.mxu0 0.0
    %v232 = vand.u32 %v66, 4294901760
    %v233 = vsub.f32 %v66, %v232
    %v234 = vand.u32 %v233, 4294901760
    %v235 = vsub.f32 %v233, %v234
    %v236 = vand.u32 %v235, 4294901760
    %237 = vmatpush1.msra.mxu0 %v236
    %238 = vmatprep.subr.mxu0 0.0
    %v239 = vand.u32 %v67, 4294901760
    %v240 = vsub.f32 %v67, %v239
    %v241 = vand.u32 %v240, 4294901760
    %v242 = vsub.f32 %v240, %v241
    %v243 = vand.u32 %v242, 4294901760
    %244 = vmatpush1.msra.mxu0 %v243
    %245 = vmatprep.subr.mxu0 0.0
    %v246 = vand.u32 %v68, 4294901760
    %v247 = vsub.f32 %v68, %v246
    %v248 = vand.u32 %v247, 4294901760
    %v249 = vsub.f32 %v247, %v248
    %v250 = vand.u32 %v249, 4294901760
    %251 = vmatpush1.msra.mxu0 %v250
    %252 = vmatprep.subr.mxu0 0.0
    %v253 = vand.u32 %v69, 4294901760
    %v254 = vsub.f32 %v69, %v253
    %v255 = vand.u32 %v254, 4294901760
    %v256 = vsub.f32 %v254, %v255
    %v257 = vand.u32 %v256, 4294901760
    %258 = vmatpush1.msra.mxu0 %v257
    %259 = vmatprep.subr.mxu0 0.0
    %v260 = vand.u32 %v70, 4294901760
    %v261 = vsub.f32 %v70, %v260
    %v262 = vand.u32 %v261, 4294901760
    %v263 = vsub.f32 %v261, %v262
    %v264 = vand.u32 %v263, 4294901760
    %265 = vmatpush1.msra.mxu0 %v264
    %266 = vmatprep.subr.mxu0 0.0
    %v267 = vand.u32 %v71, 4294901760
    %v268 = vsub.f32 %v71, %v267
    %v269 = vand.u32 %v268, 4294901760
    %v270 = vsub.f32 %v268, %v269
    %v271 = vand.u32 %v270, 4294901760
    %272 = vmatpush1.msra.mxu0 %v271
    %273 = vmatprep.subr.mxu0 0.0
    %v274 = vand.u32 %v72, 4294901760
    %v275 = vsub.f32 %v72, %v274
    %v276 = vand.u32 %v275, 4294901760
    %v277 = vsub.f32 %v275, %v276
    %v278 = vand.u32 %v277, 4294901760
    %279 = vmatpush1.msra.mxu0 %v278
    %280 = vmatprep.subr.mxu0 0.0
    %v281 = vand.u32 %v73, 4294901760
    %v282 = vsub.f32 %v73, %v281
    %v283 = vand.u32 %v282, 4294901760
    %v284 = vsub.f32 %v282, %v283
    %v285 = vand.u32 %v284, 4294901760
    %286 = vmatpush1.msra.mxu0 %v285
    %287 = vmatprep.subr.mxu0 0.0
    %288 = vmatpush1.msra.mxu0 0.0
    %289 = vmatprep.subr.mxu0 0.0
    %290 = vmatpush1.msra.mxu0 0.0
    %291 = vmatprep.subr.mxu0 0.0
    %292 = vmatpush1.msra.mxu0 0.0
    %293 = vmatprep.subr.mxu0 0.0
    %294 = vmatpush1.msra.mxu0 0.0
    %295 = vmatprep.subr.mxu0 0.0
    %296 = vmatpush1.msra.mxu0 0.0
    %297 = vmatprep.subr.mxu0 0.0
    %298 = vmatpush1.msra.mxu0 0.0
    %299 = vmatprep.subr.mxu0 0.0
    %300 = vmatpush1.msra.mxu0 0.0
    %301 = vmatprep.subr.mxu0 0.0
    %302 = vmatpush1.msra.mxu0 0.0
    %303 = vmatprep.subr.mxu0 0.0
    %304 = vmatpush1.msra.mxu0 0.0
    %305 = vmatprep.subr.mxu0 0.0
    %306 = vmatpush1.msra.mxu0 0.0
    %307 = vmatprep.subr.mxu0 0.0
    %308 = vmatpush1.msra.mxu0 0.0
    %309 = vmatprep.subr.mxu0 0.0
    %310 = vmatpush1.msra.mxu0 0.0
    %311 = vmatprep.subr.mxu0 0.0
    %312 = vmatpush1.msra.mxu0 0.0
    %313 = vmatprep.subr.mxu0 0.0
    %314 = vmatpush1.msra.mxu0 0.0
    %315 = vmatprep.subr.mxu0 0.0
    %316 = vmatpush1.msra.mxu0 0.0
    %317 = vmatprep.subr.mxu0 0.0
    %318 = vmatpush1.msra.mxu0 0.0
    %319 = vmatprep.mubr.f32.mxu0 0.0
    %v320 = vand.u32 %v55, 4294901760
    %321 = vmatmul.mubr.f32.gmra.mrb[0].mxu0 %v320
    %v322 = vpop.f32.mrb[0].mxu0
    %v323 = vadd.f32 %v162, %v322
    %v324 = vpop.f32.mrb[0].mxu0
    %325 = vmatprep.mubr.f32.mxu0 0.0
    %v326 = vand.u32 %v56, 4294901760
    %327 = vmatmul.mubr.f32.gmra.mrb[0].mxu0 %v326
    %v328 = vpop.f32.mrb[0].mxu0
    %v329 = vadd.f32 %v172, %v328
    %v330 = vpop.f32.mrb[0].mxu0
    %331 = vdwg.mxu0
    %332 = vmatprep.subr.mxu0 0.0
    %v333 = vand.u32 %v58, 4294901760
    %v334 = vsub.f32 %v58, %v333
    %335 = vmatpush1.msra.mxu0 %v334
    %336 = vmatprep.subr.mxu0 0.0
    %v337 = vand.u32 %v59, 4294901760
    %v338 = vsub.f32 %v59, %v337
    %339 = vmatpush1.msra.mxu0 %v338
    %340 = vmatprep.subr.mxu0 0.0
    %v341 = vand.u32 %v60, 4294901760
    %v342 = vsub.f32 %v60, %v341
    %343 = vmatpush1.msra.mxu0 %v342
    %344 = vmatprep.subr.mxu0 0.0
    %v345 = vand.u32 %v61, 4294901760
    %v346 = vsub.f32 %v61, %v345
    %347 = vmatpush1.msra.mxu0 %v346
    %348 = vmatprep.subr.mxu0 0.0
    %v349 = vand.u32 %v62, 4294901760
    %v350 = vsub.f32 %v62, %v349
    %351 = vmatpush1.msra.mxu0 %v350
    %352 = vmatprep.subr.mxu0 0.0
    %v353 = vand.u32 %v63, 4294901760
    %v354 = vsub.f32 %v63, %v353
    %355 = vmatpush1.msra.mxu0 %v354
    %356 = vmatprep.subr.mxu0 0.0
    %v357 = vand.u32 %v64, 4294901760
    %v358 = vsub.f32 %v64, %v357
    %359 = vmatpush1.msra.mxu0 %v358
    %360 = vmatprep.subr.mxu0 0.0
    %v361 = vand.u32 %v65, 4294901760
    %v362 = vsub.f32 %v65, %v361
    %363 = vmatpush1.msra.mxu0 %v362
    %364 = vmatprep.subr.mxu0 0.0
    %v365 = vand.u32 %v66, 4294901760
    %v366 = vsub.f32 %v66, %v365
    %367 = vmatpush1.msra.mxu0 %v366
    %368 = vmatprep.subr.mxu0 0.0
    %v369 = vand.u32 %v67, 4294901760
    %v370 = vsub.f32 %v67, %v369
    %371 = vmatpush1.msra.mxu0 %v370
    %372 = vmatprep.subr.mxu0 0.0
    %v373 = vand.u32 %v68, 4294901760
    %v374 = vsub.f32 %v68, %v373
    %375 = vmatpush1.msra.mxu0 %v374
    %376 = vmatprep.subr.mxu0 0.0
    %v377 = vand.u32 %v69, 4294901760
    %v378 = vsub.f32 %v69, %v377
    %379 = vmatpush1.msra.mxu0 %v378
    %380 = vmatprep.subr.mxu0 0.0
    %v381 = vand.u32 %v70, 4294901760
    %v382 = vsub.f32 %v70, %v381
    %383 = vmatpush1.msra.mxu0 %v382
    %384 = vmatprep.subr.mxu0 0.0
    %v385 = vand.u32 %v71, 4294901760
    %v386 = vsub.f32 %v71, %v385
    %387 = vmatpush1.msra.mxu0 %v386
    %388 = vmatprep.subr.mxu0 0.0
    %v389 = vand.u32 %v72, 4294901760
    %v390 = vsub.f32 %v72, %v389
    %391 = vmatpush1.msra.mxu0 %v390
    %392 = vmatprep.subr.mxu0 0.0
    %v393 = vand.u32 %v73, 4294901760
    %v394 = vsub.f32 %v73, %v393
    %395 = vmatpush1.msra.mxu0 %v394
    %396 = vmatprep.subr.mxu0 0.0
    %397 = vmatpush1.msra.mxu0 0.0
    %398 = vmatprep.subr.mxu0 0.0
    %399 = vmatpush1.msra.mxu0 0.0
    %400 = vmatprep.subr.mxu0 0.0
    %401 = vmatpush1.msra.mxu0 0.0
    %402 = vmatprep.subr.mxu0 0.0
    %403 = vmatpush1.msra.mxu0 0.0
    %404 = vmatprep.subr.mxu0 0.0
    %405 = vmatpush1.msra.mxu0 0.0
    %406 = vmatprep.subr.mxu0 0.0
    %407 = vmatpush1.msra.mxu0 0.0
    %408 = vmatprep.subr.mxu0 0.0
    %409 = vmatpush1.msra.mxu0 0.0
    %410 = vmatprep.subr.mxu0 0.0
    %411 = vmatpush1.msra.mxu0 0.0
    %412 = vmatprep.subr.mxu0 0.0
    %413 = vmatpush1.msra.mxu0 0.0
    %414 = vmatprep.subr.mxu0 0.0
    %415 = vmatpush1.msra.mxu0 0.0
    %416 = vmatprep.subr.mxu0 0.0
    %417 = vmatpush1.msra.mxu0 0.0
    %418 = vmatprep.subr.mxu0 0.0
    %419 = vmatpush1.msra.mxu0 0.0
    %420 = vmatprep.subr.mxu0 0.0
    %421 = vmatpush1.msra.mxu0 0.0
    %422 = vmatprep.subr.mxu0 0.0
    %423 = vmatpush1.msra.mxu0 0.0
    %424 = vmatprep.subr.mxu0 0.0
    %425 = vmatpush1.msra.mxu0 0.0
    %426 = vmatprep.subr.mxu0 0.0
    %427 = vmatpush1.msra.mxu0 0.0
    %428 = vmatprep.mubr.f32.mxu0 0.0
    %v429 = vand.u32 %v55, 4294901760
    %v430 = vsub.f32 %v55, %v429
    %431 = vmatmul.mubr.f32.gmra.mrb[0].mxu0 %v430
    %v432 = vpop.f32.mrb[0].mxu0
    %v433 = vadd.f32 %v323, %v432
    %v434 = vpop.f32.mrb[0].mxu0
    %435 = vmatprep.mubr.f32.mxu0 0.0
    %v436 = vand.u32 %v56, 4294901760
    %v437 = vsub.f32 %v56, %v436
    %438 = vmatmul.mubr.f32.gmra.mrb[0].mxu0 %v437
    %v439 = vpop.f32.mrb[0].mxu0
    %v440 = vadd.f32 %v329, %v439
    %v441 = vpop.f32.mrb[0].mxu0
    %442 = vdwg.mxu0
    %443 = vmatprep.subr.mxu0 0.0
    %v444 = vand.u32 %v58, 4294901760
    %445 = vmatpush1.msra.mxu0 %v444
    %446 = vmatprep.subr.mxu0 0.0
    %v447 = vand.u32 %v59, 4294901760
    %448 = vmatpush1.msra.mxu0 %v447
    %449 = vmatprep.subr.mxu0 0.0
    %v450 = vand.u32 %v60, 4294901760
    %451 = vmatpush1.msra.mxu0 %v450
    %452 = vmatprep.subr.mxu0 0.0
    %v453 = vand.u32 %v61, 4294901760
    %454 = vmatpush1.msra.mxu0 %v453
    %455 = vmatprep.subr.mxu0 0.0
    %v456 = vand.u32 %v62, 4294901760
    %457 = vmatpush1.msra.mxu0 %v456
    %458 = vmatprep.subr.mxu0 0.0
    %v459 = vand.u32 %v63, 4294901760
    %460 = vmatpush1.msra.mxu0 %v459
    %461 = vmatprep.subr.mxu0 0.0
    %v462 = vand.u32 %v64, 4294901760
    %463 = vmatpush1.msra.mxu0 %v462
    %464 = vmatprep.subr.mxu0 0.0
    %v465 = vand.u32 %v65, 4294901760
    %466 = vmatpush1.msra.mxu0 %v465
    %467 = vmatprep.subr.mxu0 0.0
    %v468 = vand.u32 %v66, 4294901760
    %469 = vmatpush1.msra.mxu0 %v468
    %470 = vmatprep.subr.mxu0 0.0
    %v471 = vand.u32 %v67, 4294901760
    %472 = vmatpush1.msra.mxu0 %v471
    %473 = vmatprep.subr.mxu0 0.0
    %v474 = vand.u32 %v68, 4294901760
    %475 = vmatpush1.msra.mxu0 %v474
    %476 = vmatprep.subr.mxu0 0.0
    %v477 = vand.u32 %v69, 4294901760
    %478 = vmatpush1.msra.mxu0 %v477
    %479 = vmatprep.subr.mxu0 0.0
    %v480 = vand.u32 %v70, 4294901760
    %481 = vmatpush1.msra.mxu0 %v480
    %482 = vmatprep.subr.mxu0 0.0
    %v483 = vand.u32 %v71, 4294901760
    %484 = vmatpush1.msra.mxu0 %v483
    %485 = vmatprep.subr.mxu0 0.0
    %v486 = vand.u32 %v72, 4294901760
    %487 = vmatpush1.msra.mxu0 %v486
    %488 = vmatprep.subr.mxu0 0.0
    %v489 = vand.u32 %v73, 4294901760
    %490 = vmatpush1.msra.mxu0 %v489
    %491 = vmatprep.subr.mxu0 0.0
    %492 = vmatpush1.msra.mxu0 0.0
    %493 = vmatprep.subr.mxu0 0.0
    %494 = vmatpush1.msra.mxu0 0.0
    %495 = vmatprep.subr.mxu0 0.0
    %496 = vmatpush1.msra.mxu0 0.0
    %497 = vmatprep.subr.mxu0 0.0
    %498 = vmatpush1.msra.mxu0 0.0
    %499 = vmatprep.subr.mxu0 0.0
    %500 = vmatpush1.msra.mxu0 0.0
    %501 = vmatprep.subr.mxu0 0.0
    %502 = vmatpush1.msra.mxu0 0.0
    %503 = vmatprep.subr.mxu0 0.0
    %504 = vmatpush1.msra.mxu0 0.0
    %505 = vmatprep.subr.mxu0 0.0
    %506 = vmatpush1.msra.mxu0 0.0
    %507 = vmatprep.subr.mxu0 0.0
    %508 = vmatpush1.msra.mxu0 0.0
    %509 = vmatprep.subr.mxu0 0.0
    %510 = vmatpush1.msra.mxu0 0.0
    %511 = vmatprep.subr.mxu0 0.0
    %512 = vmatpush1.msra.mxu0 0.0
    %513 = vmatprep.subr.mxu0 0.0
    %514 = vmatpush1.msra.mxu0 0.0
    %515 = vmatprep.subr.mxu0 0.0
    %516 = vmatpush1.msra.mxu0 0.0
    %517 = vmatprep.subr.mxu0 0.0
    %518 = vmatpush1.msra.mxu0 0.0
    %519 = vmatprep.subr.mxu0 0.0
    %520 = vmatpush1.msra.mxu0 0.0
    %521 = vmatprep.subr.mxu0 0.0
    %522 = vmatpush1.msra.mxu0 0.0
    %523 = vmatprep.mubr.f32.mxu0 0.0
    %v524 = vand.u32 %v55, 4294901760
    %v525 = vsub.f32 %v55, %v524
    %v526 = vand.u32 %v525, 4294901760
    %527 = vmatmul.mubr.f32.gmra.mrb[0].mxu0 %v526
    %v528 = vpop.f32.mrb[0].mxu0
    %v529 = vadd.f32 %v433, %v528
    %v530 = vpop.f32.mrb[0].mxu0
    %531 = vmatprep.mubr.f32.mxu0 0.0
    %v532 = vand.u32 %v56, 4294901760
    %v533 = vsub.f32 %v56, %v532
    %v534 = vand.u32 %v533, 4294901760
    %535 = vmatmul.mubr.f32.gmra.mrb[0].mxu0 %v534
    %v536 = vpop.f32.mrb[0].mxu0
    %v537 = vadd.f32 %v440, %v536
    %v538 = vpop.f32.mrb[0].mxu0
    %539 = vdwg.mxu0
    %540 = vmatprep.subr.mxu0 0.0
    %v541 = vand.u32 %v58, 4294901760
    %v542 = vsub.f32 %v58, %v541
    %v543 = vand.u32 %v542, 4294901760
    %544 = vmatpush1.msra.mxu0 %v543
    %545 = vmatprep.subr.mxu0 0.0
    %v546 = vand.u32 %v59, 4294901760
    %v547 = vsub.f32 %v59, %v546
    %v548 = vand.u32 %v547, 4294901760
    %549 = vmatpush1.msra.mxu0 %v548
    %550 = vmatprep.subr.mxu0 0.0
    %v551 = vand.u32 %v60, 4294901760
    %v552 = vsub.f32 %v60, %v551
    %v553 = vand.u32 %v552, 4294901760
    %554 = vmatpush1.msra.mxu0 %v553
    %555 = vmatprep.subr.mxu0 0.0
    %v556 = vand.u32 %v61, 4294901760
    %v557 = vsub.f32 %v61, %v556
    %v558 = vand.u32 %v557, 4294901760
    %559 = vmatpush1.msra.mxu0 %v558
    %560 = vmatprep.subr.mxu0 0.0
    %v561 = vand.u32 %v62, 4294901760
    %v562 = vsub.f32 %v62, %v561
    %v563 = vand.u32 %v562, 4294901760
    %564 = vmatpush1.msra.mxu0 %v563
    %565 = vmatprep.subr.mxu0 0.0
    %v566 = vand.u32 %v63, 4294901760
    %v567 = vsub.f32 %v63, %v566
    %v568 = vand.u32 %v567, 4294901760
    %569 = vmatpush1.msra.mxu0 %v568
    %570 = vmatprep.subr.mxu0 0.0
    %v571 = vand.u32 %v64, 4294901760
    %v572 = vsub.f32 %v64, %v571
    %v573 = vand.u32 %v572, 4294901760
    %574 = vmatpush1.msra.mxu0 %v573
    %575 = vmatprep.subr.mxu0 0.0
    %v576 = vand.u32 %v65, 4294901760
    %v577 = vsub.f32 %v65, %v576
    %v578 = vand.u32 %v577, 4294901760
    %579 = vmatpush1.msra.mxu0 %v578
    %580 = vmatprep.subr.mxu0 0.0
    %v581 = vand.u32 %v66, 4294901760
    %v582 = vsub.f32 %v66, %v581
    %v583 = vand.u32 %v582, 4294901760
    %584 = vmatpush1.msra.mxu0 %v583
    %585 = vmatprep.subr.mxu0 0.0
    %v586 = vand.u32 %v67, 4294901760
    %v587 = vsub.f32 %v67, %v586
    %v588 = vand.u32 %v587, 4294901760
    %589 = vmatpush1.msra.mxu0 %v588
    %590 = vmatprep.subr.mxu0 0.0
    %v591 = vand.u32 %v68, 4294901760
    %v592 = vsub.f32 %v68, %v591
    %v593 = vand.u32 %v592, 4294901760
    %594 = vmatpush1.msra.mxu0 %v593
    %595 = vmatprep.subr.mxu0 0.0
    %v596 = vand.u32 %v69, 4294901760
    %v597 = vsub.f32 %v69, %v596
    %v598 = vand.u32 %v597, 4294901760
    %599 = vmatpush1.msra.mxu0 %v598
    %600 = vmatprep.subr.mxu0 0.0
    %v601 = vand.u32 %v70, 4294901760
    %v602 = vsub.f32 %v70, %v601
    %v603 = vand.u32 %v602, 4294901760
    %604 = vmatpush1.msra.mxu0 %v603
    %605 = vmatprep.subr.mxu0 0.0
    %v606 = vand.u32 %v71, 4294901760
    %v607 = vsub.f32 %v71, %v606
    %v608 = vand.u32 %v607, 4294901760
    %609 = vmatpush1.msra.mxu0 %v608
    %610 = vmatprep.subr.mxu0 0.0
    %v611 = vand.u32 %v72, 4294901760
    %v612 = vsub.f32 %v72, %v611
    %v613 = vand.u32 %v612, 4294901760
    %614 = vmatpush1.msra.mxu0 %v613
    %615 = vmatprep.subr.mxu0 0.0
    %v616 = vand.u32 %v73, 4294901760
    %v617 = vsub.f32 %v73, %v616
    %v618 = vand.u32 %v617, 4294901760
    %619 = vmatpush1.msra.mxu0 %v618
    %620 = vmatprep.subr.mxu0 0.0
    %621 = vmatpush1.msra.mxu0 0.0
    %622 = vmatprep.subr.mxu0 0.0
    %623 = vmatpush1.msra.mxu0 0.0
    %624 = vmatprep.subr.mxu0 0.0
    %625 = vmatpush1.msra.mxu0 0.0
    %626 = vmatprep.subr.mxu0 0.0
    %627 = vmatpush1.msra.mxu0 0.0
    %628 = vmatprep.subr.mxu0 0.0
    %629 = vmatpush1.msra.mxu0 0.0
    %630 = vmatprep.subr.mxu0 0.0
    %631 = vmatpush1.msra.mxu0 0.0
    %632 = vmatprep.subr.mxu0 0.0
    %633 = vmatpush1.msra.mxu0 0.0
    %634 = vmatprep.subr.mxu0 0.0
    %635 = vmatpush1.msra.mxu0 0.0
    %636 = vmatprep.subr.mxu0 0.0
    %637 = vmatpush1.msra.mxu0 0.0
    %638 = vmatprep.subr.mxu0 0.0
    %639 = vmatpush1.msra.mxu0 0.0
    %640 = vmatprep.subr.mxu0 0.0
    %641 = vmatpush1.msra.mxu0 0.0
    %642 = vmatprep.subr.mxu0 0.0
    %643 = vmatpush1.msra.mxu0 0.0
    %644 = vmatprep.subr.mxu0 0.0
    %645 = vmatpush1.msra.mxu0 0.0
    %646 = vmatprep.subr.mxu0 0.0
    %647 = vmatpush1.msra.mxu0 0.0
    %648 = vmatprep.subr.mxu0 0.0
    %649 = vmatpush1.msra.mxu0 0.0
    %650 = vmatprep.subr.mxu0 0.0
    %651 = vmatpush1.msra.mxu0 0.0
    %652 = vmatprep.mubr.f32.mxu0 0.0
    %v653 = vand.u32 %v55, 4294901760
    %654 = vmatmul.mubr.f32.gmra.mrb[0].mxu0 %v653
    %v655 = vpop.f32.mrb[0].mxu0
    %v656 = vadd.f32 %v529, %v655
    %v657 = vpop.f32.mrb[0].mxu0
    %658 = vmatprep.mubr.f32.mxu0 0.0
    %v659 = vand.u32 %v56, 4294901760
    %660 = vmatmul.mubr.f32.gmra.mrb[0].mxu0 %v659
    %v661 = vpop.f32.mrb[0].mxu0
    %v662 = vadd.f32 %v537, %v661
    %v663 = vpop.f32.mrb[0].mxu0
    %664 = vdwg.mxu0
    %665 = vmatprep.subr.mxu0 0.0
    %v666 = vand.u32 %v58, 4294901760
    %667 = vmatpush1.msra.mxu0 %v666
    %668 = vmatprep.subr.mxu0 0.0
    %v669 = vand.u32 %v59, 4294901760
    %670 = vmatpush1.msra.mxu0 %v669
    %671 = vmatprep.subr.mxu0 0.0
    %v672 = vand.u32 %v60, 4294901760
    %673 = vmatpush1.msra.mxu0 %v672
    %674 = vmatprep.subr.mxu0 0.0
    %v675 = vand.u32 %v61, 4294901760
    %676 = vmatpush1.msra.mxu0 %v675
    %677 = vmatprep.subr.mxu0 0.0
    %v678 = vand.u32 %v62, 4294901760
    %679 = vmatpush1.msra.mxu0 %v678
    %680 = vmatprep.subr.mxu0 0.0
    %v681 = vand.u32 %v63, 4294901760
    %682 = vmatpush1.msra.mxu0 %v681
    %683 = vmatprep.subr.mxu0 0.0
    %v684 = vand.u32 %v64, 4294901760
    %685 = vmatpush1.msra.mxu0 %v684
    %686 = vmatprep.subr.mxu0 0.0
    %v687 = vand.u32 %v65, 4294901760
    %688 = vmatpush1.msra.mxu0 %v687
    %689 = vmatprep.subr.mxu0 0.0
    %v690 = vand.u32 %v66, 4294901760
    %691 = vmatpush1.msra.mxu0 %v690
    %692 = vmatprep.subr.mxu0 0.0
    %v693 = vand.u32 %v67, 4294901760
    %694 = vmatpush1.msra.mxu0 %v693
    %695 = vmatprep.subr.mxu0 0.0
    %v696 = vand.u32 %v68, 4294901760
    %697 = vmatpush1.msra.mxu0 %v696
    %698 = vmatprep.subr.mxu0 0.0
    %v699 = vand.u32 %v69, 4294901760
    %700 = vmatpush1.msra.mxu0 %v699
    %701 = vmatprep.subr.mxu0 0.0
    %v702 = vand.u32 %v70, 4294901760
    %703 = vmatpush1.msra.mxu0 %v702
    %704 = vmatprep.subr.mxu0 0.0
    %v705 = vand.u32 %v71, 4294901760
    %706 = vmatpush1.msra.mxu0 %v705
    %707 = vmatprep.subr.mxu0 0.0
    %v708 = vand.u32 %v72, 4294901760
    %709 = vmatpush1.msra.mxu0 %v708
    %710 = vmatprep.subr.mxu0 0.0
    %v711 = vand.u32 %v73, 4294901760
    %712 = vmatpush1.msra.mxu0 %v711
    %713 = vmatprep.subr.mxu0 0.0
    %714 = vmatpush1.msra.mxu0 0.0
    %715 = vmatprep.subr.mxu0 0.0
    %716 = vmatpush1.msra.mxu0 0.0
    %717 = vmatprep.subr.mxu0 0.0
    %718 = vmatpush1.msra.mxu0 0.0
    %719 = vmatprep.subr.mxu0 0.0
    %720 = vmatpush1.msra.mxu0 0.0
    %721 = vmatprep.subr.mxu0 0.0
    %722 = vmatpush1.msra.mxu0 0.0
    %723 = vmatprep.subr.mxu0 0.0
    %724 = vmatpush1.msra.mxu0 0.0
    %725 = vmatprep.subr.mxu0 0.0
    %726 = vmatpush1.msra.mxu0 0.0
    %727 = vmatprep.subr.mxu0 0.0
    %728 = vmatpush1.msra.mxu0 0.0
    %729 = vmatprep.subr.mxu0 0.0
    %730 = vmatpush1.msra.mxu0 0.0
    %731 = vmatprep.subr.mxu0 0.0
    %732 = vmatpush1.msra.mxu0 0.0
    %733 = vmatprep.subr.mxu0 0.0
    %734 = vmatpush1.msra.mxu0 0.0
    %735 = vmatprep.subr.mxu0 0.0
    %736 = vmatpush1.msra.mxu0 0.0
    %737 = vmatprep.subr.mxu0 0.0
    %738 = vmatpush1.msra.mxu0 0.0
    %739 = vmatprep.subr.mxu0 0.0
    %740 = vmatpush1.msra.mxu0 0.0
    %741 = vmatprep.subr.mxu0 0.0
    %742 = vmatpush1.msra.mxu0 0.0
    %743 = vmatprep.subr.mxu0 0.0
    %744 = vmatpush1.msra.mxu0 0.0
    %745 = vmatprep.mubr.f32.mxu0 0.0
    %v746 = vand.u32 %v55, 4294901760
    %747 = vmatmul.mubr.f32.gmra.mrb[0].mxu0 %v746
    %v748 = vpop.f32.mrb[0].mxu0
    %v749 = vadd.f32 %v656, %v748
    %v750 = vpop.f32.mrb[0].mxu0
    %751 = vmatprep.mubr.f32.mxu0 0.0
    %v752 = vand.u32 %v56, 4294901760
    %753 = vmatmul.mubr.f32.gmra.mrb[0].mxu0 %v752
    %v754 = vpop.f32.mrb[0].mxu0
    %v755 = vadd.f32 %v662, %v754
    %v756 = vpop.f32.mrb[0].mxu0
    %757 = vdwg.mxu0
    %758 = vmatprep.subr.mxu0 0.0
    %v759 = vand.u32 %v35, 4294901760
    %760 = vmatpush1.msra.mxu0 %v759
    %761 = vmatprep.subr.mxu0 0.0
    %v762 = vand.u32 %v36, 4294901760
    %763 = vmatpush1.msra.mxu0 %v762
    %764 = vmatprep.subr.mxu0 0.0
    %v765 = vand.u32 %v37, 4294901760
    %766 = vmatpush1.msra.mxu0 %v765
    %767 = vmatprep.subr.mxu0 0.0
    %v768 = vand.u32 %v38, 4294901760
    %769 = vmatpush1.msra.mxu0 %v768
    %770 = vmatprep.subr.mxu0 0.0
    %v771 = vand.u32 %v39, 4294901760
    %772 = vmatpush1.msra.mxu0 %v771
    %773 = vmatprep.subr.mxu0 0.0
    %v774 = vand.u32 %v40, 4294901760
    %775 = vmatpush1.msra.mxu0 %v774
    %776 = vmatprep.subr.mxu0 0.0
    %v777 = vand.u32 %v41, 4294901760
    %778 = vmatpush1.msra.mxu0 %v777
    %779 = vmatprep.subr.mxu0 0.0
    %v780 = vand.u32 %v42, 4294901760
    %781 = vmatpush1.msra.mxu0 %v780
    %782 = vmatprep.subr.mxu0 0.0
    %v783 = vand.u32 %v43, 4294901760
    %784 = vmatpush1.msra.mxu0 %v783
    %785 = vmatprep.subr.mxu0 0.0
    %v786 = vand.u32 %v44, 4294901760
    %787 = vmatpush1.msra.mxu0 %v786
    %788 = vmatprep.subr.mxu0 0.0
    %v789 = vand.u32 %v45, 4294901760
    %790 = vmatpush1.msra.mxu0 %v789
    %791 = vmatprep.subr.mxu0 0.0
    %v792 = vand.u32 %v46, 4294901760
    %793 = vmatpush1.msra.mxu0 %v792
    %794 = vmatprep.subr.mxu0 0.0
    %v795 = vand.u32 %v47, 4294901760
    %796 = vmatpush1.msra.mxu0 %v795
    %797 = vmatprep.subr.mxu0 0.0
    %v798 = vand.u32 %v48, 4294901760
    %799 = vmatpush1.msra.mxu0 %v798
    %800 = vmatprep.subr.mxu0 0.0
    %v801 = vand.u32 %v49, 4294901760
    %802 = vmatpush1.msra.mxu0 %v801
    %803 = vmatprep.subr.mxu0 0.0
    %v804 = vand.u32 %v50, 4294901760
    %805 = vmatpush1.msra.mxu0 %v804
    %806 = vmatprep.subr.mxu0 0.0
    %807 = vmatpush1.msra.mxu0 0.0
    %808 = vmatprep.subr.mxu0 0.0
    %809 = vmatpush1.msra.mxu0 0.0
    %810 = vmatprep.subr.mxu0 0.0
    %811 = vmatpush1.msra.mxu0 0.0
    %812 = vmatprep.subr.mxu0 0.0
    %813 = vmatpush1.msra.mxu0 0.0
    %814 = vmatprep.subr.mxu0 0.0
    %815 = vmatpush1.msra.mxu0 0.0
    %816 = vmatprep.subr.mxu0 0.0
    %817 = vmatpush1.msra.mxu0 0.0
    %818 = vmatprep.subr.mxu0 0.0
    %819 = vmatpush1.msra.mxu0 0.0
    %820 = vmatprep.subr.mxu0 0.0
    %821 = vmatpush1.msra.mxu0 0.0
    %822 = vmatprep.subr.mxu0 0.0
    %823 = vmatpush1.msra.mxu0 0.0
    %824 = vmatprep.subr.mxu0 0.0
    %825 = vmatpush1.msra.mxu0 0.0
    %826 = vmatprep.subr.mxu0 0.0
    %827 = vmatpush1.msra.mxu0 0.0
    %828 = vmatprep.subr.mxu0 0.0
    %829 = vmatpush1.msra.mxu0 0.0
    %830 = vmatprep.subr.mxu0 0.0
    %831 = vmatpush1.msra.mxu0 0.0
    %832 = vmatprep.subr.mxu0 0.0
    %833 = vmatpush1.msra.mxu0 0.0
    %834 = vmatprep.subr.mxu0 0.0
    %835 = vmatpush1.msra.mxu0 0.0
    %836 = vmatprep.subr.mxu0 0.0
    %837 = vmatpush1.msra.mxu0 0.0
    %838 = vmatprep.mubr.f32.mxu0 0.0
    %v839 = vand.u32 %v33, 4294901760
    %v840 = vsub.f32 %v33, %v839
    %v841 = vand.u32 %v840, 4294901760
    %v842 = vsub.f32 %v840, %v841
    %v843 = vand.u32 %v842, 4294901760
    %844 = vmatmul.mubr.f32.gmra.mrb[0].mxu0 %v843
    %v845 = vpop.f32.mrb[0].mxu0
    %v846 = vadd.f32 %v749, %v845
    %v847 = vpop.f32.mrb[0].mxu0
    %848 = vmatprep.mubr.f32.mxu0 0.0
    %v849 = vand.u32 %v34, 4294901760
    %v850 = vsub.f32 %v34, %v849
    %v851 = vand.u32 %v850, 4294901760
    %v852 = vsub.f32 %v850, %v851
    %v853 = vand.u32 %v852, 4294901760
    %854 = vmatmul.mubr.f32.gmra.mrb[0].mxu0 %v853
    %v855 = vpop.f32.mrb[0].mxu0
    %v856 = vadd.f32 %v755, %v855
    %v857 = vpop.f32.mrb[0].mxu0
    %858 = vdwg.mxu0
    %859 = vmatprep.subr.mxu0 0.0
    %v860 = vand.u32 %v35, 4294901760
    %v861 = vsub.f32 %v35, %v860
    %v862 = vand.u32 %v861, 4294901760
    %v863 = vsub.f32 %v861, %v862
    %v864 = vand.u32 %v863, 4294901760
    %865 = vmatpush1.msra.mxu0 %v864
    %866 = vmatprep.subr.mxu0 0.0
    %v867 = vand.u32 %v36, 4294901760
    %v868 = vsub.f32 %v36, %v867
    %v869 = vand.u32 %v868, 4294901760
    %v870 = vsub.f32 %v868, %v869
    %v871 = vand.u32 %v870, 4294901760
    %872 = vmatpush1.msra.mxu0 %v871
    %873 = vmatprep.subr.mxu0 0.0
    %v874 = vand.u32 %v37, 4294901760
    %v875 = vsub.f32 %v37, %v874
    %v876 = vand.u32 %v875, 4294901760
    %v877 = vsub.f32 %v875, %v876
    %v878 = vand.u32 %v877, 4294901760
    %879 = vmatpush1.msra.mxu0 %v878
    %880 = vmatprep.subr.mxu0 0.0
    %v881 = vand.u32 %v38, 4294901760
    %v882 = vsub.f32 %v38, %v881
    %v883 = vand.u32 %v882, 4294901760
    %v884 = vsub.f32 %v882, %v883
    %v885 = vand.u32 %v884, 4294901760
    %886 = vmatpush1.msra.mxu0 %v885
    %887 = vmatprep.subr.mxu0 0.0
    %v888 = vand.u32 %v39, 4294901760
    %v889 = vsub.f32 %v39, %v888
    %v890 = vand.u32 %v889, 4294901760
    %v891 = vsub.f32 %v889, %v890
    %v892 = vand.u32 %v891, 4294901760
    %893 = vmatpush1.msra.mxu0 %v892
    %894 = vmatprep.subr.mxu0 0.0
    %v895 = vand.u32 %v40, 4294901760
    %v896 = vsub.f32 %v40, %v895
    %v897 = vand.u32 %v896, 4294901760
    %v898 = vsub.f32 %v896, %v897
    %v899 = vand.u32 %v898, 4294901760
    %900 = vmatpush1.msra.mxu0 %v899
    %901 = vmatprep.subr.mxu0 0.0
    %v902 = vand.u32 %v41, 4294901760
    %v903 = vsub.f32 %v41, %v902
    %v904 = vand.u32 %v903, 4294901760
    %v905 = vsub.f32 %v903, %v904
    %v906 = vand.u32 %v905, 4294901760
    %907 = vmatpush1.msra.mxu0 %v906
    %908 = vmatprep.subr.mxu0 0.0
    %v909 = vand.u32 %v42, 4294901760
    %v910 = vsub.f32 %v42, %v909
    %v911 = vand.u32 %v910, 4294901760
    %v912 = vsub.f32 %v910, %v911
    %v913 = vand.u32 %v912, 4294901760
    %914 = vmatpush1.msra.mxu0 %v913
    %915 = vmatprep.subr.mxu0 0.0
    %v916 = vand.u32 %v43, 4294901760
    %v917 = vsub.f32 %v43, %v916
    %v918 = vand.u32 %v917, 4294901760
    %v919 = vsub.f32 %v917, %v918
    %v920 = vand.u32 %v919, 4294901760
    %921 = vmatpush1.msra.mxu0 %v920
    %922 = vmatprep.subr.mxu0 0.0
    %v923 = vand.u32 %v44, 4294901760
    %v924 = vsub.f32 %v44, %v923
    %v925 = vand.u32 %v924, 4294901760
    %v926 = vsub.f32 %v924, %v925
    %v927 = vand.u32 %v926, 4294901760
    %928 = vmatpush1.msra.mxu0 %v927
    %929 = vmatprep.subr.mxu0 0.0
    %v930 = vand.u32 %v45, 4294901760
    %v931 = vsub.f32 %v45, %v930
    %v932 = vand.u32 %v931, 4294901760
    %v933 = vsub.f32 %v931, %v932
    %v934 = vand.u32 %v933, 4294901760
    %935 = vmatpush1.msra.mxu0 %v934
    %936 = vmatprep.subr.mxu0 0.0
    %v937 = vand.u32 %v46, 4294901760
    %v938 = vsub.f32 %v46, %v937
    %v939 = vand.u32 %v938, 4294901760
    %v940 = vsub.f32 %v938, %v939
    %v941 = vand.u32 %v940, 4294901760
    %942 = vmatpush1.msra.mxu0 %v941
    %943 = vmatprep.subr.mxu0 0.0
    %v944 = vand.u32 %v47, 4294901760
    %v945 = vsub.f32 %v47, %v944
    %v946 = vand.u32 %v945, 4294901760
    %v947 = vsub.f32 %v945, %v946
    %v948 = vand.u32 %v947, 4294901760
    %949 = vmatpush1.msra.mxu0 %v948
    %950 = vmatprep.subr.mxu0 0.0
    %v951 = vand.u32 %v48, 4294901760
    %v952 = vsub.f32 %v48, %v951
    %v953 = vand.u32 %v952, 4294901760
    %v954 = vsub.f32 %v952, %v953
    %v955 = vand.u32 %v954, 4294901760
    %956 = vmatpush1.msra.mxu0 %v955
    %957 = vmatprep.subr.mxu0 0.0
    %v958 = vand.u32 %v49, 4294901760
    %v959 = vsub.f32 %v49, %v958
    %v960 = vand.u32 %v959, 4294901760
    %v961 = vsub.f32 %v959, %v960
    %v962 = vand.u32 %v961, 4294901760
    %963 = vmatpush1.msra.mxu0 %v962
    %964 = vmatprep.subr.mxu0 0.0
    %v965 = vand.u32 %v50, 4294901760
    %v966 = vsub.f32 %v50, %v965
    %v967 = vand.u32 %v966, 4294901760
    %v968 = vsub.f32 %v966, %v967
    %v969 = vand.u32 %v968, 4294901760
    %970 = vmatpush1.msra.mxu0 %v969
    %971 = vmatprep.subr.mxu0 0.0
    %972 = vmatpush1.msra.mxu0 0.0
    %973 = vmatprep.subr.mxu0 0.0
    %974 = vmatpush1.msra.mxu0 0.0
    %975 = vmatprep.subr.mxu0 0.0
    %976 = vmatpush1.msra.mxu0 0.0
    %977 = vmatprep.subr.mxu0 0.0
    %978 = vmatpush1.msra.mxu0 0.0
    %979 = vmatprep.subr.mxu0 0.0
    %980 = vmatpush1.msra.mxu0 0.0
    %981 = vmatprep.subr.mxu0 0.0
    %982 = vmatpush1.msra.mxu0 0.0
    %983 = vmatprep.subr.mxu0 0.0
    %984 = vmatpush1.msra.mxu0 0.0
    %985 = vmatprep.subr.mxu0 0.0
    %986 = vmatpush1.msra.mxu0 0.0
    %987 = vmatprep.subr.mxu0 0.0
    %988 = vmatpush1.msra.mxu0 0.0
    %989 = vmatprep.subr.mxu0 0.0
    %990 = vmatpush1.msra.mxu0 0.0
    %991 = vmatprep.subr.mxu0 0.0
    %992 = vmatpush1.msra.mxu0 0.0
    %993 = vmatprep.subr.mxu0 0.0
    %994 = vmatpush1.msra.mxu0 0.0
    %995 = vmatprep.subr.mxu0 0.0
    %996 = vmatpush1.msra.mxu0 0.0
    %997 = vmatprep.subr.mxu0 0.0
    %998 = vmatpush1.msra.mxu0 0.0
    %999 = vmatprep.subr.mxu0 0.0
    %1000 = vmatpush1.msra.mxu0 0.0
    %1001 = vmatprep.subr.mxu0 0.0
    %1002 = vmatpush1.msra.mxu0 0.0
    %1003 = vmatprep.mubr.f32.mxu0 0.0
    %v1004 = vand.u32 %v33, 4294901760
    %1005 = vmatmul.mubr.f32.gmra.mrb[0].mxu0 %v1004
    %v1006 = vpop.f32.mrb[0].mxu0
    %v1007 = vadd.f32 %v846, %v1006
    %v1008 = vpop.f32.mrb[0].mxu0
    %1009 = vmatprep.mubr.f32.mxu0 0.0
    %v1010 = vand.u32 %v34, 4294901760
    %1011 = vmatmul.mubr.f32.gmra.mrb[0].mxu0 %v1010
    %v1012 = vpop.f32.mrb[0].mxu0
    %v1013 = vadd.f32 %v856, %v1012
    %v1014 = vpop.f32.mrb[0].mxu0
    %1015 = vdwg.mxu0
    %1016 = vmatprep.subr.mxu0 0.0
    %v1017 = vand.u32 %v35, 4294901760
    %v1018 = vsub.f32 %v35, %v1017
    %1019 = vmatpush1.msra.mxu0 %v1018
    %1020 = vmatprep.subr.mxu0 0.0
    %v1021 = vand.u32 %v36, 4294901760
    %v1022 = vsub.f32 %v36, %v1021
    %1023 = vmatpush1.msra.mxu0 %v1022
    %1024 = vmatprep.subr.mxu0 0.0
    %v1025 = vand.u32 %v37, 4294901760
    %v1026 = vsub.f32 %v37, %v1025
    %1027 = vmatpush1.msra.mxu0 %v1026
    %1028 = vmatprep.subr.mxu0 0.0
    %v1029 = vand.u32 %v38, 4294901760
    %v1030 = vsub.f32 %v38, %v1029
    %1031 = vmatpush1.msra.mxu0 %v1030
    %1032 = vmatprep.subr.mxu0 0.0
    %v1033 = vand.u32 %v39, 4294901760
    %v1034 = vsub.f32 %v39, %v1033
    %1035 = vmatpush1.msra.mxu0 %v1034
    %1036 = vmatprep.subr.mxu0 0.0
    %v1037 = vand.u32 %v40, 4294901760
    %v1038 = vsub.f32 %v40, %v1037
    %1039 = vmatpush1.msra.mxu0 %v1038
    %1040 = vmatprep.subr.mxu0 0.0
    %v1041 = vand.u32 %v41, 4294901760
    %v1042 = vsub.f32 %v41, %v1041
    %1043 = vmatpush1.msra.mxu0 %v1042
    %1044 = vmatprep.subr.mxu0 0.0
    %v1045 = vand.u32 %v42, 4294901760
    %v1046 = vsub.f32 %v42, %v1045
    %1047 = vmatpush1.msra.mxu0 %v1046
    %1048 = vmatprep.subr.mxu0 0.0
    %v1049 = vand.u32 %v43, 4294901760
    %v1050 = vsub.f32 %v43, %v1049
    %1051 = vmatpush1.msra.mxu0 %v1050
    %1052 = vmatprep.subr.mxu0 0.0
    %v1053 = vand.u32 %v44, 4294901760
    %v1054 = vsub.f32 %v44, %v1053
    %1055 = vmatpush1.msra.mxu0 %v1054
    %1056 = vmatprep.subr.mxu0 0.0
    %v1057 = vand.u32 %v45, 4294901760
    %v1058 = vsub.f32 %v45, %v1057
    %1059 = vmatpush1.msra.mxu0 %v1058
    %1060 = vmatprep.subr.mxu0 0.0
    %v1061 = vand.u32 %v46, 4294901760
    %v1062 = vsub.f32 %v46, %v1061
    %1063 = vmatpush1.msra.mxu0 %v1062
    %1064 = vmatprep.subr.mxu0 0.0
    %v1065 = vand.u32 %v47, 4294901760
    %v1066 = vsub.f32 %v47, %v1065
    %1067 = vmatpush1.msra.mxu0 %v1066
    %1068 = vmatprep.subr.mxu0 0.0
    %v1069 = vand.u32 %v48, 4294901760
    %v1070 = vsub.f32 %v48, %v1069
    %1071 = vmatpush1.msra.mxu0 %v1070
    %1072 = vmatprep.subr.mxu0 0.0
    %v1073 = vand.u32 %v49, 4294901760
    %v1074 = vsub.f32 %v49, %v1073
    %1075 = vmatpush1.msra.mxu0 %v1074
    %1076 = vmatprep.subr.mxu0 0.0
    %v1077 = vand.u32 %v50, 4294901760
    %v1078 = vsub.f32 %v50, %v1077
    %1079 = vmatpush1.msra.mxu0 %v1078
    %1080 = vmatprep.subr.mxu0 0.0
    %1081 = vmatpush1.msra.mxu0 0.0
    %1082 = vmatprep.subr.mxu0 0.0
    %1083 = vmatpush1.msra.mxu0 0.0
    %1084 = vmatprep.subr.mxu0 0.0
    %1085 = vmatpush1.msra.mxu0 0.0
    %1086 = vmatprep.subr.mxu0 0.0
    %1087 = vmatpush1.msra.mxu0 0.0
    %1088 = vmatprep.subr.mxu0 0.0
    %1089 = vmatpush1.msra.mxu0 0.0
    %1090 = vmatprep.subr.mxu0 0.0
    %1091 = vmatpush1.msra.mxu0 0.0
    %1092 = vmatprep.subr.mxu0 0.0
    %1093 = vmatpush1.msra.mxu0 0.0
    %1094 = vmatprep.subr.mxu0 0.0
    %1095 = vmatpush1.msra.mxu0 0.0
    %1096 = vmatprep.subr.mxu0 0.0
    %1097 = vmatpush1.msra.mxu0 0.0
    %1098 = vmatprep.subr.mxu0 0.0
    %1099 = vmatpush1.msra.mxu0 0.0
    %1100 = vmatprep.subr.mxu0 0.0
    %1101 = vmatpush1.msra.mxu0 0.0
    %1102 = vmatprep.subr.mxu0 0.0
    %1103 = vmatpush1.msra.mxu0 0.0
    %1104 = vmatprep.subr.mxu0 0.0
    %1105 = vmatpush1.msra.mxu0 0.0
    %1106 = vmatprep.subr.mxu0 0.0
    %1107 = vmatpush1.msra.mxu0 0.0
    %1108 = vmatprep.subr.mxu0 0.0
    %1109 = vmatpush1.msra.mxu0 0.0
    %1110 = vmatprep.subr.mxu0 0.0
    %1111 = vmatpush1.msra.mxu0 0.0
    %1112 = vmatprep.mubr.f32.mxu0 0.0
    %v1113 = vand.u32 %v33, 4294901760
    %v1114 = vsub.f32 %v33, %v1113
    %1115 = vmatmul.mubr.f32.gmra.mrb[0].mxu0 %v1114
    %v1116 = vpop.f32.mrb[0].mxu0
    %v1117 = vadd.f32 %v1007, %v1116
    %v1118 = vpop.f32.mrb[0].mxu0
    %1119 = vmatprep.mubr.f32.mxu0 0.0
    %v1120 = vand.u32 %v34, 4294901760
    %v1121 = vsub.f32 %v34, %v1120
    %1122 = vmatmul.mubr.f32.gmra.mrb[0].mxu0 %v1121
    %v1123 = vpop.f32.mrb[0].mxu0
    %v1124 = vadd.f32 %v1013, %v1123
    %v1125 = vpop.f32.mrb[0].mxu0
    %1126 = vdwg.mxu0
    %1127 = vmatprep.subr.mxu0 0.0
    %v1128 = vand.u32 %v35, 4294901760
    %1129 = vmatpush1.msra.mxu0 %v1128
    %1130 = vmatprep.subr.mxu0 0.0
    %v1131 = vand.u32 %v36, 4294901760
    %1132 = vmatpush1.msra.mxu0 %v1131
    %1133 = vmatprep.subr.mxu0 0.0
    %v1134 = vand.u32 %v37, 4294901760
    %1135 = vmatpush1.msra.mxu0 %v1134
    %1136 = vmatprep.subr.mxu0 0.0
    %v1137 = vand.u32 %v38, 4294901760
    %1138 = vmatpush1.msra.mxu0 %v1137
    %1139 = vmatprep.subr.mxu0 0.0
    %v1140 = vand.u32 %v39, 4294901760
    %1141 = vmatpush1.msra.mxu0 %v1140
    %1142 = vmatprep.subr.mxu0 0.0
    %v1143 = vand.u32 %v40, 4294901760
    %1144 = vmatpush1.msra.mxu0 %v1143
    %1145 = vmatprep.subr.mxu0 0.0
    %v1146 = vand.u32 %v41, 4294901760
    %1147 = vmatpush1.msra.mxu0 %v1146
    %1148 = vmatprep.subr.mxu0 0.0
    %v1149 = vand.u32 %v42, 4294901760
    %1150 = vmatpush1.msra.mxu0 %v1149
    %1151 = vmatprep.subr.mxu0 0.0
    %v1152 = vand.u32 %v43, 4294901760
    %1153 = vmatpush1.msra.mxu0 %v1152
    %1154 = vmatprep.subr.mxu0 0.0
    %v1155 = vand.u32 %v44, 4294901760
    %1156 = vmatpush1.msra.mxu0 %v1155
    %1157 = vmatprep.subr.mxu0 0.0
    %v1158 = vand.u32 %v45, 4294901760
    %1159 = vmatpush1.msra.mxu0 %v1158
    %1160 = vmatprep.subr.mxu0 0.0
    %v1161 = vand.u32 %v46, 4294901760
    %1162 = vmatpush1.msra.mxu0 %v1161
    %1163 = vmatprep.subr.mxu0 0.0
    %v1164 = vand.u32 %v47, 4294901760
    %1165 = vmatpush1.msra.mxu0 %v1164
    %1166 = vmatprep.subr.mxu0 0.0
    %v1167 = vand.u32 %v48, 4294901760
    %1168 = vmatpush1.msra.mxu0 %v1167
    %1169 = vmatprep.subr.mxu0 0.0
    %v1170 = vand.u32 %v49, 4294901760
    %1171 = vmatpush1.msra.mxu0 %v1170
    %1172 = vmatprep.subr.mxu0 0.0
    %v1173 = vand.u32 %v50, 4294901760
    %1174 = vmatpush1.msra.mxu0 %v1173
    %1175 = vmatprep.subr.mxu0 0.0
    %1176 = vmatpush1.msra.mxu0 0.0
    %1177 = vmatprep.subr.mxu0 0.0
    %1178 = vmatpush1.msra.mxu0 0.0
    %1179 = vmatprep.subr.mxu0 0.0
    %1180 = vmatpush1.msra.mxu0 0.0
    %1181 = vmatprep.subr.mxu0 0.0
    %1182 = vmatpush1.msra.mxu0 0.0
    %1183 = vmatprep.subr.mxu0 0.0
    %1184 = vmatpush1.msra.mxu0 0.0
    %1185 = vmatprep.subr.mxu0 0.0
    %1186 = vmatpush1.msra.mxu0 0.0
    %1187 = vmatprep.subr.mxu0 0.0
    %1188 = vmatpush1.msra.mxu0 0.0
    %1189 = vmatprep.subr.mxu0 0.0
    %1190 = vmatpush1.msra.mxu0 0.0
    %1191 = vmatprep.subr.mxu0 0.0
    %1192 = vmatpush1.msra.mxu0 0.0
    %1193 = vmatprep.subr.mxu0 0.0
    %1194 = vmatpush1.msra.mxu0 0.0
    %1195 = vmatprep.subr.mxu0 0.0
    %1196 = vmatpush1.msra.mxu0 0.0
    %1197 = vmatprep.subr.mxu0 0.0
    %1198 = vmatpush1.msra.mxu0 0.0
    %1199 = vmatprep.subr.mxu0 0.0
    %1200 = vmatpush1.msra.mxu0 0.0
    %1201 = vmatprep.subr.mxu0 0.0
    %1202 = vmatpush1.msra.mxu0 0.0
    %1203 = vmatprep.subr.mxu0 0.0
    %1204 = vmatpush1.msra.mxu0 0.0
    %1205 = vmatprep.subr.mxu0 0.0
    %1206 = vmatpush1.msra.mxu0 0.0
    %1207 = vmatprep.mubr.f32.mxu0 0.0
    %v1208 = vand.u32 %v33, 4294901760
    %v1209 = vsub.f32 %v33, %v1208
    %v1210 = vand.u32 %v1209, 4294901760
    %1211 = vmatmul.mubr.f32.gmra.mrb[0].mxu0 %v1210
    %v1212 = vpop.f32.mrb[0].mxu0
    %v1213 = vadd.f32 %v1117, %v1212
    %v1214 = vpop.f32.mrb[0].mxu0
    %1215 = vmatprep.mubr.f32.mxu0 0.0
    %v1216 = vand.u32 %v34, 4294901760
    %v1217 = vsub.f32 %v34, %v1216
    %v1218 = vand.u32 %v1217, 4294901760
    %1219 = vmatmul.mubr.f32.gmra.mrb[0].mxu0 %v1218
    %v1220 = vpop.f32.mrb[0].mxu0
    %v1221 = vadd.f32 %v1124, %v1220
    %v1222 = vpop.f32.mrb[0].mxu0
    %1223 = vdwg.mxu0
    %1224 = vmatprep.subr.mxu0 0.0
    %v1225 = vand.u32 %v35, 4294901760
    %v1226 = vsub.f32 %v35, %v1225
    %v1227 = vand.u32 %v1226, 4294901760
    %1228 = vmatpush1.msra.mxu0 %v1227
    %1229 = vmatprep.subr.mxu0 0.0
    %v1230 = vand.u32 %v36, 4294901760
    %v1231 = vsub.f32 %v36, %v1230
    %v1232 = vand.u32 %v1231, 4294901760
    %1233 = vmatpush1.msra.mxu0 %v1232
    %1234 = vmatprep.subr.mxu0 0.0
    %v1235 = vand.u32 %v37, 4294901760
    %v1236 = vsub.f32 %v37, %v1235
    %v1237 = vand.u32 %v1236, 4294901760
    %1238 = vmatpush1.msra.mxu0 %v1237
    %1239 = vmatprep.subr.mxu0 0.0
    %v1240 = vand.u32 %v38, 4294901760
    %v1241 = vsub.f32 %v38, %v1240
    %v1242 = vand.u32 %v1241, 4294901760
    %1243 = vmatpush1.msra.mxu0 %v1242
    %1244 = vmatprep.subr.mxu0 0.0
    %v1245 = vand.u32 %v39, 4294901760
    %v1246 = vsub.f32 %v39, %v1245
    %v1247 = vand.u32 %v1246, 4294901760
    %1248 = vmatpush1.msra.mxu0 %v1247
    %1249 = vmatprep.subr.mxu0 0.0
    %v1250 = vand.u32 %v40, 4294901760
    %v1251 = vsub.f32 %v40, %v1250
    %v1252 = vand.u32 %v1251, 4294901760
    %1253 = vmatpush1.msra.mxu0 %v1252
    %1254 = vmatprep.subr.mxu0 0.0
    %v1255 = vand.u32 %v41, 4294901760
    %v1256 = vsub.f32 %v41, %v1255
    %v1257 = vand.u32 %v1256, 4294901760
    %1258 = vmatpush1.msra.mxu0 %v1257
    %1259 = vmatprep.subr.mxu0 0.0
    %v1260 = vand.u32 %v42, 4294901760
    %v1261 = vsub.f32 %v42, %v1260
    %v1262 = vand.u32 %v1261, 4294901760
    %1263 = vmatpush1.msra.mxu0 %v1262
    %1264 = vmatprep.subr.mxu0 0.0
    %v1265 = vand.u32 %v43, 4294901760
    %v1266 = vsub.f32 %v43, %v1265
    %v1267 = vand.u32 %v1266, 4294901760
    %1268 = vmatpush1.msra.mxu0 %v1267
    %1269 = vmatprep.subr.mxu0 0.0
    %v1270 = vand.u32 %v44, 4294901760
    %v1271 = vsub.f32 %v44, %v1270
    %v1272 = vand.u32 %v1271, 4294901760
    %1273 = vmatpush1.msra.mxu0 %v1272
    %1274 = vmatprep.subr.mxu0 0.0
    %v1275 = vand.u32 %v45, 4294901760
    %v1276 = vsub.f32 %v45, %v1275
    %v1277 = vand.u32 %v1276, 4294901760
    %1278 = vmatpush1.msra.mxu0 %v1277
    %1279 = vmatprep.subr.mxu0 0.0
    %v1280 = vand.u32 %v46, 4294901760
    %v1281 = vsub.f32 %v46, %v1280
    %v1282 = vand.u32 %v1281, 4294901760
    %1283 = vmatpush1.msra.mxu0 %v1282
    %1284 = vmatprep.subr.mxu0 0.0
    %v1285 = vand.u32 %v47, 4294901760
    %v1286 = vsub.f32 %v47, %v1285
    %v1287 = vand.u32 %v1286, 4294901760
    %1288 = vmatpush1.msra.mxu0 %v1287
    %1289 = vmatprep.subr.mxu0 0.0
    %v1290 = vand.u32 %v48, 4294901760
    %v1291 = vsub.f32 %v48, %v1290
    %v1292 = vand.u32 %v1291, 4294901760
    %1293 = vmatpush1.msra.mxu0 %v1292
    %1294 = vmatprep.subr.mxu0 0.0
    %v1295 = vand.u32 %v49, 4294901760
    %v1296 = vsub.f32 %v49, %v1295
    %v1297 = vand.u32 %v1296, 4294901760
    %1298 = vmatpush1.msra.mxu0 %v1297
    %1299 = vmatprep.subr.mxu0 0.0
    %v1300 = vand.u32 %v50, 4294901760
    %v1301 = vsub.f32 %v50, %v1300
    %v1302 = vand.u32 %v1301, 4294901760
    %1303 = vmatpush1.msra.mxu0 %v1302
    %1304 = vmatprep.subr.mxu0 0.0
    %1305 = vmatpush1.msra.mxu0 0.0
    %1306 = vmatprep.subr.mxu0 0.0
    %1307 = vmatpush1.msra.mxu0 0.0
    %1308 = vmatprep.subr.mxu0 0.0
    %1309 = vmatpush1.msra.mxu0 0.0
    %1310 = vmatprep.subr.mxu0 0.0
    %1311 = vmatpush1.msra.mxu0 0.0
    %1312 = vmatprep.subr.mxu0 0.0
    %1313 = vmatpush1.msra.mxu0 0.0
    %1314 = vmatprep.subr.mxu0 0.0
    %1315 = vmatpush1.msra.mxu0 0.0
    %1316 = vmatprep.subr.mxu0 0.0
    %1317 = vmatpush1.msra.mxu0 0.0
    %1318 = vmatprep.subr.mxu0 0.0
    %1319 = vmatpush1.msra.mxu0 0.0
    %1320 = vmatprep.subr.mxu0 0.0
    %1321 = vmatpush1.msra.mxu0 0.0
    %1322 = vmatprep.subr.mxu0 0.0
    %1323 = vmatpush1.msra.mxu0 0.0
    %1324 = vmatprep.subr.mxu0 0.0
    %1325 = vmatpush1.msra.mxu0 0.0
    %1326 = vmatprep.subr.mxu0 0.0
    %1327 = vmatpush1.msra.mxu0 0.0
    %1328 = vmatprep.subr.mxu0 0.0
    %1329 = vmatpush1.msra.mxu0 0.0
    %1330 = vmatprep.subr.mxu0 0.0
    %1331 = vmatpush1.msra.mxu0 0.0
    %1332 = vmatprep.subr.mxu0 0.0
    %1333 = vmatpush1.msra.mxu0 0.0
    %1334 = vmatprep.subr.mxu0 0.0
    %1335 = vmatpush1.msra.mxu0 0.0
    %1336 = vmatprep.mubr.f32.mxu0 0.0
    %v1337 = vand.u32 %v33, 4294901760
    %1338 = vmatmul.mubr.f32.gmra.mrb[0].mxu0 %v1337
    %v1339 = vpop.f32.mrb[0].mxu0
    %v1340 = vadd.f32 %v1213, %v1339
    %v1341 = vpop.f32.mrb[0].mxu0
    %1342 = vmatprep.mubr.f32.mxu0 0.0
    %v1343 = vand.u32 %v34, 4294901760
    %1344 = vmatmul.mubr.f32.gmra.mrb[0].mxu0 %v1343
    %v1345 = vpop.f32.mrb[0].mxu0
    %v1346 = vadd.f32 %v1221, %v1345
    %v1347 = vpop.f32.mrb[0].mxu0
    %1348 = vdwg.mxu0
    %1349 = vmatprep.subr.mxu0 0.0
    %v1350 = vand.u32 %v35, 4294901760
    %1351 = vmatpush1.msra.mxu0 %v1350
    %1352 = vmatprep.subr.mxu0 0.0
    %v1353 = vand.u32 %v36, 4294901760
    %1354 = vmatpush1.msra.mxu0 %v1353
    %1355 = vmatprep.subr.mxu0 0.0
    %v1356 = vand.u32 %v37, 4294901760
    %1357 = vmatpush1.msra.mxu0 %v1356
    %1358 = vmatprep.subr.mxu0 0.0
    %v1359 = vand.u32 %v38, 4294901760
    %1360 = vmatpush1.msra.mxu0 %v1359
    %1361 = vmatprep.subr.mxu0 0.0
    %v1362 = vand.u32 %v39, 4294901760
    %1363 = vmatpush1.msra.mxu0 %v1362
    %1364 = vmatprep.subr.mxu0 0.0
    %v1365 = vand.u32 %v40, 4294901760
    %1366 = vmatpush1.msra.mxu0 %v1365
    %1367 = vmatprep.subr.mxu0 0.0
    %v1368 = vand.u32 %v41, 4294901760
    %1369 = vmatpush1.msra.mxu0 %v1368
    %1370 = vmatprep.subr.mxu0 0.0
    %v1371 = vand.u32 %v42, 4294901760
    %1372 = vmatpush1.msra.mxu0 %v1371
    %1373 = vmatprep.subr.mxu0 0.0
    %v1374 = vand.u32 %v43, 4294901760
    %1375 = vmatpush1.msra.mxu0 %v1374
    %1376 = vmatprep.subr.mxu0 0.0
    %v1377 = vand.u32 %v44, 4294901760
    %1378 = vmatpush1.msra.mxu0 %v1377
    %1379 = vmatprep.subr.mxu0 0.0
    %v1380 = vand.u32 %v45, 4294901760
    %1381 = vmatpush1.msra.mxu0 %v1380
    %1382 = vmatprep.subr.mxu0 0.0
    %v1383 = vand.u32 %v46, 4294901760
    %1384 = vmatpush1.msra.mxu0 %v1383
    %1385 = vmatprep.subr.mxu0 0.0
    %v1386 = vand.u32 %v47, 4294901760
    %1387 = vmatpush1.msra.mxu0 %v1386
    %1388 = vmatprep.subr.mxu0 0.0
    %v1389 = vand.u32 %v48, 4294901760
    %1390 = vmatpush1.msra.mxu0 %v1389
    %1391 = vmatprep.subr.mxu0 0.0
    %v1392 = vand.u32 %v49, 4294901760
    %1393 = vmatpush1.msra.mxu0 %v1392
    %1394 = vmatprep.subr.mxu0 0.0
    %v1395 = vand.u32 %v50, 4294901760
    %1396 = vmatpush1.msra.mxu0 %v1395
    %1397 = vmatprep.subr.mxu0 0.0
    %1398 = vmatpush1.msra.mxu0 0.0
    %1399 = vmatprep.subr.mxu0 0.0
    %1400 = vmatpush1.msra.mxu0 0.0
    %1401 = vmatprep.subr.mxu0 0.0
    %1402 = vmatpush1.msra.mxu0 0.0
    %1403 = vmatprep.subr.mxu0 0.0
    %1404 = vmatpush1.msra.mxu0 0.0
    %1405 = vmatprep.subr.mxu0 0.0
    %1406 = vmatpush1.msra.mxu0 0.0
    %1407 = vmatprep.subr.mxu0 0.0
    %1408 = vmatpush1.msra.mxu0 0.0
    %1409 = vmatprep.subr.mxu0 0.0
    %1410 = vmatpush1.msra.mxu0 0.0
    %1411 = vmatprep.subr.mxu0 0.0
    %1412 = vmatpush1.msra.mxu0 0.0
    %1413 = vmatprep.subr.mxu0 0.0
    %1414 = vmatpush1.msra.mxu0 0.0
    %1415 = vmatprep.subr.mxu0 0.0
    %1416 = vmatpush1.msra.mxu0 0.0
    %1417 = vmatprep.subr.mxu0 0.0
    %1418 = vmatpush1.msra.mxu0 0.0
    %1419 = vmatprep.subr.mxu0 0.0
    %1420 = vmatpush1.msra.mxu0 0.0
    %1421 = vmatprep.subr.mxu0 0.0
    %1422 = vmatpush1.msra.mxu0 0.0
    %1423 = vmatprep.subr.mxu0 0.0
    %1424 = vmatpush1.msra.mxu0 0.0
    %1425 = vmatprep.subr.mxu0 0.0
    %1426 = vmatpush1.msra.mxu0 0.0
    %1427 = vmatprep.subr.mxu0 0.0
    %1428 = vmatpush1.msra.mxu0 0.0
    %1429 = vmatprep.mubr.f32.mxu0 0.0
    %v1430 = vand.u32 %v33, 4294901760
    %1431 = vmatmul.mubr.f32.gmra.mrb[0].mxu0 %v1430
    %v1432 = vpop.f32.mrb[0].mxu0
    %v1433 = vadd.f32 %v1340, %v1432
    %v1434 = vpop.f32.mrb[0].mxu0
    %1435 = vmatprep.mubr.f32.mxu0 0.0
    %v1436 = vand.u32 %v34, 4294901760
    %1437 = vmatmul.mubr.f32.gmra.mrb[0].mxu0 %v1436
    %v1438 = vpop.f32.mrb[0].mxu0
    %v1439 = vadd.f32 %v1346, %v1438
    %v1440 = vpop.f32.mrb[0].mxu0
    %1441 = vdwg.mxu0
    %1442 = vrot.lane.b32.xlu0 %v29, 64
    %v1443 = vpop.permute.xlu0 %1442
    %1444 = vrot.lane.b32.xlu0 %v30, 64
    %v1445 = vpop.permute.xlu0 %1444
    %v1446 = vmul.f32 %v27, %v1443
    %v1447 = vmul.f32 %v28, %v1445
    %s1448 = scalar_lea.vmem %s3, 256
    %v1449 = vld [vmem:[%s1448] sm:$0xff]
    %v1450 = vld [vmem:[%s1448 + $0x8] sm:$0xff]
    %v1451 = vld [vmem:[%s1448 + $0x10] sm:$0xff]
    %v1452 = vld [vmem:[%s1448 + $0x18] sm:$0xff]
    %v1453 = vld [vmem:[%s1448 + $0x20] sm:$0xff]
    %v1454 = vld [vmem:[%s1448 + $0x28] sm:$0xff]
    %v1455 = vld [vmem:[%s1448 + $0x30] sm:$0xff]
    %v1456 = vld [vmem:[%s1448 + $0x38] sm:$0xff]
    %v1457 = vld [vmem:[%s1448 + $0x40] sm:$0xff]
    %v1458 = vld [vmem:[%s1448 + $0x48] sm:$0xff]
    %v1459 = vld [vmem:[%s1448 + $0x50] sm:$0xff]
    %v1460 = vld [vmem:[%s1448 + $0x58] sm:$0xff]
    %v1461 = vld [vmem:[%s1448 + $0x60] sm:$0xff]
    %v1462 = vld [vmem:[%s1448 + $0x68] sm:$0xff]
    %v1463 = vld [vmem:[%s1448 + $0x70] sm:$0xff]
    %v1464 = vld [vmem:[%s1448 + $0x78] sm:$0xff]
    %1465 = vmatprep.subr.mxu0 0.0
    %v1466 = vand.u32 %v1449, 4294901760
    %1467 = vmatpush1.msra.mxu0 %v1466
    %1468 = vmatprep.subr.mxu0 0.0
    %v1469 = vand.u32 %v1450, 4294901760
    %1470 = vmatpush1.msra.mxu0 %v1469
    %1471 = vmatprep.subr.mxu0 0.0
    %v1472 = vand.u32 %v1451, 4294901760
    %1473 = vmatpush1.msra.mxu0 %v1472
    %1474 = vmatprep.subr.mxu0 0.0
    %v1475 = vand.u32 %v1452, 4294901760
    %1476 = vmatpush1.msra.mxu0 %v1475
    %1477 = vmatprep.subr.mxu0 0.0
    %v1478 = vand.u32 %v1453, 4294901760
    %1479 = vmatpush1.msra.mxu0 %v1478
    %1480 = vmatprep.subr.mxu0 0.0
    %v1481 = vand.u32 %v1454, 4294901760
    %1482 = vmatpush1.msra.mxu0 %v1481
    %1483 = vmatprep.subr.mxu0 0.0
    %v1484 = vand.u32 %v1455, 4294901760
    %1485 = vmatpush1.msra.mxu0 %v1484
    %1486 = vmatprep.subr.mxu0 0.0
    %v1487 = vand.u32 %v1456, 4294901760
    %1488 = vmatpush1.msra.mxu0 %v1487
    %1489 = vmatprep.subr.mxu0 0.0
    %v1490 = vand.u32 %v1457, 4294901760
    %1491 = vmatpush1.msra.mxu0 %v1490
    %1492 = vmatprep.subr.mxu0 0.0
    %v1493 = vand.u32 %v1458, 4294901760
    %1494 = vmatpush1.msra.mxu0 %v1493
    %1495 = vmatprep.subr.mxu0 0.0
    %v1496 = vand.u32 %v1459, 4294901760
    %1497 = vmatpush1.msra.mxu0 %v1496
    %1498 = vmatprep.subr.mxu0 0.0
    %v1499 = vand.u32 %v1460, 4294901760
    %1500 = vmatpush1.msra.mxu0 %v1499
    %1501 = vmatprep.subr.mxu0 0.0
    %v1502 = vand.u32 %v1461, 4294901760
    %1503 = vmatpush1.msra.mxu0 %v1502
    %1504 = vmatprep.subr.mxu0 0.0
    %v1505 = vand.u32 %v1462, 4294901760
    %1506 = vmatpush1.msra.mxu0 %v1505
    %1507 = vmatprep.subr.mxu0 0.0
    %v1508 = vand.u32 %v1463, 4294901760
    %1509 = vmatpush1.msra.mxu0 %v1508
    %1510 = vmatprep.subr.mxu0 0.0
    %v1511 = vand.u32 %v1464, 4294901760
    %1512 = vmatpush1.msra.mxu0 %v1511
    %1513 = vmatprep.subr.mxu0 0.0
    %1514 = vmatpush1.msra.mxu0 0.0
    %1515 = vmatprep.subr.mxu0 0.0
    %1516 = vmatpush1.msra.mxu0 0.0
    %1517 = vmatprep.subr.mxu0 0.0
    %1518 = vmatpush1.msra.mxu0 0.0
    %1519 = vmatprep.subr.mxu0 0.0
    %1520 = vmatpush1.msra.mxu0 0.0
    %1521 = vmatprep.subr.mxu0 0.0
    %1522 = vmatpush1.msra.mxu0 0.0
    %1523 = vmatprep.subr.mxu0 0.0
    %1524 = vmatpush1.msra.mxu0 0.0
    %1525 = vmatprep.subr.mxu0 0.0
    %1526 = vmatpush1.msra.mxu0 0.0
    %1527 = vmatprep.subr.mxu0 0.0
    %1528 = vmatpush1.msra.mxu0 0.0
    %1529 = vmatprep.subr.mxu0 0.0
    %1530 = vmatpush1.msra.mxu0 0.0
    %1531 = vmatprep.subr.mxu0 0.0
    %1532 = vmatpush1.msra.mxu0 0.0
    %1533 = vmatprep.subr.mxu0 0.0
    %1534 = vmatpush1.msra.mxu0 0.0
    %1535 = vmatprep.subr.mxu0 0.0
    %1536 = vmatpush1.msra.mxu0 0.0
    %1537 = vmatprep.subr.mxu0 0.0
    %1538 = vmatpush1.msra.mxu0 0.0
    %1539 = vmatprep.subr.mxu0 0.0
    %1540 = vmatpush1.msra.mxu0 0.0
    %1541 = vmatprep.subr.mxu0 0.0
    %1542 = vmatpush1.msra.mxu0 0.0
    %1543 = vmatprep.subr.mxu0 0.0
    %1544 = vmatpush1.msra.mxu0 0.0
    %1545 = vmatprep.mubr.f32.mxu0 0.0
    %v1546 = vand.u32 %v1446, 4294901760
    %v1547 = vsub.f32 %v1446, %v1546
    %v1548 = vand.u32 %v1547, 4294901760
    %v1549 = vsub.f32 %v1547, %v1548
    %v1550 = vand.u32 %v1549, 4294901760
    %1551 = vmatmul.mubr.f32.gmra.mrb[0].mxu0 %v1550
    %v1552 = vpop.f32.mrb[0].mxu0
    %v1553 = vadd.f32 0.0, %v1552
    %v1554 = vpop.f32.mrb[0].mxu0
    %1555 = vmatprep.mubr.f32.mxu0 0.0
    %v1556 = vand.u32 %v1447, 4294901760
    %v1557 = vsub.f32 %v1447, %v1556
    %v1558 = vand.u32 %v1557, 4294901760
    %v1559 = vsub.f32 %v1557, %v1558
    %v1560 = vand.u32 %v1559, 4294901760
    %1561 = vmatmul.mubr.f32.gmra.mrb[0].mxu0 %v1560
    %v1562 = vpop.f32.mrb[0].mxu0
    %v1563 = vadd.f32 0.0, %v1562
    %v1564 = vpop.f32.mrb[0].mxu0
    %1565 = vdwg.mxu0
    %1566 = vmatprep.subr.mxu0 0.0
    %v1567 = vand.u32 %v1449, 4294901760
    %v1568 = vsub.f32 %v1449, %v1567
    %v1569 = vand.u32 %v1568, 4294901760
    %v1570 = vsub.f32 %v1568, %v1569
    %v1571 = vand.u32 %v1570, 4294901760
    %1572 = vmatpush1.msra.mxu0 %v1571
    %1573 = vmatprep.subr.mxu0 0.0
    %v1574 = vand.u32 %v1450, 4294901760
    %v1575 = vsub.f32 %v1450, %v1574
    %v1576 = vand.u32 %v1575, 4294901760
    %v1577 = vsub.f32 %v1575, %v1576
    %v1578 = vand.u32 %v1577, 4294901760
    %1579 = vmatpush1.msra.mxu0 %v1578
    %1580 = vmatprep.subr.mxu0 0.0
    %v1581 = vand.u32 %v1451, 4294901760
    %v1582 = vsub.f32 %v1451, %v1581
    %v1583 = vand.u32 %v1582, 4294901760
    %v1584 = vsub.f32 %v1582, %v1583
    %v1585 = vand.u32 %v1584, 4294901760
    %1586 = vmatpush1.msra.mxu0 %v1585
    %1587 = vmatprep.subr.mxu0 0.0
    %v1588 = vand.u32 %v1452, 4294901760
    %v1589 = vsub.f32 %v1452, %v1588
    %v1590 = vand.u32 %v1589, 4294901760
    %v1591 = vsub.f32 %v1589, %v1590
    %v1592 = vand.u32 %v1591, 4294901760
    %1593 = vmatpush1.msra.mxu0 %v1592
    %1594 = vmatprep.subr.mxu0 0.0
    %v1595 = vand.u32 %v1453, 4294901760
    %v1596 = vsub.f32 %v1453, %v1595
    %v1597 = vand.u32 %v1596, 4294901760
    %v1598 = vsub.f32 %v1596, %v1597
    %v1599 = vand.u32 %v1598, 4294901760
    %1600 = vmatpush1.msra.mxu0 %v1599
    %1601 = vmatprep.subr.mxu0 0.0
    %v1602 = vand.u32 %v1454, 4294901760
    %v1603 = vsub.f32 %v1454, %v1602
    %v1604 = vand.u32 %v1603, 4294901760
    %v1605 = vsub.f32 %v1603, %v1604
    %v1606 = vand.u32 %v1605, 4294901760
    %1607 = vmatpush1.msra.mxu0 %v1606
    %1608 = vmatprep.subr.mxu0 0.0
    %v1609 = vand.u32 %v1455, 4294901760
    %v1610 = vsub.f32 %v1455, %v1609
    %v1611 = vand.u32 %v1610, 4294901760
    %v1612 = vsub.f32 %v1610, %v1611
    %v1613 = vand.u32 %v1612, 4294901760
    %1614 = vmatpush1.msra.mxu0 %v1613
    %1615 = vmatprep.subr.mxu0 0.0
    %v1616 = vand.u32 %v1456, 4294901760
    %v1617 = vsub.f32 %v1456, %v1616
    %v1618 = vand.u32 %v1617, 4294901760
    %v1619 = vsub.f32 %v1617, %v1618
    %v1620 = vand.u32 %v1619, 4294901760
    %1621 = vmatpush1.msra.mxu0 %v1620
    %1622 = vmatprep.subr.mxu0 0.0
    %v1623 = vand.u32 %v1457, 4294901760
    %v1624 = vsub.f32 %v1457, %v1623
    %v1625 = vand.u32 %v1624, 4294901760
    %v1626 = vsub.f32 %v1624, %v1625
    %v1627 = vand.u32 %v1626, 4294901760
    %1628 = vmatpush1.msra.mxu0 %v1627
    %1629 = vmatprep.subr.mxu0 0.0
    %v1630 = vand.u32 %v1458, 4294901760
    %v1631 = vsub.f32 %v1458, %v1630
    %v1632 = vand.u32 %v1631, 4294901760
    %v1633 = vsub.f32 %v1631, %v1632
    %v1634 = vand.u32 %v1633, 4294901760
    %1635 = vmatpush1.msra.mxu0 %v1634
    %1636 = vmatprep.subr.mxu0 0.0
    %v1637 = vand.u32 %v1459, 4294901760
    %v1638 = vsub.f32 %v1459, %v1637
    %v1639 = vand.u32 %v1638, 4294901760
    %v1640 = vsub.f32 %v1638, %v1639
    %v1641 = vand.u32 %v1640, 4294901760
    %1642 = vmatpush1.msra.mxu0 %v1641
    %1643 = vmatprep.subr.mxu0 0.0
    %v1644 = vand.u32 %v1460, 4294901760
    %v1645 = vsub.f32 %v1460, %v1644
    %v1646 = vand.u32 %v1645, 4294901760
    %v1647 = vsub.f32 %v1645, %v1646
    %v1648 = vand.u32 %v1647, 4294901760
    %1649 = vmatpush1.msra.mxu0 %v1648
    %1650 = vmatprep.subr.mxu0 0.0
    %v1651 = vand.u32 %v1461, 4294901760
    %v1652 = vsub.f32 %v1461, %v1651
    %v1653 = vand.u32 %v1652, 4294901760
    %v1654 = vsub.f32 %v1652, %v1653
    %v1655 = vand.u32 %v1654, 4294901760
    %1656 = vmatpush1.msra.mxu0 %v1655
    %1657 = vmatprep.subr.mxu0 0.0
    %v1658 = vand.u32 %v1462, 4294901760
    %v1659 = vsub.f32 %v1462, %v1658
    %v1660 = vand.u32 %v1659, 4294901760
    %v1661 = vsub.f32 %v1659, %v1660
    %v1662 = vand.u32 %v1661, 4294901760
    %1663 = vmatpush1.msra.mxu0 %v1662
    %1664 = vmatprep.subr.mxu0 0.0
    %v1665 = vand.u32 %v1463, 4294901760
    %v1666 = vsub.f32 %v1463, %v1665
    %v1667 = vand.u32 %v1666, 4294901760
    %v1668 = vsub.f32 %v1666, %v1667
    %v1669 = vand.u32 %v1668, 4294901760
    %1670 = vmatpush1.msra.mxu0 %v1669
    %1671 = vmatprep.subr.mxu0 0.0
    %v1672 = vand.u32 %v1464, 4294901760
    %v1673 = vsub.f32 %v1464, %v1672
    %v1674 = vand.u32 %v1673, 4294901760
    %v1675 = vsub.f32 %v1673, %v1674
    %v1676 = vand.u32 %v1675, 4294901760
    %1677 = vmatpush1.msra.mxu0 %v1676
    %1678 = vmatprep.subr.mxu0 0.0
    %1679 = vmatpush1.msra.mxu0 0.0
    %1680 = vmatprep.subr.mxu0 0.0
    %1681 = vmatpush1.msra.mxu0 0.0
    %1682 = vmatprep.subr.mxu0 0.0
    %1683 = vmatpush1.msra.mxu0 0.0
    %1684 = vmatprep.subr.mxu0 0.0
    %1685 = vmatpush1.msra.mxu0 0.0
    %1686 = vmatprep.subr.mxu0 0.0
    %1687 = vmatpush1.msra.mxu0 0.0
    %1688 = vmatprep.subr.mxu0 0.0
    %1689 = vmatpush1.msra.mxu0 0.0
    %1690 = vmatprep.subr.mxu0 0.0
    %1691 = vmatpush1.msra.mxu0 0.0
    %1692 = vmatprep.subr.mxu0 0.0
    %1693 = vmatpush1.msra.mxu0 0.0
    %1694 = vmatprep.subr.mxu0 0.0
    %1695 = vmatpush1.msra.mxu0 0.0
    %1696 = vmatprep.subr.mxu0 0.0
    %1697 = vmatpush1.msra.mxu0 0.0
    %1698 = vmatprep.subr.mxu0 0.0
    %1699 = vmatpush1.msra.mxu0 0.0
    %1700 = vmatprep.subr.mxu0 0.0
    %1701 = vmatpush1.msra.mxu0 0.0
    %1702 = vmatprep.subr.mxu0 0.0
    %1703 = vmatpush1.msra.mxu0 0.0
    %1704 = vmatprep.subr.mxu0 0.0
    %1705 = vmatpush1.msra.mxu0 0.0
    %1706 = vmatprep.subr.mxu0 0.0
    %1707 = vmatpush1.msra.mxu0 0.0
    %1708 = vmatprep.subr.mxu0 0.0
    %1709 = vmatpush1.msra.mxu0 0.0
    %1710 = vmatprep.mubr.f32.mxu0 0.0
    %v1711 = vand.u32 %v1446, 4294901760
    %1712 = vmatmul.mubr.f32.gmra.mrb[0].mxu0 %v1711
    %v1713 = vpop.f32.mrb[0].mxu0
    %v1714 = vadd.f32 %v1553, %v1713
    %v1715 = vpop.f32.mrb[0].mxu0
    %1716 = vmatprep.mubr.f32.mxu0 0.0
    %v1717 = vand.u32 %v1447, 4294901760
    %1718 = vmatmul.mubr.f32.gmra.mrb[0].mxu0 %v1717
    %v1719 = vpop.f32.mrb[0].mxu0
    %v1720 = vadd.f32 %v1563, %v1719
    %v1721 = vpop.f32.mrb[0].mxu0
    %1722 = vdwg.mxu0
    %1723 = vmatprep.subr.mxu0 0.0
    %v1724 = vand.u32 %v1449, 4294901760
    %v1725 = vsub.f32 %v1449, %v1724
    %1726 = vmatpush1.msra.mxu0 %v1725
    %1727 = vmatprep.subr.mxu0 0.0
    %v1728 = vand.u32 %v1450, 4294901760
    %v1729 = vsub.f32 %v1450, %v1728
    %1730 = vmatpush1.msra.mxu0 %v1729
    %1731 = vmatprep.subr.mxu0 0.0
    %v1732 = vand.u32 %v1451, 4294901760
    %v1733 = vsub.f32 %v1451, %v1732
    %1734 = vmatpush1.msra.mxu0 %v1733
    %1735 = vmatprep.subr.mxu0 0.0
    %v1736 = vand.u32 %v1452, 4294901760
    %v1737 = vsub.f32 %v1452, %v1736
    %1738 = vmatpush1.msra.mxu0 %v1737
    %1739 = vmatprep.subr.mxu0 0.0
    %v1740 = vand.u32 %v1453, 4294901760
    %v1741 = vsub.f32 %v1453, %v1740
    %1742 = vmatpush1.msra.mxu0 %v1741
    %1743 = vmatprep.subr.mxu0 0.0
    %v1744 = vand.u32 %v1454, 4294901760
    %v1745 = vsub.f32 %v1454, %v1744
    %1746 = vmatpush1.msra.mxu0 %v1745
    %1747 = vmatprep.subr.mxu0 0.0
    %v1748 = vand.u32 %v1455, 4294901760
    %v1749 = vsub.f32 %v1455, %v1748
    %1750 = vmatpush1.msra.mxu0 %v1749
    %1751 = vmatprep.subr.mxu0 0.0
    %v1752 = vand.u32 %v1456, 4294901760
    %v1753 = vsub.f32 %v1456, %v1752
    %1754 = vmatpush1.msra.mxu0 %v1753
    %1755 = vmatprep.subr.mxu0 0.0
    %v1756 = vand.u32 %v1457, 4294901760
    %v1757 = vsub.f32 %v1457, %v1756
    %1758 = vmatpush1.msra.mxu0 %v1757
    %1759 = vmatprep.subr.mxu0 0.0
    %v1760 = vand.u32 %v1458, 4294901760
    %v1761 = vsub.f32 %v1458, %v1760
    %1762 = vmatpush1.msra.mxu0 %v1761
    %1763 = vmatprep.subr.mxu0 0.0
    %v1764 = vand.u32 %v1459, 4294901760
    %v1765 = vsub.f32 %v1459, %v1764
    %1766 = vmatpush1.msra.mxu0 %v1765
    %1767 = vmatprep.subr.mxu0 0.0
    %v1768 = vand.u32 %v1460, 4294901760
    %v1769 = vsub.f32 %v1460, %v1768
    %1770 = vmatpush1.msra.mxu0 %v1769
    %1771 = vmatprep.subr.mxu0 0.0
    %v1772 = vand.u32 %v1461, 4294901760
    %v1773 = vsub.f32 %v1461, %v1772
    %1774 = vmatpush1.msra.mxu0 %v1773
    %1775 = vmatprep.subr.mxu0 0.0
    %v1776 = vand.u32 %v1462, 4294901760
    %v1777 = vsub.f32 %v1462, %v1776
    %1778 = vmatpush1.msra.mxu0 %v1777
    %1779 = vmatprep.subr.mxu0 0.0
    %v1780 = vand.u32 %v1463, 4294901760
    %v1781 = vsub.f32 %v1463, %v1780
    %1782 = vmatpush1.msra.mxu0 %v1781
    %1783 = vmatprep.subr.mxu0 0.0
    %v1784 = vand.u32 %v1464, 4294901760
    %v1785 = vsub.f32 %v1464, %v1784
    %1786 = vmatpush1.msra.mxu0 %v1785
    %1787 = vmatprep.subr.mxu0 0.0
    %1788 = vmatpush1.msra.mxu0 0.0
    %1789 = vmatprep.subr.mxu0 0.0
    %1790 = vmatpush1.msra.mxu0 0.0
    %1791 = vmatprep.subr.mxu0 0.0
    %1792 = vmatpush1.msra.mxu0 0.0
    %1793 = vmatprep.subr.mxu0 0.0
    %1794 = vmatpush1.msra.mxu0 0.0
    %1795 = vmatprep.subr.mxu0 0.0
    %1796 = vmatpush1.msra.mxu0 0.0
    %1797 = vmatprep.subr.mxu0 0.0
    %1798 = vmatpush1.msra.mxu0 0.0
    %1799 = vmatprep.subr.mxu0 0.0
    %1800 = vmatpush1.msra.mxu0 0.0
    %1801 = vmatprep.subr.mxu0 0.0
    %1802 = vmatpush1.msra.mxu0 0.0
    %1803 = vmatprep.subr.mxu0 0.0
    %1804 = vmatpush1.msra.mxu0 0.0
    %1805 = vmatprep.subr.mxu0 0.0
    %1806 = vmatpush1.msra.mxu0 0.0
    %1807 = vmatprep.subr.mxu0 0.0
    %1808 = vmatpush1.msra.mxu0 0.0
    %1809 = vmatprep.subr.mxu0 0.0
    %1810 = vmatpush1.msra.mxu0 0.0
    %1811 = vmatprep.subr.mxu0 0.0
    %1812 = vmatpush1.msra.mxu0 0.0
    %1813 = vmatprep.subr.mxu0 0.0
    %1814 = vmatpush1.msra.mxu0 0.0
    %1815 = vmatprep.subr.mxu0 0.0
    %1816 = vmatpush1.msra.mxu0 0.0
    %1817 = vmatprep.subr.mxu0 0.0
    %1818 = vmatpush1.msra.mxu0 0.0
    %1819 = vmatprep.mubr.f32.mxu0 0.0
    %v1820 = vand.u32 %v1446, 4294901760
    %v1821 = vsub.f32 %v1446, %v1820
    %1822 = vmatmul.mubr.f32.gmra.mrb[0].mxu0 %v1821
    %v1823 = vpop.f32.mrb[0].mxu0
    %v1824 = vadd.f32 %v1714, %v1823
    %v1825 = vpop.f32.mrb[0].mxu0
    %1826 = vmatprep.mubr.f32.mxu0 0.0
    %v1827 = vand.u32 %v1447, 4294901760
    %v1828 = vsub.f32 %v1447, %v1827
    %1829 = vmatmul.mubr.f32.gmra.mrb[0].mxu0 %v1828
    %v1830 = vpop.f32.mrb[0].mxu0
    %v1831 = vadd.f32 %v1720, %v1830
    %v1832 = vpop.f32.mrb[0].mxu0
    %1833 = vdwg.mxu0
    %1834 = vmatprep.subr.mxu0 0.0
    %v1835 = vand.u32 %v1449, 4294901760
    %1836 = vmatpush1.msra.mxu0 %v1835
    %1837 = vmatprep.subr.mxu0 0.0
    %v1838 = vand.u32 %v1450, 4294901760
    %1839 = vmatpush1.msra.mxu0 %v1838
    %1840 = vmatprep.subr.mxu0 0.0
    %v1841 = vand.u32 %v1451, 4294901760
    %1842 = vmatpush1.msra.mxu0 %v1841
    %1843 = vmatprep.subr.mxu0 0.0
    %v1844 = vand.u32 %v1452, 4294901760
    %1845 = vmatpush1.msra.mxu0 %v1844
    %1846 = vmatprep.subr.mxu0 0.0
    %v1847 = vand.u32 %v1453, 4294901760
    %1848 = vmatpush1.msra.mxu0 %v1847
    %1849 = vmatprep.subr.mxu0 0.0
    %v1850 = vand.u32 %v1454, 4294901760
    %1851 = vmatpush1.msra.mxu0 %v1850
    %1852 = vmatprep.subr.mxu0 0.0
    %v1853 = vand.u32 %v1455, 4294901760
    %1854 = vmatpush1.msra.mxu0 %v1853
    %1855 = vmatprep.subr.mxu0 0.0
    %v1856 = vand.u32 %v1456, 4294901760
    %1857 = vmatpush1.msra.mxu0 %v1856
    %1858 = vmatprep.subr.mxu0 0.0
    %v1859 = vand.u32 %v1457, 4294901760
    %1860 = vmatpush1.msra.mxu0 %v1859
    %1861 = vmatprep.subr.mxu0 0.0
    %v1862 = vand.u32 %v1458, 4294901760
    %1863 = vmatpush1.msra.mxu0 %v1862
    %1864 = vmatprep.subr.mxu0 0.0
    %v1865 = vand.u32 %v1459, 4294901760
    %1866 = vmatpush1.msra.mxu0 %v1865
    %1867 = vmatprep.subr.mxu0 0.0
    %v1868 = vand.u32 %v1460, 4294901760
    %1869 = vmatpush1.msra.mxu0 %v1868
    %1870 = vmatprep.subr.mxu0 0.0
    %v1871 = vand.u32 %v1461, 4294901760
    %1872 = vmatpush1.msra.mxu0 %v1871
    %1873 = vmatprep.subr.mxu0 0.0
    %v1874 = vand.u32 %v1462, 4294901760
    %1875 = vmatpush1.msra.mxu0 %v1874
    %1876 = vmatprep.subr.mxu0 0.0
    %v1877 = vand.u32 %v1463, 4294901760
    %1878 = vmatpush1.msra.mxu0 %v1877
    %1879 = vmatprep.subr.mxu0 0.0
    %v1880 = vand.u32 %v1464, 4294901760
    %1881 = vmatpush1.msra.mxu0 %v1880
    %1882 = vmatprep.subr.mxu0 0.0
    %1883 = vmatpush1.msra.mxu0 0.0
    %1884 = vmatprep.subr.mxu0 0.0
    %1885 = vmatpush1.msra.mxu0 0.0
    %1886 = vmatprep.subr.mxu0 0.0
    %1887 = vmatpush1.msra.mxu0 0.0
    %1888 = vmatprep.subr.mxu0 0.0
    %1889 = vmatpush1.msra.mxu0 0.0
    %1890 = vmatprep.subr.mxu0 0.0
    %1891 = vmatpush1.msra.mxu0 0.0
    %1892 = vmatprep.subr.mxu0 0.0
    %1893 = vmatpush1.msra.mxu0 0.0
    %1894 = vmatprep.subr.mxu0 0.0
    %1895 = vmatpush1.msra.mxu0 0.0
    %1896 = vmatprep.subr.mxu0 0.0
    %1897 = vmatpush1.msra.mxu0 0.0
    %1898 = vmatprep.subr.mxu0 0.0
    %1899 = vmatpush1.msra.mxu0 0.0
    %1900 = vmatprep.subr.mxu0 0.0
    %1901 = vmatpush1.msra.mxu0 0.0
    %1902 = vmatprep.subr.mxu0 0.0
    %1903 = vmatpush1.msra.mxu0 0.0
    %1904 = vmatprep.subr.mxu0 0.0
    %1905 = vmatpush1.msra.mxu0 0.0
    %1906 = vmatprep.subr.mxu0 0.0
    %1907 = vmatpush1.msra.mxu0 0.0
    %1908 = vmatprep.subr.mxu0 0.0
    %1909 = vmatpush1.msra.mxu0 0.0
    %1910 = vmatprep.subr.mxu0 0.0
    %1911 = vmatpush1.msra.mxu0 0.0
    %1912 = vmatprep.subr.mxu0 0.0
    %1913 = vmatpush1.msra.mxu0 0.0
    %1914 = vmatprep.mubr.f32.mxu0 0.0
    %v1915 = vand.u32 %v1446, 4294901760
    %v1916 = vsub.f32 %v1446, %v1915
    %v1917 = vand.u32 %v1916, 4294901760
    %1918 = vmatmul.mubr.f32.gmra.mrb[0].mxu0 %v1917
    %v1919 = vpop.f32.mrb[0].mxu0
    %v1920 = vadd.f32 %v1824, %v1919
    %v1921 = vpop.f32.mrb[0].mxu0
    %1922 = vmatprep.mubr.f32.mxu0 0.0
    %v1923 = vand.u32 %v1447, 4294901760
    %v1924 = vsub.f32 %v1447, %v1923
    %v1925 = vand.u32 %v1924, 4294901760
    %1926 = vmatmul.mubr.f32.gmra.mrb[0].mxu0 %v1925
    %v1927 = vpop.f32.mrb[0].mxu0
    %v1928 = vadd.f32 %v1831, %v1927
    %v1929 = vpop.f32.mrb[0].mxu0
    %1930 = vdwg.mxu0
    %1931 = vmatprep.subr.mxu0 0.0
    %v1932 = vand.u32 %v1449, 4294901760
    %v1933 = vsub.f32 %v1449, %v1932
    %v1934 = vand.u32 %v1933, 4294901760
    %1935 = vmatpush1.msra.mxu0 %v1934
    %1936 = vmatprep.subr.mxu0 0.0
    %v1937 = vand.u32 %v1450, 4294901760
    %v1938 = vsub.f32 %v1450, %v1937
    %v1939 = vand.u32 %v1938, 4294901760
    %1940 = vmatpush1.msra.mxu0 %v1939
    %1941 = vmatprep.subr.mxu0 0.0
    %v1942 = vand.u32 %v1451, 4294901760
    %v1943 = vsub.f32 %v1451, %v1942
    %v1944 = vand.u32 %v1943, 4294901760
    %1945 = vmatpush1.msra.mxu0 %v1944
    %1946 = vmatprep.subr.mxu0 0.0
    %v1947 = vand.u32 %v1452, 4294901760
    %v1948 = vsub.f32 %v1452, %v1947
    %v1949 = vand.u32 %v1948, 4294901760
    %1950 = vmatpush1.msra.mxu0 %v1949
    %1951 = vmatprep.subr.mxu0 0.0
    %v1952 = vand.u32 %v1453, 4294901760
    %v1953 = vsub.f32 %v1453, %v1952
    %v1954 = vand.u32 %v1953, 4294901760
    %1955 = vmatpush1.msra.mxu0 %v1954
    %1956 = vmatprep.subr.mxu0 0.0
    %v1957 = vand.u32 %v1454, 4294901760
    %v1958 = vsub.f32 %v1454, %v1957
    %v1959 = vand.u32 %v1958, 4294901760
    %1960 = vmatpush1.msra.mxu0 %v1959
    %1961 = vmatprep.subr.mxu0 0.0
    %v1962 = vand.u32 %v1455, 4294901760
    %v1963 = vsub.f32 %v1455, %v1962
    %v1964 = vand.u32 %v1963, 4294901760
    %1965 = vmatpush1.msra.mxu0 %v1964
    %1966 = vmatprep.subr.mxu0 0.0
    %v1967 = vand.u32 %v1456, 4294901760
    %v1968 = vsub.f32 %v1456, %v1967
    %v1969 = vand.u32 %v1968, 4294901760
    %1970 = vmatpush1.msra.mxu0 %v1969
    %1971 = vmatprep.subr.mxu0 0.0
    %v1972 = vand.u32 %v1457, 4294901760
    %v1973 = vsub.f32 %v1457, %v1972
    %v1974 = vand.u32 %v1973, 4294901760
    %1975 = vmatpush1.msra.mxu0 %v1974
    %1976 = vmatprep.subr.mxu0 0.0
    %v1977 = vand.u32 %v1458, 4294901760
    %v1978 = vsub.f32 %v1458, %v1977
    %v1979 = vand.u32 %v1978, 4294901760
    %1980 = vmatpush1.msra.mxu0 %v1979
    %1981 = vmatprep.subr.mxu0 0.0
    %v1982 = vand.u32 %v1459, 4294901760
    %v1983 = vsub.f32 %v1459, %v1982
    %v1984 = vand.u32 %v1983, 4294901760
    %1985 = vmatpush1.msra.mxu0 %v1984
    %1986 = vmatprep.subr.mxu0 0.0
    %v1987 = vand.u32 %v1460, 4294901760
    %v1988 = vsub.f32 %v1460, %v1987
    %v1989 = vand.u32 %v1988, 4294901760
    %1990 = vmatpush1.msra.mxu0 %v1989
    %1991 = vmatprep.subr.mxu0 0.0
    %v1992 = vand.u32 %v1461, 4294901760
    %v1993 = vsub.f32 %v1461, %v1992
    %v1994 = vand.u32 %v1993, 4294901760
    %1995 = vmatpush1.msra.mxu0 %v1994
    %1996 = vmatprep.subr.mxu0 0.0
    %v1997 = vand.u32 %v1462, 4294901760
    %v1998 = vsub.f32 %v1462, %v1997
    %v1999 = vand.u32 %v1998, 4294901760
    %2000 = vmatpush1.msra.mxu0 %v1999
    %2001 = vmatprep.subr.mxu0 0.0
    %v2002 = vand.u32 %v1463, 4294901760
    %v2003 = vsub.f32 %v1463, %v2002
    %v2004 = vand.u32 %v2003, 4294901760
    %2005 = vmatpush1.msra.mxu0 %v2004
    %2006 = vmatprep.subr.mxu0 0.0
    %v2007 = vand.u32 %v1464, 4294901760
    %v2008 = vsub.f32 %v1464, %v2007
    %v2009 = vand.u32 %v2008, 4294901760
    %2010 = vmatpush1.msra.mxu0 %v2009
    %2011 = vmatprep.subr.mxu0 0.0
    %2012 = vmatpush1.msra.mxu0 0.0
    %2013 = vmatprep.subr.mxu0 0.0
    %2014 = vmatpush1.msra.mxu0 0.0
    %2015 = vmatprep.subr.mxu0 0.0
    %2016 = vmatpush1.msra.mxu0 0.0
    %2017 = vmatprep.subr.mxu0 0.0
    %2018 = vmatpush1.msra.mxu0 0.0
    %2019 = vmatprep.subr.mxu0 0.0
    %2020 = vmatpush1.msra.mxu0 0.0
    %2021 = vmatprep.subr.mxu0 0.0
    %2022 = vmatpush1.msra.mxu0 0.0
    %2023 = vmatprep.subr.mxu0 0.0
    %2024 = vmatpush1.msra.mxu0 0.0
    %2025 = vmatprep.subr.mxu0 0.0
    %2026 = vmatpush1.msra.mxu0 0.0
    %2027 = vmatprep.subr.mxu0 0.0
    %2028 = vmatpush1.msra.mxu0 0.0
    %2029 = vmatprep.subr.mxu0 0.0
    %2030 = vmatpush1.msra.mxu0 0.0
    %2031 = vmatprep.subr.mxu0 0.0
    %2032 = vmatpush1.msra.mxu0 0.0
    %2033 = vmatprep.subr.mxu0 0.0
    %2034 = vmatpush1.msra.mxu0 0.0
    %2035 = vmatprep.subr.mxu0 0.0
    %2036 = vmatpush1.msra.mxu0 0.0
    %2037 = vmatprep.subr.mxu0 0.0
    %2038 = vmatpush1.msra.mxu0 0.0
    %2039 = vmatprep.subr.mxu0 0.0
    %2040 = vmatpush1.msra.mxu0 0.0
    %2041 = vmatprep.subr.mxu0 0.0
    %2042 = vmatpush1.msra.mxu0 0.0
    %2043 = vmatprep.mubr.f32.mxu0 0.0
    %v2044 = vand.u32 %v1446, 4294901760
    %2045 = vmatmul.mubr.f32.gmra.mrb[0].mxu0 %v2044
    %v2046 = vpop.f32.mrb[0].mxu0
    %v2047 = vadd.f32 %v1920, %v2046
    %v2048 = vpop.f32.mrb[0].mxu0
    %2049 = vmatprep.mubr.f32.mxu0 0.0
    %v2050 = vand.u32 %v1447, 4294901760
    %2051 = vmatmul.mubr.f32.gmra.mrb[0].mxu0 %v2050
    %v2052 = vpop.f32.mrb[0].mxu0
    %v2053 = vadd.f32 %v1928, %v2052
    %v2054 = vpop.f32.mrb[0].mxu0
    %2055 = vdwg.mxu0
    %2056 = vmatprep.subr.mxu0 0.0
    %v2057 = vand.u32 %v1449, 4294901760
    %2058 = vmatpush1.msra.mxu0 %v2057
    %2059 = vmatprep.subr.mxu0 0.0
    %v2060 = vand.u32 %v1450, 4294901760
    %2061 = vmatpush1.msra.mxu0 %v2060
    %2062 = vmatprep.subr.mxu0 0.0
    %v2063 = vand.u32 %v1451, 4294901760
    %2064 = vmatpush1.msra.mxu0 %v2063
    %2065 = vmatprep.subr.mxu0 0.0
    %v2066 = vand.u32 %v1452, 4294901760
    %2067 = vmatpush1.msra.mxu0 %v2066
    %2068 = vmatprep.subr.mxu0 0.0
    %v2069 = vand.u32 %v1453, 4294901760
    %2070 = vmatpush1.msra.mxu0 %v2069
    %2071 = vmatprep.subr.mxu0 0.0
    %v2072 = vand.u32 %v1454, 4294901760
    %2073 = vmatpush1.msra.mxu0 %v2072
    %2074 = vmatprep.subr.mxu0 0.0
    %v2075 = vand.u32 %v1455, 4294901760
    %2076 = vmatpush1.msra.mxu0 %v2075
    %2077 = vmatprep.subr.mxu0 0.0
    %v2078 = vand.u32 %v1456, 4294901760
    %2079 = vmatpush1.msra.mxu0 %v2078
    %2080 = vmatprep.subr.mxu0 0.0
    %v2081 = vand.u32 %v1457, 4294901760
    %2082 = vmatpush1.msra.mxu0 %v2081
    %2083 = vmatprep.subr.mxu0 0.0
    %v2084 = vand.u32 %v1458, 4294901760
    %2085 = vmatpush1.msra.mxu0 %v2084
    %2086 = vmatprep.subr.mxu0 0.0
    %v2087 = vand.u32 %v1459, 4294901760
    %2088 = vmatpush1.msra.mxu0 %v2087
    %2089 = vmatprep.subr.mxu0 0.0
    %v2090 = vand.u32 %v1460, 4294901760
    %2091 = vmatpush1.msra.mxu0 %v2090
    %2092 = vmatprep.subr.mxu0 0.0
    %v2093 = vand.u32 %v1461, 4294901760
    %2094 = vmatpush1.msra.mxu0 %v2093
    %2095 = vmatprep.subr.mxu0 0.0
    %v2096 = vand.u32 %v1462, 4294901760
    %2097 = vmatpush1.msra.mxu0 %v2096
    %2098 = vmatprep.subr.mxu0 0.0
    %v2099 = vand.u32 %v1463, 4294901760
    %2100 = vmatpush1.msra.mxu0 %v2099
    %2101 = vmatprep.subr.mxu0 0.0
    %v2102 = vand.u32 %v1464, 4294901760
    %2103 = vmatpush1.msra.mxu0 %v2102
    %2104 = vmatprep.subr.mxu0 0.0
    %2105 = vmatpush1.msra.mxu0 0.0
    %2106 = vmatprep.subr.mxu0 0.0
    %2107 = vmatpush1.msra.mxu0 0.0
    %2108 = vmatprep.subr.mxu0 0.0
    %2109 = vmatpush1.msra.mxu0 0.0
    %2110 = vmatprep.subr.mxu0 0.0
    %2111 = vmatpush1.msra.mxu0 0.0
    %2112 = vmatprep.subr.mxu0 0.0
    %2113 = vmatpush1.msra.mxu0 0.0
    %2114 = vmatprep.subr.mxu0 0.0
    %2115 = vmatpush1.msra.mxu0 0.0
    %2116 = vmatprep.subr.mxu0 0.0
    %2117 = vmatpush1.msra.mxu0 0.0
    %2118 = vmatprep.subr.mxu0 0.0
    %2119 = vmatpush1.msra.mxu0 0.0
    %2120 = vmatprep.subr.mxu0 0.0
    %2121 = vmatpush1.msra.mxu0 0.0
    %2122 = vmatprep.subr.mxu0 0.0
    %2123 = vmatpush1.msra.mxu0 0.0
    %2124 = vmatprep.subr.mxu0 0.0
    %2125 = vmatpush1.msra.mxu0 0.0
    %2126 = vmatprep.subr.mxu0 0.0
    %2127 = vmatpush1.msra.mxu0 0.0
    %2128 = vmatprep.subr.mxu0 0.0
    %2129 = vmatpush1.msra.mxu0 0.0
    %2130 = vmatprep.subr.mxu0 0.0
    %2131 = vmatpush1.msra.mxu0 0.0
    %2132 = vmatprep.subr.mxu0 0.0
    %2133 = vmatpush1.msra.mxu0 0.0
    %2134 = vmatprep.subr.mxu0 0.0
    %2135 = vmatpush1.msra.mxu0 0.0
    %2136 = vmatprep.mubr.f32.mxu0 0.0
    %v2137 = vand.u32 %v1446, 4294901760
    %2138 = vmatmul.mubr.f32.gmra.mrb[0].mxu0 %v2137
    %v2139 = vpop.f32.mrb[0].mxu0
    %v2140 = vadd.f32 %v2047, %v2139
    %v2141 = vpop.f32.mrb[0].mxu0
    %2142 = vmatprep.mubr.f32.mxu0 0.0
    %v2143 = vand.u32 %v1447, 4294901760
    %2144 = vmatmul.mubr.f32.gmra.mrb[0].mxu0 %v2143
    %v2145 = vpop.f32.mrb[0].mxu0
    %v2146 = vadd.f32 %v2053, %v2145
    %v2147 = vpop.f32.mrb[0].mxu0
    %2148 = vdwg.mxu0
    %v2149 = vadd.f32 %v1433, %v2140
    %v2150 = vadd.f32 %v1439, %v2146
    %2151 = vrot.lane.b32.xlu0 %v29, 96
    %v2152 = vpop.permute.xlu0 %2151
    %2153 = vrot.lane.b32.xlu0 %v30, 96
    %v2154 = vpop.permute.xlu0 %2153
    %v2155 = vmul.f32 %v27, %v2152
    %v2156 = vmul.f32 %v28, %v2154
    %s2157 = scalar_lea.vmem %s3, 384
    %v2158 = vld [vmem:[%s2157] sm:$0xff]
    %v2159 = vld [vmem:[%s2157 + $0x8] sm:$0xff]
    %v2160 = vld [vmem:[%s2157 + $0x10] sm:$0xff]
    %v2161 = vld [vmem:[%s2157 + $0x18] sm:$0xff]
    %v2162 = vld [vmem:[%s2157 + $0x20] sm:$0xff]
    %v2163 = vld [vmem:[%s2157 + $0x28] sm:$0xff]
    %v2164 = vld [vmem:[%s2157 + $0x30] sm:$0xff]
    %v2165 = vld [vmem:[%s2157 + $0x38] sm:$0xff]
    %v2166 = vld [vmem:[%s2157 + $0x40] sm:$0xff]
    %v2167 = vld [vmem:[%s2157 + $0x48] sm:$0xff]
    %v2168 = vld [vmem:[%s2157 + $0x50] sm:$0xff]
    %v2169 = vld [vmem:[%s2157 + $0x58] sm:$0xff]
    %v2170 = vld [vmem:[%s2157 + $0x60] sm:$0xff]
    %v2171 = vld [vmem:[%s2157 + $0x68] sm:$0xff]
    %v2172 = vld [vmem:[%s2157 + $0x70] sm:$0xff]
    %v2173 = vld [vmem:[%s2157 + $0x78] sm:$0xff]
    %2174 = vmatprep.subr.mxu0 0.0
    %v2175 = vand.u32 %v2158, 4294901760
    %2176 = vmatpush1.msra.mxu0 %v2175
    %2177 = vmatprep.subr.mxu0 0.0
    %v2178 = vand.u32 %v2159, 4294901760
    %2179 = vmatpush1.msra.mxu0 %v2178
    %2180 = vmatprep.subr.mxu0 0.0
    %v2181 = vand.u32 %v2160, 4294901760
    %2182 = vmatpush1.msra.mxu0 %v2181
    %2183 = vmatprep.subr.mxu0 0.0
    %v2184 = vand.u32 %v2161, 4294901760
    %2185 = vmatpush1.msra.mxu0 %v2184
    %2186 = vmatprep.subr.mxu0 0.0
    %v2187 = vand.u32 %v2162, 4294901760
    %2188 = vmatpush1.msra.mxu0 %v2187
    %2189 = vmatprep.subr.mxu0 0.0
    %v2190 = vand.u32 %v2163, 4294901760
    %2191 = vmatpush1.msra.mxu0 %v2190
    %2192 = vmatprep.subr.mxu0 0.0
    %v2193 = vand.u32 %v2164, 4294901760
    %2194 = vmatpush1.msra.mxu0 %v2193
    %2195 = vmatprep.subr.mxu0 0.0
    %v2196 = vand.u32 %v2165, 4294901760
    %2197 = vmatpush1.msra.mxu0 %v2196
    %2198 = vmatprep.subr.mxu0 0.0
    %v2199 = vand.u32 %v2166, 4294901760
    %2200 = vmatpush1.msra.mxu0 %v2199
    %2201 = vmatprep.subr.mxu0 0.0
    %v2202 = vand.u32 %v2167, 4294901760
    %2203 = vmatpush1.msra.mxu0 %v2202
    %2204 = vmatprep.subr.mxu0 0.0
    %v2205 = vand.u32 %v2168, 4294901760
    %2206 = vmatpush1.msra.mxu0 %v2205
    %2207 = vmatprep.subr.mxu0 0.0
    %v2208 = vand.u32 %v2169, 4294901760
    %2209 = vmatpush1.msra.mxu0 %v2208
    %2210 = vmatprep.subr.mxu0 0.0
    %v2211 = vand.u32 %v2170, 4294901760
    %2212 = vmatpush1.msra.mxu0 %v2211
    %2213 = vmatprep.subr.mxu0 0.0
    %v2214 = vand.u32 %v2171, 4294901760
    %2215 = vmatpush1.msra.mxu0 %v2214
    %2216 = vmatprep.subr.mxu0 0.0
    %v2217 = vand.u32 %v2172, 4294901760
    %2218 = vmatpush1.msra.mxu0 %v2217
    %2219 = vmatprep.subr.mxu0 0.0
    %v2220 = vand.u32 %v2173, 4294901760
    %2221 = vmatpush1.msra.mxu0 %v2220
    %2222 = vmatprep.subr.mxu0 0.0
    %2223 = vmatpush1.msra.mxu0 0.0
    %2224 = vmatprep.subr.mxu0 0.0
    %2225 = vmatpush1.msra.mxu0 0.0
    %2226 = vmatprep.subr.mxu0 0.0
    %2227 = vmatpush1.msra.mxu0 0.0
    %2228 = vmatprep.subr.mxu0 0.0
    %2229 = vmatpush1.msra.mxu0 0.0
    %2230 = vmatprep.subr.mxu0 0.0
    %2231 = vmatpush1.msra.mxu0 0.0
    %2232 = vmatprep.subr.mxu0 0.0
    %2233 = vmatpush1.msra.mxu0 0.0
    %2234 = vmatprep.subr.mxu0 0.0
    %2235 = vmatpush1.msra.mxu0 0.0
    %2236 = vmatprep.subr.mxu0 0.0
    %2237 = vmatpush1.msra.mxu0 0.0
    %2238 = vmatprep.subr.mxu0 0.0
    %2239 = vmatpush1.msra.mxu0 0.0
    %2240 = vmatprep.subr.mxu0 0.0
    %2241 = vmatpush1.msra.mxu0 0.0
    %2242 = vmatprep.subr.mxu0 0.0
    %2243 = vmatpush1.msra.mxu0 0.0
    %2244 = vmatprep.subr.mxu0 0.0
    %2245 = vmatpush1.msra.mxu0 0.0
    %2246 = vmatprep.subr.mxu0 0.0
    %2247 = vmatpush1.msra.mxu0 0.0
    %2248 = vmatprep.subr.mxu0 0.0
    %2249 = vmatpush1.msra.mxu0 0.0
    %2250 = vmatprep.subr.mxu0 0.0
    %2251 = vmatpush1.msra.mxu0 0.0
    %2252 = vmatprep.subr.mxu0 0.0
    %2253 = vmatpush1.msra.mxu0 0.0
    %2254 = vmatprep.mubr.f32.mxu0 0.0
    %v2255 = vand.u32 %v2155, 4294901760
    %v2256 = vsub.f32 %v2155, %v2255
    %v2257 = vand.u32 %v2256, 4294901760
    %v2258 = vsub.f32 %v2256, %v2257
    %v2259 = vand.u32 %v2258, 4294901760
    %2260 = vmatmul.mubr.f32.gmra.mrb[0].mxu0 %v2259
    %v2261 = vpop.f32.mrb[0].mxu0
    %v2262 = vadd.f32 0.0, %v2261
    %v2263 = vpop.f32.mrb[0].mxu0
    %2264 = vmatprep.mubr.f32.mxu0 0.0
    %v2265 = vand.u32 %v2156, 4294901760
    %v2266 = vsub.f32 %v2156, %v2265
    %v2267 = vand.u32 %v2266, 4294901760
    %v2268 = vsub.f32 %v2266, %v2267
    %v2269 = vand.u32 %v2268, 4294901760
    %2270 = vmatmul.mubr.f32.gmra.mrb[0].mxu0 %v2269
    %v2271 = vpop.f32.mrb[0].mxu0
    %v2272 = vadd.f32 0.0, %v2271
    %v2273 = vpop.f32.mrb[0].mxu0
    %2274 = vdwg.mxu0
    %2275 = vmatprep.subr.mxu0 0.0
    %v2276 = vand.u32 %v2158, 4294901760
    %v2277 = vsub.f32 %v2158, %v2276
    %v2278 = vand.u32 %v2277, 4294901760
    %v2279 = vsub.f32 %v2277, %v2278
    %v2280 = vand.u32 %v2279, 4294901760
    %2281 = vmatpush1.msra.mxu0 %v2280
    %2282 = vmatprep.subr.mxu0 0.0
    %v2283 = vand.u32 %v2159, 4294901760
    %v2284 = vsub.f32 %v2159, %v2283
    %v2285 = vand.u32 %v2284, 4294901760
    %v2286 = vsub.f32 %v2284, %v2285
    %v2287 = vand.u32 %v2286, 4294901760
    %2288 = vmatpush1.msra.mxu0 %v2287
    %2289 = vmatprep.subr.mxu0 0.0
    %v2290 = vand.u32 %v2160, 4294901760
    %v2291 = vsub.f32 %v2160, %v2290
    %v2292 = vand.u32 %v2291, 4294901760
    %v2293 = vsub.f32 %v2291, %v2292
    %v2294 = vand.u32 %v2293, 4294901760
    %2295 = vmatpush1.msra.mxu0 %v2294
    %2296 = vmatprep.subr.mxu0 0.0
    %v2297 = vand.u32 %v2161, 4294901760
    %v2298 = vsub.f32 %v2161, %v2297
    %v2299 = vand.u32 %v2298, 4294901760
    %v2300 = vsub.f32 %v2298, %v2299
    %v2301 = vand.u32 %v2300, 4294901760
    %2302 = vmatpush1.msra.mxu0 %v2301
    %2303 = vmatprep.subr.mxu0 0.0
    %v2304 = vand.u32 %v2162, 4294901760
    %v2305 = vsub.f32 %v2162, %v2304
    %v2306 = vand.u32 %v2305, 4294901760
    %v2307 = vsub.f32 %v2305, %v2306
    %v2308 = vand.u32 %v2307, 4294901760
    %2309 = vmatpush1.msra.mxu0 %v2308
    %2310 = vmatprep.subr.mxu0 0.0
    %v2311 = vand.u32 %v2163, 4294901760
    %v2312 = vsub.f32 %v2163, %v2311
    %v2313 = vand.u32 %v2312, 4294901760
    %v2314 = vsub.f32 %v2312, %v2313
    %v2315 = vand.u32 %v2314, 4294901760
    %2316 = vmatpush1.msra.mxu0 %v2315
    %2317 = vmatprep.subr.mxu0 0.0
    %v2318 = vand.u32 %v2164, 4294901760
    %v2319 = vsub.f32 %v2164, %v2318
    %v2320 = vand.u32 %v2319, 4294901760
    %v2321 = vsub.f32 %v2319, %v2320
    %v2322 = vand.u32 %v2321, 4294901760
    %2323 = vmatpush1.msra.mxu0 %v2322
    %2324 = vmatprep.subr.mxu0 0.0
    %v2325 = vand.u32 %v2165, 4294901760
    %v2326 = vsub.f32 %v2165, %v2325
    %v2327 = vand.u32 %v2326, 4294901760
    %v2328 = vsub.f32 %v2326, %v2327
    %v2329 = vand.u32 %v2328, 4294901760
    %2330 = vmatpush1.msra.mxu0 %v2329
    %2331 = vmatprep.subr.mxu0 0.0
    %v2332 = vand.u32 %v2166, 4294901760
    %v2333 = vsub.f32 %v2166, %v2332
    %v2334 = vand.u32 %v2333, 4294901760
    %v2335 = vsub.f32 %v2333, %v2334
    %v2336 = vand.u32 %v2335, 4294901760
    %2337 = vmatpush1.msra.mxu0 %v2336
    %2338 = vmatprep.subr.mxu0 0.0
    %v2339 = vand.u32 %v2167, 4294901760
    %v2340 = vsub.f32 %v2167, %v2339
    %v2341 = vand.u32 %v2340, 4294901760
    %v2342 = vsub.f32 %v2340, %v2341
    %v2343 = vand.u32 %v2342, 4294901760
    %2344 = vmatpush1.msra.mxu0 %v2343
    %2345 = vmatprep.subr.mxu0 0.0
    %v2346 = vand.u32 %v2168, 4294901760
    %v2347 = vsub.f32 %v2168, %v2346
    %v2348 = vand.u32 %v2347, 4294901760
    %v2349 = vsub.f32 %v2347, %v2348
    %v2350 = vand.u32 %v2349, 4294901760
    %2351 = vmatpush1.msra.mxu0 %v2350
    %2352 = vmatprep.subr.mxu0 0.0
    %v2353 = vand.u32 %v2169, 4294901760
    %v2354 = vsub.f32 %v2169, %v2353
    %v2355 = vand.u32 %v2354, 4294901760
    %v2356 = vsub.f32 %v2354, %v2355
    %v2357 = vand.u32 %v2356, 4294901760
    %2358 = vmatpush1.msra.mxu0 %v2357
    %2359 = vmatprep.subr.mxu0 0.0
    %v2360 = vand.u32 %v2170, 4294901760
    %v2361 = vsub.f32 %v2170, %v2360
    %v2362 = vand.u32 %v2361, 4294901760
    %v2363 = vsub.f32 %v2361, %v2362
    %v2364 = vand.u32 %v2363, 4294901760
    %2365 = vmatpush1.msra.mxu0 %v2364
    %2366 = vmatprep.subr.mxu0 0.0
    %v2367 = vand.u32 %v2171, 4294901760
    %v2368 = vsub.f32 %v2171, %v2367
    %v2369 = vand.u32 %v2368, 4294901760
    %v2370 = vsub.f32 %v2368, %v2369
    %v2371 = vand.u32 %v2370, 4294901760
    %2372 = vmatpush1.msra.mxu0 %v2371
    %2373 = vmatprep.subr.mxu0 0.0
    %v2374 = vand.u32 %v2172, 4294901760
    %v2375 = vsub.f32 %v2172, %v2374
    %v2376 = vand.u32 %v2375, 4294901760
    %v2377 = vsub.f32 %v2375, %v2376
    %v2378 = vand.u32 %v2377, 4294901760
    %2379 = vmatpush1.msra.mxu0 %v2378
    %2380 = vmatprep.subr.mxu0 0.0
    %v2381 = vand.u32 %v2173, 4294901760
    %v2382 = vsub.f32 %v2173, %v2381
    %v2383 = vand.u32 %v2382, 4294901760
    %v2384 = vsub.f32 %v2382, %v2383
    %v2385 = vand.u32 %v2384, 4294901760
    %2386 = vmatpush1.msra.mxu0 %v2385
    %2387 = vmatprep.subr.mxu0 0.0
    %2388 = vmatpush1.msra.mxu0 0.0
    %2389 = vmatprep.subr.mxu0 0.0
    %2390 = vmatpush1.msra.mxu0 0.0
    %2391 = vmatprep.subr.mxu0 0.0
    %2392 = vmatpush1.msra.mxu0 0.0
    %2393 = vmatprep.subr.mxu0 0.0
    %2394 = vmatpush1.msra.mxu0 0.0
    %2395 = vmatprep.subr.mxu0 0.0
    %2396 = vmatpush1.msra.mxu0 0.0
    %2397 = vmatprep.subr.mxu0 0.0
    %2398 = vmatpush1.msra.mxu0 0.0
    %2399 = vmatprep.subr.mxu0 0.0
    %2400 = vmatpush1.msra.mxu0 0.0
    %2401 = vmatprep.subr.mxu0 0.0
    %2402 = vmatpush1.msra.mxu0 0.0
    %2403 = vmatprep.subr.mxu0 0.0
    %2404 = vmatpush1.msra.mxu0 0.0
    %2405 = vmatprep.subr.mxu0 0.0
    %2406 = vmatpush1.msra.mxu0 0.0
    %2407 = vmatprep.subr.mxu0 0.0
    %2408 = vmatpush1.msra.mxu0 0.0
    %2409 = vmatprep.subr.mxu0 0.0
    %2410 = vmatpush1.msra.mxu0 0.0
    %2411 = vmatprep.subr.mxu0 0.0
    %2412 = vmatpush1.msra.mxu0 0.0
    %2413 = vmatprep.subr.mxu0 0.0
    %2414 = vmatpush1.msra.mxu0 0.0
    %2415 = vmatprep.subr.mxu0 0.0
    %2416 = vmatpush1.msra.mxu0 0.0
    %2417 = vmatprep.subr.mxu0 0.0
    %2418 = vmatpush1.msra.mxu0 0.0
    %2419 = vmatprep.mubr.f32.mxu0 0.0
    %v2420 = vand.u32 %v2155, 4294901760
    %2421 = vmatmul.mubr.f32.gmra.mrb[0].mxu0 %v2420
    %v2422 = vpop.f32.mrb[0].mxu0
    %v2423 = vadd.f32 %v2262, %v2422
    %v2424 = vpop.f32.mrb[0].mxu0
    %2425 = vmatprep.mubr.f32.mxu0 0.0
    %v2426 = vand.u32 %v2156, 4294901760
    %2427 = vmatmul.mubr.f32.gmra.mrb[0].mxu0 %v2426
    %v2428 = vpop.f32.mrb[0].mxu0
    %v2429 = vadd.f32 %v2272, %v2428
    %v2430 = vpop.f32.mrb[0].mxu0
    %2431 = vdwg.mxu0
    %2432 = vmatprep.subr.mxu0 0.0
    %v2433 = vand.u32 %v2158, 4294901760
    %v2434 = vsub.f32 %v2158, %v2433
    %2435 = vmatpush1.msra.mxu0 %v2434
    %2436 = vmatprep.subr.mxu0 0.0
    %v2437 = vand.u32 %v2159, 4294901760
    %v2438 = vsub.f32 %v2159, %v2437
    %2439 = vmatpush1.msra.mxu0 %v2438
    %2440 = vmatprep.subr.mxu0 0.0
    %v2441 = vand.u32 %v2160, 4294901760
    %v2442 = vsub.f32 %v2160, %v2441
    %2443 = vmatpush1.msra.mxu0 %v2442
    %2444 = vmatprep.subr.mxu0 0.0
    %v2445 = vand.u32 %v2161, 4294901760
    %v2446 = vsub.f32 %v2161, %v2445
    %2447 = vmatpush1.msra.mxu0 %v2446
    %2448 = vmatprep.subr.mxu0 0.0
    %v2449 = vand.u32 %v2162, 4294901760
    %v2450 = vsub.f32 %v2162, %v2449
    %2451 = vmatpush1.msra.mxu0 %v2450
    %2452 = vmatprep.subr.mxu0 0.0
    %v2453 = vand.u32 %v2163, 4294901760
    %v2454 = vsub.f32 %v2163, %v2453
    %2455 = vmatpush1.msra.mxu0 %v2454
    %2456 = vmatprep.subr.mxu0 0.0
    %v2457 = vand.u32 %v2164, 4294901760
    %v2458 = vsub.f32 %v2164, %v2457
    %2459 = vmatpush1.msra.mxu0 %v2458
    %2460 = vmatprep.subr.mxu0 0.0
    %v2461 = vand.u32 %v2165, 4294901760
    %v2462 = vsub.f32 %v2165, %v2461
    %2463 = vmatpush1.msra.mxu0 %v2462
    %2464 = vmatprep.subr.mxu0 0.0
    %v2465 = vand.u32 %v2166, 4294901760
    %v2466 = vsub.f32 %v2166, %v2465
    %2467 = vmatpush1.msra.mxu0 %v2466
    %2468 = vmatprep.subr.mxu0 0.0
    %v2469 = vand.u32 %v2167, 4294901760
    %v2470 = vsub.f32 %v2167, %v2469
    %2471 = vmatpush1.msra.mxu0 %v2470
    %2472 = vmatprep.subr.mxu0 0.0
    %v2473 = vand.u32 %v2168, 4294901760
    %v2474 = vsub.f32 %v2168, %v2473
    %2475 = vmatpush1.msra.mxu0 %v2474
    %2476 = vmatprep.subr.mxu0 0.0
    %v2477 = vand.u32 %v2169, 4294901760
    %v2478 = vsub.f32 %v2169, %v2477
    %2479 = vmatpush1.msra.mxu0 %v2478
    %2480 = vmatprep.subr.mxu0 0.0
    %v2481 = vand.u32 %v2170, 4294901760
    %v2482 = vsub.f32 %v2170, %v2481
    %2483 = vmatpush1.msra.mxu0 %v2482
    %2484 = vmatprep.subr.mxu0 0.0
    %v2485 = vand.u32 %v2171, 4294901760
    %v2486 = vsub.f32 %v2171, %v2485
    %2487 = vmatpush1.msra.mxu0 %v2486
    %2488 = vmatprep.subr.mxu0 0.0
    %v2489 = vand.u32 %v2172, 4294901760
    %v2490 = vsub.f32 %v2172, %v2489
    %2491 = vmatpush1.msra.mxu0 %v2490
    %2492 = vmatprep.subr.mxu0 0.0
    %v2493 = vand.u32 %v2173, 4294901760
    %v2494 = vsub.f32 %v2173, %v2493
    %2495 = vmatpush1.msra.mxu0 %v2494
    %2496 = vmatprep.subr.mxu0 0.0
    %2497 = vmatpush1.msra.mxu0 0.0
    %2498 = vmatprep.subr.mxu0 0.0
    %2499 = vmatpush1.msra.mxu0 0.0
    %2500 = vmatprep.subr.mxu0 0.0
    %2501 = vmatpush1.msra.mxu0 0.0
    %2502 = vmatprep.subr.mxu0 0.0
    %2503 = vmatpush1.msra.mxu0 0.0
    %2504 = vmatprep.subr.mxu0 0.0
    %2505 = vmatpush1.msra.mxu0 0.0
    %2506 = vmatprep.subr.mxu0 0.0
    %2507 = vmatpush1.msra.mxu0 0.0
    %2508 = vmatprep.subr.mxu0 0.0
    %2509 = vmatpush1.msra.mxu0 0.0
    %2510 = vmatprep.subr.mxu0 0.0
    %2511 = vmatpush1.msra.mxu0 0.0
    %2512 = vmatprep.subr.mxu0 0.0
    %2513 = vmatpush1.msra.mxu0 0.0
    %2514 = vmatprep.subr.mxu0 0.0
    %2515 = vmatpush1.msra.mxu0 0.0
    %2516 = vmatprep.subr.mxu0 0.0
    %2517 = vmatpush1.msra.mxu0 0.0
    %2518 = vmatprep.subr.mxu0 0.0
    %2519 = vmatpush1.msra.mxu0 0.0
    %2520 = vmatprep.subr.mxu0 0.0
    %2521 = vmatpush1.msra.mxu0 0.0
    %2522 = vmatprep.subr.mxu0 0.0
    %2523 = vmatpush1.msra.mxu0 0.0
    %2524 = vmatprep.subr.mxu0 0.0
    %2525 = vmatpush1.msra.mxu0 0.0
    %2526 = vmatprep.subr.mxu0 0.0
    %2527 = vmatpush1.msra.mxu0 0.0
    %2528 = vmatprep.mubr.f32.mxu0 0.0
    %v2529 = vand.u32 %v2155, 4294901760
    %v2530 = vsub.f32 %v2155, %v2529
    %2531 = vmatmul.mubr.f32.gmra.mrb[0].mxu0 %v2530
    %v2532 = vpop.f32.mrb[0].mxu0
    %v2533 = vadd.f32 %v2423, %v2532
    %v2534 = vpop.f32.mrb[0].mxu0
    %2535 = vmatprep.mubr.f32.mxu0 0.0
    %v2536 = vand.u32 %v2156, 4294901760
    %v2537 = vsub.f32 %v2156, %v2536
    %2538 = vmatmul.mubr.f32.gmra.mrb[0].mxu0 %v2537
    %v2539 = vpop.f32.mrb[0].mxu0
    %v2540 = vadd.f32 %v2429, %v2539
    %v2541 = vpop.f32.mrb[0].mxu0
    %2542 = vdwg.mxu0
    %2543 = vmatprep.subr.mxu0 0.0
    %v2544 = vand.u32 %v2158, 4294901760
    %2545 = vmatpush1.msra.mxu0 %v2544
    %2546 = vmatprep.subr.mxu0 0.0
    %v2547 = vand.u32 %v2159, 4294901760
    %2548 = vmatpush1.msra.mxu0 %v2547
    %2549 = vmatprep.subr.mxu0 0.0
    %v2550 = vand.u32 %v2160, 4294901760
    %2551 = vmatpush1.msra.mxu0 %v2550
    %2552 = vmatprep.subr.mxu0 0.0
    %v2553 = vand.u32 %v2161, 4294901760
    %2554 = vmatpush1.msra.mxu0 %v2553
    %2555 = vmatprep.subr.mxu0 0.0
    %v2556 = vand.u32 %v2162, 4294901760
    %2557 = vmatpush1.msra.mxu0 %v2556
    %2558 = vmatprep.subr.mxu0 0.0
    %v2559 = vand.u32 %v2163, 4294901760
    %2560 = vmatpush1.msra.mxu0 %v2559
    %2561 = vmatprep.subr.mxu0 0.0
    %v2562 = vand.u32 %v2164, 4294901760
    %2563 = vmatpush1.msra.mxu0 %v2562
    %2564 = vmatprep.subr.mxu0 0.0
    %v2565 = vand.u32 %v2165, 4294901760
    %2566 = vmatpush1.msra.mxu0 %v2565
    %2567 = vmatprep.subr.mxu0 0.0
    %v2568 = vand.u32 %v2166, 4294901760
    %2569 = vmatpush1.msra.mxu0 %v2568
    %2570 = vmatprep.subr.mxu0 0.0
    %v2571 = vand.u32 %v2167, 4294901760
    %2572 = vmatpush1.msra.mxu0 %v2571
    %2573 = vmatprep.subr.mxu0 0.0
    %v2574 = vand.u32 %v2168, 4294901760
    %2575 = vmatpush1.msra.mxu0 %v2574
    %2576 = vmatprep.subr.mxu0 0.0
    %v2577 = vand.u32 %v2169, 4294901760
    %2578 = vmatpush1.msra.mxu0 %v2577
    %2579 = vmatprep.subr.mxu0 0.0
    %v2580 = vand.u32 %v2170, 4294901760
    %2581 = vmatpush1.msra.mxu0 %v2580
    %2582 = vmatprep.subr.mxu0 0.0
    %v2583 = vand.u32 %v2171, 4294901760
    %2584 = vmatpush1.msra.mxu0 %v2583
    %2585 = vmatprep.subr.mxu0 0.0
    %v2586 = vand.u32 %v2172, 4294901760
    %2587 = vmatpush1.msra.mxu0 %v2586
    %2588 = vmatprep.subr.mxu0 0.0
    %v2589 = vand.u32 %v2173, 4294901760
    %2590 = vmatpush1.msra.mxu0 %v2589
    %2591 = vmatprep.subr.mxu0 0.0
    %2592 = vmatpush1.msra.mxu0 0.0
    %2593 = vmatprep.subr.mxu0 0.0
    %2594 = vmatpush1.msra.mxu0 0.0
    %2595 = vmatprep.subr.mxu0 0.0
    %2596 = vmatpush1.msra.mxu0 0.0
    %2597 = vmatprep.subr.mxu0 0.0
    %2598 = vmatpush1.msra.mxu0 0.0
    %2599 = vmatprep.subr.mxu0 0.0
    %2600 = vmatpush1.msra.mxu0 0.0
    %2601 = vmatprep.subr.mxu0 0.0
    %2602 = vmatpush1.msra.mxu0 0.0
    %2603 = vmatprep.subr.mxu0 0.0
    %2604 = vmatpush1.msra.mxu0 0.0
    %2605 = vmatprep.subr.mxu0 0.0
    %2606 = vmatpush1.msra.mxu0 0.0
    %2607 = vmatprep.subr.mxu0 0.0
    %2608 = vmatpush1.msra.mxu0 0.0
    %2609 = vmatprep.subr.mxu0 0.0
    %2610 = vmatpush1.msra.mxu0 0.0
    %2611 = vmatprep.subr.mxu0 0.0
    %2612 = vmatpush1.msra.mxu0 0.0
    %2613 = vmatprep.subr.mxu0 0.0
    %2614 = vmatpush1.msra.mxu0 0.0
    %2615 = vmatprep.subr.mxu0 0.0
    %2616 = vmatpush1.msra.mxu0 0.0
    %2617 = vmatprep.subr.mxu0 0.0
    %2618 = vmatpush1.msra.mxu0 0.0
    %2619 = vmatprep.subr.mxu0 0.0
    %2620 = vmatpush1.msra.mxu0 0.0
    %2621 = vmatprep.subr.mxu0 0.0
    %2622 = vmatpush1.msra.mxu0 0.0
    %2623 = vmatprep.mubr.f32.mxu0 0.0
    %v2624 = vand.u32 %v2155, 4294901760
    %v2625 = vsub.f32 %v2155, %v2624
    %v2626 = vand.u32 %v2625, 4294901760
    %2627 = vmatmul.mubr.f32.gmra.mrb[0].mxu0 %v2626
    %v2628 = vpop.f32.mrb[0].mxu0
    %v2629 = vadd.f32 %v2533, %v2628
    %v2630 = vpop.f32.mrb[0].mxu0
    %2631 = vmatprep.mubr.f32.mxu0 0.0
    %v2632 = vand.u32 %v2156, 4294901760
    %v2633 = vsub.f32 %v2156, %v2632
    %v2634 = vand.u32 %v2633, 4294901760
    %2635 = vmatmul.mubr.f32.gmra.mrb[0].mxu0 %v2634
    %v2636 = vpop.f32.mrb[0].mxu0
    %v2637 = vadd.f32 %v2540, %v2636
    %v2638 = vpop.f32.mrb[0].mxu0
    %2639 = vdwg.mxu0
    %2640 = vmatprep.subr.mxu0 0.0
    %v2641 = vand.u32 %v2158, 4294901760
    %v2642 = vsub.f32 %v2158, %v2641
    %v2643 = vand.u32 %v2642, 4294901760
    %2644 = vmatpush1.msra.mxu0 %v2643
    %2645 = vmatprep.subr.mxu0 0.0
    %v2646 = vand.u32 %v2159, 4294901760
    %v2647 = vsub.f32 %v2159, %v2646
    %v2648 = vand.u32 %v2647, 4294901760
    %2649 = vmatpush1.msra.mxu0 %v2648
    %2650 = vmatprep.subr.mxu0 0.0
    %v2651 = vand.u32 %v2160, 4294901760
    %v2652 = vsub.f32 %v2160, %v2651
    %v2653 = vand.u32 %v2652, 4294901760
    %2654 = vmatpush1.msra.mxu0 %v2653
    %2655 = vmatprep.subr.mxu0 0.0
    %v2656 = vand.u32 %v2161, 4294901760
    %v2657 = vsub.f32 %v2161, %v2656
    %v2658 = vand.u32 %v2657, 4294901760
    %2659 = vmatpush1.msra.mxu0 %v2658
    %2660 = vmatprep.subr.mxu0 0.0
    %v2661 = vand.u32 %v2162, 4294901760
    %v2662 = vsub.f32 %v2162, %v2661
    %v2663 = vand.u32 %v2662, 4294901760
    %2664 = vmatpush1.msra.mxu0 %v2663
    %2665 = vmatprep.subr.mxu0 0.0
    %v2666 = vand.u32 %v2163, 4294901760
    %v2667 = vsub.f32 %v2163, %v2666
    %v2668 = vand.u32 %v2667, 4294901760
    %2669 = vmatpush1.msra.mxu0 %v2668
    %2670 = vmatprep.subr.mxu0 0.0
    %v2671 = vand.u32 %v2164, 4294901760
    %v2672 = vsub.f32 %v2164, %v2671
    %v2673 = vand.u32 %v2672, 4294901760
    %2674 = vmatpush1.msra.mxu0 %v2673
    %2675 = vmatprep.subr.mxu0 0.0
    %v2676 = vand.u32 %v2165, 4294901760
    %v2677 = vsub.f32 %v2165, %v2676
    %v2678 = vand.u32 %v2677, 4294901760
    %2679 = vmatpush1.msra.mxu0 %v2678
    %2680 = vmatprep.subr.mxu0 0.0
    %v2681 = vand.u32 %v2166, 4294901760
    %v2682 = vsub.f32 %v2166, %v2681
    %v2683 = vand.u32 %v2682, 4294901760
    %2684 = vmatpush1.msra.mxu0 %v2683
    %2685 = vmatprep.subr.mxu0 0.0
    %v2686 = vand.u32 %v2167, 4294901760
    %v2687 = vsub.f32 %v2167, %v2686
    %v2688 = vand.u32 %v2687, 4294901760
    %2689 = vmatpush1.msra.mxu0 %v2688
    %2690 = vmatprep.subr.mxu0 0.0
    %v2691 = vand.u32 %v2168, 4294901760
    %v2692 = vsub.f32 %v2168, %v2691
    %v2693 = vand.u32 %v2692, 4294901760
    %2694 = vmatpush1.msra.mxu0 %v2693
    %2695 = vmatprep.subr.mxu0 0.0
    %v2696 = vand.u32 %v2169, 4294901760
    %v2697 = vsub.f32 %v2169, %v2696
    %v2698 = vand.u32 %v2697, 4294901760
    %2699 = vmatpush1.msra.mxu0 %v2698
    %2700 = vmatprep.subr.mxu0 0.0
    %v2701 = vand.u32 %v2170, 4294901760
    %v2702 = vsub.f32 %v2170, %v2701
    %v2703 = vand.u32 %v2702, 4294901760
    %2704 = vmatpush1.msra.mxu0 %v2703
    %2705 = vmatprep.subr.mxu0 0.0
    %v2706 = vand.u32 %v2171, 4294901760
    %v2707 = vsub.f32 %v2171, %v2706
    %v2708 = vand.u32 %v2707, 4294901760
    %2709 = vmatpush1.msra.mxu0 %v2708
    %2710 = vmatprep.subr.mxu0 0.0
    %v2711 = vand.u32 %v2172, 4294901760
    %v2712 = vsub.f32 %v2172, %v2711
    %v2713 = vand.u32 %v2712, 4294901760
    %2714 = vmatpush1.msra.mxu0 %v2713
    %2715 = vmatprep.subr.mxu0 0.0
    %v2716 = vand.u32 %v2173, 4294901760
    %v2717 = vsub.f32 %v2173, %v2716
    %v2718 = vand.u32 %v2717, 4294901760
    %2719 = vmatpush1.msra.mxu0 %v2718
    %2720 = vmatprep.subr.mxu0 0.0
    %2721 = vmatpush1.msra.mxu0 0.0
    %2722 = vmatprep.subr.mxu0 0.0
    %2723 = vmatpush1.msra.mxu0 0.0
    %2724 = vmatprep.subr.mxu0 0.0
    %2725 = vmatpush1.msra.mxu0 0.0
    %2726 = vmatprep.subr.mxu0 0.0
    %2727 = vmatpush1.msra.mxu0 0.0
    %2728 = vmatprep.subr.mxu0 0.0
    %2729 = vmatpush1.msra.mxu0 0.0
    %2730 = vmatprep.subr.mxu0 0.0
    %2731 = vmatpush1.msra.mxu0 0.0
    %2732 = vmatprep.subr.mxu0 0.0
    %2733 = vmatpush1.msra.mxu0 0.0
    %2734 = vmatprep.subr.mxu0 0.0
    %2735 = vmatpush1.msra.mxu0 0.0
    %2736 = vmatprep.subr.mxu0 0.0
    %2737 = vmatpush1.msra.mxu0 0.0
    %2738 = vmatprep.subr.mxu0 0.0
    %2739 = vmatpush1.msra.mxu0 0.0
    %2740 = vmatprep.subr.mxu0 0.0
    %2741 = vmatpush1.msra.mxu0 0.0
    %2742 = vmatprep.subr.mxu0 0.0
    %2743 = vmatpush1.msra.mxu0 0.0
    %2744 = vmatprep.subr.mxu0 0.0
    %2745 = vmatpush1.msra.mxu0 0.0
    %2746 = vmatprep.subr.mxu0 0.0
    %2747 = vmatpush1.msra.mxu0 0.0
    %2748 = vmatprep.subr.mxu0 0.0
    %2749 = vmatpush1.msra.mxu0 0.0
    %2750 = vmatprep.subr.mxu0 0.0
    %2751 = vmatpush1.msra.mxu0 0.0
    %2752 = vmatprep.mubr.f32.mxu0 0.0
    %v2753 = vand.u32 %v2155, 4294901760
    %2754 = vmatmul.mubr.f32.gmra.mrb[0].mxu0 %v2753
    %v2755 = vpop.f32.mrb[0].mxu0
    %v2756 = vadd.f32 %v2629, %v2755
    %v2757 = vpop.f32.mrb[0].mxu0
    %2758 = vmatprep.mubr.f32.mxu0 0.0
    %v2759 = vand.u32 %v2156, 4294901760
    %2760 = vmatmul.mubr.f32.gmra.mrb[0].mxu0 %v2759
    %v2761 = vpop.f32.mrb[0].mxu0
    %v2762 = vadd.f32 %v2637, %v2761
    %v2763 = vpop.f32.mrb[0].mxu0
    %2764 = vdwg.mxu0
    %2765 = vmatprep.subr.mxu0 0.0
    %v2766 = vand.u32 %v2158, 4294901760
    %2767 = vmatpush1.msra.mxu0 %v2766
    %2768 = vmatprep.subr.mxu0 0.0
    %v2769 = vand.u32 %v2159, 4294901760
    %2770 = vmatpush1.msra.mxu0 %v2769
    %2771 = vmatprep.subr.mxu0 0.0
    %v2772 = vand.u32 %v2160, 4294901760
    %2773 = vmatpush1.msra.mxu0 %v2772
    %2774 = vmatprep.subr.mxu0 0.0
    %v2775 = vand.u32 %v2161, 4294901760
    %2776 = vmatpush1.msra.mxu0 %v2775
    %2777 = vmatprep.subr.mxu0 0.0
    %v2778 = vand.u32 %v2162, 4294901760
    %2779 = vmatpush1.msra.mxu0 %v2778
    %2780 = vmatprep.subr.mxu0 0.0
    %v2781 = vand.u32 %v2163, 4294901760
    %2782 = vmatpush1.msra.mxu0 %v2781
    %2783 = vmatprep.subr.mxu0 0.0
    %v2784 = vand.u32 %v2164, 4294901760
    %2785 = vmatpush1.msra.mxu0 %v2784
    %2786 = vmatprep.subr.mxu0 0.0
    %v2787 = vand.u32 %v2165, 4294901760
    %2788 = vmatpush1.msra.mxu0 %v2787
    %2789 = vmatprep.subr.mxu0 0.0
    %v2790 = vand.u32 %v2166, 4294901760
    %2791 = vmatpush1.msra.mxu0 %v2790
    %2792 = vmatprep.subr.mxu0 0.0
    %v2793 = vand.u32 %v2167, 4294901760
    %2794 = vmatpush1.msra.mxu0 %v2793
    %2795 = vmatprep.subr.mxu0 0.0
    %v2796 = vand.u32 %v2168, 4294901760
    %2797 = vmatpush1.msra.mxu0 %v2796
    %2798 = vmatprep.subr.mxu0 0.0
    %v2799 = vand.u32 %v2169, 4294901760
    %2800 = vmatpush1.msra.mxu0 %v2799
    %2801 = vmatprep.subr.mxu0 0.0
    %v2802 = vand.u32 %v2170, 4294901760
    %2803 = vmatpush1.msra.mxu0 %v2802
    %2804 = vmatprep.subr.mxu0 0.0
    %v2805 = vand.u32 %v2171, 4294901760
    %2806 = vmatpush1.msra.mxu0 %v2805
    %2807 = vmatprep.subr.mxu0 0.0
    %v2808 = vand.u32 %v2172, 4294901760
    %2809 = vmatpush1.msra.mxu0 %v2808
    %2810 = vmatprep.subr.mxu0 0.0
    %v2811 = vand.u32 %v2173, 4294901760
    %2812 = vmatpush1.msra.mxu0 %v2811
    %2813 = vmatprep.subr.mxu0 0.0
    %2814 = vmatpush1.msra.mxu0 0.0
    %2815 = vmatprep.subr.mxu0 0.0
    %2816 = vmatpush1.msra.mxu0 0.0
    %2817 = vmatprep.subr.mxu0 0.0
    %2818 = vmatpush1.msra.mxu0 0.0
    %2819 = vmatprep.subr.mxu0 0.0
    %2820 = vmatpush1.msra.mxu0 0.0
    %2821 = vmatprep.subr.mxu0 0.0
    %2822 = vmatpush1.msra.mxu0 0.0
    %2823 = vmatprep.subr.mxu0 0.0
    %2824 = vmatpush1.msra.mxu0 0.0
    %2825 = vmatprep.subr.mxu0 0.0
    %2826 = vmatpush1.msra.mxu0 0.0
    %2827 = vmatprep.subr.mxu0 0.0
    %2828 = vmatpush1.msra.mxu0 0.0
    %2829 = vmatprep.subr.mxu0 0.0
    %2830 = vmatpush1.msra.mxu0 0.0
    %2831 = vmatprep.subr.mxu0 0.0
    %2832 = vmatpush1.msra.mxu0 0.0
    %2833 = vmatprep.subr.mxu0 0.0
    %2834 = vmatpush1.msra.mxu0 0.0
    %2835 = vmatprep.subr.mxu0 0.0
    %2836 = vmatpush1.msra.mxu0 0.0
    %2837 = vmatprep.subr.mxu0 0.0
    %2838 = vmatpush1.msra.mxu0 0.0
    %2839 = vmatprep.subr.mxu0 0.0
    %2840 = vmatpush1.msra.mxu0 0.0
    %2841 = vmatprep.subr.mxu0 0.0
    %2842 = vmatpush1.msra.mxu0 0.0
    %2843 = vmatprep.subr.mxu0 0.0
    %2844 = vmatpush1.msra.mxu0 0.0
    %2845 = vmatprep.mubr.f32.mxu0 0.0
    %v2846 = vand.u32 %v2155, 4294901760
    %2847 = vmatmul.mubr.f32.gmra.mrb[0].mxu0 %v2846
    %v2848 = vpop.f32.mrb[0].mxu0
    %v2849 = vadd.f32 %v2756, %v2848
    %v2850 = vpop.f32.mrb[0].mxu0
    %2851 = vmatprep.mubr.f32.mxu0 0.0
    %v2852 = vand.u32 %v2156, 4294901760
    %2853 = vmatmul.mubr.f32.gmra.mrb[0].mxu0 %v2852
    %v2854 = vpop.f32.mrb[0].mxu0
    %v2855 = vadd.f32 %v2762, %v2854
    %v2856 = vpop.f32.mrb[0].mxu0
    %2857 = vdwg.mxu0
    %v2858 = vadd.f32 %v2149, %v2849
    %v2859 = vadd.f32 %v2150, %v2855
    %v2860 = vld [vmem:[%s5] sm:$0xff]
    %v2861 = vld [vmem:[%s5 + $0x8] sm:$0xff]
    %vm2862 = vcmask 130048
    %v2864 = vsel %vm2862, %v2858, 0
    %v2867 = vsel %vm2862, %v2859, 0
    %2869 = vmatprep.subr.mxu0 0.0
    %v2870 = vand.u32 %v2860, 4294901760
    %2871 = vmatpush1.msra.mxu0 %v2870
    %2872 = vmatprep.subr.mxu0 0.0
    %v2873 = vand.u32 %v2861, 4294901760
    %2874 = vmatpush1.msra.mxu0 %v2873
    %2875 = vmatprep.subr.mxu0 0.0
    %2876 = vmatpush1.msra.mxu0 0.0
    %2877 = vmatprep.subr.mxu0 0.0
    %2878 = vmatpush1.msra.mxu0 0.0
    %2879 = vmatprep.subr.mxu0 0.0
    %2880 = vmatpush1.msra.mxu0 0.0
    %2881 = vmatprep.subr.mxu0 0.0
    %2882 = vmatpush1.msra.mxu0 0.0
    %2883 = vmatprep.subr.mxu0 0.0
    %2884 = vmatpush1.msra.mxu0 0.0
    %2885 = vmatprep.subr.mxu0 0.0
    %2886 = vmatpush1.msra.mxu0 0.0
    %2887 = vmatprep.subr.mxu0 0.0
    %2888 = vmatpush1.msra.mxu0 0.0
    %2889 = vmatprep.subr.mxu0 0.0
    %2890 = vmatpush1.msra.mxu0 0.0
    %2891 = vmatprep.subr.mxu0 0.0
    %2892 = vmatpush1.msra.mxu0 0.0
    %2893 = vmatprep.subr.mxu0 0.0
    %2894 = vmatpush1.msra.mxu0 0.0
    %2895 = vmatprep.subr.mxu0 0.0
    %2896 = vmatpush1.msra.mxu0 0.0
    %2897 = vmatprep.subr.mxu0 0.0
    %2898 = vmatpush1.msra.mxu0 0.0
    %2899 = vmatprep.subr.mxu0 0.0
    %2900 = vmatpush1.msra.mxu0 0.0
    %2901 = vmatprep.subr.mxu0 0.0
    %2902 = vmatpush1.msra.mxu0 0.0
    %2903 = vmatprep.subr.mxu0 0.0
    %2904 = vmatpush1.msra.mxu0 0.0
    %2905 = vmatprep.subr.mxu0 0.0
    %2906 = vmatpush1.msra.mxu0 0.0
    %2907 = vmatprep.subr.mxu0 0.0
    %2908 = vmatpush1.msra.mxu0 0.0
    %2909 = vmatprep.subr.mxu0 0.0
    %2910 = vmatpush1.msra.mxu0 0.0
    %2911 = vmatprep.subr.mxu0 0.0
    %2912 = vmatpush1.msra.mxu0 0.0
    %2913 = vmatprep.subr.mxu0 0.0
    %2914 = vmatpush1.msra.mxu0 0.0
    %2915 = vmatprep.subr.mxu0 0.0
    %2916 = vmatpush1.msra.mxu0 0.0
    %2917 = vmatprep.subr.mxu0 0.0
    %2918 = vmatpush1.msra.mxu0 0.0
    %2919 = vmatprep.subr.mxu0 0.0
    %2920 = vmatpush1.msra.mxu0 0.0
    %2921 = vmatprep.subr.mxu0 0.0
    %2922 = vmatpush1.msra.mxu0 0.0
    %2923 = vmatprep.subr.mxu0 0.0
    %2924 = vmatpush1.msra.mxu0 0.0
    %2925 = vmatprep.subr.mxu0 0.0
    %2926 = vmatpush1.msra.mxu0 0.0
    %2927 = vmatprep.subr.mxu0 0.0
    %2928 = vmatpush1.msra.mxu0 0.0
    %2929 = vmatprep.subr.mxu0 0.0
    %2930 = vmatpush1.msra.mxu0 0.0
    %2931 = vmatprep.subr.mxu0 0.0
    %2932 = vmatpush1.msra.mxu0 0.0
    %2933 = vmatprep.subr.mxu0 0.0
    %2934 = vmatpush1.msra.mxu0 0.0
    %2935 = vmatprep.mubr.f32.mxu0 0.0
    %v2936 = vand.u32 %v2864, 4294901760
    %v2937 = vsub.f32 %v2864, %v2936
    %v2938 = vand.u32 %v2937, 4294901760
    %v2939 = vsub.f32 %v2937, %v2938
    %v2940 = vand.u32 %v2939, 4294901760
    %2941 = vmatmul.mubr.f32.gmra.mrb[0].mxu0 %v2940
    %v2942 = vpop.f32.mrb[0].mxu0
    %v2943 = vadd.f32 0.0, %v2942
    %v2944 = vpop.f32.mrb[0].mxu0
    %2945 = vmatprep.mubr.f32.mxu0 0.0
    %v2946 = vand.u32 %v2867, 4294901760
    %v2947 = vsub.f32 %v2867, %v2946
    %v2948 = vand.u32 %v2947, 4294901760
    %v2949 = vsub.f32 %v2947, %v2948
    %v2950 = vand.u32 %v2949, 4294901760
    %2951 = vmatmul.mubr.f32.gmra.mrb[0].mxu0 %v2950
    %v2952 = vpop.f32.mrb[0].mxu0
    %v2953 = vadd.f32 0.0, %v2952
    %v2954 = vpop.f32.mrb[0].mxu0
    %2955 = vdwg.mxu0
    %2956 = vmatprep.subr.mxu0 0.0
    %v2957 = vand.u32 %v2860, 4294901760
    %v2958 = vsub.f32 %v2860, %v2957
    %v2959 = vand.u32 %v2958, 4294901760
    %v2960 = vsub.f32 %v2958, %v2959
    %v2961 = vand.u32 %v2960, 4294901760
    %2962 = vmatpush1.msra.mxu0 %v2961
    %2963 = vmatprep.subr.mxu0 0.0
    %v2964 = vand.u32 %v2861, 4294901760
    %v2965 = vsub.f32 %v2861, %v2964
    %v2966 = vand.u32 %v2965, 4294901760
    %v2967 = vsub.f32 %v2965, %v2966
    %v2968 = vand.u32 %v2967, 4294901760
    %2969 = vmatpush1.msra.mxu0 %v2968
    %2970 = vmatprep.subr.mxu0 0.0
    %2971 = vmatpush1.msra.mxu0 0.0
    %2972 = vmatprep.subr.mxu0 0.0
    %2973 = vmatpush1.msra.mxu0 0.0
    %2974 = vmatprep.subr.mxu0 0.0
    %2975 = vmatpush1.msra.mxu0 0.0
    %2976 = vmatprep.subr.mxu0 0.0
    %2977 = vmatpush1.msra.mxu0 0.0
    %2978 = vmatprep.subr.mxu0 0.0
    %2979 = vmatpush1.msra.mxu0 0.0
    %2980 = vmatprep.subr.mxu0 0.0
    %2981 = vmatpush1.msra.mxu0 0.0
    %2982 = vmatprep.subr.mxu0 0.0
    %2983 = vmatpush1.msra.mxu0 0.0
    %2984 = vmatprep.subr.mxu0 0.0
    %2985 = vmatpush1.msra.mxu0 0.0
    %2986 = vmatprep.subr.mxu0 0.0
    %2987 = vmatpush1.msra.mxu0 0.0
    %2988 = vmatprep.subr.mxu0 0.0
    %2989 = vmatpush1.msra.mxu0 0.0
    %2990 = vmatprep.subr.mxu0 0.0
    %2991 = vmatpush1.msra.mxu0 0.0
    %2992 = vmatprep.subr.mxu0 0.0
    %2993 = vmatpush1.msra.mxu0 0.0
    %2994 = vmatprep.subr.mxu0 0.0
    %2995 = vmatpush1.msra.mxu0 0.0
    %2996 = vmatprep.subr.mxu0 0.0
    %2997 = vmatpush1.msra.mxu0 0.0
    %2998 = vmatprep.subr.mxu0 0.0
    %2999 = vmatpush1.msra.mxu0 0.0
    %3000 = vmatprep.subr.mxu0 0.0
    %3001 = vmatpush1.msra.mxu0 0.0
    %3002 = vmatprep.subr.mxu0 0.0
    %3003 = vmatpush1.msra.mxu0 0.0
    %3004 = vmatprep.subr.mxu0 0.0
    %3005 = vmatpush1.msra.mxu0 0.0
    %3006 = vmatprep.subr.mxu0 0.0
    %3007 = vmatpush1.msra.mxu0 0.0
    %3008 = vmatprep.subr.mxu0 0.0
    %3009 = vmatpush1.msra.mxu0 0.0
    %3010 = vmatprep.subr.mxu0 0.0
    %3011 = vmatpush1.msra.mxu0 0.0
    %3012 = vmatprep.subr.mxu0 0.0
    %3013 = vmatpush1.msra.mxu0 0.0
    %3014 = vmatprep.subr.mxu0 0.0
    %3015 = vmatpush1.msra.mxu0 0.0
    %3016 = vmatprep.subr.mxu0 0.0
    %3017 = vmatpush1.msra.mxu0 0.0
    %3018 = vmatprep.subr.mxu0 0.0
    %3019 = vmatpush1.msra.mxu0 0.0
    %3020 = vmatprep.subr.mxu0 0.0
    %3021 = vmatpush1.msra.mxu0 0.0
    %3022 = vmatprep.subr.mxu0 0.0
    %3023 = vmatpush1.msra.mxu0 0.0
    %3024 = vmatprep.subr.mxu0 0.0
    %3025 = vmatpush1.msra.mxu0 0.0
    %3026 = vmatprep.subr.mxu0 0.0
    %3027 = vmatpush1.msra.mxu0 0.0
    %3028 = vmatprep.subr.mxu0 0.0
    %3029 = vmatpush1.msra.mxu0 0.0
    %3030 = vmatprep.mubr.f32.mxu0 0.0
    %v3031 = vand.u32 %v2864, 4294901760
    %3032 = vmatmul.mubr.f32.gmra.mrb[0].mxu0 %v3031
    %v3033 = vpop.f32.mrb[0].mxu0
    %v3034 = vadd.f32 %v2943, %v3033
    %v3035 = vpop.f32.mrb[0].mxu0
    %3036 = vmatprep.mubr.f32.mxu0 0.0
    %v3037 = vand.u32 %v2867, 4294901760
    %3038 = vmatmul.mubr.f32.gmra.mrb[0].mxu0 %v3037
    %v3039 = vpop.f32.mrb[0].mxu0
    %v3040 = vadd.f32 %v2953, %v3039
    %v3041 = vpop.f32.mrb[0].mxu0
    %3042 = vdwg.mxu0
    %3043 = vmatprep.subr.mxu0 0.0
    %v3044 = vand.u32 %v2860, 4294901760
    %v3045 = vsub.f32 %v2860, %v3044
    %3046 = vmatpush1.msra.mxu0 %v3045
    %3047 = vmatprep.subr.mxu0 0.0
    %v3048 = vand.u32 %v2861, 4294901760
    %v3049 = vsub.f32 %v2861, %v3048
    %3050 = vmatpush1.msra.mxu0 %v3049
    %3051 = vmatprep.subr.mxu0 0.0
    %3052 = vmatpush1.msra.mxu0 0.0
    %3053 = vmatprep.subr.mxu0 0.0
    %3054 = vmatpush1.msra.mxu0 0.0
    %3055 = vmatprep.subr.mxu0 0.0
    %3056 = vmatpush1.msra.mxu0 0.0
    %3057 = vmatprep.subr.mxu0 0.0
    %3058 = vmatpush1.msra.mxu0 0.0
    %3059 = vmatprep.subr.mxu0 0.0
    %3060 = vmatpush1.msra.mxu0 0.0
    %3061 = vmatprep.subr.mxu0 0.0
    %3062 = vmatpush1.msra.mxu0 0.0
    %3063 = vmatprep.subr.mxu0 0.0
    %3064 = vmatpush1.msra.mxu0 0.0
    %3065 = vmatprep.subr.mxu0 0.0
    %3066 = vmatpush1.msra.mxu0 0.0
    %3067 = vmatprep.subr.mxu0 0.0
    %3068 = vmatpush1.msra.mxu0 0.0
    %3069 = vmatprep.subr.mxu0 0.0
    %3070 = vmatpush1.msra.mxu0 0.0
    %3071 = vmatprep.subr.mxu0 0.0
    %3072 = vmatpush1.msra.mxu0 0.0
    %3073 = vmatprep.subr.mxu0 0.0
    %3074 = vmatpush1.msra.mxu0 0.0
    %3075 = vmatprep.subr.mxu0 0.0
    %3076 = vmatpush1.msra.mxu0 0.0
    %3077 = vmatprep.subr.mxu0 0.0
    %3078 = vmatpush1.msra.mxu0 0.0
    %3079 = vmatprep.subr.mxu0 0.0
    %3080 = vmatpush1.msra.mxu0 0.0
    %3081 = vmatprep.subr.mxu0 0.0
    %3082 = vmatpush1.msra.mxu0 0.0
    %3083 = vmatprep.subr.mxu0 0.0
    %3084 = vmatpush1.msra.mxu0 0.0
    %3085 = vmatprep.subr.mxu0 0.0
    %3086 = vmatpush1.msra.mxu0 0.0
    %3087 = vmatprep.subr.mxu0 0.0
    %3088 = vmatpush1.msra.mxu0 0.0
    %3089 = vmatprep.subr.mxu0 0.0
    %3090 = vmatpush1.msra.mxu0 0.0
    %3091 = vmatprep.subr.mxu0 0.0
    %3092 = vmatpush1.msra.mxu0 0.0
    %3093 = vmatprep.subr.mxu0 0.0
    %3094 = vmatpush1.msra.mxu0 0.0
    %3095 = vmatprep.subr.mxu0 0.0
    %3096 = vmatpush1.msra.mxu0 0.0
    %3097 = vmatprep.subr.mxu0 0.0
    %3098 = vmatpush1.msra.mxu0 0.0
    %3099 = vmatprep.subr.mxu0 0.0
    %3100 = vmatpush1.msra.mxu0 0.0
    %3101 = vmatprep.subr.mxu0 0.0
    %3102 = vmatpush1.msra.mxu0 0.0
    %3103 = vmatprep.subr.mxu0 0.0
    %3104 = vmatpush1.msra.mxu0 0.0
    %3105 = vmatprep.subr.mxu0 0.0
    %3106 = vmatpush1.msra.mxu0 0.0
    %3107 = vmatprep.subr.mxu0 0.0
    %3108 = vmatpush1.msra.mxu0 0.0
    %3109 = vmatprep.subr.mxu0 0.0
    %3110 = vmatpush1.msra.mxu0 0.0
    %3111 = vmatprep.mubr.f32.mxu0 0.0
    %v3112 = vand.u32 %v2864, 4294901760
    %v3113 = vsub.f32 %v2864, %v3112
    %3114 = vmatmul.mubr.f32.gmra.mrb[0].mxu0 %v3113
    %v3115 = vpop.f32.mrb[0].mxu0
    %v3116 = vadd.f32 %v3034, %v3115
    %v3117 = vpop.f32.mrb[0].mxu0
    %3118 = vmatprep.mubr.f32.mxu0 0.0
    %v3119 = vand.u32 %v2867, 4294901760
    %v3120 = vsub.f32 %v2867, %v3119
    %3121 = vmatmul.mubr.f32.gmra.mrb[0].mxu0 %v3120
    %v3122 = vpop.f32.mrb[0].mxu0
    %v3123 = vadd.f32 %v3040, %v3122
    %v3124 = vpop.f32.mrb[0].mxu0
    %3125 = vdwg.mxu0
    %3126 = vmatprep.subr.mxu0 0.0
    %v3127 = vand.u32 %v2860, 4294901760
    %3128 = vmatpush1.msra.mxu0 %v3127
    %3129 = vmatprep.subr.mxu0 0.0
    %v3130 = vand.u32 %v2861, 4294901760
    %3131 = vmatpush1.msra.mxu0 %v3130
    %3132 = vmatprep.subr.mxu0 0.0
    %3133 = vmatpush1.msra.mxu0 0.0
    %3134 = vmatprep.subr.mxu0 0.0
    %3135 = vmatpush1.msra.mxu0 0.0
    %3136 = vmatprep.subr.mxu0 0.0
    %3137 = vmatpush1.msra.mxu0 0.0
    %3138 = vmatprep.subr.mxu0 0.0
    %3139 = vmatpush1.msra.mxu0 0.0
    %3140 = vmatprep.subr.mxu0 0.0
    %3141 = vmatpush1.msra.mxu0 0.0
    %3142 = vmatprep.subr.mxu0 0.0
    %3143 = vmatpush1.msra.mxu0 0.0
    %3144 = vmatprep.subr.mxu0 0.0
    %3145 = vmatpush1.msra.mxu0 0.0
    %3146 = vmatprep.subr.mxu0 0.0
    %3147 = vmatpush1.msra.mxu0 0.0
    %3148 = vmatprep.subr.mxu0 0.0
    %3149 = vmatpush1.msra.mxu0 0.0
    %3150 = vmatprep.subr.mxu0 0.0
    %3151 = vmatpush1.msra.mxu0 0.0
    %3152 = vmatprep.subr.mxu0 0.0
    %3153 = vmatpush1.msra.mxu0 0.0
    %3154 = vmatprep.subr.mxu0 0.0
    %3155 = vmatpush1.msra.mxu0 0.0
    %3156 = vmatprep.subr.mxu0 0.0
    %3157 = vmatpush1.msra.mxu0 0.0
    %3158 = vmatprep.subr.mxu0 0.0
    %3159 = vmatpush1.msra.mxu0 0.0
    %3160 = vmatprep.subr.mxu0 0.0
    %3161 = vmatpush1.msra.mxu0 0.0
    %3162 = vmatprep.subr.mxu0 0.0
    %3163 = vmatpush1.msra.mxu0 0.0
    %3164 = vmatprep.subr.mxu0 0.0
    %3165 = vmatpush1.msra.mxu0 0.0
    %3166 = vmatprep.subr.mxu0 0.0
    %3167 = vmatpush1.msra.mxu0 0.0
    %3168 = vmatprep.subr.mxu0 0.0
    %3169 = vmatpush1.msra.mxu0 0.0
    %3170 = vmatprep.subr.mxu0 0.0
    %3171 = vmatpush1.msra.mxu0 0.0
    %3172 = vmatprep.subr.mxu0 0.0
    %3173 = vmatpush1.msra.mxu0 0.0
    %3174 = vmatprep.subr.mxu0 0.0
    %3175 = vmatpush1.msra.mxu0 0.0
    %3176 = vmatprep.subr.mxu0 0.0
    %3177 = vmatpush1.msra.mxu0 0.0
    %3178 = vmatprep.subr.mxu0 0.0
    %3179 = vmatpush1.msra.mxu0 0.0
    %3180 = vmatprep.subr.mxu0 0.0
    %3181 = vmatpush1.msra.mxu0 0.0
    %3182 = vmatprep.subr.mxu0 0.0
    %3183 = vmatpush1.msra.mxu0 0.0
    %3184 = vmatprep.subr.mxu0 0.0
    %3185 = vmatpush1.msra.mxu0 0.0
    %3186 = vmatprep.subr.mxu0 0.0
    %3187 = vmatpush1.msra.mxu0 0.0
    %3188 = vmatprep.subr.mxu0 0.0
    %3189 = vmatpush1.msra.mxu0 0.0
    %3190 = vmatprep.subr.mxu0 0.0
    %3191 = vmatpush1.msra.mxu0 0.0
    %3192 = vmatprep.mubr.f32.mxu0 0.0
    %v3193 = vand.u32 %v2864, 4294901760
    %v3194 = vsub.f32 %v2864, %v3193
    %v3195 = vand.u32 %v3194, 4294901760
    %3196 = vmatmul.mubr.f32.gmra.mrb[0].mxu0 %v3195
    %v3197 = vpop.f32.mrb[0].mxu0
    %v3198 = vadd.f32 %v3116, %v3197
    %v3199 = vpop.f32.mrb[0].mxu0
    %3200 = vmatprep.mubr.f32.mxu0 0.0
    %v3201 = vand.u32 %v2867, 4294901760
    %v3202 = vsub.f32 %v2867, %v3201
    %v3203 = vand.u32 %v3202, 4294901760
    %3204 = vmatmul.mubr.f32.gmra.mrb[0].mxu0 %v3203
    %v3205 = vpop.f32.mrb[0].mxu0
    %v3206 = vadd.f32 %v3123, %v3205
    %v3207 = vpop.f32.mrb[0].mxu0
    %3208 = vdwg.mxu0
    %3209 = vmatprep.subr.mxu0 0.0
    %v3210 = vand.u32 %v2860, 4294901760
    %v3211 = vsub.f32 %v2860, %v3210
    %v3212 = vand.u32 %v3211, 4294901760
    %3213 = vmatpush1.msra.mxu0 %v3212
    %3214 = vmatprep.subr.mxu0 0.0
    %v3215 = vand.u32 %v2861, 4294901760
    %v3216 = vsub.f32 %v2861, %v3215
    %v3217 = vand.u32 %v3216, 4294901760
    %3218 = vmatpush1.msra.mxu0 %v3217
    %3219 = vmatprep.subr.mxu0 0.0
    %3220 = vmatpush1.msra.mxu0 0.0
    %3221 = vmatprep.subr.mxu0 0.0
    %3222 = vmatpush1.msra.mxu0 0.0
    %3223 = vmatprep.subr.mxu0 0.0
    %3224 = vmatpush1.msra.mxu0 0.0
    %3225 = vmatprep.subr.mxu0 0.0
    %3226 = vmatpush1.msra.mxu0 0.0
    %3227 = vmatprep.subr.mxu0 0.0
    %3228 = vmatpush1.msra.mxu0 0.0
    %3229 = vmatprep.subr.mxu0 0.0
    %3230 = vmatpush1.msra.mxu0 0.0
    %3231 = vmatprep.subr.mxu0 0.0
    %3232 = vmatpush1.msra.mxu0 0.0
    %3233 = vmatprep.subr.mxu0 0.0
    %3234 = vmatpush1.msra.mxu0 0.0
    %3235 = vmatprep.subr.mxu0 0.0
    %3236 = vmatpush1.msra.mxu0 0.0
    %3237 = vmatprep.subr.mxu0 0.0
    %3238 = vmatpush1.msra.mxu0 0.0
    %3239 = vmatprep.subr.mxu0 0.0
    %3240 = vmatpush1.msra.mxu0 0.0
    %3241 = vmatprep.subr.mxu0 0.0
    %3242 = vmatpush1.msra.mxu0 0.0
    %3243 = vmatprep.subr.mxu0 0.0
    %3244 = vmatpush1.msra.mxu0 0.0
    %3245 = vmatprep.subr.mxu0 0.0
    %3246 = vmatpush1.msra.mxu0 0.0
    %3247 = vmatprep.subr.mxu0 0.0
    %3248 = vmatpush1.msra.mxu0 0.0
    %3249 = vmatprep.subr.mxu0 0.0
    %3250 = vmatpush1.msra.mxu0 0.0
    %3251 = vmatprep.subr.mxu0 0.0
    %3252 = vmatpush1.msra.mxu0 0.0
    %3253 = vmatprep.subr.mxu0 0.0
    %3254 = vmatpush1.msra.mxu0 0.0
    %3255 = vmatprep.subr.mxu0 0.0
    %3256 = vmatpush1.msra.mxu0 0.0
    %3257 = vmatprep.subr.mxu0 0.0
    %3258 = vmatpush1.msra.mxu0 0.0
    %3259 = vmatprep.subr.mxu0 0.0
    %3260 = vmatpush1.msra.mxu0 0.0
    %3261 = vmatprep.subr.mxu0 0.0
    %3262 = vmatpush1.msra.mxu0 0.0
    %3263 = vmatprep.subr.mxu0 0.0
    %3264 = vmatpush1.msra.mxu0 0.0
    %3265 = vmatprep.subr.mxu0 0.0
    %3266 = vmatpush1.msra.mxu0 0.0
    %3267 = vmatprep.subr.mxu0 0.0
    %3268 = vmatpush1.msra.mxu0 0.0
    %3269 = vmatprep.subr.mxu0 0.0
    %3270 = vmatpush1.msra.mxu0 0.0
    %3271 = vmatprep.subr.mxu0 0.0
    %3272 = vmatpush1.msra.mxu0 0.0
    %3273 = vmatprep.subr.mxu0 0.0
    %3274 = vmatpush1.msra.mxu0 0.0
    %3275 = vmatprep.subr.mxu0 0.0
    %3276 = vmatpush1.msra.mxu0 0.0
    %3277 = vmatprep.subr.mxu0 0.0
    %3278 = vmatpush1.msra.mxu0 0.0
    %3279 = vmatprep.mubr.f32.mxu0 0.0
    %v3280 = vand.u32 %v2864, 4294901760
    %3281 = vmatmul.mubr.f32.gmra.mrb[0].mxu0 %v3280
    %v3282 = vpop.f32.mrb[0].mxu0
    %v3283 = vadd.f32 %v3198, %v3282
    %v3284 = vpop.f32.mrb[0].mxu0
    %3285 = vmatprep.mubr.f32.mxu0 0.0
    %v3286 = vand.u32 %v2867, 4294901760
    %3287 = vmatmul.mubr.f32.gmra.mrb[0].mxu0 %v3286
    %v3288 = vpop.f32.mrb[0].mxu0
    %v3289 = vadd.f32 %v3206, %v3288
    %v3290 = vpop.f32.mrb[0].mxu0
    %3291 = vdwg.mxu0
    %3292 = vmatprep.subr.mxu0 0.0
    %v3293 = vand.u32 %v2860, 4294901760
    %3294 = vmatpush1.msra.mxu0 %v3293
    %3295 = vmatprep.subr.mxu0 0.0
    %v3296 = vand.u32 %v2861, 4294901760
    %3297 = vmatpush1.msra.mxu0 %v3296
    %3298 = vmatprep.subr.mxu0 0.0
    %3299 = vmatpush1.msra.mxu0 0.0
    %3300 = vmatprep.subr.mxu0 0.0
    %3301 = vmatpush1.msra.mxu0 0.0
    %3302 = vmatprep.subr.mxu0 0.0
    %3303 = vmatpush1.msra.mxu0 0.0
    %3304 = vmatprep.subr.mxu0 0.0
    %3305 = vmatpush1.msra.mxu0 0.0
    %3306 = vmatprep.subr.mxu0 0.0
    %3307 = vmatpush1.msra.mxu0 0.0
    %3308 = vmatprep.subr.mxu0 0.0
    %3309 = vmatpush1.msra.mxu0 0.0
    %3310 = vmatprep.subr.mxu0 0.0
    %3311 = vmatpush1.msra.mxu0 0.0
    %3312 = vmatprep.subr.mxu0 0.0
    %3313 = vmatpush1.msra.mxu0 0.0
    %3314 = vmatprep.subr.mxu0 0.0
    %3315 = vmatpush1.msra.mxu0 0.0
    %3316 = vmatprep.subr.mxu0 0.0
    %3317 = vmatpush1.msra.mxu0 0.0
    %3318 = vmatprep.subr.mxu0 0.0
    %3319 = vmatpush1.msra.mxu0 0.0
    %3320 = vmatprep.subr.mxu0 0.0
    %3321 = vmatpush1.msra.mxu0 0.0
    %3322 = vmatprep.subr.mxu0 0.0
    %3323 = vmatpush1.msra.mxu0 0.0
    %3324 = vmatprep.subr.mxu0 0.0
    %3325 = vmatpush1.msra.mxu0 0.0
    %3326 = vmatprep.subr.mxu0 0.0
    %3327 = vmatpush1.msra.mxu0 0.0
    %3328 = vmatprep.subr.mxu0 0.0
    %3329 = vmatpush1.msra.mxu0 0.0
    %3330 = vmatprep.subr.mxu0 0.0
    %3331 = vmatpush1.msra.mxu0 0.0
    %3332 = vmatprep.subr.mxu0 0.0
    %3333 = vmatpush1.msra.mxu0 0.0
    %3334 = vmatprep.subr.mxu0 0.0
    %3335 = vmatpush1.msra.mxu0 0.0
    %3336 = vmatprep.subr.mxu0 0.0
    %3337 = vmatpush1.msra.mxu0 0.0
    %3338 = vmatprep.subr.mxu0 0.0
    %3339 = vmatpush1.msra.mxu0 0.0
    %3340 = vmatprep.subr.mxu0 0.0
    %3341 = vmatpush1.msra.mxu0 0.0
    %3342 = vmatprep.subr.mxu0 0.0
    %3343 = vmatpush1.msra.mxu0 0.0
    %3344 = vmatprep.subr.mxu0 0.0
    %3345 = vmatpush1.msra.mxu0 0.0
    %3346 = vmatprep.subr.mxu0 0.0
    %3347 = vmatpush1.msra.mxu0 0.0
    %3348 = vmatprep.subr.mxu0 0.0
    %3349 = vmatpush1.msra.mxu0 0.0
    %3350 = vmatprep.subr.mxu0 0.0
    %3351 = vmatpush1.msra.mxu0 0.0
    %3352 = vmatprep.subr.mxu0 0.0
    %3353 = vmatpush1.msra.mxu0 0.0
    %3354 = vmatprep.subr.mxu0 0.0
    %3355 = vmatpush1.msra.mxu0 0.0
    %3356 = vmatprep.subr.mxu0 0.0
    %3357 = vmatpush1.msra.mxu0 0.0
    %3358 = vmatprep.mubr.f32.mxu0 0.0
    %v3359 = vand.u32 %v2864, 4294901760
    %3360 = vmatmul.mubr.f32.gmra.mrb[0].mxu0 %v3359
    %v3361 = vpop.f32.mrb[0].mxu0
    %v3362 = vadd.f32 %v3283, %v3361
    %v3363 = vpop.f32.mrb[0].mxu0
    %3364 = vmatprep.mubr.f32.mxu0 0.0
    %v3365 = vand.u32 %v2867, 4294901760
    %3366 = vmatmul.mubr.f32.gmra.mrb[0].mxu0 %v3365
    %v3367 = vpop.f32.mrb[0].mxu0
    %v3368 = vadd.f32 %v3289, %v3367
    %v3369 = vpop.f32.mrb[0].mxu0
    %3370 = vdwg.mxu0
    %v3371 = vmax.f32 %v2858, %v3362
    %v3372 = vmax.f32 %v2859, %v3368
    %v3374 = vsel %vm2862, %v3362, 0
    %v3377 = vsel %vm2862, %v3368, 0
    %3379 = vmatprep.subr.mxu0 0.0
    %v3380 = vand.u32 %v2860, 4294901760
    %3381 = vmatpush1.msra.mxu0 %v3380
    %3382 = vmatprep.subr.mxu0 0.0
    %v3383 = vand.u32 %v2861, 4294901760
    %3384 = vmatpush1.msra.mxu0 %v3383
    %3385 = vmatprep.subr.mxu0 0.0
    %3386 = vmatpush1.msra.mxu0 0.0
    %3387 = vmatprep.subr.mxu0 0.0
    %3388 = vmatpush1.msra.mxu0 0.0
    %3389 = vmatprep.subr.mxu0 0.0
    %3390 = vmatpush1.msra.mxu0 0.0
    %3391 = vmatprep.subr.mxu0 0.0
    %3392 = vmatpush1.msra.mxu0 0.0
    %3393 = vmatprep.subr.mxu0 0.0
    %3394 = vmatpush1.msra.mxu0 0.0
    %3395 = vmatprep.subr.mxu0 0.0
    %3396 = vmatpush1.msra.mxu0 0.0
    %3397 = vmatprep.subr.mxu0 0.0
    %3398 = vmatpush1.msra.mxu0 0.0
    %3399 = vmatprep.subr.mxu0 0.0
    %3400 = vmatpush1.msra.mxu0 0.0
    %3401 = vmatprep.subr.mxu0 0.0
    %3402 = vmatpush1.msra.mxu0 0.0
    %3403 = vmatprep.subr.mxu0 0.0
    %3404 = vmatpush1.msra.mxu0 0.0
    %3405 = vmatprep.subr.mxu0 0.0
    %3406 = vmatpush1.msra.mxu0 0.0
    %3407 = vmatprep.subr.mxu0 0.0
    %3408 = vmatpush1.msra.mxu0 0.0
    %3409 = vmatprep.subr.mxu0 0.0
    %3410 = vmatpush1.msra.mxu0 0.0
    %3411 = vmatprep.subr.mxu0 0.0
    %3412 = vmatpush1.msra.mxu0 0.0
    %3413 = vmatprep.subr.mxu0 0.0
    %3414 = vmatpush1.msra.mxu0 0.0
    %3415 = vmatprep.subr.mxu0 0.0
    %3416 = vmatpush1.msra.mxu0 0.0
    %3417 = vmatprep.subr.mxu0 0.0
    %3418 = vmatpush1.msra.mxu0 0.0
    %3419 = vmatprep.subr.mxu0 0.0
    %3420 = vmatpush1.msra.mxu0 0.0
    %3421 = vmatprep.subr.mxu0 0.0
    %3422 = vmatpush1.msra.mxu0 0.0
    %3423 = vmatprep.subr.mxu0 0.0
    %3424 = vmatpush1.msra.mxu0 0.0
    %3425 = vmatprep.subr.mxu0 0.0
    %3426 = vmatpush1.msra.mxu0 0.0
    %3427 = vmatprep.subr.mxu0 0.0
    %3428 = vmatpush1.msra.mxu0 0.0
    %3429 = vmatprep.subr.mxu0 0.0
    %3430 = vmatpush1.msra.mxu0 0.0
    %3431 = vmatprep.subr.mxu0 0.0
    %3432 = vmatpush1.msra.mxu0 0.0
    %3433 = vmatprep.subr.mxu0 0.0
    %3434 = vmatpush1.msra.mxu0 0.0
    %3435 = vmatprep.subr.mxu0 0.0
    %3436 = vmatpush1.msra.mxu0 0.0
    %3437 = vmatprep.subr.mxu0 0.0
    %3438 = vmatpush1.msra.mxu0 0.0
    %3439 = vmatprep.subr.mxu0 0.0
    %3440 = vmatpush1.msra.mxu0 0.0
    %3441 = vmatprep.subr.mxu0 0.0
    %3442 = vmatpush1.msra.mxu0 0.0
    %3443 = vmatprep.subr.mxu0 0.0
    %3444 = vmatpush1.msra.mxu0 0.0
    %3445 = vmatprep.mubr.f32.mxu0 0.0
    %v3446 = vand.u32 %v3374, 4294901760
    %v3447 = vsub.f32 %v3374, %v3446
    %v3448 = vand.u32 %v3447, 4294901760
    %v3449 = vsub.f32 %v3447, %v3448
    %v3450 = vand.u32 %v3449, 4294901760
    %3451 = vmatmul.mubr.f32.gmra.mrb[0].mxu0 %v3450
    %v3452 = vpop.f32.mrb[0].mxu0
    %v3453 = vadd.f32 0.0, %v3452
    %v3454 = vpop.f32.mrb[0].mxu0
    %3455 = vmatprep.mubr.f32.mxu0 0.0
    %v3456 = vand.u32 %v3377, 4294901760
    %v3457 = vsub.f32 %v3377, %v3456
    %v3458 = vand.u32 %v3457, 4294901760
    %v3459 = vsub.f32 %v3457, %v3458
    %v3460 = vand.u32 %v3459, 4294901760
    %3461 = vmatmul.mubr.f32.gmra.mrb[0].mxu0 %v3460
    %v3462 = vpop.f32.mrb[0].mxu0
    %v3463 = vadd.f32 0.0, %v3462
    %v3464 = vpop.f32.mrb[0].mxu0
    %3465 = vdwg.mxu0
    %3466 = vmatprep.subr.mxu0 0.0
    %v3467 = vand.u32 %v2860, 4294901760
    %v3468 = vsub.f32 %v2860, %v3467
    %v3469 = vand.u32 %v3468, 4294901760
    %v3470 = vsub.f32 %v3468, %v3469
    %v3471 = vand.u32 %v3470, 4294901760
    %3472 = vmatpush1.msra.mxu0 %v3471
    %3473 = vmatprep.subr.mxu0 0.0
    %v3474 = vand.u32 %v2861, 4294901760
    %v3475 = vsub.f32 %v2861, %v3474
    %v3476 = vand.u32 %v3475, 4294901760
    %v3477 = vsub.f32 %v3475, %v3476
    %v3478 = vand.u32 %v3477, 4294901760
    %3479 = vmatpush1.msra.mxu0 %v3478
    %3480 = vmatprep.subr.mxu0 0.0
    %3481 = vmatpush1.msra.mxu0 0.0
    %3482 = vmatprep.subr.mxu0 0.0
    %3483 = vmatpush1.msra.mxu0 0.0
    %3484 = vmatprep.subr.mxu0 0.0
    %3485 = vmatpush1.msra.mxu0 0.0
    %3486 = vmatprep.subr.mxu0 0.0
    %3487 = vmatpush1.msra.mxu0 0.0
    %3488 = vmatprep.subr.mxu0 0.0
    %3489 = vmatpush1.msra.mxu0 0.0
    %3490 = vmatprep.subr.mxu0 0.0
    %3491 = vmatpush1.msra.mxu0 0.0
    %3492 = vmatprep.subr.mxu0 0.0
    %3493 = vmatpush1.msra.mxu0 0.0
    %3494 = vmatprep.subr.mxu0 0.0
    %3495 = vmatpush1.msra.mxu0 0.0
    %3496 = vmatprep.subr.mxu0 0.0
    %3497 = vmatpush1.msra.mxu0 0.0
    %3498 = vmatprep.subr.mxu0 0.0
    %3499 = vmatpush1.msra.mxu0 0.0
    %3500 = vmatprep.subr.mxu0 0.0
    %3501 = vmatpush1.msra.mxu0 0.0
    %3502 = vmatprep.subr.mxu0 0.0
    %3503 = vmatpush1.msra.mxu0 0.0
    %3504 = vmatprep.subr.mxu0 0.0
    %3505 = vmatpush1.msra.mxu0 0.0
    %3506 = vmatprep.subr.mxu0 0.0
    %3507 = vmatpush1.msra.mxu0 0.0
    %3508 = vmatprep.subr.mxu0 0.0
    %3509 = vmatpush1.msra.mxu0 0.0
    %3510 = vmatprep.subr.mxu0 0.0
    %3511 = vmatpush1.msra.mxu0 0.0
    %3512 = vmatprep.subr.mxu0 0.0
    %3513 = vmatpush1.msra.mxu0 0.0
    %3514 = vmatprep.subr.mxu0 0.0
    %3515 = vmatpush1.msra.mxu0 0.0
    %3516 = vmatprep.subr.mxu0 0.0
    %3517 = vmatpush1.msra.mxu0 0.0
    %3518 = vmatprep.subr.mxu0 0.0
    %3519 = vmatpush1.msra.mxu0 0.0
    %3520 = vmatprep.subr.mxu0 0.0
    %3521 = vmatpush1.msra.mxu0 0.0
    %3522 = vmatprep.subr.mxu0 0.0
    %3523 = vmatpush1.msra.mxu0 0.0
    %3524 = vmatprep.subr.mxu0 0.0
    %3525 = vmatpush1.msra.mxu0 0.0
    %3526 = vmatprep.subr.mxu0 0.0
    %3527 = vmatpush1.msra.mxu0 0.0
    %3528 = vmatprep.subr.mxu0 0.0
    %3529 = vmatpush1.msra.mxu0 0.0
    %3530 = vmatprep.subr.mxu0 0.0
    %3531 = vmatpush1.msra.mxu0 0.0
    %3532 = vmatprep.subr.mxu0 0.0
    %3533 = vmatpush1.msra.mxu0 0.0
    %3534 = vmatprep.subr.mxu0 0.0
    %3535 = vmatpush1.msra.mxu0 0.0
    %3536 = vmatprep.subr.mxu0 0.0
    %3537 = vmatpush1.msra.mxu0 0.0
    %3538 = vmatprep.subr.mxu0 0.0
    %3539 = vmatpush1.msra.mxu0 0.0
    %3540 = vmatprep.mubr.f32.mxu0 0.0
    %v3541 = vand.u32 %v3374, 4294901760
    %3542 = vmatmul.mubr.f32.gmra.mrb[0].mxu0 %v3541
    %v3543 = vpop.f32.mrb[0].mxu0
    %v3544 = vadd.f32 %v3453, %v3543
    %v3545 = vpop.f32.mrb[0].mxu0
    %3546 = vmatprep.mubr.f32.mxu0 0.0
    %v3547 = vand.u32 %v3377, 4294901760
    %3548 = vmatmul.mubr.f32.gmra.mrb[0].mxu0 %v3547
    %v3549 = vpop.f32.mrb[0].mxu0
    %v3550 = vadd.f32 %v3463, %v3549
    %v3551 = vpop.f32.mrb[0].mxu0
    %3552 = vdwg.mxu0
    %3553 = vmatprep.subr.mxu0 0.0
    %v3554 = vand.u32 %v2860, 4294901760
    %v3555 = vsub.f32 %v2860, %v3554
    %3556 = vmatpush1.msra.mxu0 %v3555
    %3557 = vmatprep.subr.mxu0 0.0
    %v3558 = vand.u32 %v2861, 4294901760
    %v3559 = vsub.f32 %v2861, %v3558
    %3560 = vmatpush1.msra.mxu0 %v3559
    %3561 = vmatprep.subr.mxu0 0.0
    %3562 = vmatpush1.msra.mxu0 0.0
    %3563 = vmatprep.subr.mxu0 0.0
    %3564 = vmatpush1.msra.mxu0 0.0
    %3565 = vmatprep.subr.mxu0 0.0
    %3566 = vmatpush1.msra.mxu0 0.0
    %3567 = vmatprep.subr.mxu0 0.0
    %3568 = vmatpush1.msra.mxu0 0.0
    %3569 = vmatprep.subr.mxu0 0.0
    %3570 = vmatpush1.msra.mxu0 0.0
    %3571 = vmatprep.subr.mxu0 0.0
    %3572 = vmatpush1.msra.mxu0 0.0
    %3573 = vmatprep.subr.mxu0 0.0
    %3574 = vmatpush1.msra.mxu0 0.0
    %3575 = vmatprep.subr.mxu0 0.0
    %3576 = vmatpush1.msra.mxu0 0.0
    %3577 = vmatprep.subr.mxu0 0.0
    %3578 = vmatpush1.msra.mxu0 0.0
    %3579 = vmatprep.subr.mxu0 0.0
    %3580 = vmatpush1.msra.mxu0 0.0
    %3581 = vmatprep.subr.mxu0 0.0
    %3582 = vmatpush1.msra.mxu0 0.0
    %3583 = vmatprep.subr.mxu0 0.0
    %3584 = vmatpush1.msra.mxu0 0.0
    %3585 = vmatprep.subr.mxu0 0.0
    %3586 = vmatpush1.msra.mxu0 0.0
    %3587 = vmatprep.subr.mxu0 0.0
    %3588 = vmatpush1.msra.mxu0 0.0
    %3589 = vmatprep.subr.mxu0 0.0
    %3590 = vmatpush1.msra.mxu0 0.0
    %3591 = vmatprep.subr.mxu0 0.0
    %3592 = vmatpush1.msra.mxu0 0.0
    %3593 = vmatprep.subr.mxu0 0.0
    %3594 = vmatpush1.msra.mxu0 0.0
    %3595 = vmatprep.subr.mxu0 0.0
    %3596 = vmatpush1.msra.mxu0 0.0
    %3597 = vmatprep.subr.mxu0 0.0
    %3598 = vmatpush1.msra.mxu0 0.0
    %3599 = vmatprep.subr.mxu0 0.0
    %3600 = vmatpush1.msra.mxu0 0.0
    %3601 = vmatprep.subr.mxu0 0.0
    %3602 = vmatpush1.msra.mxu0 0.0
    %3603 = vmatprep.subr.mxu0 0.0
    %3604 = vmatpush1.msra.mxu0 0.0
    %3605 = vmatprep.subr.mxu0 0.0
    %3606 = vmatpush1.msra.mxu0 0.0
    %3607 = vmatprep.subr.mxu0 0.0
    %3608 = vmatpush1.msra.mxu0 0.0
    %3609 = vmatprep.subr.mxu0 0.0
    %3610 = vmatpush1.msra.mxu0 0.0
    %3611 = vmatprep.subr.mxu0 0.0
    %3612 = vmatpush1.msra.mxu0 0.0
    %3613 = vmatprep.subr.mxu0 0.0
    %3614 = vmatpush1.msra.mxu0 0.0
    %3615 = vmatprep.subr.mxu0 0.0
    %3616 = vmatpush1.msra.mxu0 0.0
    %3617 = vmatprep.subr.mxu0 0.0
    %3618 = vmatpush1.msra.mxu0 0.0
    %3619 = vmatprep.subr.mxu0 0.0
    %3620 = vmatpush1.msra.mxu0 0.0
    %3621 = vmatprep.mubr.f32.mxu0 0.0
    %v3622 = vand.u32 %v3374, 4294901760
    %v3623 = vsub.f32 %v3374, %v3622
    %3624 = vmatmul.mubr.f32.gmra.mrb[0].mxu0 %v3623
    %v3625 = vpop.f32.mrb[0].mxu0
    %v3626 = vadd.f32 %v3544, %v3625
    %v3627 = vpop.f32.mrb[0].mxu0
    %3628 = vmatprep.mubr.f32.mxu0 0.0
    %v3629 = vand.u32 %v3377, 4294901760
    %v3630 = vsub.f32 %v3377, %v3629
    %3631 = vmatmul.mubr.f32.gmra.mrb[0].mxu0 %v3630
    %v3632 = vpop.f32.mrb[0].mxu0
    %v3633 = vadd.f32 %v3550, %v3632
    %v3634 = vpop.f32.mrb[0].mxu0
    %3635 = vdwg.mxu0
    %3636 = vmatprep.subr.mxu0 0.0
    %v3637 = vand.u32 %v2860, 4294901760
    %3638 = vmatpush1.msra.mxu0 %v3637
    %3639 = vmatprep.subr.mxu0 0.0
    %v3640 = vand.u32 %v2861, 4294901760
    %3641 = vmatpush1.msra.mxu0 %v3640
    %3642 = vmatprep.subr.mxu0 0.0
    %3643 = vmatpush1.msra.mxu0 0.0
    %3644 = vmatprep.subr.mxu0 0.0
    %3645 = vmatpush1.msra.mxu0 0.0
    %3646 = vmatprep.subr.mxu0 0.0
    %3647 = vmatpush1.msra.mxu0 0.0
    %3648 = vmatprep.subr.mxu0 0.0
    %3649 = vmatpush1.msra.mxu0 0.0
    %3650 = vmatprep.subr.mxu0 0.0
    %3651 = vmatpush1.msra.mxu0 0.0
    %3652 = vmatprep.subr.mxu0 0.0
    %3653 = vmatpush1.msra.mxu0 0.0
    %3654 = vmatprep.subr.mxu0 0.0
    %3655 = vmatpush1.msra.mxu0 0.0
    %3656 = vmatprep.subr.mxu0 0.0
    %3657 = vmatpush1.msra.mxu0 0.0
    %3658 = vmatprep.subr.mxu0 0.0
    %3659 = vmatpush1.msra.mxu0 0.0
    %3660 = vmatprep.subr.mxu0 0.0
    %3661 = vmatpush1.msra.mxu0 0.0
    %3662 = vmatprep.subr.mxu0 0.0
    %3663 = vmatpush1.msra.mxu0 0.0
    %3664 = vmatprep.subr.mxu0 0.0
    %3665 = vmatpush1.msra.mxu0 0.0
    %3666 = vmatprep.subr.mxu0 0.0
    %3667 = vmatpush1.msra.mxu0 0.0
    %3668 = vmatprep.subr.mxu0 0.0
    %3669 = vmatpush1.msra.mxu0 0.0
    %3670 = vmatprep.subr.mxu0 0.0
    %3671 = vmatpush1.msra.mxu0 0.0
    %3672 = vmatprep.subr.mxu0 0.0
    %3673 = vmatpush1.msra.mxu0 0.0
    %3674 = vmatprep.subr.mxu0 0.0
    %3675 = vmatpush1.msra.mxu0 0.0
    %3676 = vmatprep.subr.mxu0 0.0
    %3677 = vmatpush1.msra.mxu0 0.0
    %3678 = vmatprep.subr.mxu0 0.0
    %3679 = vmatpush1.msra.mxu0 0.0
    %3680 = vmatprep.subr.mxu0 0.0
    %3681 = vmatpush1.msra.mxu0 0.0
    %3682 = vmatprep.subr.mxu0 0.0
    %3683 = vmatpush1.msra.mxu0 0.0
    %3684 = vmatprep.subr.mxu0 0.0
    %3685 = vmatpush1.msra.mxu0 0.0
    %3686 = vmatprep.subr.mxu0 0.0
    %3687 = vmatpush1.msra.mxu0 0.0
    %3688 = vmatprep.subr.mxu0 0.0
    %3689 = vmatpush1.msra.mxu0 0.0
    %3690 = vmatprep.subr.mxu0 0.0
    %3691 = vmatpush1.msra.mxu0 0.0
    %3692 = vmatprep.subr.mxu0 0.0
    %3693 = vmatpush1.msra.mxu0 0.0
    %3694 = vmatprep.subr.mxu0 0.0
    %3695 = vmatpush1.msra.mxu0 0.0
    %3696 = vmatprep.subr.mxu0 0.0
    %3697 = vmatpush1.msra.mxu0 0.0
    %3698 = vmatprep.subr.mxu0 0.0
    %3699 = vmatpush1.msra.mxu0 0.0
    %3700 = vmatprep.subr.mxu0 0.0
    %3701 = vmatpush1.msra.mxu0 0.0
    %3702 = vmatprep.mubr.f32.mxu0 0.0
    %v3703 = vand.u32 %v3374, 4294901760
    %v3704 = vsub.f32 %v3374, %v3703
    %v3705 = vand.u32 %v3704, 4294901760
    %3706 = vmatmul.mubr.f32.gmra.mrb[0].mxu0 %v3705
    %v3707 = vpop.f32.mrb[0].mxu0
    %v3708 = vadd.f32 %v3626, %v3707
    %v3709 = vpop.f32.mrb[0].mxu0
    %3710 = vmatprep.mubr.f32.mxu0 0.0
    %v3711 = vand.u32 %v3377, 4294901760
    %v3712 = vsub.f32 %v3377, %v3711
    %v3713 = vand.u32 %v3712, 4294901760
    %3714 = vmatmul.mubr.f32.gmra.mrb[0].mxu0 %v3713
    %v3715 = vpop.f32.mrb[0].mxu0
    %v3716 = vadd.f32 %v3633, %v3715
    %v3717 = vpop.f32.mrb[0].mxu0
    %3718 = vdwg.mxu0
    %3719 = vmatprep.subr.mxu0 0.0
    %v3720 = vand.u32 %v2860, 4294901760
    %v3721 = vsub.f32 %v2860, %v3720
    %v3722 = vand.u32 %v3721, 4294901760
    %3723 = vmatpush1.msra.mxu0 %v3722
    %3724 = vmatprep.subr.mxu0 0.0
    %v3725 = vand.u32 %v2861, 4294901760
    %v3726 = vsub.f32 %v2861, %v3725
    %v3727 = vand.u32 %v3726, 4294901760
    %3728 = vmatpush1.msra.mxu0 %v3727
    %3729 = vmatprep.subr.mxu0 0.0
    %3730 = vmatpush1.msra.mxu0 0.0
    %3731 = vmatprep.subr.mxu0 0.0
    %3732 = vmatpush1.msra.mxu0 0.0
    %3733 = vmatprep.subr.mxu0 0.0
    %3734 = vmatpush1.msra.mxu0 0.0
    %3735 = vmatprep.subr.mxu0 0.0
    %3736 = vmatpush1.msra.mxu0 0.0
    %3737 = vmatprep.subr.mxu0 0.0
    %3738 = vmatpush1.msra.mxu0 0.0
    %3739 = vmatprep.subr.mxu0 0.0
    %3740 = vmatpush1.msra.mxu0 0.0
    %3741 = vmatprep.subr.mxu0 0.0
    %3742 = vmatpush1.msra.mxu0 0.0
    %3743 = vmatprep.subr.mxu0 0.0
    %3744 = vmatpush1.msra.mxu0 0.0
    %3745 = vmatprep.subr.mxu0 0.0
    %3746 = vmatpush1.msra.mxu0 0.0
    %3747 = vmatprep.subr.mxu0 0.0
    %3748 = vmatpush1.msra.mxu0 0.0
    %3749 = vmatprep.subr.mxu0 0.0
    %3750 = vmatpush1.msra.mxu0 0.0
    %3751 = vmatprep.subr.mxu0 0.0
    %3752 = vmatpush1.msra.mxu0 0.0
    %3753 = vmatprep.subr.mxu0 0.0
    %3754 = vmatpush1.msra.mxu0 0.0
    %3755 = vmatprep.subr.mxu0 0.0
    %3756 = vmatpush1.msra.mxu0 0.0
    %3757 = vmatprep.subr.mxu0 0.0
    %3758 = vmatpush1.msra.mxu0 0.0
    %3759 = vmatprep.subr.mxu0 0.0
    %3760 = vmatpush1.msra.mxu0 0.0
    %3761 = vmatprep.subr.mxu0 0.0
    %3762 = vmatpush1.msra.mxu0 0.0
    %3763 = vmatprep.subr.mxu0 0.0
    %3764 = vmatpush1.msra.mxu0 0.0
    %3765 = vmatprep.subr.mxu0 0.0
    %3766 = vmatpush1.msra.mxu0 0.0
    %3767 = vmatprep.subr.mxu0 0.0
    %3768 = vmatpush1.msra.mxu0 0.0
    %3769 = vmatprep.subr.mxu0 0.0
    %3770 = vmatpush1.msra.mxu0 0.0
    %3771 = vmatprep.subr.mxu0 0.0
    %3772 = vmatpush1.msra.mxu0 0.0
    %3773 = vmatprep.subr.mxu0 0.0
    %3774 = vmatpush1.msra.mxu0 0.0
    %3775 = vmatprep.subr.mxu0 0.0
    %3776 = vmatpush1.msra.mxu0 0.0
    %3777 = vmatprep.subr.mxu0 0.0
    %3778 = vmatpush1.msra.mxu0 0.0
    %3779 = vmatprep.subr.mxu0 0.0
    %3780 = vmatpush1.msra.mxu0 0.0
    %3781 = vmatprep.subr.mxu0 0.0
    %3782 = vmatpush1.msra.mxu0 0.0
    %3783 = vmatprep.subr.mxu0 0.0
    %3784 = vmatpush1.msra.mxu0 0.0
    %3785 = vmatprep.subr.mxu0 0.0
    %3786 = vmatpush1.msra.mxu0 0.0
    %3787 = vmatprep.subr.mxu0 0.0
    %3788 = vmatpush1.msra.mxu0 0.0
    %3789 = vmatprep.mubr.f32.mxu0 0.0
    %v3790 = vand.u32 %v3374, 4294901760
    %3791 = vmatmul.mubr.f32.gmra.mrb[0].mxu0 %v3790
    %v3792 = vpop.f32.mrb[0].mxu0
    %v3793 = vadd.f32 %v3708, %v3792
    %v3794 = vpop.f32.mrb[0].mxu0
    %3795 = vmatprep.mubr.f32.mxu0 0.0
    %v3796 = vand.u32 %v3377, 4294901760
    %3797 = vmatmul.mubr.f32.gmra.mrb[0].mxu0 %v3796
    %v3798 = vpop.f32.mrb[0].mxu0
    %v3799 = vadd.f32 %v3716, %v3798
    %v3800 = vpop.f32.mrb[0].mxu0
    %3801 = vdwg.mxu0
    %3802 = vmatprep.subr.mxu0 0.0
    %v3803 = vand.u32 %v2860, 4294901760
    %3804 = vmatpush1.msra.mxu0 %v3803
    %3805 = vmatprep.subr.mxu0 0.0
    %v3806 = vand.u32 %v2861, 4294901760
    %3807 = vmatpush1.msra.mxu0 %v3806
    %3808 = vmatprep.subr.mxu0 0.0
    %3809 = vmatpush1.msra.mxu0 0.0
    %3810 = vmatprep.subr.mxu0 0.0
    %3811 = vmatpush1.msra.mxu0 0.0
    %3812 = vmatprep.subr.mxu0 0.0
    %3813 = vmatpush1.msra.mxu0 0.0
    %3814 = vmatprep.subr.mxu0 0.0
    %3815 = vmatpush1.msra.mxu0 0.0
    %3816 = vmatprep.subr.mxu0 0.0
    %3817 = vmatpush1.msra.mxu0 0.0
    %3818 = vmatprep.subr.mxu0 0.0
    %3819 = vmatpush1.msra.mxu0 0.0
    %3820 = vmatprep.subr.mxu0 0.0
    %3821 = vmatpush1.msra.mxu0 0.0
    %3822 = vmatprep.subr.mxu0 0.0
    %3823 = vmatpush1.msra.mxu0 0.0
    %3824 = vmatprep.subr.mxu0 0.0
    %3825 = vmatpush1.msra.mxu0 0.0
    %3826 = vmatprep.subr.mxu0 0.0
    %3827 = vmatpush1.msra.mxu0 0.0
    %3828 = vmatprep.subr.mxu0 0.0
    %3829 = vmatpush1.msra.mxu0 0.0
    %3830 = vmatprep.subr.mxu0 0.0
    %3831 = vmatpush1.msra.mxu0 0.0
    %3832 = vmatprep.subr.mxu0 0.0
    %3833 = vmatpush1.msra.mxu0 0.0
    %3834 = vmatprep.subr.mxu0 0.0
    %3835 = vmatpush1.msra.mxu0 0.0
    %3836 = vmatprep.subr.mxu0 0.0
    %3837 = vmatpush1.msra.mxu0 0.0
    %3838 = vmatprep.subr.mxu0 0.0
    %3839 = vmatpush1.msra.mxu0 0.0
    %3840 = vmatprep.subr.mxu0 0.0
    %3841 = vmatpush1.msra.mxu0 0.0
    %3842 = vmatprep.subr.mxu0 0.0
    %3843 = vmatpush1.msra.mxu0 0.0
    %3844 = vmatprep.subr.mxu0 0.0
    %3845 = vmatpush1.msra.mxu0 0.0
    %3846 = vmatprep.subr.mxu0 0.0
    %3847 = vmatpush1.msra.mxu0 0.0
    %3848 = vmatprep.subr.mxu0 0.0
    %3849 = vmatpush1.msra.mxu0 0.0
    %3850 = vmatprep.subr.mxu0 0.0
    %3851 = vmatpush1.msra.mxu0 0.0
    %3852 = vmatprep.subr.mxu0 0.0
    %3853 = vmatpush1.msra.mxu0 0.0
    %3854 = vmatprep.subr.mxu0 0.0
    %3855 = vmatpush1.msra.mxu0 0.0
    %3856 = vmatprep.subr.mxu0 0.0
    %3857 = vmatpush1.msra.mxu0 0.0
    %3858 = vmatprep.subr.mxu0 0.0
    %3859 = vmatpush1.msra.mxu0 0.0
    %3860 = vmatprep.subr.mxu0 0.0
    %3861 = vmatpush1.msra.mxu0 0.0
    %3862 = vmatprep.subr.mxu0 0.0
    %3863 = vmatpush1.msra.mxu0 0.0
    %3864 = vmatprep.subr.mxu0 0.0
    %3865 = vmatpush1.msra.mxu0 0.0
    %3866 = vmatprep.subr.mxu0 0.0
    %3867 = vmatpush1.msra.mxu0 0.0
    %3868 = vmatprep.mubr.f32.mxu0 0.0
    %v3869 = vand.u32 %v3374, 4294901760
    %3870 = vmatmul.mubr.f32.gmra.mrb[0].mxu0 %v3869
    %v3871 = vpop.f32.mrb[0].mxu0
    %v3872 = vadd.f32 %v3793, %v3871
    %v3873 = vpop.f32.mrb[0].mxu0
    %3874 = vmatprep.mubr.f32.mxu0 0.0
    %v3875 = vand.u32 %v3377, 4294901760
    %3876 = vmatmul.mubr.f32.gmra.mrb[0].mxu0 %v3875
    %v3877 = vpop.f32.mrb[0].mxu0
    %v3878 = vadd.f32 %v3799, %v3877
    %v3879 = vpop.f32.mrb[0].mxu0
    %3880 = vdwg.mxu0
    %v3881 = vmax.f32 %v3371, %v3872
    %v3882 = vmax.f32 %v3372, %v3878
    %v3884 = vsel %vm2862, %v3872, 0
    %v3887 = vsel %vm2862, %v3878, 0
    %3889 = vmatprep.subr.mxu0 0.0
    %v3890 = vand.u32 %v2860, 4294901760
    %3891 = vmatpush1.msra.mxu0 %v3890
    %3892 = vmatprep.subr.mxu0 0.0
    %v3893 = vand.u32 %v2861, 4294901760
    %3894 = vmatpush1.msra.mxu0 %v3893
    %3895 = vmatprep.subr.mxu0 0.0
    %3896 = vmatpush1.msra.mxu0 0.0
    %3897 = vmatprep.subr.mxu0 0.0
    %3898 = vmatpush1.msra.mxu0 0.0
    %3899 = vmatprep.subr.mxu0 0.0
    %3900 = vmatpush1.msra.mxu0 0.0
    %3901 = vmatprep.subr.mxu0 0.0
    %3902 = vmatpush1.msra.mxu0 0.0
    %3903 = vmatprep.subr.mxu0 0.0
    %3904 = vmatpush1.msra.mxu0 0.0
    %3905 = vmatprep.subr.mxu0 0.0
    %3906 = vmatpush1.msra.mxu0 0.0
    %3907 = vmatprep.subr.mxu0 0.0
    %3908 = vmatpush1.msra.mxu0 0.0
    %3909 = vmatprep.subr.mxu0 0.0
    %3910 = vmatpush1.msra.mxu0 0.0
    %3911 = vmatprep.subr.mxu0 0.0
    %3912 = vmatpush1.msra.mxu0 0.0
    %3913 = vmatprep.subr.mxu0 0.0
    %3914 = vmatpush1.msra.mxu0 0.0
    %3915 = vmatprep.subr.mxu0 0.0
    %3916 = vmatpush1.msra.mxu0 0.0
    %3917 = vmatprep.subr.mxu0 0.0
    %3918 = vmatpush1.msra.mxu0 0.0
    %3919 = vmatprep.subr.mxu0 0.0
    %3920 = vmatpush1.msra.mxu0 0.0
    %3921 = vmatprep.subr.mxu0 0.0
    %3922 = vmatpush1.msra.mxu0 0.0
    %3923 = vmatprep.subr.mxu0 0.0
    %3924 = vmatpush1.msra.mxu0 0.0
    %3925 = vmatprep.subr.mxu0 0.0
    %3926 = vmatpush1.msra.mxu0 0.0
    %3927 = vmatprep.subr.mxu0 0.0
    %3928 = vmatpush1.msra.mxu0 0.0
    %3929 = vmatprep.subr.mxu0 0.0
    %3930 = vmatpush1.msra.mxu0 0.0
    %3931 = vmatprep.subr.mxu0 0.0
    %3932 = vmatpush1.msra.mxu0 0.0
    %3933 = vmatprep.subr.mxu0 0.0
    %3934 = vmatpush1.msra.mxu0 0.0
    %3935 = vmatprep.subr.mxu0 0.0
    %3936 = vmatpush1.msra.mxu0 0.0
    %3937 = vmatprep.subr.mxu0 0.0
    %3938 = vmatpush1.msra.mxu0 0.0
    %3939 = vmatprep.subr.mxu0 0.0
    %3940 = vmatpush1.msra.mxu0 0.0
    %3941 = vmatprep.subr.mxu0 0.0
    %3942 = vmatpush1.msra.mxu0 0.0
    %3943 = vmatprep.subr.mxu0 0.0
    %3944 = vmatpush1.msra.mxu0 0.0
    %3945 = vmatprep.subr.mxu0 0.0
    %3946 = vmatpush1.msra.mxu0 0.0
    %3947 = vmatprep.subr.mxu0 0.0
    %3948 = vmatpush1.msra.mxu0 0.0
    %3949 = vmatprep.subr.mxu0 0.0
    %3950 = vmatpush1.msra.mxu0 0.0
    %3951 = vmatprep.subr.mxu0 0.0
    %3952 = vmatpush1.msra.mxu0 0.0
    %3953 = vmatprep.subr.mxu0 0.0
    %3954 = vmatpush1.msra.mxu0 0.0
    %3955 = vmatprep.mubr.f32.mxu0 0.0
    %v3956 = vand.u32 %v3884, 4294901760
    %v3957 = vsub.f32 %v3884, %v3956
    %v3958 = vand.u32 %v3957, 4294901760
    %v3959 = vsub.f32 %v3957, %v3958
    %v3960 = vand.u32 %v3959, 4294901760
    %3961 = vmatmul.mubr.f32.gmra.mrb[0].mxu0 %v3960
    %v3962 = vpop.f32.mrb[0].mxu0
    %v3963 = vadd.f32 0.0, %v3962
    %v3964 = vpop.f32.mrb[0].mxu0
    %3965 = vmatprep.mubr.f32.mxu0 0.0
    %v3966 = vand.u32 %v3887, 4294901760
    %v3967 = vsub.f32 %v3887, %v3966
    %v3968 = vand.u32 %v3967, 4294901760
    %v3969 = vsub.f32 %v3967, %v3968
    %v3970 = vand.u32 %v3969, 4294901760
    %3971 = vmatmul.mubr.f32.gmra.mrb[0].mxu0 %v3970
    %v3972 = vpop.f32.mrb[0].mxu0
    %v3973 = vadd.f32 0.0, %v3972
    %v3974 = vpop.f32.mrb[0].mxu0
    %3975 = vdwg.mxu0
    %3976 = vmatprep.subr.mxu0 0.0
    %v3977 = vand.u32 %v2860, 4294901760
    %v3978 = vsub.f32 %v2860, %v3977
    %v3979 = vand.u32 %v3978, 4294901760
    %v3980 = vsub.f32 %v3978, %v3979
    %v3981 = vand.u32 %v3980, 4294901760
    %3982 = vmatpush1.msra.mxu0 %v3981
    %3983 = vmatprep.subr.mxu0 0.0
    %v3984 = vand.u32 %v2861, 4294901760
    %v3985 = vsub.f32 %v2861, %v3984
    %v3986 = vand.u32 %v3985, 4294901760
    %v3987 = vsub.f32 %v3985, %v3986
    %v3988 = vand.u32 %v3987, 4294901760
    %3989 = vmatpush1.msra.mxu0 %v3988
    %3990 = vmatprep.subr.mxu0 0.0
    %3991 = vmatpush1.msra.mxu0 0.0
    %3992 = vmatprep.subr.mxu0 0.0
    %3993 = vmatpush1.msra.mxu0 0.0
    %3994 = vmatprep.subr.mxu0 0.0
    %3995 = vmatpush1.msra.mxu0 0.0
    %3996 = vmatprep.subr.mxu0 0.0
    %3997 = vmatpush1.msra.mxu0 0.0
    %3998 = vmatprep.subr.mxu0 0.0
    %3999 = vmatpush1.msra.mxu0 0.0
    %4000 = vmatprep.subr.mxu0 0.0
    %4001 = vmatpush1.msra.mxu0 0.0
    %4002 = vmatprep.subr.mxu0 0.0
    %4003 = vmatpush1.msra.mxu0 0.0
    %4004 = vmatprep.subr.mxu0 0.0
    %4005 = vmatpush1.msra.mxu0 0.0
    %4006 = vmatprep.subr.mxu0 0.0
    %4007 = vmatpush1.msra.mxu0 0.0
    %4008 = vmatprep.subr.mxu0 0.0
    %4009 = vmatpush1.msra.mxu0 0.0
    %4010 = vmatprep.subr.mxu0 0.0
    %4011 = vmatpush1.msra.mxu0 0.0
    %4012 = vmatprep.subr.mxu0 0.0
    %4013 = vmatpush1.msra.mxu0 0.0
    %4014 = vmatprep.subr.mxu0 0.0
    %4015 = vmatpush1.msra.mxu0 0.0
    %4016 = vmatprep.subr.mxu0 0.0
    %4017 = vmatpush1.msra.mxu0 0.0
    %4018 = vmatprep.subr.mxu0 0.0
    %4019 = vmatpush1.msra.mxu0 0.0
    %4020 = vmatprep.subr.mxu0 0.0
    %4021 = vmatpush1.msra.mxu0 0.0
    %4022 = vmatprep.subr.mxu0 0.0
    %4023 = vmatpush1.msra.mxu0 0.0
    %4024 = vmatprep.subr.mxu0 0.0
    %4025 = vmatpush1.msra.mxu0 0.0
    %4026 = vmatprep.subr.mxu0 0.0
    %4027 = vmatpush1.msra.mxu0 0.0
    %4028 = vmatprep.subr.mxu0 0.0
    %4029 = vmatpush1.msra.mxu0 0.0
    %4030 = vmatprep.subr.mxu0 0.0
    %4031 = vmatpush1.msra.mxu0 0.0
    %4032 = vmatprep.subr.mxu0 0.0
    %4033 = vmatpush1.msra.mxu0 0.0
    %4034 = vmatprep.subr.mxu0 0.0
    %4035 = vmatpush1.msra.mxu0 0.0
    %4036 = vmatprep.subr.mxu0 0.0
    %4037 = vmatpush1.msra.mxu0 0.0
    %4038 = vmatprep.subr.mxu0 0.0
    %4039 = vmatpush1.msra.mxu0 0.0
    %4040 = vmatprep.subr.mxu0 0.0
    %4041 = vmatpush1.msra.mxu0 0.0
    %4042 = vmatprep.subr.mxu0 0.0
    %4043 = vmatpush1.msra.mxu0 0.0
    %4044 = vmatprep.subr.mxu0 0.0
    %4045 = vmatpush1.msra.mxu0 0.0
    %4046 = vmatprep.subr.mxu0 0.0
    %4047 = vmatpush1.msra.mxu0 0.0
    %4048 = vmatprep.subr.mxu0 0.0
    %4049 = vmatpush1.msra.mxu0 0.0
    %4050 = vmatprep.mubr.f32.mxu0 0.0
    %v4051 = vand.u32 %v3884, 4294901760
    %4052 = vmatmul.mubr.f32.gmra.mrb[0].mxu0 %v4051
    %v4053 = vpop.f32.mrb[0].mxu0
    %v4054 = vadd.f32 %v3963, %v4053
    %v4055 = vpop.f32.mrb[0].mxu0
    %4056 = vmatprep.mubr.f32.mxu0 0.0
    %v4057 = vand.u32 %v3887, 4294901760
    %4058 = vmatmul.mubr.f32.gmra.mrb[0].mxu0 %v4057
    %v4059 = vpop.f32.mrb[0].mxu0
    %v4060 = vadd.f32 %v3973, %v4059
    %v4061 = vpop.f32.mrb[0].mxu0
    %4062 = vdwg.mxu0
    %4063 = vmatprep.subr.mxu0 0.0
    %v4064 = vand.u32 %v2860, 4294901760
    %v4065 = vsub.f32 %v2860, %v4064
    %4066 = vmatpush1.msra.mxu0 %v4065
    %4067 = vmatprep.subr.mxu0 0.0
    %v4068 = vand.u32 %v2861, 4294901760
    %v4069 = vsub.f32 %v2861, %v4068
    %4070 = vmatpush1.msra.mxu0 %v4069
    %4071 = vmatprep.subr.mxu0 0.0
    %4072 = vmatpush1.msra.mxu0 0.0
    %4073 = vmatprep.subr.mxu0 0.0
    %4074 = vmatpush1.msra.mxu0 0.0
    %4075 = vmatprep.subr.mxu0 0.0
    %4076 = vmatpush1.msra.mxu0 0.0
    %4077 = vmatprep.subr.mxu0 0.0
    %4078 = vmatpush1.msra.mxu0 0.0
    %4079 = vmatprep.subr.mxu0 0.0
    %4080 = vmatpush1.msra.mxu0 0.0
    %4081 = vmatprep.subr.mxu0 0.0
    %4082 = vmatpush1.msra.mxu0 0.0
    %4083 = vmatprep.subr.mxu0 0.0
    %4084 = vmatpush1.msra.mxu0 0.0
    %4085 = vmatprep.subr.mxu0 0.0
    %4086 = vmatpush1.msra.mxu0 0.0
    %4087 = vmatprep.subr.mxu0 0.0
    %4088 = vmatpush1.msra.mxu0 0.0
    %4089 = vmatprep.subr.mxu0 0.0
    %4090 = vmatpush1.msra.mxu0 0.0
    %4091 = vmatprep.subr.mxu0 0.0
    %4092 = vmatpush1.msra.mxu0 0.0
    %4093 = vmatprep.subr.mxu0 0.0
    %4094 = vmatpush1.msra.mxu0 0.0
    %4095 = vmatprep.subr.mxu0 0.0
    %4096 = vmatpush1.msra.mxu0 0.0
    %4097 = vmatprep.subr.mxu0 0.0
    %4098 = vmatpush1.msra.mxu0 0.0
    %4099 = vmatprep.subr.mxu0 0.0
    %4100 = vmatpush1.msra.mxu0 0.0
    %4101 = vmatprep.subr.mxu0 0.0
    %4102 = vmatpush1.msra.mxu0 0.0
    %4103 = vmatprep.subr.mxu0 0.0
    %4104 = vmatpush1.msra.mxu0 0.0
    %4105 = vmatprep.subr.mxu0 0.0
    %4106 = vmatpush1.msra.mxu0 0.0
    %4107 = vmatprep.subr.mxu0 0.0
    %4108 = vmatpush1.msra.mxu0 0.0
    %4109 = vmatprep.subr.mxu0 0.0
    %4110 = vmatpush1.msra.mxu0 0.0
    %4111 = vmatprep.subr.mxu0 0.0
    %4112 = vmatpush1.msra.mxu0 0.0
    %4113 = vmatprep.subr.mxu0 0.0
    %4114 = vmatpush1.msra.mxu0 0.0
    %4115 = vmatprep.subr.mxu0 0.0
    %4116 = vmatpush1.msra.mxu0 0.0
    %4117 = vmatprep.subr.mxu0 0.0
    %4118 = vmatpush1.msra.mxu0 0.0
    %4119 = vmatprep.subr.mxu0 0.0
    %4120 = vmatpush1.msra.mxu0 0.0
    %4121 = vmatprep.subr.mxu0 0.0
    %4122 = vmatpush1.msra.mxu0 0.0
    %4123 = vmatprep.subr.mxu0 0.0
    %4124 = vmatpush1.msra.mxu0 0.0
    %4125 = vmatprep.subr.mxu0 0.0
    %4126 = vmatpush1.msra.mxu0 0.0
    %4127 = vmatprep.subr.mxu0 0.0
    %4128 = vmatpush1.msra.mxu0 0.0
    %4129 = vmatprep.subr.mxu0 0.0
    %4130 = vmatpush1.msra.mxu0 0.0
    %4131 = vmatprep.mubr.f32.mxu0 0.0
    %v4132 = vand.u32 %v3884, 4294901760
    %v4133 = vsub.f32 %v3884, %v4132
    %4134 = vmatmul.mubr.f32.gmra.mrb[0].mxu0 %v4133
    %v4135 = vpop.f32.mrb[0].mxu0
    %v4136 = vadd.f32 %v4054, %v4135
    %v4137 = vpop.f32.mrb[0].mxu0
    %4138 = vmatprep.mubr.f32.mxu0 0.0
    %v4139 = vand.u32 %v3887, 4294901760
    %v4140 = vsub.f32 %v3887, %v4139
    %4141 = vmatmul.mubr.f32.gmra.mrb[0].mxu0 %v4140
    %v4142 = vpop.f32.mrb[0].mxu0
    %v4143 = vadd.f32 %v4060, %v4142
    %v4144 = vpop.f32.mrb[0].mxu0
    %4145 = vdwg.mxu0
    %4146 = vmatprep.subr.mxu0 0.0
    %v4147 = vand.u32 %v2860, 4294901760
    %4148 = vmatpush1.msra.mxu0 %v4147
    %4149 = vmatprep.subr.mxu0 0.0
    %v4150 = vand.u32 %v2861, 4294901760
    %4151 = vmatpush1.msra.mxu0 %v4150
    %4152 = vmatprep.subr.mxu0 0.0
    %4153 = vmatpush1.msra.mxu0 0.0
    %4154 = vmatprep.subr.mxu0 0.0
    %4155 = vmatpush1.msra.mxu0 0.0
    %4156 = vmatprep.subr.mxu0 0.0
    %4157 = vmatpush1.msra.mxu0 0.0
    %4158 = vmatprep.subr.mxu0 0.0
    %4159 = vmatpush1.msra.mxu0 0.0
    %4160 = vmatprep.subr.mxu0 0.0
    %4161 = vmatpush1.msra.mxu0 0.0
    %4162 = vmatprep.subr.mxu0 0.0
    %4163 = vmatpush1.msra.mxu0 0.0
    %4164 = vmatprep.subr.mxu0 0.0
    %4165 = vmatpush1.msra.mxu0 0.0
    %4166 = vmatprep.subr.mxu0 0.0
    %4167 = vmatpush1.msra.mxu0 0.0
    %4168 = vmatprep.subr.mxu0 0.0
    %4169 = vmatpush1.msra.mxu0 0.0
    %4170 = vmatprep.subr.mxu0 0.0
    %4171 = vmatpush1.msra.mxu0 0.0
    %4172 = vmatprep.subr.mxu0 0.0
    %4173 = vmatpush1.msra.mxu0 0.0
    %4174 = vmatprep.subr.mxu0 0.0
    %4175 = vmatpush1.msra.mxu0 0.0
    %4176 = vmatprep.subr.mxu0 0.0
    %4177 = vmatpush1.msra.mxu0 0.0
    %4178 = vmatprep.subr.mxu0 0.0
    %4179 = vmatpush1.msra.mxu0 0.0
    %4180 = vmatprep.subr.mxu0 0.0
    %4181 = vmatpush1.msra.mxu0 0.0
    %4182 = vmatprep.subr.mxu0 0.0
    %4183 = vmatpush1.msra.mxu0 0.0
    %4184 = vmatprep.subr.mxu0 0.0
    %4185 = vmatpush1.msra.mxu0 0.0
    %4186 = vmatprep.subr.mxu0 0.0
    %4187 = vmatpush1.msra.mxu0 0.0
    %4188 = vmatprep.subr.mxu0 0.0
    %4189 = vmatpush1.msra.mxu0 0.0
    %4190 = vmatprep.subr.mxu0 0.0
    %4191 = vmatpush1.msra.mxu0 0.0
    %4192 = vmatprep.subr.mxu0 0.0
    %4193 = vmatpush1.msra.mxu0 0.0
    %4194 = vmatprep.subr.mxu0 0.0
    %4195 = vmatpush1.msra.mxu0 0.0
    %4196 = vmatprep.subr.mxu0 0.0
    %4197 = vmatpush1.msra.mxu0 0.0
    %4198 = vmatprep.subr.mxu0 0.0
    %4199 = vmatpush1.msra.mxu0 0.0
    %4200 = vmatprep.subr.mxu0 0.0
    %4201 = vmatpush1.msra.mxu0 0.0
    %4202 = vmatprep.subr.mxu0 0.0
    %4203 = vmatpush1.msra.mxu0 0.0
    %4204 = vmatprep.subr.mxu0 0.0
    %4205 = vmatpush1.msra.mxu0 0.0
    %4206 = vmatprep.subr.mxu0 0.0
    %4207 = vmatpush1.msra.mxu0 0.0
    %4208 = vmatprep.subr.mxu0 0.0
    %4209 = vmatpush1.msra.mxu0 0.0
    %4210 = vmatprep.subr.mxu0 0.0
    %4211 = vmatpush1.msra.mxu0 0.0
    %4212 = vmatprep.mubr.f32.mxu0 0.0
    %v4213 = vand.u32 %v3884, 4294901760
    %v4214 = vsub.f32 %v3884, %v4213
    %v4215 = vand.u32 %v4214, 4294901760
    %4216 = vmatmul.mubr.f32.gmra.mrb[0].mxu0 %v4215
    %v4217 = vpop.f32.mrb[0].mxu0
    %v4218 = vadd.f32 %v4136, %v4217
    %v4219 = vpop.f32.mrb[0].mxu0
    %4220 = vmatprep.mubr.f32.mxu0 0.0
    %v4221 = vand.u32 %v3887, 4294901760
    %v4222 = vsub.f32 %v3887, %v4221
    %v4223 = vand.u32 %v4222, 4294901760
    %4224 = vmatmul.mubr.f32.gmra.mrb[0].mxu0 %v4223
    %v4225 = vpop.f32.mrb[0].mxu0
    %v4226 = vadd.f32 %v4143, %v4225
    %v4227 = vpop.f32.mrb[0].mxu0
    %4228 = vdwg.mxu0
    %4229 = vmatprep.subr.mxu0 0.0
    %v4230 = vand.u32 %v2860, 4294901760
    %v4231 = vsub.f32 %v2860, %v4230
    %v4232 = vand.u32 %v4231, 4294901760
    %4233 = vmatpush1.msra.mxu0 %v4232
    %4234 = vmatprep.subr.mxu0 0.0
    %v4235 = vand.u32 %v2861, 4294901760
    %v4236 = vsub.f32 %v2861, %v4235
    %v4237 = vand.u32 %v4236, 4294901760
    %4238 = vmatpush1.msra.mxu0 %v4237
    %4239 = vmatprep.subr.mxu0 0.0
    %4240 = vmatpush1.msra.mxu0 0.0
    %4241 = vmatprep.subr.mxu0 0.0
    %4242 = vmatpush1.msra.mxu0 0.0
    %4243 = vmatprep.subr.mxu0 0.0
    %4244 = vmatpush1.msra.mxu0 0.0
    %4245 = vmatprep.subr.mxu0 0.0
    %4246 = vmatpush1.msra.mxu0 0.0
    %4247 = vmatprep.subr.mxu0 0.0
    %4248 = vmatpush1.msra.mxu0 0.0
    %4249 = vmatprep.subr.mxu0 0.0
    %4250 = vmatpush1.msra.mxu0 0.0
    %4251 = vmatprep.subr.mxu0 0.0
    %4252 = vmatpush1.msra.mxu0 0.0
    %4253 = vmatprep.subr.mxu0 0.0
    %4254 = vmatpush1.msra.mxu0 0.0
    %4255 = vmatprep.subr.mxu0 0.0
    %4256 = vmatpush1.msra.mxu0 0.0
    %4257 = vmatprep.subr.mxu0 0.0
    %4258 = vmatpush1.msra.mxu0 0.0
    %4259 = vmatprep.subr.mxu0 0.0
    %4260 = vmatpush1.msra.mxu0 0.0
    %4261 = vmatprep.subr.mxu0 0.0
    %4262 = vmatpush1.msra.mxu0 0.0
    %4263 = vmatprep.subr.mxu0 0.0
    %4264 = vmatpush1.msra.mxu0 0.0
    %4265 = vmatprep.subr.mxu0 0.0
    %4266 = vmatpush1.msra.mxu0 0.0
    %4267 = vmatprep.subr.mxu0 0.0
    %4268 = vmatpush1.msra.mxu0 0.0
    %4269 = vmatprep.subr.mxu0 0.0
    %4270 = vmatpush1.msra.mxu0 0.0
    %4271 = vmatprep.subr.mxu0 0.0
    %4272 = vmatpush1.msra.mxu0 0.0
    %4273 = vmatprep.subr.mxu0 0.0
    %4274 = vmatpush1.msra.mxu0 0.0
    %4275 = vmatprep.subr.mxu0 0.0
    %4276 = vmatpush1.msra.mxu0 0.0
    %4277 = vmatprep.subr.mxu0 0.0
    %4278 = vmatpush1.msra.mxu0 0.0
    %4279 = vmatprep.subr.mxu0 0.0
    %4280 = vmatpush1.msra.mxu0 0.0
    %4281 = vmatprep.subr.mxu0 0.0
    %4282 = vmatpush1.msra.mxu0 0.0
    %4283 = vmatprep.subr.mxu0 0.0
    %4284 = vmatpush1.msra.mxu0 0.0
    %4285 = vmatprep.subr.mxu0 0.0
    %4286 = vmatpush1.msra.mxu0 0.0
    %4287 = vmatprep.subr.mxu0 0.0
    %4288 = vmatpush1.msra.mxu0 0.0
    %4289 = vmatprep.subr.mxu0 0.0
    %4290 = vmatpush1.msra.mxu0 0.0
    %4291 = vmatprep.subr.mxu0 0.0
    %4292 = vmatpush1.msra.mxu0 0.0
    %4293 = vmatprep.subr.mxu0 0.0
    %4294 = vmatpush1.msra.mxu0 0.0
    %4295 = vmatprep.subr.mxu0 0.0
    %4296 = vmatpush1.msra.mxu0 0.0
    %4297 = vmatprep.subr.mxu0 0.0
    %4298 = vmatpush1.msra.mxu0 0.0
    %4299 = vmatprep.mubr.f32.mxu0 0.0
    %v4300 = vand.u32 %v3884, 4294901760
    %4301 = vmatmul.mubr.f32.gmra.mrb[0].mxu0 %v4300
    %v4302 = vpop.f32.mrb[0].mxu0
    %v4303 = vadd.f32 %v4218, %v4302
    %v4304 = vpop.f32.mrb[0].mxu0
    %4305 = vmatprep.mubr.f32.mxu0 0.0
    %v4306 = vand.u32 %v3887, 4294901760
    %4307 = vmatmul.mubr.f32.gmra.mrb[0].mxu0 %v4306
    %v4308 = vpop.f32.mrb[0].mxu0
    %v4309 = vadd.f32 %v4226, %v4308
    %v4310 = vpop.f32.mrb[0].mxu0
    %4311 = vdwg.mxu0
    %4312 = vmatprep.subr.mxu0 0.0
    %v4313 = vand.u32 %v2860, 4294901760
    %4314 = vmatpush1.msra.mxu0 %v4313
    %4315 = vmatprep.subr.mxu0 0.0
    %v4316 = vand.u32 %v2861, 4294901760
    %4317 = vmatpush1.msra.mxu0 %v4316
    %4318 = vmatprep.subr.mxu0 0.0
    %4319 = vmatpush1.msra.mxu0 0.0
    %4320 = vmatprep.subr.mxu0 0.0
    %4321 = vmatpush1.msra.mxu0 0.0
    %4322 = vmatprep.subr.mxu0 0.0
    %4323 = vmatpush1.msra.mxu0 0.0
    %4324 = vmatprep.subr.mxu0 0.0
    %4325 = vmatpush1.msra.mxu0 0.0
    %4326 = vmatprep.subr.mxu0 0.0
    %4327 = vmatpush1.msra.mxu0 0.0
    %4328 = vmatprep.subr.mxu0 0.0
    %4329 = vmatpush1.msra.mxu0 0.0
    %4330 = vmatprep.subr.mxu0 0.0
    %4331 = vmatpush1.msra.mxu0 0.0
    %4332 = vmatprep.subr.mxu0 0.0
    %4333 = vmatpush1.msra.mxu0 0.0
    %4334 = vmatprep.subr.mxu0 0.0
    %4335 = vmatpush1.msra.mxu0 0.0
    %4336 = vmatprep.subr.mxu0 0.0
    %4337 = vmatpush1.msra.mxu0 0.0
    %4338 = vmatprep.subr.mxu0 0.0
    %4339 = vmatpush1.msra.mxu0 0.0
    %4340 = vmatprep.subr.mxu0 0.0
    %4341 = vmatpush1.msra.mxu0 0.0
    %4342 = vmatprep.subr.mxu0 0.0
    %4343 = vmatpush1.msra.mxu0 0.0
    %4344 = vmatprep.subr.mxu0 0.0
    %4345 = vmatpush1.msra.mxu0 0.0
    %4346 = vmatprep.subr.mxu0 0.0
    %4347 = vmatpush1.msra.mxu0 0.0
    %4348 = vmatprep.subr.mxu0 0.0
    %4349 = vmatpush1.msra.mxu0 0.0
    %4350 = vmatprep.subr.mxu0 0.0
    %4351 = vmatpush1.msra.mxu0 0.0
    %4352 = vmatprep.subr.mxu0 0.0
    %4353 = vmatpush1.msra.mxu0 0.0
    %4354 = vmatprep.subr.mxu0 0.0
    %4355 = vmatpush1.msra.mxu0 0.0
    %4356 = vmatprep.subr.mxu0 0.0
    %4357 = vmatpush1.msra.mxu0 0.0
    %4358 = vmatprep.subr.mxu0 0.0
    %4359 = vmatpush1.msra.mxu0 0.0
    %4360 = vmatprep.subr.mxu0 0.0
    %4361 = vmatpush1.msra.mxu0 0.0
    %4362 = vmatprep.subr.mxu0 0.0
    %4363 = vmatpush1.msra.mxu0 0.0
    %4364 = vmatprep.subr.mxu0 0.0
    %4365 = vmatpush1.msra.mxu0 0.0
    %4366 = vmatprep.subr.mxu0 0.0
    %4367 = vmatpush1.msra.mxu0 0.0
    %4368 = vmatprep.subr.mxu0 0.0
    %4369 = vmatpush1.msra.mxu0 0.0
    %4370 = vmatprep.subr.mxu0 0.0
    %4371 = vmatpush1.msra.mxu0 0.0
    %4372 = vmatprep.subr.mxu0 0.0
    %4373 = vmatpush1.msra.mxu0 0.0
    %4374 = vmatprep.subr.mxu0 0.0
    %4375 = vmatpush1.msra.mxu0 0.0
    %4376 = vmatprep.subr.mxu0 0.0
    %4377 = vmatpush1.msra.mxu0 0.0
    %4378 = vmatprep.mubr.f32.mxu0 0.0
    %v4379 = vand.u32 %v3884, 4294901760
    %4380 = vmatmul.mubr.f32.gmra.mrb[0].mxu0 %v4379
    %v4381 = vpop.f32.mrb[0].mxu0
    %v4382 = vadd.f32 %v4303, %v4381
    %v4383 = vpop.f32.mrb[0].mxu0
    %4384 = vmatprep.mubr.f32.mxu0 0.0
    %v4385 = vand.u32 %v3887, 4294901760
    %4386 = vmatmul.mubr.f32.gmra.mrb[0].mxu0 %v4385
    %v4387 = vpop.f32.mrb[0].mxu0
    %v4388 = vadd.f32 %v4309, %v4387
    %v4389 = vpop.f32.mrb[0].mxu0
    %4390 = vdwg.mxu0
    %v4391 = vmax.f32 %v3881, %v4382
    %v4392 = vmax.f32 %v3882, %v4388
    %v4393 = vsub.f32 %v2858, %v4391
    %v4394 = vsub.f32 %v2859, %v4392
    %v4395 = vmul.f32 %v4393, 1.442695
    %v4396 = vpow.pop %v4395
    %v4397 = vmul.f32 %v4394, 1.442695
    %v4398 = vpow.pop %v4397
    %v4399 = vld [vmem:[%s6] sm:$0xff]
    %v4400 = vld [vmem:[%s6 + $0x8] sm:$0xff]
    %v4402 = vsel %vm2862, %v4396, 0
    %v4405 = vsel %vm2862, %v4398, 0
    %4407 = vmatprep.subr.mxu0 0.0
    %v4408 = vand.u32 %v4399, 4294901760
    %4409 = vmatpush1.msra.mxu0 %v4408
    %4410 = vmatprep.subr.mxu0 0.0
    %v4411 = vand.u32 %v4400, 4294901760
    %4412 = vmatpush1.msra.mxu0 %v4411
    %4413 = vmatprep.subr.mxu0 0.0
    %4414 = vmatpush1.msra.mxu0 0.0
    %4415 = vmatprep.subr.mxu0 0.0
    %4416 = vmatpush1.msra.mxu0 0.0
    %4417 = vmatprep.subr.mxu0 0.0
    %4418 = vmatpush1.msra.mxu0 0.0
    %4419 = vmatprep.subr.mxu0 0.0
    %4420 = vmatpush1.msra.mxu0 0.0
    %4421 = vmatprep.subr.mxu0 0.0
    %4422 = vmatpush1.msra.mxu0 0.0
    %4423 = vmatprep.subr.mxu0 0.0
    %4424 = vmatpush1.msra.mxu0 0.0
    %4425 = vmatprep.subr.mxu0 0.0
    %4426 = vmatpush1.msra.mxu0 0.0
    %4427 = vmatprep.subr.mxu0 0.0
    %4428 = vmatpush1.msra.mxu0 0.0
    %4429 = vmatprep.subr.mxu0 0.0
    %4430 = vmatpush1.msra.mxu0 0.0
    %4431 = vmatprep.subr.mxu0 0.0
    %4432 = vmatpush1.msra.mxu0 0.0
    %4433 = vmatprep.subr.mxu0 0.0
    %4434 = vmatpush1.msra.mxu0 0.0
    %4435 = vmatprep.subr.mxu0 0.0
    %4436 = vmatpush1.msra.mxu0 0.0
    %4437 = vmatprep.subr.mxu0 0.0
    %4438 = vmatpush1.msra.mxu0 0.0
    %4439 = vmatprep.subr.mxu0 0.0
    %4440 = vmatpush1.msra.mxu0 0.0
    %4441 = vmatprep.subr.mxu0 0.0
    %4442 = vmatpush1.msra.mxu0 0.0
    %4443 = vmatprep.subr.mxu0 0.0
    %4444 = vmatpush1.msra.mxu0 0.0
    %4445 = vmatprep.subr.mxu0 0.0
    %4446 = vmatpush1.msra.mxu0 0.0
    %4447 = vmatprep.subr.mxu0 0.0
    %4448 = vmatpush1.msra.mxu0 0.0
    %4449 = vmatprep.subr.mxu0 0.0
    %4450 = vmatpush1.msra.mxu0 0.0
    %4451 = vmatprep.subr.mxu0 0.0
    %4452 = vmatpush1.msra.mxu0 0.0
    %4453 = vmatprep.subr.mxu0 0.0
    %4454 = vmatpush1.msra.mxu0 0.0
    %4455 = vmatprep.subr.mxu0 0.0
    %4456 = vmatpush1.msra.mxu0 0.0
    %4457 = vmatprep.subr.mxu0 0.0
    %4458 = vmatpush1.msra.mxu0 0.0
    %4459 = vmatprep.subr.mxu0 0.0
    %4460 = vmatpush1.msra.mxu0 0.0
    %4461 = vmatprep.subr.mxu0 0.0
    %4462 = vmatpush1.msra.mxu0 0.0
    %4463 = vmatprep.subr.mxu0 0.0
    %4464 = vmatpush1.msra.mxu0 0.0
    %4465 = vmatprep.subr.mxu0 0.0
    %4466 = vmatpush1.msra.mxu0 0.0
    %4467 = vmatprep.subr.mxu0 0.0
    %4468 = vmatpush1.msra.mxu0 0.0
    %4469 = vmatprep.subr.mxu0 0.0
    %4470 = vmatpush1.msra.mxu0 0.0
    %4471 = vmatprep.subr.mxu0 0.0
    %4472 = vmatpush1.msra.mxu0 0.0
    %4473 = vmatprep.mubr.f32.mxu0 0.0
    %v4474 = vand.u32 %v4402, 4294901760
    %v4475 = vsub.f32 %v4402, %v4474
    %v4476 = vand.u32 %v4475, 4294901760
    %v4477 = vsub.f32 %v4475, %v4476
    %v4478 = vand.u32 %v4477, 4294901760
    %4479 = vmatmul.mubr.f32.gmra.mrb[0].mxu0 %v4478
    %v4480 = vpop.f32.mrb[0].mxu0
    %v4481 = vadd.f32 0.0, %v4480
    %v4482 = vpop.f32.mrb[0].mxu0
    %4483 = vmatprep.mubr.f32.mxu0 0.0
    %v4484 = vand.u32 %v4405, 4294901760
    %v4485 = vsub.f32 %v4405, %v4484
    %v4486 = vand.u32 %v4485, 4294901760
    %v4487 = vsub.f32 %v4485, %v4486
    %v4488 = vand.u32 %v4487, 4294901760
    %4489 = vmatmul.mubr.f32.gmra.mrb[0].mxu0 %v4488
    %v4490 = vpop.f32.mrb[0].mxu0
    %v4491 = vadd.f32 0.0, %v4490
    %v4492 = vpop.f32.mrb[0].mxu0
    %4493 = vdwg.mxu0
    %4494 = vmatprep.subr.mxu0 0.0
    %v4495 = vand.u32 %v4399, 4294901760
    %v4496 = vsub.f32 %v4399, %v4495
    %v4497 = vand.u32 %v4496, 4294901760
    %v4498 = vsub.f32 %v4496, %v4497
    %v4499 = vand.u32 %v4498, 4294901760
    %4500 = vmatpush1.msra.mxu0 %v4499
    %4501 = vmatprep.subr.mxu0 0.0
    %v4502 = vand.u32 %v4400, 4294901760
    %v4503 = vsub.f32 %v4400, %v4502
    %v4504 = vand.u32 %v4503, 4294901760
    %v4505 = vsub.f32 %v4503, %v4504
    %v4506 = vand.u32 %v4505, 4294901760
    %4507 = vmatpush1.msra.mxu0 %v4506
    %4508 = vmatprep.subr.mxu0 0.0
    %4509 = vmatpush1.msra.mxu0 0.0
    %4510 = vmatprep.subr.mxu0 0.0
    %4511 = vmatpush1.msra.mxu0 0.0
    %4512 = vmatprep.subr.mxu0 0.0
    %4513 = vmatpush1.msra.mxu0 0.0
    %4514 = vmatprep.subr.mxu0 0.0
    %4515 = vmatpush1.msra.mxu0 0.0
    %4516 = vmatprep.subr.mxu0 0.0
    %4517 = vmatpush1.msra.mxu0 0.0
    %4518 = vmatprep.subr.mxu0 0.0
    %4519 = vmatpush1.msra.mxu0 0.0
    %4520 = vmatprep.subr.mxu0 0.0
    %4521 = vmatpush1.msra.mxu0 0.0
    %4522 = vmatprep.subr.mxu0 0.0
    %4523 = vmatpush1.msra.mxu0 0.0
    %4524 = vmatprep.subr.mxu0 0.0
    %4525 = vmatpush1.msra.mxu0 0.0
    %4526 = vmatprep.subr.mxu0 0.0
    %4527 = vmatpush1.msra.mxu0 0.0
    %4528 = vmatprep.subr.mxu0 0.0
    %4529 = vmatpush1.msra.mxu0 0.0
    %4530 = vmatprep.subr.mxu0 0.0
    %4531 = vmatpush1.msra.mxu0 0.0
    %4532 = vmatprep.subr.mxu0 0.0
    %4533 = vmatpush1.msra.mxu0 0.0
    %4534 = vmatprep.subr.mxu0 0.0
    %4535 = vmatpush1.msra.mxu0 0.0
    %4536 = vmatprep.subr.mxu0 0.0
    %4537 = vmatpush1.msra.mxu0 0.0
    %4538 = vmatprep.subr.mxu0 0.0
    %4539 = vmatpush1.msra.mxu0 0.0
    %4540 = vmatprep.subr.mxu0 0.0
    %4541 = vmatpush1.msra.mxu0 0.0
    %4542 = vmatprep.subr.mxu0 0.0
    %4543 = vmatpush1.msra.mxu0 0.0
    %4544 = vmatprep.subr.mxu0 0.0
    %4545 = vmatpush1.msra.mxu0 0.0
    %4546 = vmatprep.subr.mxu0 0.0
    %4547 = vmatpush1.msra.mxu0 0.0
    %4548 = vmatprep.subr.mxu0 0.0
    %4549 = vmatpush1.msra.mxu0 0.0
    %4550 = vmatprep.subr.mxu0 0.0
    %4551 = vmatpush1.msra.mxu0 0.0
    %4552 = vmatprep.subr.mxu0 0.0
    %4553 = vmatpush1.msra.mxu0 0.0
    %4554 = vmatprep.subr.mxu0 0.0
    %4555 = vmatpush1.msra.mxu0 0.0
    %4556 = vmatprep.subr.mxu0 0.0
    %4557 = vmatpush1.msra.mxu0 0.0
    %4558 = vmatprep.subr.mxu0 0.0
    %4559 = vmatpush1.msra.mxu0 0.0
    %4560 = vmatprep.subr.mxu0 0.0
    %4561 = vmatpush1.msra.mxu0 0.0
    %4562 = vmatprep.subr.mxu0 0.0
    %4563 = vmatpush1.msra.mxu0 0.0
    %4564 = vmatprep.subr.mxu0 0.0
    %4565 = vmatpush1.msra.mxu0 0.0
    %4566 = vmatprep.subr.mxu0 0.0
    %4567 = vmatpush1.msra.mxu0 0.0
    %4568 = vmatprep.mubr.f32.mxu0 0.0
    %v4569 = vand.u32 %v4402, 4294901760
    %4570 = vmatmul.mubr.f32.gmra.mrb[0].mxu0 %v4569
    %v4571 = vpop.f32.mrb[0].mxu0
    %v4572 = vadd.f32 %v4481, %v4571
    %v4573 = vpop.f32.mrb[0].mxu0
    %4574 = vmatprep.mubr.f32.mxu0 0.0
    %v4575 = vand.u32 %v4405, 4294901760
    %4576 = vmatmul.mubr.f32.gmra.mrb[0].mxu0 %v4575
    %v4577 = vpop.f32.mrb[0].mxu0
    %v4578 = vadd.f32 %v4491, %v4577
    %v4579 = vpop.f32.mrb[0].mxu0
    %4580 = vdwg.mxu0
    %4581 = vmatprep.subr.mxu0 0.0
    %v4582 = vand.u32 %v4399, 4294901760
    %v4583 = vsub.f32 %v4399, %v4582
    %4584 = vmatpush1.msra.mxu0 %v4583
    %4585 = vmatprep.subr.mxu0 0.0
    %v4586 = vand.u32 %v4400, 4294901760
    %v4587 = vsub.f32 %v4400, %v4586
    %4588 = vmatpush1.msra.mxu0 %v4587
    %4589 = vmatprep.subr.mxu0 0.0
    %4590 = vmatpush1.msra.mxu0 0.0
    %4591 = vmatprep.subr.mxu0 0.0
    %4592 = vmatpush1.msra.mxu0 0.0
    %4593 = vmatprep.subr.mxu0 0.0
    %4594 = vmatpush1.msra.mxu0 0.0
    %4595 = vmatprep.subr.mxu0 0.0
    %4596 = vmatpush1.msra.mxu0 0.0
    %4597 = vmatprep.subr.mxu0 0.0
    %4598 = vmatpush1.msra.mxu0 0.0
    %4599 = vmatprep.subr.mxu0 0.0
    %4600 = vmatpush1.msra.mxu0 0.0
    %4601 = vmatprep.subr.mxu0 0.0
    %4602 = vmatpush1.msra.mxu0 0.0
    %4603 = vmatprep.subr.mxu0 0.0
    %4604 = vmatpush1.msra.mxu0 0.0
    %4605 = vmatprep.subr.mxu0 0.0
    %4606 = vmatpush1.msra.mxu0 0.0
    %4607 = vmatprep.subr.mxu0 0.0
    %4608 = vmatpush1.msra.mxu0 0.0
    %4609 = vmatprep.subr.mxu0 0.0
    %4610 = vmatpush1.msra.mxu0 0.0
    %4611 = vmatprep.subr.mxu0 0.0
    %4612 = vmatpush1.msra.mxu0 0.0
    %4613 = vmatprep.subr.mxu0 0.0
    %4614 = vmatpush1.msra.mxu0 0.0
    %4615 = vmatprep.subr.mxu0 0.0
    %4616 = vmatpush1.msra.mxu0 0.0
    %4617 = vmatprep.subr.mxu0 0.0
    %4618 = vmatpush1.msra.mxu0 0.0
    %4619 = vmatprep.subr.mxu0 0.0
    %4620 = vmatpush1.msra.mxu0 0.0
    %4621 = vmatprep.subr.mxu0 0.0
    %4622 = vmatpush1.msra.mxu0 0.0
    %4623 = vmatprep.subr.mxu0 0.0
    %4624 = vmatpush1.msra.mxu0 0.0
    %4625 = vmatprep.subr.mxu0 0.0
    %4626 = vmatpush1.msra.mxu0 0.0
    %4627 = vmatprep.subr.mxu0 0.0
    %4628 = vmatpush1.msra.mxu0 0.0
    %4629 = vmatprep.subr.mxu0 0.0
    %4630 = vmatpush1.msra.mxu0 0.0
    %4631 = vmatprep.subr.mxu0 0.0
    %4632 = vmatpush1.msra.mxu0 0.0
    %4633 = vmatprep.subr.mxu0 0.0
    %4634 = vmatpush1.msra.mxu0 0.0
    %4635 = vmatprep.subr.mxu0 0.0
    %4636 = vmatpush1.msra.mxu0 0.0
    %4637 = vmatprep.subr.mxu0 0.0
    %4638 = vmatpush1.msra.mxu0 0.0
    %4639 = vmatprep.subr.mxu0 0.0
    %4640 = vmatpush1.msra.mxu0 0.0
    %4641 = vmatprep.subr.mxu0 0.0
    %4642 = vmatpush1.msra.mxu0 0.0
    %4643 = vmatprep.subr.mxu0 0.0
    %4644 = vmatpush1.msra.mxu0 0.0
    %4645 = vmatprep.subr.mxu0 0.0
    %4646 = vmatpush1.msra.mxu0 0.0
    %4647 = vmatprep.subr.mxu0 0.0
    %4648 = vmatpush1.msra.mxu0 0.0
    %4649 = vmatprep.mubr.f32.mxu0 0.0
    %v4650 = vand.u32 %v4402, 4294901760
    %v4651 = vsub.f32 %v4402, %v4650
    %4652 = vmatmul.mubr.f32.gmra.mrb[0].mxu0 %v4651
    %v4653 = vpop.f32.mrb[0].mxu0
    %v4654 = vadd.f32 %v4572, %v4653
    %v4655 = vpop.f32.mrb[0].mxu0
    %4656 = vmatprep.mubr.f32.mxu0 0.0
    %v4657 = vand.u32 %v4405, 4294901760
    %v4658 = vsub.f32 %v4405, %v4657
    %4659 = vmatmul.mubr.f32.gmra.mrb[0].mxu0 %v4658
    %v4660 = vpop.f32.mrb[0].mxu0
    %v4661 = vadd.f32 %v4578, %v4660
    %v4662 = vpop.f32.mrb[0].mxu0
    %4663 = vdwg.mxu0
    %4664 = vmatprep.subr.mxu0 0.0
    %v4665 = vand.u32 %v4399, 4294901760
    %4666 = vmatpush1.msra.mxu0 %v4665
    %4667 = vmatprep.subr.mxu0 0.0
    %v4668 = vand.u32 %v4400, 4294901760
    %4669 = vmatpush1.msra.mxu0 %v4668
    %4670 = vmatprep.subr.mxu0 0.0
    %4671 = vmatpush1.msra.mxu0 0.0
    %4672 = vmatprep.subr.mxu0 0.0
    %4673 = vmatpush1.msra.mxu0 0.0
    %4674 = vmatprep.subr.mxu0 0.0
    %4675 = vmatpush1.msra.mxu0 0.0
    %4676 = vmatprep.subr.mxu0 0.0
    %4677 = vmatpush1.msra.mxu0 0.0
    %4678 = vmatprep.subr.mxu0 0.0
    %4679 = vmatpush1.msra.mxu0 0.0
    %4680 = vmatprep.subr.mxu0 0.0
    %4681 = vmatpush1.msra.mxu0 0.0
    %4682 = vmatprep.subr.mxu0 0.0
    %4683 = vmatpush1.msra.mxu0 0.0
    %4684 = vmatprep.subr.mxu0 0.0
    %4685 = vmatpush1.msra.mxu0 0.0
    %4686 = vmatprep.subr.mxu0 0.0
    %4687 = vmatpush1.msra.mxu0 0.0
    %4688 = vmatprep.subr.mxu0 0.0
    %4689 = vmatpush1.msra.mxu0 0.0
    %4690 = vmatprep.subr.mxu0 0.0
    %4691 = vmatpush1.msra.mxu0 0.0
    %4692 = vmatprep.subr.mxu0 0.0
    %4693 = vmatpush1.msra.mxu0 0.0
    %4694 = vmatprep.subr.mxu0 0.0
    %4695 = vmatpush1.msra.mxu0 0.0
    %4696 = vmatprep.subr.mxu0 0.0
    %4697 = vmatpush1.msra.mxu0 0.0
    %4698 = vmatprep.subr.mxu0 0.0
    %4699 = vmatpush1.msra.mxu0 0.0
    %4700 = vmatprep.subr.mxu0 0.0
    %4701 = vmatpush1.msra.mxu0 0.0
    %4702 = vmatprep.subr.mxu0 0.0
    %4703 = vmatpush1.msra.mxu0 0.0
    %4704 = vmatprep.subr.mxu0 0.0
    %4705 = vmatpush1.msra.mxu0 0.0
    %4706 = vmatprep.subr.mxu0 0.0
    %4707 = vmatpush1.msra.mxu0 0.0
    %4708 = vmatprep.subr.mxu0 0.0
    %4709 = vmatpush1.msra.mxu0 0.0
    %4710 = vmatprep.subr.mxu0 0.0
    %4711 = vmatpush1.msra.mxu0 0.0
    %4712 = vmatprep.subr.mxu0 0.0
    %4713 = vmatpush1.msra.mxu0 0.0
    %4714 = vmatprep.subr.mxu0 0.0
    %4715 = vmatpush1.msra.mxu0 0.0
    %4716 = vmatprep.subr.mxu0 0.0
    %4717 = vmatpush1.msra.mxu0 0.0
    %4718 = vmatprep.subr.mxu0 0.0
    %4719 = vmatpush1.msra.mxu0 0.0
    %4720 = vmatprep.subr.mxu0 0.0
    %4721 = vmatpush1.msra.mxu0 0.0
    %4722 = vmatprep.subr.mxu0 0.0
    %4723 = vmatpush1.msra.mxu0 0.0
    %4724 = vmatprep.subr.mxu0 0.0
    %4725 = vmatpush1.msra.mxu0 0.0
    %4726 = vmatprep.subr.mxu0 0.0
    %4727 = vmatpush1.msra.mxu0 0.0
    %4728 = vmatprep.subr.mxu0 0.0
    %4729 = vmatpush1.msra.mxu0 0.0
    %4730 = vmatprep.mubr.f32.mxu0 0.0
    %v4731 = vand.u32 %v4402, 4294901760
    %v4732 = vsub.f32 %v4402, %v4731
    %v4733 = vand.u32 %v4732, 4294901760
    %4734 = vmatmul.mubr.f32.gmra.mrb[0].mxu0 %v4733
    %v4735 = vpop.f32.mrb[0].mxu0
    %v4736 = vadd.f32 %v4654, %v4735
    %v4737 = vpop.f32.mrb[0].mxu0
    %4738 = vmatprep.mubr.f32.mxu0 0.0
    %v4739 = vand.u32 %v4405, 4294901760
    %v4740 = vsub.f32 %v4405, %v4739
    %v4741 = vand.u32 %v4740, 4294901760
    %4742 = vmatmul.mubr.f32.gmra.mrb[0].mxu0 %v4741
    %v4743 = vpop.f32.mrb[0].mxu0
    %v4744 = vadd.f32 %v4661, %v4743
    %v4745 = vpop.f32.mrb[0].mxu0
    %4746 = vdwg.mxu0
    %4747 = vmatprep.subr.mxu0 0.0
    %v4748 = vand.u32 %v4399, 4294901760
    %v4749 = vsub.f32 %v4399, %v4748
    %v4750 = vand.u32 %v4749, 4294901760
    %4751 = vmatpush1.msra.mxu0 %v4750
    %4752 = vmatprep.subr.mxu0 0.0
    %v4753 = vand.u32 %v4400, 4294901760
    %v4754 = vsub.f32 %v4400, %v4753
    %v4755 = vand.u32 %v4754, 4294901760
    %4756 = vmatpush1.msra.mxu0 %v4755
    %4757 = vmatprep.subr.mxu0 0.0
    %4758 = vmatpush1.msra.mxu0 0.0
    %4759 = vmatprep.subr.mxu0 0.0
    %4760 = vmatpush1.msra.mxu0 0.0
    %4761 = vmatprep.subr.mxu0 0.0
    %4762 = vmatpush1.msra.mxu0 0.0
    %4763 = vmatprep.subr.mxu0 0.0
    %4764 = vmatpush1.msra.mxu0 0.0
    %4765 = vmatprep.subr.mxu0 0.0
    %4766 = vmatpush1.msra.mxu0 0.0
    %4767 = vmatprep.subr.mxu0 0.0
    %4768 = vmatpush1.msra.mxu0 0.0
    %4769 = vmatprep.subr.mxu0 0.0
    %4770 = vmatpush1.msra.mxu0 0.0
    %4771 = vmatprep.subr.mxu0 0.0
    %4772 = vmatpush1.msra.mxu0 0.0
    %4773 = vmatprep.subr.mxu0 0.0
    %4774 = vmatpush1.msra.mxu0 0.0
    %4775 = vmatprep.subr.mxu0 0.0
    %4776 = vmatpush1.msra.mxu0 0.0
    %4777 = vmatprep.subr.mxu0 0.0
    %4778 = vmatpush1.msra.mxu0 0.0
    %4779 = vmatprep.subr.mxu0 0.0
    %4780 = vmatpush1.msra.mxu0 0.0
    %4781 = vmatprep.subr.mxu0 0.0
    %4782 = vmatpush1.msra.mxu0 0.0
    %4783 = vmatprep.subr.mxu0 0.0
    %4784 = vmatpush1.msra.mxu0 0.0
    %4785 = vmatprep.subr.mxu0 0.0
    %4786 = vmatpush1.msra.mxu0 0.0
    %4787 = vmatprep.subr.mxu0 0.0
    %4788 = vmatpush1.msra.mxu0 0.0
    %4789 = vmatprep.subr.mxu0 0.0
    %4790 = vmatpush1.msra.mxu0 0.0
    %4791 = vmatprep.subr.mxu0 0.0
    %4792 = vmatpush1.msra.mxu0 0.0
    %4793 = vmatprep.subr.mxu0 0.0
    %4794 = vmatpush1.msra.mxu0 0.0
    %4795 = vmatprep.subr.mxu0 0.0
    %4796 = vmatpush1.msra.mxu0 0.0
    %4797 = vmatprep.subr.mxu0 0.0
    %4798 = vmatpush1.msra.mxu0 0.0
    %4799 = vmatprep.subr.mxu0 0.0
    %4800 = vmatpush1.msra.mxu0 0.0
    %4801 = vmatprep.subr.mxu0 0.0
    %4802 = vmatpush1.msra.mxu0 0.0
    %4803 = vmatprep.subr.mxu0 0.0
    %4804 = vmatpush1.msra.mxu0 0.0
    %4805 = vmatprep.subr.mxu0 0.0
    %4806 = vmatpush1.msra.mxu0 0.0
    %4807 = vmatprep.subr.mxu0 0.0
    %4808 = vmatpush1.msra.mxu0 0.0
    %4809 = vmatprep.subr.mxu0 0.0
    %4810 = vmatpush1.msra.mxu0 0.0
    %4811 = vmatprep.subr.mxu0 0.0
    %4812 = vmatpush1.msra.mxu0 0.0
    %4813 = vmatprep.subr.mxu0 0.0
    %4814 = vmatpush1.msra.mxu0 0.0
    %4815 = vmatprep.subr.mxu0 0.0
    %4816 = vmatpush1.msra.mxu0 0.0
    %4817 = vmatprep.mubr.f32.mxu0 0.0
    %v4818 = vand.u32 %v4402, 4294901760
    %4819 = vmatmul.mubr.f32.gmra.mrb[0].mxu0 %v4818
    %v4820 = vpop.f32.mrb[0].mxu0
    %v4821 = vadd.f32 %v4736, %v4820
    %v4822 = vpop.f32.mrb[0].mxu0
    %4823 = vmatprep.mubr.f32.mxu0 0.0
    %v4824 = vand.u32 %v4405, 4294901760
    %4825 = vmatmul.mubr.f32.gmra.mrb[0].mxu0 %v4824
    %v4826 = vpop.f32.mrb[0].mxu0
    %v4827 = vadd.f32 %v4744, %v4826
    %v4828 = vpop.f32.mrb[0].mxu0
    %4829 = vdwg.mxu0
    %4830 = vmatprep.subr.mxu0 0.0
    %v4831 = vand.u32 %v4399, 4294901760
    %4832 = vmatpush1.msra.mxu0 %v4831
    %4833 = vmatprep.subr.mxu0 0.0
    %v4834 = vand.u32 %v4400, 4294901760
    %4835 = vmatpush1.msra.mxu0 %v4834
    %4836 = vmatprep.subr.mxu0 0.0
    %4837 = vmatpush1.msra.mxu0 0.0
    %4838 = vmatprep.subr.mxu0 0.0
    %4839 = vmatpush1.msra.mxu0 0.0
    %4840 = vmatprep.subr.mxu0 0.0
    %4841 = vmatpush1.msra.mxu0 0.0
    %4842 = vmatprep.subr.mxu0 0.0
    %4843 = vmatpush1.msra.mxu0 0.0
    %4844 = vmatprep.subr.mxu0 0.0
    %4845 = vmatpush1.msra.mxu0 0.0
    %4846 = vmatprep.subr.mxu0 0.0
    %4847 = vmatpush1.msra.mxu0 0.0
    %4848 = vmatprep.subr.mxu0 0.0
    %4849 = vmatpush1.msra.mxu0 0.0
    %4850 = vmatprep.subr.mxu0 0.0
    %4851 = vmatpush1.msra.mxu0 0.0
    %4852 = vmatprep.subr.mxu0 0.0
    %4853 = vmatpush1.msra.mxu0 0.0
    %4854 = vmatprep.subr.mxu0 0.0
    %4855 = vmatpush1.msra.mxu0 0.0
    %4856 = vmatprep.subr.mxu0 0.0
    %4857 = vmatpush1.msra.mxu0 0.0
    %4858 = vmatprep.subr.mxu0 0.0
    %4859 = vmatpush1.msra.mxu0 0.0
    %4860 = vmatprep.subr.mxu0 0.0
    %4861 = vmatpush1.msra.mxu0 0.0
    %4862 = vmatprep.subr.mxu0 0.0
    %4863 = vmatpush1.msra.mxu0 0.0
    %4864 = vmatprep.subr.mxu0 0.0
    %4865 = vmatpush1.msra.mxu0 0.0
    %4866 = vmatprep.subr.mxu0 0.0
    %4867 = vmatpush1.msra.mxu0 0.0
    %4868 = vmatprep.subr.mxu0 0.0
    %4869 = vmatpush1.msra.mxu0 0.0
    %4870 = vmatprep.subr.mxu0 0.0
    %4871 = vmatpush1.msra.mxu0 0.0
    %4872 = vmatprep.subr.mxu0 0.0
    %4873 = vmatpush1.msra.mxu0 0.0
    %4874 = vmatprep.subr.mxu0 0.0
    %4875 = vmatpush1.msra.mxu0 0.0
    %4876 = vmatprep.subr.mxu0 0.0
    %4877 = vmatpush1.msra.mxu0 0.0
    %4878 = vmatprep.subr.mxu0 0.0
    %4879 = vmatpush1.msra.mxu0 0.0
    %4880 = vmatprep.subr.mxu0 0.0
    %4881 = vmatpush1.msra.mxu0 0.0
    %4882 = vmatprep.subr.mxu0 0.0
    %4883 = vmatpush1.msra.mxu0 0.0
    %4884 = vmatprep.subr.mxu0 0.0
    %4885 = vmatpush1.msra.mxu0 0.0
    %4886 = vmatprep.subr.mxu0 0.0
    %4887 = vmatpush1.msra.mxu0 0.0
    %4888 = vmatprep.subr.mxu0 0.0
    %4889 = vmatpush1.msra.mxu0 0.0
    %4890 = vmatprep.subr.mxu0 0.0
    %4891 = vmatpush1.msra.mxu0 0.0
    %4892 = vmatprep.subr.mxu0 0.0
    %4893 = vmatpush1.msra.mxu0 0.0
    %4894 = vmatprep.subr.mxu0 0.0
    %4895 = vmatpush1.msra.mxu0 0.0
    %4896 = vmatprep.mubr.f32.mxu0 0.0
    %v4897 = vand.u32 %v4402, 4294901760
    %4898 = vmatmul.mubr.f32.gmra.mrb[0].mxu0 %v4897
    %v4899 = vpop.f32.mrb[0].mxu0
    %v4900 = vadd.f32 %v4821, %v4899
    %v4901 = vpop.f32.mrb[0].mxu0
    %4902 = vmatprep.mubr.f32.mxu0 0.0
    %v4903 = vand.u32 %v4405, 4294901760
    %4904 = vmatmul.mubr.f32.gmra.mrb[0].mxu0 %v4903
    %v4905 = vpop.f32.mrb[0].mxu0
    %v4906 = vadd.f32 %v4827, %v4905
    %v4907 = vpop.f32.mrb[0].mxu0
    %4908 = vdwg.mxu0
    %v4909 = vrcp.pop %v4900
    %v4910 = vrcp.pop %v4906
    %v4911 = vmul.f32 %v4396, %v4909
    %v4912 = vmul.f32 %v4398, %v4910
    %v4913 = vld [vmem:[%s4] sm:$0xff]
    %v4914 = vld [vmem:[%s4 + $0x8] sm:$0xff]
    %v4916 = vsel %vm2862, %v4911, 0
    %v4919 = vsel %vm2862, %v4912, 0
    %4921 = vmatprep.subr.mxu0 0.0
    %v4922 = vand.u32 %v4913, 4294901760
    %4923 = vmatpush1.msra.mxu0 %v4922
    %4924 = vmatprep.subr.mxu0 0.0
    %v4925 = vand.u32 %v4914, 4294901760
    %4926 = vmatpush1.msra.mxu0 %v4925
    %4927 = vmatprep.subr.mxu0 0.0
    %4928 = vmatpush1.msra.mxu0 0.0
    %4929 = vmatprep.subr.mxu0 0.0
    %4930 = vmatpush1.msra.mxu0 0.0
    %4931 = vmatprep.subr.mxu0 0.0
    %4932 = vmatpush1.msra.mxu0 0.0
    %4933 = vmatprep.subr.mxu0 0.0
    %4934 = vmatpush1.msra.mxu0 0.0
    %4935 = vmatprep.subr.mxu0 0.0
    %4936 = vmatpush1.msra.mxu0 0.0
    %4937 = vmatprep.subr.mxu0 0.0
    %4938 = vmatpush1.msra.mxu0 0.0
    %4939 = vmatprep.subr.mxu0 0.0
    %4940 = vmatpush1.msra.mxu0 0.0
    %4941 = vmatprep.subr.mxu0 0.0
    %4942 = vmatpush1.msra.mxu0 0.0
    %4943 = vmatprep.subr.mxu0 0.0
    %4944 = vmatpush1.msra.mxu0 0.0
    %4945 = vmatprep.subr.mxu0 0.0
    %4946 = vmatpush1.msra.mxu0 0.0
    %4947 = vmatprep.subr.mxu0 0.0
    %4948 = vmatpush1.msra.mxu0 0.0
    %4949 = vmatprep.subr.mxu0 0.0
    %4950 = vmatpush1.msra.mxu0 0.0
    %4951 = vmatprep.subr.mxu0 0.0
    %4952 = vmatpush1.msra.mxu0 0.0
    %4953 = vmatprep.subr.mxu0 0.0
    %4954 = vmatpush1.msra.mxu0 0.0
    %4955 = vmatprep.subr.mxu0 0.0
    %4956 = vmatpush1.msra.mxu0 0.0
    %4957 = vmatprep.subr.mxu0 0.0
    %4958 = vmatpush1.msra.mxu0 0.0
    %4959 = vmatprep.subr.mxu0 0.0
    %4960 = vmatpush1.msra.mxu0 0.0
    %4961 = vmatprep.subr.mxu0 0.0
    %4962 = vmatpush1.msra.mxu0 0.0
    %4963 = vmatprep.subr.mxu0 0.0
    %4964 = vmatpush1.msra.mxu0 0.0
    %4965 = vmatprep.subr.mxu0 0.0
    %4966 = vmatpush1.msra.mxu0 0.0
    %4967 = vmatprep.subr.mxu0 0.0
    %4968 = vmatpush1.msra.mxu0 0.0
    %4969 = vmatprep.subr.mxu0 0.0
    %4970 = vmatpush1.msra.mxu0 0.0
    %4971 = vmatprep.subr.mxu0 0.0
    %4972 = vmatpush1.msra.mxu0 0.0
    %4973 = vmatprep.subr.mxu0 0.0
    %4974 = vmatpush1.msra.mxu0 0.0
    %4975 = vmatprep.subr.mxu0 0.0
    %4976 = vmatpush1.msra.mxu0 0.0
    %4977 = vmatprep.subr.mxu0 0.0
    %4978 = vmatpush1.msra.mxu0 0.0
    %4979 = vmatprep.subr.mxu0 0.0
    %4980 = vmatpush1.msra.mxu0 0.0
    %4981 = vmatprep.subr.mxu0 0.0
    %4982 = vmatpush1.msra.mxu0 0.0
    %4983 = vmatprep.subr.mxu0 0.0
    %4984 = vmatpush1.msra.mxu0 0.0
    %4985 = vmatprep.subr.mxu0 0.0
    %4986 = vmatpush1.msra.mxu0 0.0
    %4987 = vmatprep.mubr.f32.mxu0 0.0
    %v4988 = vand.u32 %v4916, 4294901760
    %v4989 = vsub.f32 %v4916, %v4988
    %v4990 = vand.u32 %v4989, 4294901760
    %v4991 = vsub.f32 %v4989, %v4990
    %v4992 = vand.u32 %v4991, 4294901760
    %4993 = vmatmul.mubr.f32.gmra.mrb[0].mxu0 %v4992
    %v4994 = vpop.f32.mrb[0].mxu0
    %v4995 = vadd.f32 0.0, %v4994
    %v4996 = vpop.f32.mrb[0].mxu0
    %4997 = vmatprep.mubr.f32.mxu0 0.0
    %v4998 = vand.u32 %v4919, 4294901760
    %v4999 = vsub.f32 %v4919, %v4998
    %v5000 = vand.u32 %v4999, 4294901760
    %v5001 = vsub.f32 %v4999, %v5000
    %v5002 = vand.u32 %v5001, 4294901760
    %5003 = vmatmul.mubr.f32.gmra.mrb[0].mxu0 %v5002
    %v5004 = vpop.f32.mrb[0].mxu0
    %v5005 = vadd.f32 0.0, %v5004
    %v5006 = vpop.f32.mrb[0].mxu0
    %5007 = vdwg.mxu0
    %5008 = vmatprep.subr.mxu0 0.0
    %v5009 = vand.u32 %v4913, 4294901760
    %v5010 = vsub.f32 %v4913, %v5009
    %v5011 = vand.u32 %v5010, 4294901760
    %v5012 = vsub.f32 %v5010, %v5011
    %v5013 = vand.u32 %v5012, 4294901760
    %5014 = vmatpush1.msra.mxu0 %v5013
    %5015 = vmatprep.subr.mxu0 0.0
    %v5016 = vand.u32 %v4914, 4294901760
    %v5017 = vsub.f32 %v4914, %v5016
    %v5018 = vand.u32 %v5017, 4294901760
    %v5019 = vsub.f32 %v5017, %v5018
    %v5020 = vand.u32 %v5019, 4294901760
    %5021 = vmatpush1.msra.mxu0 %v5020
    %5022 = vmatprep.subr.mxu0 0.0
    %5023 = vmatpush1.msra.mxu0 0.0
    %5024 = vmatprep.subr.mxu0 0.0
    %5025 = vmatpush1.msra.mxu0 0.0
    %5026 = vmatprep.subr.mxu0 0.0
    %5027 = vmatpush1.msra.mxu0 0.0
    %5028 = vmatprep.subr.mxu0 0.0
    %5029 = vmatpush1.msra.mxu0 0.0
    %5030 = vmatprep.subr.mxu0 0.0
    %5031 = vmatpush1.msra.mxu0 0.0
    %5032 = vmatprep.subr.mxu0 0.0
    %5033 = vmatpush1.msra.mxu0 0.0
    %5034 = vmatprep.subr.mxu0 0.0
    %5035 = vmatpush1.msra.mxu0 0.0
    %5036 = vmatprep.subr.mxu0 0.0
    %5037 = vmatpush1.msra.mxu0 0.0
    %5038 = vmatprep.subr.mxu0 0.0
    %5039 = vmatpush1.msra.mxu0 0.0
    %5040 = vmatprep.subr.mxu0 0.0
    %5041 = vmatpush1.msra.mxu0 0.0
    %5042 = vmatprep.subr.mxu0 0.0
    %5043 = vmatpush1.msra.mxu0 0.0
    %5044 = vmatprep.subr.mxu0 0.0
    %5045 = vmatpush1.msra.mxu0 0.0
    %5046 = vmatprep.subr.mxu0 0.0
    %5047 = vmatpush1.msra.mxu0 0.0
    %5048 = vmatprep.subr.mxu0 0.0
    %5049 = vmatpush1.msra.mxu0 0.0
    %5050 = vmatprep.subr.mxu0 0.0
    %5051 = vmatpush1.msra.mxu0 0.0
    %5052 = vmatprep.subr.mxu0 0.0
    %5053 = vmatpush1.msra.mxu0 0.0
    %5054 = vmatprep.subr.mxu0 0.0
    %5055 = vmatpush1.msra.mxu0 0.0
    %5056 = vmatprep.subr.mxu0 0.0
    %5057 = vmatpush1.msra.mxu0 0.0
    %5058 = vmatprep.subr.mxu0 0.0
    %5059 = vmatpush1.msra.mxu0 0.0
    %5060 = vmatprep.subr.mxu0 0.0
    %5061 = vmatpush1.msra.mxu0 0.0
    %5062 = vmatprep.subr.mxu0 0.0
    %5063 = vmatpush1.msra.mxu0 0.0
    %5064 = vmatprep.subr.mxu0 0.0
    %5065 = vmatpush1.msra.mxu0 0.0
    %5066 = vmatprep.subr.mxu0 0.0
    %5067 = vmatpush1.msra.mxu0 0.0
    %5068 = vmatprep.subr.mxu0 0.0
    %5069 = vmatpush1.msra.mxu0 0.0
    %5070 = vmatprep.subr.mxu0 0.0
    %5071 = vmatpush1.msra.mxu0 0.0
    %5072 = vmatprep.subr.mxu0 0.0
    %5073 = vmatpush1.msra.mxu0 0.0
    %5074 = vmatprep.subr.mxu0 0.0
    %5075 = vmatpush1.msra.mxu0 0.0
    %5076 = vmatprep.subr.mxu0 0.0
    %5077 = vmatpush1.msra.mxu0 0.0
    %5078 = vmatprep.subr.mxu0 0.0
    %5079 = vmatpush1.msra.mxu0 0.0
    %5080 = vmatprep.subr.mxu0 0.0
    %5081 = vmatpush1.msra.mxu0 0.0
    %5082 = vmatprep.mubr.f32.mxu0 0.0
    %v5083 = vand.u32 %v4916, 4294901760
    %5084 = vmatmul.mubr.f32.gmra.mrb[0].mxu0 %v5083
    %v5085 = vpop.f32.mrb[0].mxu0
    %v5086 = vadd.f32 %v4995, %v5085
    %v5087 = vpop.f32.mrb[0].mxu0
    %5088 = vmatprep.mubr.f32.mxu0 0.0
    %v5089 = vand.u32 %v4919, 4294901760
    %5090 = vmatmul.mubr.f32.gmra.mrb[0].mxu0 %v5089
    %v5091 = vpop.f32.mrb[0].mxu0
    %v5092 = vadd.f32 %v5005, %v5091
    %v5093 = vpop.f32.mrb[0].mxu0
    %5094 = vdwg.mxu0
    %5095 = vmatprep.subr.mxu0 0.0
    %v5096 = vand.u32 %v4913, 4294901760
    %v5097 = vsub.f32 %v4913, %v5096
    %5098 = vmatpush1.msra.mxu0 %v5097
    %5099 = vmatprep.subr.mxu0 0.0
    %v5100 = vand.u32 %v4914, 4294901760
    %v5101 = vsub.f32 %v4914, %v5100
    %5102 = vmatpush1.msra.mxu0 %v5101
    %5103 = vmatprep.subr.mxu0 0.0
    %5104 = vmatpush1.msra.mxu0 0.0
    %5105 = vmatprep.subr.mxu0 0.0
    %5106 = vmatpush1.msra.mxu0 0.0
    %5107 = vmatprep.subr.mxu0 0.0
    %5108 = vmatpush1.msra.mxu0 0.0
    %5109 = vmatprep.subr.mxu0 0.0
    %5110 = vmatpush1.msra.mxu0 0.0
    %5111 = vmatprep.subr.mxu0 0.0
    %5112 = vmatpush1.msra.mxu0 0.0
    %5113 = vmatprep.subr.mxu0 0.0
    %5114 = vmatpush1.msra.mxu0 0.0
    %5115 = vmatprep.subr.mxu0 0.0
    %5116 = vmatpush1.msra.mxu0 0.0
    %5117 = vmatprep.subr.mxu0 0.0
    %5118 = vmatpush1.msra.mxu0 0.0
    %5119 = vmatprep.subr.mxu0 0.0
    %5120 = vmatpush1.msra.mxu0 0.0
    %5121 = vmatprep.subr.mxu0 0.0
    %5122 = vmatpush1.msra.mxu0 0.0
    %5123 = vmatprep.subr.mxu0 0.0
    %5124 = vmatpush1.msra.mxu0 0.0
    %5125 = vmatprep.subr.mxu0 0.0
    %5126 = vmatpush1.msra.mxu0 0.0
    %5127 = vmatprep.subr.mxu0 0.0
    %5128 = vmatpush1.msra.mxu0 0.0
    %5129 = vmatprep.subr.mxu0 0.0
    %5130 = vmatpush1.msra.mxu0 0.0
    %5131 = vmatprep.subr.mxu0 0.0
    %5132 = vmatpush1.msra.mxu0 0.0
    %5133 = vmatprep.subr.mxu0 0.0
    %5134 = vmatpush1.msra.mxu0 0.0
    %5135 = vmatprep.subr.mxu0 0.0
    %5136 = vmatpush1.msra.mxu0 0.0
    %5137 = vmatprep.subr.mxu0 0.0
    %5138 = vmatpush1.msra.mxu0 0.0
    %5139 = vmatprep.subr.mxu0 0.0
    %5140 = vmatpush1.msra.mxu0 0.0
    %5141 = vmatprep.subr.mxu0 0.0
    %5142 = vmatpush1.msra.mxu0 0.0
    %5143 = vmatprep.subr.mxu0 0.0
    %5144 = vmatpush1.msra.mxu0 0.0
    %5145 = vmatprep.subr.mxu0 0.0
    %5146 = vmatpush1.msra.mxu0 0.0
    %5147 = vmatprep.subr.mxu0 0.0
    %5148 = vmatpush1.msra.mxu0 0.0
    %5149 = vmatprep.subr.mxu0 0.0
    %5150 = vmatpush1.msra.mxu0 0.0
    %5151 = vmatprep.subr.mxu0 0.0
    %5152 = vmatpush1.msra.mxu0 0.0
    %5153 = vmatprep.subr.mxu0 0.0
    %5154 = vmatpush1.msra.mxu0 0.0
    %5155 = vmatprep.subr.mxu0 0.0
    %5156 = vmatpush1.msra.mxu0 0.0
    %5157 = vmatprep.subr.mxu0 0.0
    %5158 = vmatpush1.msra.mxu0 0.0
    %5159 = vmatprep.subr.mxu0 0.0
    %5160 = vmatpush1.msra.mxu0 0.0
    %5161 = vmatprep.subr.mxu0 0.0
    %5162 = vmatpush1.msra.mxu0 0.0
    %5163 = vmatprep.mubr.f32.mxu0 0.0
    %v5164 = vand.u32 %v4916, 4294901760
    %v5165 = vsub.f32 %v4916, %v5164
    %5166 = vmatmul.mubr.f32.gmra.mrb[0].mxu0 %v5165
    %v5167 = vpop.f32.mrb[0].mxu0
    %v5168 = vadd.f32 %v5086, %v5167
    %v5169 = vpop.f32.mrb[0].mxu0
    %5170 = vmatprep.mubr.f32.mxu0 0.0
    %v5171 = vand.u32 %v4919, 4294901760
    %v5172 = vsub.f32 %v4919, %v5171
    %5173 = vmatmul.mubr.f32.gmra.mrb[0].mxu0 %v5172
    %v5174 = vpop.f32.mrb[0].mxu0
    %v5175 = vadd.f32 %v5092, %v5174
    %v5176 = vpop.f32.mrb[0].mxu0
    %5177 = vdwg.mxu0
    %5178 = vmatprep.subr.mxu0 0.0
    %v5179 = vand.u32 %v4913, 4294901760
    %5180 = vmatpush1.msra.mxu0 %v5179
    %5181 = vmatprep.subr.mxu0 0.0
    %v5182 = vand.u32 %v4914, 4294901760
    %5183 = vmatpush1.msra.mxu0 %v5182
    %5184 = vmatprep.subr.mxu0 0.0
    %5185 = vmatpush1.msra.mxu0 0.0
    %5186 = vmatprep.subr.mxu0 0.0
    %5187 = vmatpush1.msra.mxu0 0.0
    %5188 = vmatprep.subr.mxu0 0.0
    %5189 = vmatpush1.msra.mxu0 0.0
    %5190 = vmatprep.subr.mxu0 0.0
    %5191 = vmatpush1.msra.mxu0 0.0
    %5192 = vmatprep.subr.mxu0 0.0
    %5193 = vmatpush1.msra.mxu0 0.0
    %5194 = vmatprep.subr.mxu0 0.0
    %5195 = vmatpush1.msra.mxu0 0.0
    %5196 = vmatprep.subr.mxu0 0.0
    %5197 = vmatpush1.msra.mxu0 0.0
    %5198 = vmatprep.subr.mxu0 0.0
    %5199 = vmatpush1.msra.mxu0 0.0
    %5200 = vmatprep.subr.mxu0 0.0
    %5201 = vmatpush1.msra.mxu0 0.0
    %5202 = vmatprep.subr.mxu0 0.0
    %5203 = vmatpush1.msra.mxu0 0.0
    %5204 = vmatprep.subr.mxu0 0.0
    %5205 = vmatpush1.msra.mxu0 0.0
    %5206 = vmatprep.subr.mxu0 0.0
    %5207 = vmatpush1.msra.mxu0 0.0
    %5208 = vmatprep.subr.mxu0 0.0
    %5209 = vmatpush1.msra.mxu0 0.0
    %5210 = vmatprep.subr.mxu0 0.0
    %5211 = vmatpush1.msra.mxu0 0.0
    %5212 = vmatprep.subr.mxu0 0.0
    %5213 = vmatpush1.msra.mxu0 0.0
    %5214 = vmatprep.subr.mxu0 0.0
    %5215 = vmatpush1.msra.mxu0 0.0
    %5216 = vmatprep.subr.mxu0 0.0
    %5217 = vmatpush1.msra.mxu0 0.0
    %5218 = vmatprep.subr.mxu0 0.0
    %5219 = vmatpush1.msra.mxu0 0.0
    %5220 = vmatprep.subr.mxu0 0.0
    %5221 = vmatpush1.msra.mxu0 0.0
    %5222 = vmatprep.subr.mxu0 0.0
    %5223 = vmatpush1.msra.mxu0 0.0
    %5224 = vmatprep.subr.mxu0 0.0
    %5225 = vmatpush1.msra.mxu0 0.0
    %5226 = vmatprep.subr.mxu0 0.0
    %5227 = vmatpush1.msra.mxu0 0.0
    %5228 = vmatprep.subr.mxu0 0.0
    %5229 = vmatpush1.msra.mxu0 0.0
    %5230 = vmatprep.subr.mxu0 0.0
    %5231 = vmatpush1.msra.mxu0 0.0
    %5232 = vmatprep.subr.mxu0 0.0
    %5233 = vmatpush1.msra.mxu0 0.0
    %5234 = vmatprep.subr.mxu0 0.0
    %5235 = vmatpush1.msra.mxu0 0.0
    %5236 = vmatprep.subr.mxu0 0.0
    %5237 = vmatpush1.msra.mxu0 0.0
    %5238 = vmatprep.subr.mxu0 0.0
    %5239 = vmatpush1.msra.mxu0 0.0
    %5240 = vmatprep.subr.mxu0 0.0
    %5241 = vmatpush1.msra.mxu0 0.0
    %5242 = vmatprep.subr.mxu0 0.0
    %5243 = vmatpush1.msra.mxu0 0.0
    %5244 = vmatprep.mubr.f32.mxu0 0.0
    %v5245 = vand.u32 %v4916, 4294901760
    %v5246 = vsub.f32 %v4916, %v5245
    %v5247 = vand.u32 %v5246, 4294901760
    %5248 = vmatmul.mubr.f32.gmra.mrb[0].mxu0 %v5247
    %v5249 = vpop.f32.mrb[0].mxu0
    %v5250 = vadd.f32 %v5168, %v5249
    %v5251 = vpop.f32.mrb[0].mxu0
    %5252 = vmatprep.mubr.f32.mxu0 0.0
    %v5253 = vand.u32 %v4919, 4294901760
    %v5254 = vsub.f32 %v4919, %v5253
    %v5255 = vand.u32 %v5254, 4294901760
    %5256 = vmatmul.mubr.f32.gmra.mrb[0].mxu0 %v5255
    %v5257 = vpop.f32.mrb[0].mxu0
    %v5258 = vadd.f32 %v5175, %v5257
    %v5259 = vpop.f32.mrb[0].mxu0
    %5260 = vdwg.mxu0
    %5261 = vmatprep.subr.mxu0 0.0
    %v5262 = vand.u32 %v4913, 4294901760
    %v5263 = vsub.f32 %v4913, %v5262
    %v5264 = vand.u32 %v5263, 4294901760
    %5265 = vmatpush1.msra.mxu0 %v5264
    %5266 = vmatprep.subr.mxu0 0.0
    %v5267 = vand.u32 %v4914, 4294901760
    %v5268 = vsub.f32 %v4914, %v5267
    %v5269 = vand.u32 %v5268, 4294901760
    %5270 = vmatpush1.msra.mxu0 %v5269
    %5271 = vmatprep.subr.mxu0 0.0
    %5272 = vmatpush1.msra.mxu0 0.0
    %5273 = vmatprep.subr.mxu0 0.0
    %5274 = vmatpush1.msra.mxu0 0.0
    %5275 = vmatprep.subr.mxu0 0.0
    %5276 = vmatpush1.msra.mxu0 0.0
    %5277 = vmatprep.subr.mxu0 0.0
    %5278 = vmatpush1.msra.mxu0 0.0
    %5279 = vmatprep.subr.mxu0 0.0
    %5280 = vmatpush1.msra.mxu0 0.0
    %5281 = vmatprep.subr.mxu0 0.0
    %5282 = vmatpush1.msra.mxu0 0.0
    %5283 = vmatprep.subr.mxu0 0.0
    %5284 = vmatpush1.msra.mxu0 0.0
    %5285 = vmatprep.subr.mxu0 0.0
    %5286 = vmatpush1.msra.mxu0 0.0
    %5287 = vmatprep.subr.mxu0 0.0
    %5288 = vmatpush1.msra.mxu0 0.0
    %5289 = vmatprep.subr.mxu0 0.0
    %5290 = vmatpush1.msra.mxu0 0.0
    %5291 = vmatprep.subr.mxu0 0.0
    %5292 = vmatpush1.msra.mxu0 0.0
    %5293 = vmatprep.subr.mxu0 0.0
    %5294 = vmatpush1.msra.mxu0 0.0
    %5295 = vmatprep.subr.mxu0 0.0
    %5296 = vmatpush1.msra.mxu0 0.0
    %5297 = vmatprep.subr.mxu0 0.0
    %5298 = vmatpush1.msra.mxu0 0.0
    %5299 = vmatprep.subr.mxu0 0.0
    %5300 = vmatpush1.msra.mxu0 0.0
    %5301 = vmatprep.subr.mxu0 0.0
    %5302 = vmatpush1.msra.mxu0 0.0
    %5303 = vmatprep.subr.mxu0 0.0
    %5304 = vmatpush1.msra.mxu0 0.0
    %5305 = vmatprep.subr.mxu0 0.0
    %5306 = vmatpush1.msra.mxu0 0.0
    %5307 = vmatprep.subr.mxu0 0.0
    %5308 = vmatpush1.msra.mxu0 0.0
    %5309 = vmatprep.subr.mxu0 0.0
    %5310 = vmatpush1.msra.mxu0 0.0
    %5311 = vmatprep.subr.mxu0 0.0
    %5312 = vmatpush1.msra.mxu0 0.0
    %5313 = vmatprep.subr.mxu0 0.0
    %5314 = vmatpush1.msra.mxu0 0.0
    %5315 = vmatprep.subr.mxu0 0.0
    %5316 = vmatpush1.msra.mxu0 0.0
    %5317 = vmatprep.subr.mxu0 0.0
    %5318 = vmatpush1.msra.mxu0 0.0
    %5319 = vmatprep.subr.mxu0 0.0
    %5320 = vmatpush1.msra.mxu0 0.0
    %5321 = vmatprep.subr.mxu0 0.0
    %5322 = vmatpush1.msra.mxu0 0.0
    %5323 = vmatprep.subr.mxu0 0.0
    %5324 = vmatpush1.msra.mxu0 0.0
    %5325 = vmatprep.subr.mxu0 0.0
    %5326 = vmatpush1.msra.mxu0 0.0
    %5327 = vmatprep.subr.mxu0 0.0
    %5328 = vmatpush1.msra.mxu0 0.0
    %5329 = vmatprep.subr.mxu0 0.0
    %5330 = vmatpush1.msra.mxu0 0.0
    %5331 = vmatprep.mubr.f32.mxu0 0.0
    %v5332 = vand.u32 %v4916, 4294901760
    %5333 = vmatmul.mubr.f32.gmra.mrb[0].mxu0 %v5332
    %v5334 = vpop.f32.mrb[0].mxu0
    %v5335 = vadd.f32 %v5250, %v5334
    %v5336 = vpop.f32.mrb[0].mxu0
    %5337 = vmatprep.mubr.f32.mxu0 0.0
    %v5338 = vand.u32 %v4919, 4294901760
    %5339 = vmatmul.mubr.f32.gmra.mrb[0].mxu0 %v5338
    %v5340 = vpop.f32.mrb[0].mxu0
    %v5341 = vadd.f32 %v5258, %v5340
    %v5342 = vpop.f32.mrb[0].mxu0
    %5343 = vdwg.mxu0
    %5344 = vmatprep.subr.mxu0 0.0
    %v5345 = vand.u32 %v4913, 4294901760
    %5346 = vmatpush1.msra.mxu0 %v5345
    %5347 = vmatprep.subr.mxu0 0.0
    %v5348 = vand.u32 %v4914, 4294901760
    %5349 = vmatpush1.msra.mxu0 %v5348
    %5350 = vmatprep.subr.mxu0 0.0
    %5351 = vmatpush1.msra.mxu0 0.0
    %5352 = vmatprep.subr.mxu0 0.0
    %5353 = vmatpush1.msra.mxu0 0.0
    %5354 = vmatprep.subr.mxu0 0.0
    %5355 = vmatpush1.msra.mxu0 0.0
    %5356 = vmatprep.subr.mxu0 0.0
    %5357 = vmatpush1.msra.mxu0 0.0
    %5358 = vmatprep.subr.mxu0 0.0
    %5359 = vmatpush1.msra.mxu0 0.0
    %5360 = vmatprep.subr.mxu0 0.0
    %5361 = vmatpush1.msra.mxu0 0.0
    %5362 = vmatprep.subr.mxu0 0.0
    %5363 = vmatpush1.msra.mxu0 0.0
    %5364 = vmatprep.subr.mxu0 0.0
    %5365 = vmatpush1.msra.mxu0 0.0
    %5366 = vmatprep.subr.mxu0 0.0
    %5367 = vmatpush1.msra.mxu0 0.0
    %5368 = vmatprep.subr.mxu0 0.0
    %5369 = vmatpush1.msra.mxu0 0.0
    %5370 = vmatprep.subr.mxu0 0.0
    %5371 = vmatpush1.msra.mxu0 0.0
    %5372 = vmatprep.subr.mxu0 0.0
    %5373 = vmatpush1.msra.mxu0 0.0
    %5374 = vmatprep.subr.mxu0 0.0
    %5375 = vmatpush1.msra.mxu0 0.0
    %5376 = vmatprep.subr.mxu0 0.0
    %5377 = vmatpush1.msra.mxu0 0.0
    %5378 = vmatprep.subr.mxu0 0.0
    %5379 = vmatpush1.msra.mxu0 0.0
    %5380 = vmatprep.subr.mxu0 0.0
    %5381 = vmatpush1.msra.mxu0 0.0
    %5382 = vmatprep.subr.mxu0 0.0
    %5383 = vmatpush1.msra.mxu0 0.0
    %5384 = vmatprep.subr.mxu0 0.0
    %5385 = vmatpush1.msra.mxu0 0.0
    %5386 = vmatprep.subr.mxu0 0.0
    %5387 = vmatpush1.msra.mxu0 0.0
    %5388 = vmatprep.subr.mxu0 0.0
    %5389 = vmatpush1.msra.mxu0 0.0
    %5390 = vmatprep.subr.mxu0 0.0
    %5391 = vmatpush1.msra.mxu0 0.0
    %5392 = vmatprep.subr.mxu0 0.0
    %5393 = vmatpush1.msra.mxu0 0.0
    %5394 = vmatprep.subr.mxu0 0.0
    %5395 = vmatpush1.msra.mxu0 0.0
    %5396 = vmatprep.subr.mxu0 0.0
    %5397 = vmatpush1.msra.mxu0 0.0
    %5398 = vmatprep.subr.mxu0 0.0
    %5399 = vmatpush1.msra.mxu0 0.0
    %5400 = vmatprep.subr.mxu0 0.0
    %5401 = vmatpush1.msra.mxu0 0.0
    %5402 = vmatprep.subr.mxu0 0.0
    %5403 = vmatpush1.msra.mxu0 0.0
    %5404 = vmatprep.subr.mxu0 0.0
    %5405 = vmatpush1.msra.mxu0 0.0
    %5406 = vmatprep.subr.mxu0 0.0
    %5407 = vmatpush1.msra.mxu0 0.0
    %5408 = vmatprep.subr.mxu0 0.0
    %5409 = vmatpush1.msra.mxu0 0.0
    %5410 = vmatprep.mubr.f32.mxu0 0.0
    %v5411 = vand.u32 %v4916, 4294901760
    %5412 = vmatmul.mubr.f32.gmra.mrb[0].mxu0 %v5411
    %v5413 = vpop.f32.mrb[0].mxu0
    %v5414 = vadd.f32 %v5335, %v5413
    %v5415 = vpop.f32.mrb[0].mxu0
    %5416 = vmatprep.mubr.f32.mxu0 0.0
    %v5417 = vand.u32 %v4919, 4294901760
    %5418 = vmatmul.mubr.f32.gmra.mrb[0].mxu0 %v5417
    %v5419 = vpop.f32.mrb[0].mxu0
    %v5420 = vadd.f32 %v5341, %v5419
    %v5421 = vpop.f32.mrb[0].mxu0
    %5422 = vdwg.mxu0
    %v5423 = vmul.f32 %v5414, %v31
    %v5424 = vmul.f32 %v5420, %v32
    %5425 = vrot.lane.b32.xlu0 %v31, 32
    %v5426 = vpop.permute.xlu0 %5425
    %5427 = vrot.lane.b32.xlu0 %v32, 32
    %v5428 = vpop.permute.xlu0 %5427
    %s5429 = scalar_lea.vmem %s4, 16
    %v5430 = vld [vmem:[%s5429] sm:$0xff]
    %v5431 = vld [vmem:[%s5429 + $0x8] sm:$0xff]
    %5432 = vmatprep.subr.mxu0 0.0
    %v5433 = vand.u32 %v5430, 4294901760
    %5434 = vmatpush1.msra.mxu0 %v5433
    %5435 = vmatprep.subr.mxu0 0.0
    %v5436 = vand.u32 %v5431, 4294901760
    %5437 = vmatpush1.msra.mxu0 %v5436
    %5438 = vmatprep.subr.mxu0 0.0
    %5439 = vmatpush1.msra.mxu0 0.0
    %5440 = vmatprep.subr.mxu0 0.0
    %5441 = vmatpush1.msra.mxu0 0.0
    %5442 = vmatprep.subr.mxu0 0.0
    %5443 = vmatpush1.msra.mxu0 0.0
    %5444 = vmatprep.subr.mxu0 0.0
    %5445 = vmatpush1.msra.mxu0 0.0
    %5446 = vmatprep.subr.mxu0 0.0
    %5447 = vmatpush1.msra.mxu0 0.0
    %5448 = vmatprep.subr.mxu0 0.0
    %5449 = vmatpush1.msra.mxu0 0.0
    %5450 = vmatprep.subr.mxu0 0.0
    %5451 = vmatpush1.msra.mxu0 0.0
    %5452 = vmatprep.subr.mxu0 0.0
    %5453 = vmatpush1.msra.mxu0 0.0
    %5454 = vmatprep.subr.mxu0 0.0
    %5455 = vmatpush1.msra.mxu0 0.0
    %5456 = vmatprep.subr.mxu0 0.0
    %5457 = vmatpush1.msra.mxu0 0.0
    %5458 = vmatprep.subr.mxu0 0.0
    %5459 = vmatpush1.msra.mxu0 0.0
    %5460 = vmatprep.subr.mxu0 0.0
    %5461 = vmatpush1.msra.mxu0 0.0
    %5462 = vmatprep.subr.mxu0 0.0
    %5463 = vmatpush1.msra.mxu0 0.0
    %5464 = vmatprep.subr.mxu0 0.0
    %5465 = vmatpush1.msra.mxu0 0.0
    %5466 = vmatprep.subr.mxu0 0.0
    %5467 = vmatpush1.msra.mxu0 0.0
    %5468 = vmatprep.subr.mxu0 0.0
    %5469 = vmatpush1.msra.mxu0 0.0
    %5470 = vmatprep.subr.mxu0 0.0
    %5471 = vmatpush1.msra.mxu0 0.0
    %5472 = vmatprep.subr.mxu0 0.0
    %5473 = vmatpush1.msra.mxu0 0.0
    %5474 = vmatprep.subr.mxu0 0.0
    %5475 = vmatpush1.msra.mxu0 0.0
    %5476 = vmatprep.subr.mxu0 0.0
    %5477 = vmatpush1.msra.mxu0 0.0
    %5478 = vmatprep.subr.mxu0 0.0
    %5479 = vmatpush1.msra.mxu0 0.0
    %5480 = vmatprep.subr.mxu0 0.0
    %5481 = vmatpush1.msra.mxu0 0.0
    %5482 = vmatprep.subr.mxu0 0.0
    %5483 = vmatpush1.msra.mxu0 0.0
    %5484 = vmatprep.subr.mxu0 0.0
    %5485 = vmatpush1.msra.mxu0 0.0
    %5486 = vmatprep.subr.mxu0 0.0
    %5487 = vmatpush1.msra.mxu0 0.0
    %5488 = vmatprep.subr.mxu0 0.0
    %5489 = vmatpush1.msra.mxu0 0.0
    %5490 = vmatprep.subr.mxu0 0.0
    %5491 = vmatpush1.msra.mxu0 0.0
    %5492 = vmatprep.subr.mxu0 0.0
    %5493 = vmatpush1.msra.mxu0 0.0
    %5494 = vmatprep.subr.mxu0 0.0
    %5495 = vmatpush1.msra.mxu0 0.0
    %5496 = vmatprep.subr.mxu0 0.0
    %5497 = vmatpush1.msra.mxu0 0.0
    %5498 = vmatprep.mubr.f32.mxu0 0.0
    %v5499 = vand.u32 %v4916, 4294901760
    %v5500 = vsub.f32 %v4916, %v5499
    %v5501 = vand.u32 %v5500, 4294901760
    %v5502 = vsub.f32 %v5500, %v5501
    %v5503 = vand.u32 %v5502, 4294901760
    %5504 = vmatmul.mubr.f32.gmra.mrb[0].mxu0 %v5503
    %v5505 = vpop.f32.mrb[0].mxu0
    %v5506 = vadd.f32 0.0, %v5505
    %v5507 = vpop.f32.mrb[0].mxu0
    %5508 = vmatprep.mubr.f32.mxu0 0.0
    %v5509 = vand.u32 %v4919, 4294901760
    %v5510 = vsub.f32 %v4919, %v5509
    %v5511 = vand.u32 %v5510, 4294901760
    %v5512 = vsub.f32 %v5510, %v5511
    %v5513 = vand.u32 %v5512, 4294901760
    %5514 = vmatmul.mubr.f32.gmra.mrb[0].mxu0 %v5513
    %v5515 = vpop.f32.mrb[0].mxu0
    %v5516 = vadd.f32 0.0, %v5515
    %v5517 = vpop.f32.mrb[0].mxu0
    %5518 = vdwg.mxu0
    %5519 = vmatprep.subr.mxu0 0.0
    %v5520 = vand.u32 %v5430, 4294901760
    %v5521 = vsub.f32 %v5430, %v5520
    %v5522 = vand.u32 %v5521, 4294901760
    %v5523 = vsub.f32 %v5521, %v5522
    %v5524 = vand.u32 %v5523, 4294901760
    %5525 = vmatpush1.msra.mxu0 %v5524
    %5526 = vmatprep.subr.mxu0 0.0
    %v5527 = vand.u32 %v5431, 4294901760
    %v5528 = vsub.f32 %v5431, %v5527
    %v5529 = vand.u32 %v5528, 4294901760
    %v5530 = vsub.f32 %v5528, %v5529
    %v5531 = vand.u32 %v5530, 4294901760
    %5532 = vmatpush1.msra.mxu0 %v5531
    %5533 = vmatprep.subr.mxu0 0.0
    %5534 = vmatpush1.msra.mxu0 0.0
    %5535 = vmatprep.subr.mxu0 0.0
    %5536 = vmatpush1.msra.mxu0 0.0
    %5537 = vmatprep.subr.mxu0 0.0
    %5538 = vmatpush1.msra.mxu0 0.0
    %5539 = vmatprep.subr.mxu0 0.0
    %5540 = vmatpush1.msra.mxu0 0.0
    %5541 = vmatprep.subr.mxu0 0.0
    %5542 = vmatpush1.msra.mxu0 0.0
    %5543 = vmatprep.subr.mxu0 0.0
    %5544 = vmatpush1.msra.mxu0 0.0
    %5545 = vmatprep.subr.mxu0 0.0
    %5546 = vmatpush1.msra.mxu0 0.0
    %5547 = vmatprep.subr.mxu0 0.0
    %5548 = vmatpush1.msra.mxu0 0.0
    %5549 = vmatprep.subr.mxu0 0.0
    %5550 = vmatpush1.msra.mxu0 0.0
    %5551 = vmatprep.subr.mxu0 0.0
    %5552 = vmatpush1.msra.mxu0 0.0
    %5553 = vmatprep.subr.mxu0 0.0
    %5554 = vmatpush1.msra.mxu0 0.0
    %5555 = vmatprep.subr.mxu0 0.0
    %5556 = vmatpush1.msra.mxu0 0.0
    %5557 = vmatprep.subr.mxu0 0.0
    %5558 = vmatpush1.msra.mxu0 0.0
    %5559 = vmatprep.subr.mxu0 0.0
    %5560 = vmatpush1.msra.mxu0 0.0
    %5561 = vmatprep.subr.mxu0 0.0
    %5562 = vmatpush1.msra.mxu0 0.0
    %5563 = vmatprep.subr.mxu0 0.0
    %5564 = vmatpush1.msra.mxu0 0.0
    %5565 = vmatprep.subr.mxu0 0.0
    %5566 = vmatpush1.msra.mxu0 0.0
    %5567 = vmatprep.subr.mxu0 0.0
    %5568 = vmatpush1.msra.mxu0 0.0
    %5569 = vmatprep.subr.mxu0 0.0
    %5570 = vmatpush1.msra.mxu0 0.0
    %5571 = vmatprep.subr.mxu0 0.0
    %5572 = vmatpush1.msra.mxu0 0.0
    %5573 = vmatprep.subr.mxu0 0.0
    %5574 = vmatpush1.msra.mxu0 0.0
    %5575 = vmatprep.subr.mxu0 0.0
    %5576 = vmatpush1.msra.mxu0 0.0
    %5577 = vmatprep.subr.mxu0 0.0
    %5578 = vmatpush1.msra.mxu0 0.0
    %5579 = vmatprep.subr.mxu0 0.0
    %5580 = vmatpush1.msra.mxu0 0.0
    %5581 = vmatprep.subr.mxu0 0.0
    %5582 = vmatpush1.msra.mxu0 0.0
    %5583 = vmatprep.subr.mxu0 0.0
    %5584 = vmatpush1.msra.mxu0 0.0
    %5585 = vmatprep.subr.mxu0 0.0
    %5586 = vmatpush1.msra.mxu0 0.0
    %5587 = vmatprep.subr.mxu0 0.0
    %5588 = vmatpush1.msra.mxu0 0.0
    %5589 = vmatprep.subr.mxu0 0.0
    %5590 = vmatpush1.msra.mxu0 0.0
    %5591 = vmatprep.subr.mxu0 0.0
    %5592 = vmatpush1.msra.mxu0 0.0
    %5593 = vmatprep.mubr.f32.mxu0 0.0
    %v5594 = vand.u32 %v4916, 4294901760
    %5595 = vmatmul.mubr.f32.gmra.mrb[0].mxu0 %v5594
    %v5596 = vpop.f32.mrb[0].mxu0
    %v5597 = vadd.f32 %v5506, %v5596
    %v5598 = vpop.f32.mrb[0].mxu0
    %5599 = vmatprep.mubr.f32.mxu0 0.0
    %v5600 = vand.u32 %v4919, 4294901760
    %5601 = vmatmul.mubr.f32.gmra.mrb[0].mxu0 %v5600
    %v5602 = vpop.f32.mrb[0].mxu0
    %v5603 = vadd.f32 %v5516, %v5602
    %v5604 = vpop.f32.mrb[0].mxu0
    %5605 = vdwg.mxu0
    %5606 = vmatprep.subr.mxu0 0.0
    %v5607 = vand.u32 %v5430, 4294901760
    %v5608 = vsub.f32 %v5430, %v5607
    %5609 = vmatpush1.msra.mxu0 %v5608
    %5610 = vmatprep.subr.mxu0 0.0
    %v5611 = vand.u32 %v5431, 4294901760
    %v5612 = vsub.f32 %v5431, %v5611
    %5613 = vmatpush1.msra.mxu0 %v5612
    %5614 = vmatprep.subr.mxu0 0.0
    %5615 = vmatpush1.msra.mxu0 0.0
    %5616 = vmatprep.subr.mxu0 0.0
    %5617 = vmatpush1.msra.mxu0 0.0
    %5618 = vmatprep.subr.mxu0 0.0
    %5619 = vmatpush1.msra.mxu0 0.0
    %5620 = vmatprep.subr.mxu0 0.0
    %5621 = vmatpush1.msra.mxu0 0.0
    %5622 = vmatprep.subr.mxu0 0.0
    %5623 = vmatpush1.msra.mxu0 0.0
    %5624 = vmatprep.subr.mxu0 0.0
    %5625 = vmatpush1.msra.mxu0 0.0
    %5626 = vmatprep.subr.mxu0 0.0
    %5627 = vmatpush1.msra.mxu0 0.0
    %5628 = vmatprep.subr.mxu0 0.0
    %5629 = vmatpush1.msra.mxu0 0.0
    %5630 = vmatprep.subr.mxu0 0.0
    %5631 = vmatpush1.msra.mxu0 0.0
    %5632 = vmatprep.subr.mxu0 0.0
    %5633 = vmatpush1.msra.mxu0 0.0
    %5634 = vmatprep.subr.mxu0 0.0
    %5635 = vmatpush1.msra.mxu0 0.0
    %5636 = vmatprep.subr.mxu0 0.0
    %5637 = vmatpush1.msra.mxu0 0.0
    %5638 = vmatprep.subr.mxu0 0.0
    %5639 = vmatpush1.msra.mxu0 0.0
    %5640 = vmatprep.subr.mxu0 0.0
    %5641 = vmatpush1.msra.mxu0 0.0
    %5642 = vmatprep.subr.mxu0 0.0
    %5643 = vmatpush1.msra.mxu0 0.0
    %5644 = vmatprep.subr.mxu0 0.0
    %5645 = vmatpush1.msra.mxu0 0.0
    %5646 = vmatprep.subr.mxu0 0.0
    %5647 = vmatpush1.msra.mxu0 0.0
    %5648 = vmatprep.subr.mxu0 0.0
    %5649 = vmatpush1.msra.mxu0 0.0
    %5650 = vmatprep.subr.mxu0 0.0
    %5651 = vmatpush1.msra.mxu0 0.0
    %5652 = vmatprep.subr.mxu0 0.0
    %5653 = vmatpush1.msra.mxu0 0.0
    %5654 = vmatprep.subr.mxu0 0.0
    %5655 = vmatpush1.msra.mxu0 0.0
    %5656 = vmatprep.subr.mxu0 0.0
    %5657 = vmatpush1.msra.mxu0 0.0
    %5658 = vmatprep.subr.mxu0 0.0
    %5659 = vmatpush1.msra.mxu0 0.0
    %5660 = vmatprep.subr.mxu0 0.0
    %5661 = vmatpush1.msra.mxu0 0.0
    %5662 = vmatprep.subr.mxu0 0.0
    %5663 = vmatpush1.msra.mxu0 0.0
    %5664 = vmatprep.subr.mxu0 0.0
    %5665 = vmatpush1.msra.mxu0 0.0
    %5666 = vmatprep.subr.mxu0 0.0
    %5667 = vmatpush1.msra.mxu0 0.0
    %5668 = vmatprep.subr.mxu0 0.0
    %5669 = vmatpush1.msra.mxu0 0.0
    %5670 = vmatprep.subr.mxu0 0.0
    %5671 = vmatpush1.msra.mxu0 0.0
    %5672 = vmatprep.subr.mxu0 0.0
    %5673 = vmatpush1.msra.mxu0 0.0
    %5674 = vmatprep.mubr.f32.mxu0 0.0
    %v5675 = vand.u32 %v4916, 4294901760
    %v5676 = vsub.f32 %v4916, %v5675
    %5677 = vmatmul.mubr.f32.gmra.mrb[0].mxu0 %v5676
    %v5678 = vpop.f32.mrb[0].mxu0
    %v5679 = vadd.f32 %v5597, %v5678
    %v5680 = vpop.f32.mrb[0].mxu0
    %5681 = vmatprep.mubr.f32.mxu0 0.0
    %v5682 = vand.u32 %v4919, 4294901760
    %v5683 = vsub.f32 %v4919, %v5682
    %5684 = vmatmul.mubr.f32.gmra.mrb[0].mxu0 %v5683
    %v5685 = vpop.f32.mrb[0].mxu0
    %v5686 = vadd.f32 %v5603, %v5685
    %v5687 = vpop.f32.mrb[0].mxu0
    %5688 = vdwg.mxu0
    %5689 = vmatprep.subr.mxu0 0.0
    %v5690 = vand.u32 %v5430, 4294901760
    %5691 = vmatpush1.msra.mxu0 %v5690
    %5692 = vmatprep.subr.mxu0 0.0
    %v5693 = vand.u32 %v5431, 4294901760
    %5694 = vmatpush1.msra.mxu0 %v5693
    %5695 = vmatprep.subr.mxu0 0.0
    %5696 = vmatpush1.msra.mxu0 0.0
    %5697 = vmatprep.subr.mxu0 0.0
    %5698 = vmatpush1.msra.mxu0 0.0
    %5699 = vmatprep.subr.mxu0 0.0
    %5700 = vmatpush1.msra.mxu0 0.0
    %5701 = vmatprep.subr.mxu0 0.0
    %5702 = vmatpush1.msra.mxu0 0.0
    %5703 = vmatprep.subr.mxu0 0.0
    %5704 = vmatpush1.msra.mxu0 0.0
    %5705 = vmatprep.subr.mxu0 0.0
    %5706 = vmatpush1.msra.mxu0 0.0
    %5707 = vmatprep.subr.mxu0 0.0
    %5708 = vmatpush1.msra.mxu0 0.0
    %5709 = vmatprep.subr.mxu0 0.0
    %5710 = vmatpush1.msra.mxu0 0.0
    %5711 = vmatprep.subr.mxu0 0.0
    %5712 = vmatpush1.msra.mxu0 0.0
    %5713 = vmatprep.subr.mxu0 0.0
    %5714 = vmatpush1.msra.mxu0 0.0
    %5715 = vmatprep.subr.mxu0 0.0
    %5716 = vmatpush1.msra.mxu0 0.0
    %5717 = vmatprep.subr.mxu0 0.0
    %5718 = vmatpush1.msra.mxu0 0.0
    %5719 = vmatprep.subr.mxu0 0.0
    %5720 = vmatpush1.msra.mxu0 0.0
    %5721 = vmatprep.subr.mxu0 0.0
    %5722 = vmatpush1.msra.mxu0 0.0
    %5723 = vmatprep.subr.mxu0 0.0
    %5724 = vmatpush1.msra.mxu0 0.0
    %5725 = vmatprep.subr.mxu0 0.0
    %5726 = vmatpush1.msra.mxu0 0.0
    %5727 = vmatprep.subr.mxu0 0.0
    %5728 = vmatpush1.msra.mxu0 0.0
    %5729 = vmatprep.subr.mxu0 0.0
    %5730 = vmatpush1.msra.mxu0 0.0
    %5731 = vmatprep.subr.mxu0 0.0
    %5732 = vmatpush1.msra.mxu0 0.0
    %5733 = vmatprep.subr.mxu0 0.0
    %5734 = vmatpush1.msra.mxu0 0.0
    %5735 = vmatprep.subr.mxu0 0.0
    %5736 = vmatpush1.msra.mxu0 0.0
    %5737 = vmatprep.subr.mxu0 0.0
    %5738 = vmatpush1.msra.mxu0 0.0
    %5739 = vmatprep.subr.mxu0 0.0
    %5740 = vmatpush1.msra.mxu0 0.0
    %5741 = vmatprep.subr.mxu0 0.0
    %5742 = vmatpush1.msra.mxu0 0.0
    %5743 = vmatprep.subr.mxu0 0.0
    %5744 = vmatpush1.msra.mxu0 0.0
    %5745 = vmatprep.subr.mxu0 0.0
    %5746 = vmatpush1.msra.mxu0 0.0
    %5747 = vmatprep.subr.mxu0 0.0
    %5748 = vmatpush1.msra.mxu0 0.0
    %5749 = vmatprep.subr.mxu0 0.0
    %5750 = vmatpush1.msra.mxu0 0.0
    %5751 = vmatprep.subr.mxu0 0.0
    %5752 = vmatpush1.msra.mxu0 0.0
    %5753 = vmatprep.subr.mxu0 0.0
    %5754 = vmatpush1.msra.mxu0 0.0
    %5755 = vmatprep.mubr.f32.mxu0 0.0
    %v5756 = vand.u32 %v4916, 4294901760
    %v5757 = vsub.f32 %v4916, %v5756
    %v5758 = vand.u32 %v5757, 4294901760
    %5759 = vmatmul.mubr.f32.gmra.mrb[0].mxu0 %v5758
    %v5760 = vpop.f32.mrb[0].mxu0
    %v5761 = vadd.f32 %v5679, %v5760
    %v5762 = vpop.f32.mrb[0].mxu0
    %5763 = vmatprep.mubr.f32.mxu0 0.0
    %v5764 = vand.u32 %v4919, 4294901760
    %v5765 = vsub.f32 %v4919, %v5764
    %v5766 = vand.u32 %v5765, 4294901760
    %5767 = vmatmul.mubr.f32.gmra.mrb[0].mxu0 %v5766
    %v5768 = vpop.f32.mrb[0].mxu0
    %v5769 = vadd.f32 %v5686, %v5768
    %v5770 = vpop.f32.mrb[0].mxu0
    %5771 = vdwg.mxu0
    %5772 = vmatprep.subr.mxu0 0.0
    %v5773 = vand.u32 %v5430, 4294901760
    %v5774 = vsub.f32 %v5430, %v5773
    %v5775 = vand.u32 %v5774, 4294901760
    %5776 = vmatpush1.msra.mxu0 %v5775
    %5777 = vmatprep.subr.mxu0 0.0
    %v5778 = vand.u32 %v5431, 4294901760
    %v5779 = vsub.f32 %v5431, %v5778
    %v5780 = vand.u32 %v5779, 4294901760
    %5781 = vmatpush1.msra.mxu0 %v5780
    %5782 = vmatprep.subr.mxu0 0.0
    %5783 = vmatpush1.msra.mxu0 0.0
    %5784 = vmatprep.subr.mxu0 0.0
    %5785 = vmatpush1.msra.mxu0 0.0
    %5786 = vmatprep.subr.mxu0 0.0
    %5787 = vmatpush1.msra.mxu0 0.0
    %5788 = vmatprep.subr.mxu0 0.0
    %5789 = vmatpush1.msra.mxu0 0.0
    %5790 = vmatprep.subr.mxu0 0.0
    %5791 = vmatpush1.msra.mxu0 0.0
    %5792 = vmatprep.subr.mxu0 0.0
    %5793 = vmatpush1.msra.mxu0 0.0
    %5794 = vmatprep.subr.mxu0 0.0
    %5795 = vmatpush1.msra.mxu0 0.0
    %5796 = vmatprep.subr.mxu0 0.0
    %5797 = vmatpush1.msra.mxu0 0.0
    %5798 = vmatprep.subr.mxu0 0.0
    %5799 = vmatpush1.msra.mxu0 0.0
    %5800 = vmatprep.subr.mxu0 0.0
    %5801 = vmatpush1.msra.mxu0 0.0
    %5802 = vmatprep.subr.mxu0 0.0
    %5803 = vmatpush1.msra.mxu0 0.0
    %5804 = vmatprep.subr.mxu0 0.0
    %5805 = vmatpush1.msra.mxu0 0.0
    %5806 = vmatprep.subr.mxu0 0.0
    %5807 = vmatpush1.msra.mxu0 0.0
    %5808 = vmatprep.subr.mxu0 0.0
    %5809 = vmatpush1.msra.mxu0 0.0
    %5810 = vmatprep.subr.mxu0 0.0
    %5811 = vmatpush1.msra.mxu0 0.0
    %5812 = vmatprep.subr.mxu0 0.0
    %5813 = vmatpush1.msra.mxu0 0.0
    %5814 = vmatprep.subr.mxu0 0.0
    %5815 = vmatpush1.msra.mxu0 0.0
    %5816 = vmatprep.subr.mxu0 0.0
    %5817 = vmatpush1.msra.mxu0 0.0
    %5818 = vmatprep.subr.mxu0 0.0
    %5819 = vmatpush1.msra.mxu0 0.0
    %5820 = vmatprep.subr.mxu0 0.0
    %5821 = vmatpush1.msra.mxu0 0.0
    %5822 = vmatprep.subr.mxu0 0.0
    %5823 = vmatpush1.msra.mxu0 0.0
    %5824 = vmatprep.subr.mxu0 0.0
    %5825 = vmatpush1.msra.mxu0 0.0
    %5826 = vmatprep.subr.mxu0 0.0
    %5827 = vmatpush1.msra.mxu0 0.0
    %5828 = vmatprep.subr.mxu0 0.0
    %5829 = vmatpush1.msra.mxu0 0.0
    %5830 = vmatprep.subr.mxu0 0.0
    %5831 = vmatpush1.msra.mxu0 0.0
    %5832 = vmatprep.subr.mxu0 0.0
    %5833 = vmatpush1.msra.mxu0 0.0
    %5834 = vmatprep.subr.mxu0 0.0
    %5835 = vmatpush1.msra.mxu0 0.0
    %5836 = vmatprep.subr.mxu0 0.0
    %5837 = vmatpush1.msra.mxu0 0.0
    %5838 = vmatprep.subr.mxu0 0.0
    %5839 = vmatpush1.msra.mxu0 0.0
    %5840 = vmatprep.subr.mxu0 0.0
    %5841 = vmatpush1.msra.mxu0 0.0
    %5842 = vmatprep.mubr.f32.mxu0 0.0
    %v5843 = vand.u32 %v4916, 4294901760
    %5844 = vmatmul.mubr.f32.gmra.mrb[0].mxu0 %v5843
    %v5845 = vpop.f32.mrb[0].mxu0
    %v5846 = vadd.f32 %v5761, %v5845
    %v5847 = vpop.f32.mrb[0].mxu0
    %5848 = vmatprep.mubr.f32.mxu0 0.0
    %v5849 = vand.u32 %v4919, 4294901760
    %5850 = vmatmul.mubr.f32.gmra.mrb[0].mxu0 %v5849
    %v5851 = vpop.f32.mrb[0].mxu0
    %v5852 = vadd.f32 %v5769, %v5851
    %v5853 = vpop.f32.mrb[0].mxu0
    %5854 = vdwg.mxu0
    %5855 = vmatprep.subr.mxu0 0.0
    %v5856 = vand.u32 %v5430, 4294901760
    %5857 = vmatpush1.msra.mxu0 %v5856
    %5858 = vmatprep.subr.mxu0 0.0
    %v5859 = vand.u32 %v5431, 4294901760
    %5860 = vmatpush1.msra.mxu0 %v5859
    %5861 = vmatprep.subr.mxu0 0.0
    %5862 = vmatpush1.msra.mxu0 0.0
    %5863 = vmatprep.subr.mxu0 0.0
    %5864 = vmatpush1.msra.mxu0 0.0
    %5865 = vmatprep.subr.mxu0 0.0
    %5866 = vmatpush1.msra.mxu0 0.0
    %5867 = vmatprep.subr.mxu0 0.0
    %5868 = vmatpush1.msra.mxu0 0.0
    %5869 = vmatprep.subr.mxu0 0.0
    %5870 = vmatpush1.msra.mxu0 0.0
    %5871 = vmatprep.subr.mxu0 0.0
    %5872 = vmatpush1.msra.mxu0 0.0
    %5873 = vmatprep.subr.mxu0 0.0
    %5874 = vmatpush1.msra.mxu0 0.0
    %5875 = vmatprep.subr.mxu0 0.0
    %5876 = vmatpush1.msra.mxu0 0.0
    %5877 = vmatprep.subr.mxu0 0.0
    %5878 = vmatpush1.msra.mxu0 0.0
    %5879 = vmatprep.subr.mxu0 0.0
    %5880 = vmatpush1.msra.mxu0 0.0
    %5881 = vmatprep.subr.mxu0 0.0
    %5882 = vmatpush1.msra.mxu0 0.0
    %5883 = vmatprep.subr.mxu0 0.0
    %5884 = vmatpush1.msra.mxu0 0.0
    %5885 = vmatprep.subr.mxu0 0.0
    %5886 = vmatpush1.msra.mxu0 0.0
    %5887 = vmatprep.subr.mxu0 0.0
    %5888 = vmatpush1.msra.mxu0 0.0
    %5889 = vmatprep.subr.mxu0 0.0
    %5890 = vmatpush1.msra.mxu0 0.0
    %5891 = vmatprep.subr.mxu0 0.0
    %5892 = vmatpush1.msra.mxu0 0.0
    %5893 = vmatprep.subr.mxu0 0.0
    %5894 = vmatpush1.msra.mxu0 0.0
    %5895 = vmatprep.subr.mxu0 0.0
    %5896 = vmatpush1.msra.mxu0 0.0
    %5897 = vmatprep.subr.mxu0 0.0
    %5898 = vmatpush1.msra.mxu0 0.0
    %5899 = vmatprep.subr.mxu0 0.0
    %5900 = vmatpush1.msra.mxu0 0.0
    %5901 = vmatprep.subr.mxu0 0.0
    %5902 = vmatpush1.msra.mxu0 0.0
    %5903 = vmatprep.subr.mxu0 0.0
    %5904 = vmatpush1.msra.mxu0 0.0
    %5905 = vmatprep.subr.mxu0 0.0
    %5906 = vmatpush1.msra.mxu0 0.0
    %5907 = vmatprep.subr.mxu0 0.0
    %5908 = vmatpush1.msra.mxu0 0.0
    %5909 = vmatprep.subr.mxu0 0.0
    %5910 = vmatpush1.msra.mxu0 0.0
    %5911 = vmatprep.subr.mxu0 0.0
    %5912 = vmatpush1.msra.mxu0 0.0
    %5913 = vmatprep.subr.mxu0 0.0
    %5914 = vmatpush1.msra.mxu0 0.0
    %5915 = vmatprep.subr.mxu0 0.0
    %5916 = vmatpush1.msra.mxu0 0.0
    %5917 = vmatprep.subr.mxu0 0.0
    %5918 = vmatpush1.msra.mxu0 0.0
    %5919 = vmatprep.subr.mxu0 0.0
    %5920 = vmatpush1.msra.mxu0 0.0
    %5921 = vmatprep.mubr.f32.mxu0 0.0
    %v5922 = vand.u32 %v4916, 4294901760
    %5923 = vmatmul.mubr.f32.gmra.mrb[0].mxu0 %v5922
    %v5924 = vpop.f32.mrb[0].mxu0
    %v5925 = vadd.f32 %v5846, %v5924
    %v5926 = vpop.f32.mrb[0].mxu0
    %5927 = vmatprep.mubr.f32.mxu0 0.0
    %v5928 = vand.u32 %v4919, 4294901760
    %5929 = vmatmul.mubr.f32.gmra.mrb[0].mxu0 %v5928
    %v5930 = vpop.f32.mrb[0].mxu0
    %v5931 = vadd.f32 %v5852, %v5930
    %v5932 = vpop.f32.mrb[0].mxu0
    %5933 = vdwg.mxu0
    %v5934 = vmul.f32 %v5925, %v5426
    %v5935 = vmul.f32 %v5931, %v5428
    %v5936 = vadd.f32 %v5423, %v5934
    %v5937 = vadd.f32 %v5424, %v5935
    %5938 = vrot.lane.b32.xlu0 %v31, 64
    %v5939 = vpop.permute.xlu0 %5938
    %5940 = vrot.lane.b32.xlu0 %v32, 64
    %v5941 = vpop.permute.xlu0 %5940
    %s5942 = scalar_lea.vmem %s4, 32
    %v5943 = vld [vmem:[%s5942] sm:$0xff]
    %v5944 = vld [vmem:[%s5942 + $0x8] sm:$0xff]
    %5945 = vmatprep.subr.mxu0 0.0
    %v5946 = vand.u32 %v5943, 4294901760
    %5947 = vmatpush1.msra.mxu0 %v5946
    %5948 = vmatprep.subr.mxu0 0.0
    %v5949 = vand.u32 %v5944, 4294901760
    %5950 = vmatpush1.msra.mxu0 %v5949
    %5951 = vmatprep.subr.mxu0 0.0
    %5952 = vmatpush1.msra.mxu0 0.0
    %5953 = vmatprep.subr.mxu0 0.0
    %5954 = vmatpush1.msra.mxu0 0.0
    %5955 = vmatprep.subr.mxu0 0.0
    %5956 = vmatpush1.msra.mxu0 0.0
    %5957 = vmatprep.subr.mxu0 0.0
    %5958 = vmatpush1.msra.mxu0 0.0
    %5959 = vmatprep.subr.mxu0 0.0
    %5960 = vmatpush1.msra.mxu0 0.0
    %5961 = vmatprep.subr.mxu0 0.0
    %5962 = vmatpush1.msra.mxu0 0.0
    %5963 = vmatprep.subr.mxu0 0.0
    %5964 = vmatpush1.msra.mxu0 0.0
    %5965 = vmatprep.subr.mxu0 0.0
    %5966 = vmatpush1.msra.mxu0 0.0
    %5967 = vmatprep.subr.mxu0 0.0
    %5968 = vmatpush1.msra.mxu0 0.0
    %5969 = vmatprep.subr.mxu0 0.0
    %5970 = vmatpush1.msra.mxu0 0.0
    %5971 = vmatprep.subr.mxu0 0.0
    %5972 = vmatpush1.msra.mxu0 0.0
    %5973 = vmatprep.subr.mxu0 0.0
    %5974 = vmatpush1.msra.mxu0 0.0
    %5975 = vmatprep.subr.mxu0 0.0
    %5976 = vmatpush1.msra.mxu0 0.0
    %5977 = vmatprep.subr.mxu0 0.0
    %5978 = vmatpush1.msra.mxu0 0.0
    %5979 = vmatprep.subr.mxu0 0.0
    %5980 = vmatpush1.msra.mxu0 0.0
    %5981 = vmatprep.subr.mxu0 0.0
    %5982 = vmatpush1.msra.mxu0 0.0
    %5983 = vmatprep.subr.mxu0 0.0
    %5984 = vmatpush1.msra.mxu0 0.0
    %5985 = vmatprep.subr.mxu0 0.0
    %5986 = vmatpush1.msra.mxu0 0.0
    %5987 = vmatprep.subr.mxu0 0.0
    %5988 = vmatpush1.msra.mxu0 0.0
    %5989 = vmatprep.subr.mxu0 0.0
    %5990 = vmatpush1.msra.mxu0 0.0
    %5991 = vmatprep.subr.mxu0 0.0
    %5992 = vmatpush1.msra.mxu0 0.0
    %5993 = vmatprep.subr.mxu0 0.0
    %5994 = vmatpush1.msra.mxu0 0.0
    %5995 = vmatprep.subr.mxu0 0.0
    %5996 = vmatpush1.msra.mxu0 0.0
    %5997 = vmatprep.subr.mxu0 0.0
    %5998 = vmatpush1.msra.mxu0 0.0
    %5999 = vmatprep.subr.mxu0 0.0
    %6000 = vmatpush1.msra.mxu0 0.0
    %6001 = vmatprep.subr.mxu0 0.0
    %6002 = vmatpush1.msra.mxu0 0.0
    %6003 = vmatprep.subr.mxu0 0.0
    %6004 = vmatpush1.msra.mxu0 0.0
    %6005 = vmatprep.subr.mxu0 0.0
    %6006 = vmatpush1.msra.mxu0 0.0
    %6007 = vmatprep.subr.mxu0 0.0
    %6008 = vmatpush1.msra.mxu0 0.0
    %6009 = vmatprep.subr.mxu0 0.0
    %6010 = vmatpush1.msra.mxu0 0.0
    %6011 = vmatprep.mubr.f32.mxu0 0.0
    %v6012 = vand.u32 %v4916, 4294901760
    %v6013 = vsub.f32 %v4916, %v6012
    %v6014 = vand.u32 %v6013, 4294901760
    %v6015 = vsub.f32 %v6013, %v6014
    %v6016 = vand.u32 %v6015, 4294901760
    %6017 = vmatmul.mubr.f32.gmra.mrb[0].mxu0 %v6016
    %v6018 = vpop.f32.mrb[0].mxu0
    %v6019 = vadd.f32 0.0, %v6018
    %v6020 = vpop.f32.mrb[0].mxu0
    %6021 = vmatprep.mubr.f32.mxu0 0.0
    %v6022 = vand.u32 %v4919, 4294901760
    %v6023 = vsub.f32 %v4919, %v6022
    %v6024 = vand.u32 %v6023, 4294901760
    %v6025 = vsub.f32 %v6023, %v6024
    %v6026 = vand.u32 %v6025, 4294901760
    %6027 = vmatmul.mubr.f32.gmra.mrb[0].mxu0 %v6026
    %v6028 = vpop.f32.mrb[0].mxu0
    %v6029 = vadd.f32 0.0, %v6028
    %v6030 = vpop.f32.mrb[0].mxu0
    %6031 = vdwg.mxu0
    %6032 = vmatprep.subr.mxu0 0.0
    %v6033 = vand.u32 %v5943, 4294901760
    %v6034 = vsub.f32 %v5943, %v6033
    %v6035 = vand.u32 %v6034, 4294901760
    %v6036 = vsub.f32 %v6034, %v6035
    %v6037 = vand.u32 %v6036, 4294901760
    %6038 = vmatpush1.msra.mxu0 %v6037
    %6039 = vmatprep.subr.mxu0 0.0
    %v6040 = vand.u32 %v5944, 4294901760
    %v6041 = vsub.f32 %v5944, %v6040
    %v6042 = vand.u32 %v6041, 4294901760
    %v6043 = vsub.f32 %v6041, %v6042
    %v6044 = vand.u32 %v6043, 4294901760
    %6045 = vmatpush1.msra.mxu0 %v6044
    %6046 = vmatprep.subr.mxu0 0.0
    %6047 = vmatpush1.msra.mxu0 0.0
    %6048 = vmatprep.subr.mxu0 0.0
    %6049 = vmatpush1.msra.mxu0 0.0
    %6050 = vmatprep.subr.mxu0 0.0
    %6051 = vmatpush1.msra.mxu0 0.0
    %6052 = vmatprep.subr.mxu0 0.0
    %6053 = vmatpush1.msra.mxu0 0.0
    %6054 = vmatprep.subr.mxu0 0.0
    %6055 = vmatpush1.msra.mxu0 0.0
    %6056 = vmatprep.subr.mxu0 0.0
    %6057 = vmatpush1.msra.mxu0 0.0
    %6058 = vmatprep.subr.mxu0 0.0
    %6059 = vmatpush1.msra.mxu0 0.0
    %6060 = vmatprep.subr.mxu0 0.0
    %6061 = vmatpush1.msra.mxu0 0.0
    %6062 = vmatprep.subr.mxu0 0.0
    %6063 = vmatpush1.msra.mxu0 0.0
    %6064 = vmatprep.subr.mxu0 0.0
    %6065 = vmatpush1.msra.mxu0 0.0
    %6066 = vmatprep.subr.mxu0 0.0
    %6067 = vmatpush1.msra.mxu0 0.0
    %6068 = vmatprep.subr.mxu0 0.0
    %6069 = vmatpush1.msra.mxu0 0.0
    %6070 = vmatprep.subr.mxu0 0.0
    %6071 = vmatpush1.msra.mxu0 0.0
    %6072 = vmatprep.subr.mxu0 0.0
    %6073 = vmatpush1.msra.mxu0 0.0
    %6074 = vmatprep.subr.mxu0 0.0
    %6075 = vmatpush1.msra.mxu0 0.0
    %6076 = vmatprep.subr.mxu0 0.0
    %6077 = vmatpush1.msra.mxu0 0.0
    %6078 = vmatprep.subr.mxu0 0.0
    %6079 = vmatpush1.msra.mxu0 0.0
    %6080 = vmatprep.subr.mxu0 0.0
    %6081 = vmatpush1.msra.mxu0 0.0
    %6082 = vmatprep.subr.mxu0 0.0
    %6083 = vmatpush1.msra.mxu0 0.0
    %6084 = vmatprep.subr.mxu0 0.0
    %6085 = vmatpush1.msra.mxu0 0.0
    %6086 = vmatprep.subr.mxu0 0.0
    %6087 = vmatpush1.msra.mxu0 0.0
    %6088 = vmatprep.subr.mxu0 0.0
    %6089 = vmatpush1.msra.mxu0 0.0
    %6090 = vmatprep.subr.mxu0 0.0
    %6091 = vmatpush1.msra.mxu0 0.0
    %6092 = vmatprep.subr.mxu0 0.0
    %6093 = vmatpush1.msra.mxu0 0.0
    %6094 = vmatprep.subr.mxu0 0.0
    %6095 = vmatpush1.msra.mxu0 0.0
    %6096 = vmatprep.subr.mxu0 0.0
    %6097 = vmatpush1.msra.mxu0 0.0
    %6098 = vmatprep.subr.mxu0 0.0
    %6099 = vmatpush1.msra.mxu0 0.0
    %6100 = vmatprep.subr.mxu0 0.0
    %6101 = vmatpush1.msra.mxu0 0.0
    %6102 = vmatprep.subr.mxu0 0.0
    %6103 = vmatpush1.msra.mxu0 0.0
    %6104 = vmatprep.subr.mxu0 0.0
    %6105 = vmatpush1.msra.mxu0 0.0
    %6106 = vmatprep.mubr.f32.mxu0 0.0
    %v6107 = vand.u32 %v4916, 4294901760
    %6108 = vmatmul.mubr.f32.gmra.mrb[0].mxu0 %v6107
    %v6109 = vpop.f32.mrb[0].mxu0
    %v6110 = vadd.f32 %v6019, %v6109
    %v6111 = vpop.f32.mrb[0].mxu0
    %6112 = vmatprep.mubr.f32.mxu0 0.0
    %v6113 = vand.u32 %v4919, 4294901760
    %6114 = vmatmul.mubr.f32.gmra.mrb[0].mxu0 %v6113
    %v6115 = vpop.f32.mrb[0].mxu0
    %v6116 = vadd.f32 %v6029, %v6115
    %v6117 = vpop.f32.mrb[0].mxu0
    %6118 = vdwg.mxu0
    %6119 = vmatprep.subr.mxu0 0.0
    %v6120 = vand.u32 %v5943, 4294901760
    %v6121 = vsub.f32 %v5943, %v6120
    %6122 = vmatpush1.msra.mxu0 %v6121
    %6123 = vmatprep.subr.mxu0 0.0
    %v6124 = vand.u32 %v5944, 4294901760
    %v6125 = vsub.f32 %v5944, %v6124
    %6126 = vmatpush1.msra.mxu0 %v6125
    %6127 = vmatprep.subr.mxu0 0.0
    %6128 = vmatpush1.msra.mxu0 0.0
    %6129 = vmatprep.subr.mxu0 0.0
    %6130 = vmatpush1.msra.mxu0 0.0
    %6131 = vmatprep.subr.mxu0 0.0
    %6132 = vmatpush1.msra.mxu0 0.0
    %6133 = vmatprep.subr.mxu0 0.0
    %6134 = vmatpush1.msra.mxu0 0.0
    %6135 = vmatprep.subr.mxu0 0.0
    %6136 = vmatpush1.msra.mxu0 0.0
    %6137 = vmatprep.subr.mxu0 0.0
    %6138 = vmatpush1.msra.mxu0 0.0
    %6139 = vmatprep.subr.mxu0 0.0
    %6140 = vmatpush1.msra.mxu0 0.0
    %6141 = vmatprep.subr.mxu0 0.0
    %6142 = vmatpush1.msra.mxu0 0.0
    %6143 = vmatprep.subr.mxu0 0.0
    %6144 = vmatpush1.msra.mxu0 0.0
    %6145 = vmatprep.subr.mxu0 0.0
    %6146 = vmatpush1.msra.mxu0 0.0
    %6147 = vmatprep.subr.mxu0 0.0
    %6148 = vmatpush1.msra.mxu0 0.0
    %6149 = vmatprep.subr.mxu0 0.0
    %6150 = vmatpush1.msra.mxu0 0.0
    %6151 = vmatprep.subr.mxu0 0.0
    %6152 = vmatpush1.msra.mxu0 0.0
    %6153 = vmatprep.subr.mxu0 0.0
    %6154 = vmatpush1.msra.mxu0 0.0
    %6155 = vmatprep.subr.mxu0 0.0
    %6156 = vmatpush1.msra.mxu0 0.0
    %6157 = vmatprep.subr.mxu0 0.0
    %6158 = vmatpush1.msra.mxu0 0.0
    %6159 = vmatprep.subr.mxu0 0.0
    %6160 = vmatpush1.msra.mxu0 0.0
    %6161 = vmatprep.subr.mxu0 0.0
    %6162 = vmatpush1.msra.mxu0 0.0
    %6163 = vmatprep.subr.mxu0 0.0
    %6164 = vmatpush1.msra.mxu0 0.0
    %6165 = vmatprep.subr.mxu0 0.0
    %6166 = vmatpush1.msra.mxu0 0.0
    %6167 = vmatprep.subr.mxu0 0.0
    %6168 = vmatpush1.msra.mxu0 0.0
    %6169 = vmatprep.subr.mxu0 0.0
    %6170 = vmatpush1.msra.mxu0 0.0
    %6171 = vmatprep.subr.mxu0 0.0
    %6172 = vmatpush1.msra.mxu0 0.0
    %6173 = vmatprep.subr.mxu0 0.0
    %6174 = vmatpush1.msra.mxu0 0.0
    %6175 = vmatprep.subr.mxu0 0.0
    %6176 = vmatpush1.msra.mxu0 0.0
    %6177 = vmatprep.subr.mxu0 0.0
    %6178 = vmatpush1.msra.mxu0 0.0
    %6179 = vmatprep.subr.mxu0 0.0
    %6180 = vmatpush1.msra.mxu0 0.0
    %6181 = vmatprep.subr.mxu0 0.0
    %6182 = vmatpush1.msra.mxu0 0.0
    %6183 = vmatprep.subr.mxu0 0.0
    %6184 = vmatpush1.msra.mxu0 0.0
    %6185 = vmatprep.subr.mxu0 0.0
    %6186 = vmatpush1.msra.mxu0 0.0
    %6187 = vmatprep.mubr.f32.mxu0 0.0
    %v6188 = vand.u32 %v4916, 4294901760
    %v6189 = vsub.f32 %v4916, %v6188
    %6190 = vmatmul.mubr.f32.gmra.mrb[0].mxu0 %v6189
    %v6191 = vpop.f32.mrb[0].mxu0
    %v6192 = vadd.f32 %v6110, %v6191
    %v6193 = vpop.f32.mrb[0].mxu0
    %6194 = vmatprep.mubr.f32.mxu0 0.0
    %v6195 = vand.u32 %v4919, 4294901760
    %v6196 = vsub.f32 %v4919, %v6195
    %6197 = vmatmul.mubr.f32.gmra.mrb[0].mxu0 %v6196
    %v6198 = vpop.f32.mrb[0].mxu0
    %v6199 = vadd.f32 %v6116, %v6198
    %v6200 = vpop.f32.mrb[0].mxu0
    %6201 = vdwg.mxu0
    %6202 = vmatprep.subr.mxu0 0.0
    %v6203 = vand.u32 %v5943, 4294901760
    %6204 = vmatpush1.msra.mxu0 %v6203
    %6205 = vmatprep.subr.mxu0 0.0
    %v6206 = vand.u32 %v5944, 4294901760
    %6207 = vmatpush1.msra.mxu0 %v6206
    %6208 = vmatprep.subr.mxu0 0.0
    %6209 = vmatpush1.msra.mxu0 0.0
    %6210 = vmatprep.subr.mxu0 0.0
    %6211 = vmatpush1.msra.mxu0 0.0
    %6212 = vmatprep.subr.mxu0 0.0
    %6213 = vmatpush1.msra.mxu0 0.0
    %6214 = vmatprep.subr.mxu0 0.0
    %6215 = vmatpush1.msra.mxu0 0.0
    %6216 = vmatprep.subr.mxu0 0.0
    %6217 = vmatpush1.msra.mxu0 0.0
    %6218 = vmatprep.subr.mxu0 0.0
    %6219 = vmatpush1.msra.mxu0 0.0
    %6220 = vmatprep.subr.mxu0 0.0
    %6221 = vmatpush1.msra.mxu0 0.0
    %6222 = vmatprep.subr.mxu0 0.0
    %6223 = vmatpush1.msra.mxu0 0.0
    %6224 = vmatprep.subr.mxu0 0.0
    %6225 = vmatpush1.msra.mxu0 0.0
    %6226 = vmatprep.subr.mxu0 0.0
    %6227 = vmatpush1.msra.mxu0 0.0
    %6228 = vmatprep.subr.mxu0 0.0
    %6229 = vmatpush1.msra.mxu0 0.0
    %6230 = vmatprep.subr.mxu0 0.0
    %6231 = vmatpush1.msra.mxu0 0.0
    %6232 = vmatprep.subr.mxu0 0.0
    %6233 = vmatpush1.msra.mxu0 0.0
    %6234 = vmatprep.subr.mxu0 0.0
    %6235 = vmatpush1.msra.mxu0 0.0
    %6236 = vmatprep.subr.mxu0 0.0
    %6237 = vmatpush1.msra.mxu0 0.0
    %6238 = vmatprep.subr.mxu0 0.0
    %6239 = vmatpush1.msra.mxu0 0.0
    %6240 = vmatprep.subr.mxu0 0.0
    %6241 = vmatpush1.msra.mxu0 0.0
    %6242 = vmatprep.subr.mxu0 0.0
    %6243 = vmatpush1.msra.mxu0 0.0
    %6244 = vmatprep.subr.mxu0 0.0
    %6245 = vmatpush1.msra.mxu0 0.0
    %6246 = vmatprep.subr.mxu0 0.0
    %6247 = vmatpush1.msra.mxu0 0.0
    %6248 = vmatprep.subr.mxu0 0.0
    %6249 = vmatpush1.msra.mxu0 0.0
    %6250 = vmatprep.subr.mxu0 0.0
    %6251 = vmatpush1.msra.mxu0 0.0
    %6252 = vmatprep.subr.mxu0 0.0
    %6253 = vmatpush1.msra.mxu0 0.0
    %6254 = vmatprep.subr.mxu0 0.0
    %6255 = vmatpush1.msra.mxu0 0.0
    %6256 = vmatprep.subr.mxu0 0.0
    %6257 = vmatpush1.msra.mxu0 0.0
    %6258 = vmatprep.subr.mxu0 0.0
    %6259 = vmatpush1.msra.mxu0 0.0
    %6260 = vmatprep.subr.mxu0 0.0
    %6261 = vmatpush1.msra.mxu0 0.0
    %6262 = vmatprep.subr.mxu0 0.0
    %6263 = vmatpush1.msra.mxu0 0.0
    %6264 = vmatprep.subr.mxu0 0.0
    %6265 = vmatpush1.msra.mxu0 0.0
    %6266 = vmatprep.subr.mxu0 0.0
    %6267 = vmatpush1.msra.mxu0 0.0
    %6268 = vmatprep.mubr.f32.mxu0 0.0
    %v6269 = vand.u32 %v4916, 4294901760
    %v6270 = vsub.f32 %v4916, %v6269
    %v6271 = vand.u32 %v6270, 4294901760
    %6272 = vmatmul.mubr.f32.gmra.mrb[0].mxu0 %v6271
    %v6273 = vpop.f32.mrb[0].mxu0
    %v6274 = vadd.f32 %v6192, %v6273
    %v6275 = vpop.f32.mrb[0].mxu0
    %6276 = vmatprep.mubr.f32.mxu0 0.0
    %v6277 = vand.u32 %v4919, 4294901760
    %v6278 = vsub.f32 %v4919, %v6277
    %v6279 = vand.u32 %v6278, 4294901760
    %6280 = vmatmul.mubr.f32.gmra.mrb[0].mxu0 %v6279
    %v6281 = vpop.f32.mrb[0].mxu0
    %v6282 = vadd.f32 %v6199, %v6281
    %v6283 = vpop.f32.mrb[0].mxu0
    %6284 = vdwg.mxu0
    %6285 = vmatprep.subr.mxu0 0.0
    %v6286 = vand.u32 %v5943, 4294901760
    %v6287 = vsub.f32 %v5943, %v6286
    %v6288 = vand.u32 %v6287, 4294901760
    %6289 = vmatpush1.msra.mxu0 %v6288
    %6290 = vmatprep.subr.mxu0 0.0
    %v6291 = vand.u32 %v5944, 4294901760
    %v6292 = vsub.f32 %v5944, %v6291
    %v6293 = vand.u32 %v6292, 4294901760
    %6294 = vmatpush1.msra.mxu0 %v6293
    %6295 = vmatprep.subr.mxu0 0.0
    %6296 = vmatpush1.msra.mxu0 0.0
    %6297 = vmatprep.subr.mxu0 0.0
    %6298 = vmatpush1.msra.mxu0 0.0
    %6299 = vmatprep.subr.mxu0 0.0
    %6300 = vmatpush1.msra.mxu0 0.0
    %6301 = vmatprep.subr.mxu0 0.0
    %6302 = vmatpush1.msra.mxu0 0.0
    %6303 = vmatprep.subr.mxu0 0.0
    %6304 = vmatpush1.msra.mxu0 0.0
    %6305 = vmatprep.subr.mxu0 0.0
    %6306 = vmatpush1.msra.mxu0 0.0
    %6307 = vmatprep.subr.mxu0 0.0
    %6308 = vmatpush1.msra.mxu0 0.0
    %6309 = vmatprep.subr.mxu0 0.0
    %6310 = vmatpush1.msra.mxu0 0.0
    %6311 = vmatprep.subr.mxu0 0.0
    %6312 = vmatpush1.msra.mxu0 0.0
    %6313 = vmatprep.subr.mxu0 0.0
    %6314 = vmatpush1.msra.mxu0 0.0
    %6315 = vmatprep.subr.mxu0 0.0
    %6316 = vmatpush1.msra.mxu0 0.0
    %6317 = vmatprep.subr.mxu0 0.0
    %6318 = vmatpush1.msra.mxu0 0.0
    %6319 = vmatprep.subr.mxu0 0.0
    %6320 = vmatpush1.msra.mxu0 0.0
    %6321 = vmatprep.subr.mxu0 0.0
    %6322 = vmatpush1.msra.mxu0 0.0
    %6323 = vmatprep.subr.mxu0 0.0
    %6324 = vmatpush1.msra.mxu0 0.0
    %6325 = vmatprep.subr.mxu0 0.0
    %6326 = vmatpush1.msra.mxu0 0.0
    %6327 = vmatprep.subr.mxu0 0.0
    %6328 = vmatpush1.msra.mxu0 0.0
    %6329 = vmatprep.subr.mxu0 0.0
    %6330 = vmatpush1.msra.mxu0 0.0
    %6331 = vmatprep.subr.mxu0 0.0
    %6332 = vmatpush1.msra.mxu0 0.0
    %6333 = vmatprep.subr.mxu0 0.0
    %6334 = vmatpush1.msra.mxu0 0.0
    %6335 = vmatprep.subr.mxu0 0.0
    %6336 = vmatpush1.msra.mxu0 0.0
    %6337 = vmatprep.subr.mxu0 0.0
    %6338 = vmatpush1.msra.mxu0 0.0
    %6339 = vmatprep.subr.mxu0 0.0
    %6340 = vmatpush1.msra.mxu0 0.0
    %6341 = vmatprep.subr.mxu0 0.0
    %6342 = vmatpush1.msra.mxu0 0.0
    %6343 = vmatprep.subr.mxu0 0.0
    %6344 = vmatpush1.msra.mxu0 0.0
    %6345 = vmatprep.subr.mxu0 0.0
    %6346 = vmatpush1.msra.mxu0 0.0
    %6347 = vmatprep.subr.mxu0 0.0
    %6348 = vmatpush1.msra.mxu0 0.0
    %6349 = vmatprep.subr.mxu0 0.0
    %6350 = vmatpush1.msra.mxu0 0.0
    %6351 = vmatprep.subr.mxu0 0.0
    %6352 = vmatpush1.msra.mxu0 0.0
    %6353 = vmatprep.subr.mxu0 0.0
    %6354 = vmatpush1.msra.mxu0 0.0
    %6355 = vmatprep.mubr.f32.mxu0 0.0
    %v6356 = vand.u32 %v4916, 4294901760
    %6357 = vmatmul.mubr.f32.gmra.mrb[0].mxu0 %v6356
    %v6358 = vpop.f32.mrb[0].mxu0
    %v6359 = vadd.f32 %v6274, %v6358
    %v6360 = vpop.f32.mrb[0].mxu0
    %6361 = vmatprep.mubr.f32.mxu0 0.0
    %v6362 = vand.u32 %v4919, 4294901760
    %6363 = vmatmul.mubr.f32.gmra.mrb[0].mxu0 %v6362
    %v6364 = vpop.f32.mrb[0].mxu0
    %v6365 = vadd.f32 %v6282, %v6364
    %v6366 = vpop.f32.mrb[0].mxu0
    %6367 = vdwg.mxu0
    %6368 = vmatprep.subr.mxu0 0.0
    %v6369 = vand.u32 %v5943, 4294901760
    %6370 = vmatpush1.msra.mxu0 %v6369
    %6371 = vmatprep.subr.mxu0 0.0
    %v6372 = vand.u32 %v5944, 4294901760
    %6373 = vmatpush1.msra.mxu0 %v6372
    %6374 = vmatprep.subr.mxu0 0.0
    %6375 = vmatpush1.msra.mxu0 0.0
    %6376 = vmatprep.subr.mxu0 0.0
    %6377 = vmatpush1.msra.mxu0 0.0
    %6378 = vmatprep.subr.mxu0 0.0
    %6379 = vmatpush1.msra.mxu0 0.0
    %6380 = vmatprep.subr.mxu0 0.0
    %6381 = vmatpush1.msra.mxu0 0.0
    %6382 = vmatprep.subr.mxu0 0.0
    %6383 = vmatpush1.msra.mxu0 0.0
    %6384 = vmatprep.subr.mxu0 0.0
    %6385 = vmatpush1.msra.mxu0 0.0
    %6386 = vmatprep.subr.mxu0 0.0
    %6387 = vmatpush1.msra.mxu0 0.0
    %6388 = vmatprep.subr.mxu0 0.0
    %6389 = vmatpush1.msra.mxu0 0.0
    %6390 = vmatprep.subr.mxu0 0.0
    %6391 = vmatpush1.msra.mxu0 0.0
    %6392 = vmatprep.subr.mxu0 0.0
    %6393 = vmatpush1.msra.mxu0 0.0
    %6394 = vmatprep.subr.mxu0 0.0
    %6395 = vmatpush1.msra.mxu0 0.0
    %6396 = vmatprep.subr.mxu0 0.0
    %6397 = vmatpush1.msra.mxu0 0.0
    %6398 = vmatprep.subr.mxu0 0.0
    %6399 = vmatpush1.msra.mxu0 0.0
    %6400 = vmatprep.subr.mxu0 0.0
    %6401 = vmatpush1.msra.mxu0 0.0
    %6402 = vmatprep.subr.mxu0 0.0
    %6403 = vmatpush1.msra.mxu0 0.0
    %6404 = vmatprep.subr.mxu0 0.0
    %6405 = vmatpush1.msra.mxu0 0.0
    %6406 = vmatprep.subr.mxu0 0.0
    %6407 = vmatpush1.msra.mxu0 0.0
    %6408 = vmatprep.subr.mxu0 0.0
    %6409 = vmatpush1.msra.mxu0 0.0
    %6410 = vmatprep.subr.mxu0 0.0
    %6411 = vmatpush1.msra.mxu0 0.0
    %6412 = vmatprep.subr.mxu0 0.0
    %6413 = vmatpush1.msra.mxu0 0.0
    %6414 = vmatprep.subr.mxu0 0.0
    %6415 = vmatpush1.msra.mxu0 0.0
    %6416 = vmatprep.subr.mxu0 0.0
    %6417 = vmatpush1.msra.mxu0 0.0
    %6418 = vmatprep.subr.mxu0 0.0
    %6419 = vmatpush1.msra.mxu0 0.0
    %6420 = vmatprep.subr.mxu0 0.0
    %6421 = vmatpush1.msra.mxu0 0.0
    %6422 = vmatprep.subr.mxu0 0.0
    %6423 = vmatpush1.msra.mxu0 0.0
    %6424 = vmatprep.subr.mxu0 0.0
    %6425 = vmatpush1.msra.mxu0 0.0
    %6426 = vmatprep.subr.mxu0 0.0
    %6427 = vmatpush1.msra.mxu0 0.0
    %6428 = vmatprep.subr.mxu0 0.0
    %6429 = vmatpush1.msra.mxu0 0.0
    %6430 = vmatprep.subr.mxu0 0.0
    %6431 = vmatpush1.msra.mxu0 0.0
    %6432 = vmatprep.subr.mxu0 0.0
    %6433 = vmatpush1.msra.mxu0 0.0
    %6434 = vmatprep.mubr.f32.mxu0 0.0
    %v6435 = vand.u32 %v4916, 4294901760
    %6436 = vmatmul.mubr.f32.gmra.mrb[0].mxu0 %v6435
    %v6437 = vpop.f32.mrb[0].mxu0
    %v6438 = vadd.f32 %v6359, %v6437
    %v6439 = vpop.f32.mrb[0].mxu0
    %6440 = vmatprep.mubr.f32.mxu0 0.0
    %v6441 = vand.u32 %v4919, 4294901760
    %6442 = vmatmul.mubr.f32.gmra.mrb[0].mxu0 %v6441
    %v6443 = vpop.f32.mrb[0].mxu0
    %v6444 = vadd.f32 %v6365, %v6443
    %v6445 = vpop.f32.mrb[0].mxu0
    %6446 = vdwg.mxu0
    %v6447 = vmul.f32 %v6438, %v5939
    %v6448 = vmul.f32 %v6444, %v5941
    %v6449 = vadd.f32 %v5936, %v6447
    %v6450 = vadd.f32 %v5937, %v6448
    %6451 = vrot.lane.b32.xlu0 %v31, 96
    %v6452 = vpop.permute.xlu0 %6451
    %6453 = vrot.lane.b32.xlu0 %v32, 96
    %v6454 = vpop.permute.xlu0 %6453
    %s6455 = scalar_lea.vmem %s4, 48
    %v6456 = vld [vmem:[%s6455] sm:$0xff]
    %v6457 = vld [vmem:[%s6455 + $0x8] sm:$0xff]
    %6458 = vmatprep.subr.mxu0 0.0
    %v6459 = vand.u32 %v6456, 4294901760
    %6460 = vmatpush1.msra.mxu0 %v6459
    %6461 = vmatprep.subr.mxu0 0.0
    %v6462 = vand.u32 %v6457, 4294901760
    %6463 = vmatpush1.msra.mxu0 %v6462
    %6464 = vmatprep.subr.mxu0 0.0
    %6465 = vmatpush1.msra.mxu0 0.0
    %6466 = vmatprep.subr.mxu0 0.0
    %6467 = vmatpush1.msra.mxu0 0.0
    %6468 = vmatprep.subr.mxu0 0.0
    %6469 = vmatpush1.msra.mxu0 0.0
    %6470 = vmatprep.subr.mxu0 0.0
    %6471 = vmatpush1.msra.mxu0 0.0
    %6472 = vmatprep.subr.mxu0 0.0
    %6473 = vmatpush1.msra.mxu0 0.0
    %6474 = vmatprep.subr.mxu0 0.0
    %6475 = vmatpush1.msra.mxu0 0.0
    %6476 = vmatprep.subr.mxu0 0.0
    %6477 = vmatpush1.msra.mxu0 0.0
    %6478 = vmatprep.subr.mxu0 0.0
    %6479 = vmatpush1.msra.mxu0 0.0
    %6480 = vmatprep.subr.mxu0 0.0
    %6481 = vmatpush1.msra.mxu0 0.0
    %6482 = vmatprep.subr.mxu0 0.0
    %6483 = vmatpush1.msra.mxu0 0.0
    %6484 = vmatprep.subr.mxu0 0.0
    %6485 = vmatpush1.msra.mxu0 0.0
    %6486 = vmatprep.subr.mxu0 0.0
    %6487 = vmatpush1.msra.mxu0 0.0
    %6488 = vmatprep.subr.mxu0 0.0
    %6489 = vmatpush1.msra.mxu0 0.0
    %6490 = vmatprep.subr.mxu0 0.0
    %6491 = vmatpush1.msra.mxu0 0.0
    %6492 = vmatprep.subr.mxu0 0.0
    %6493 = vmatpush1.msra.mxu0 0.0
    %6494 = vmatprep.subr.mxu0 0.0
    %6495 = vmatpush1.msra.mxu0 0.0
    %6496 = vmatprep.subr.mxu0 0.0
    %6497 = vmatpush1.msra.mxu0 0.0
    %6498 = vmatprep.subr.mxu0 0.0
    %6499 = vmatpush1.msra.mxu0 0.0
    %6500 = vmatprep.subr.mxu0 0.0
    %6501 = vmatpush1.msra.mxu0 0.0
    %6502 = vmatprep.subr.mxu0 0.0
    %6503 = vmatpush1.msra.mxu0 0.0
    %6504 = vmatprep.subr.mxu0 0.0
    %6505 = vmatpush1.msra.mxu0 0.0
    %6506 = vmatprep.subr.mxu0 0.0
    %6507 = vmatpush1.msra.mxu0 0.0
    %6508 = vmatprep.subr.mxu0 0.0
    %6509 = vmatpush1.msra.mxu0 0.0
    %6510 = vmatprep.subr.mxu0 0.0
    %6511 = vmatpush1.msra.mxu0 0.0
    %6512 = vmatprep.subr.mxu0 0.0
    %6513 = vmatpush1.msra.mxu0 0.0
    %6514 = vmatprep.subr.mxu0 0.0
    %6515 = vmatpush1.msra.mxu0 0.0
    %6516 = vmatprep.subr.mxu0 0.0
    %6517 = vmatpush1.msra.mxu0 0.0
    %6518 = vmatprep.subr.mxu0 0.0
    %6519 = vmatpush1.msra.mxu0 0.0
    %6520 = vmatprep.subr.mxu0 0.0
    %6521 = vmatpush1.msra.mxu0 0.0
    %6522 = vmatprep.subr.mxu0 0.0
    %6523 = vmatpush1.msra.mxu0 0.0
    %6524 = vmatprep.mubr.f32.mxu0 0.0
    %v6525 = vand.u32 %v4916, 4294901760
    %v6526 = vsub.f32 %v4916, %v6525
    %v6527 = vand.u32 %v6526, 4294901760
    %v6528 = vsub.f32 %v6526, %v6527
    %v6529 = vand.u32 %v6528, 4294901760
    %6530 = vmatmul.mubr.f32.gmra.mrb[0].mxu0 %v6529
    %v6531 = vpop.f32.mrb[0].mxu0
    %v6532 = vadd.f32 0.0, %v6531
    %v6533 = vpop.f32.mrb[0].mxu0
    %6534 = vmatprep.mubr.f32.mxu0 0.0
    %v6535 = vand.u32 %v4919, 4294901760
    %v6536 = vsub.f32 %v4919, %v6535
    %v6537 = vand.u32 %v6536, 4294901760
    %v6538 = vsub.f32 %v6536, %v6537
    %v6539 = vand.u32 %v6538, 4294901760
    %6540 = vmatmul.mubr.f32.gmra.mrb[0].mxu0 %v6539
    %v6541 = vpop.f32.mrb[0].mxu0
    %v6542 = vadd.f32 0.0, %v6541
    %v6543 = vpop.f32.mrb[0].mxu0
    %6544 = vdwg.mxu0
    %6545 = vmatprep.subr.mxu0 0.0
    %v6546 = vand.u32 %v6456, 4294901760
    %v6547 = vsub.f32 %v6456, %v6546
    %v6548 = vand.u32 %v6547, 4294901760
    %v6549 = vsub.f32 %v6547, %v6548
    %v6550 = vand.u32 %v6549, 4294901760
    %6551 = vmatpush1.msra.mxu0 %v6550
    %6552 = vmatprep.subr.mxu0 0.0
    %v6553 = vand.u32 %v6457, 4294901760
    %v6554 = vsub.f32 %v6457, %v6553
    %v6555 = vand.u32 %v6554, 4294901760
    %v6556 = vsub.f32 %v6554, %v6555
    %v6557 = vand.u32 %v6556, 4294901760
    %6558 = vmatpush1.msra.mxu0 %v6557
    %6559 = vmatprep.subr.mxu0 0.0
    %6560 = vmatpush1.msra.mxu0 0.0
    %6561 = vmatprep.subr.mxu0 0.0
    %6562 = vmatpush1.msra.mxu0 0.0
    %6563 = vmatprep.subr.mxu0 0.0
    %6564 = vmatpush1.msra.mxu0 0.0
    %6565 = vmatprep.subr.mxu0 0.0
    %6566 = vmatpush1.msra.mxu0 0.0
    %6567 = vmatprep.subr.mxu0 0.0
    %6568 = vmatpush1.msra.mxu0 0.0
    %6569 = vmatprep.subr.mxu0 0.0
    %6570 = vmatpush1.msra.mxu0 0.0
    %6571 = vmatprep.subr.mxu0 0.0
    %6572 = vmatpush1.msra.mxu0 0.0
    %6573 = vmatprep.subr.mxu0 0.0
    %6574 = vmatpush1.msra.mxu0 0.0
    %6575 = vmatprep.subr.mxu0 0.0
    %6576 = vmatpush1.msra.mxu0 0.0
    %6577 = vmatprep.subr.mxu0 0.0
    %6578 = vmatpush1.msra.mxu0 0.0
    %6579 = vmatprep.subr.mxu0 0.0
    %6580 = vmatpush1.msra.mxu0 0.0
    %6581 = vmatprep.subr.mxu0 0.0
    %6582 = vmatpush1.msra.mxu0 0.0
    %6583 = vmatprep.subr.mxu0 0.0
    %6584 = vmatpush1.msra.mxu0 0.0
    %6585 = vmatprep.subr.mxu0 0.0
    %6586 = vmatpush1.msra.mxu0 0.0
    %6587 = vmatprep.subr.mxu0 0.0
    %6588 = vmatpush1.msra.mxu0 0.0
    %6589 = vmatprep.subr.mxu0 0.0
    %6590 = vmatpush1.msra.mxu0 0.0
    %6591 = vmatprep.subr.mxu0 0.0
    %6592 = vmatpush1.msra.mxu0 0.0
    %6593 = vmatprep.subr.mxu0 0.0
    %6594 = vmatpush1.msra.mxu0 0.0
    %6595 = vmatprep.subr.mxu0 0.0
    %6596 = vmatpush1.msra.mxu0 0.0
    %6597 = vmatprep.subr.mxu0 0.0
    %6598 = vmatpush1.msra.mxu0 0.0
    %6599 = vmatprep.subr.mxu0 0.0
    %6600 = vmatpush1.msra.mxu0 0.0
    %6601 = vmatprep.subr.mxu0 0.0
    %6602 = vmatpush1.msra.mxu0 0.0
    %6603 = vmatprep.subr.mxu0 0.0
    %6604 = vmatpush1.msra.mxu0 0.0
    %6605 = vmatprep.subr.mxu0 0.0
    %6606 = vmatpush1.msra.mxu0 0.0
    %6607 = vmatprep.subr.mxu0 0.0
    %6608 = vmatpush1.msra.mxu0 0.0
    %6609 = vmatprep.subr.mxu0 0.0
    %6610 = vmatpush1.msra.mxu0 0.0
    %6611 = vmatprep.subr.mxu0 0.0
    %6612 = vmatpush1.msra.mxu0 0.0
    %6613 = vmatprep.subr.mxu0 0.0
    %6614 = vmatpush1.msra.mxu0 0.0
    %6615 = vmatprep.subr.mxu0 0.0
    %6616 = vmatpush1.msra.mxu0 0.0
    %6617 = vmatprep.subr.mxu0 0.0
    %6618 = vmatpush1.msra.mxu0 0.0
    %6619 = vmatprep.mubr.f32.mxu0 0.0
    %v6620 = vand.u32 %v4916, 4294901760
    %6621 = vmatmul.mubr.f32.gmra.mrb[0].mxu0 %v6620
    %v6622 = vpop.f32.mrb[0].mxu0
    %v6623 = vadd.f32 %v6532, %v6622
    %v6624 = vpop.f32.mrb[0].mxu0
    %6625 = vmatprep.mubr.f32.mxu0 0.0
    %v6626 = vand.u32 %v4919, 4294901760
    %6627 = vmatmul.mubr.f32.gmra.mrb[0].mxu0 %v6626
    %v6628 = vpop.f32.mrb[0].mxu0
    %v6629 = vadd.f32 %v6542, %v6628
    %v6630 = vpop.f32.mrb[0].mxu0
    %6631 = vdwg.mxu0
    %6632 = vmatprep.subr.mxu0 0.0
    %v6633 = vand.u32 %v6456, 4294901760
    %v6634 = vsub.f32 %v6456, %v6633
    %6635 = vmatpush1.msra.mxu0 %v6634
    %6636 = vmatprep.subr.mxu0 0.0
    %v6637 = vand.u32 %v6457, 4294901760
    %v6638 = vsub.f32 %v6457, %v6637
    %6639 = vmatpush1.msra.mxu0 %v6638
    %6640 = vmatprep.subr.mxu0 0.0
    %6641 = vmatpush1.msra.mxu0 0.0
    %6642 = vmatprep.subr.mxu0 0.0
    %6643 = vmatpush1.msra.mxu0 0.0
    %6644 = vmatprep.subr.mxu0 0.0
    %6645 = vmatpush1.msra.mxu0 0.0
    %6646 = vmatprep.subr.mxu0 0.0
    %6647 = vmatpush1.msra.mxu0 0.0
    %6648 = vmatprep.subr.mxu0 0.0
    %6649 = vmatpush1.msra.mxu0 0.0
    %6650 = vmatprep.subr.mxu0 0.0
    %6651 = vmatpush1.msra.mxu0 0.0
    %6652 = vmatprep.subr.mxu0 0.0
    %6653 = vmatpush1.msra.mxu0 0.0
    %6654 = vmatprep.subr.mxu0 0.0
    %6655 = vmatpush1.msra.mxu0 0.0
    %6656 = vmatprep.subr.mxu0 0.0
    %6657 = vmatpush1.msra.mxu0 0.0
    %6658 = vmatprep.subr.mxu0 0.0
    %6659 = vmatpush1.msra.mxu0 0.0
    %6660 = vmatprep.subr.mxu0 0.0
    %6661 = vmatpush1.msra.mxu0 0.0
    %6662 = vmatprep.subr.mxu0 0.0
    %6663 = vmatpush1.msra.mxu0 0.0
    %6664 = vmatprep.subr.mxu0 0.0
    %6665 = vmatpush1.msra.mxu0 0.0
    %6666 = vmatprep.subr.mxu0 0.0
    %6667 = vmatpush1.msra.mxu0 0.0
    %6668 = vmatprep.subr.mxu0 0.0
    %6669 = vmatpush1.msra.mxu0 0.0
    %6670 = vmatprep.subr.mxu0 0.0
    %6671 = vmatpush1.msra.mxu0 0.0
    %6672 = vmatprep.subr.mxu0 0.0
    %6673 = vmatpush1.msra.mxu0 0.0
    %6674 = vmatprep.subr.mxu0 0.0
    %6675 = vmatpush1.msra.mxu0 0.0
    %6676 = vmatprep.subr.mxu0 0.0
    %6677 = vmatpush1.msra.mxu0 0.0
    %6678 = vmatprep.subr.mxu0 0.0
    %6679 = vmatpush1.msra.mxu0 0.0
    %6680 = vmatprep.subr.mxu0 0.0
    %6681 = vmatpush1.msra.mxu0 0.0
    %6682 = vmatprep.subr.mxu0 0.0
    %6683 = vmatpush1.msra.mxu0 0.0
    %6684 = vmatprep.subr.mxu0 0.0
    %6685 = vmatpush1.msra.mxu0 0.0
    %6686 = vmatprep.subr.mxu0 0.0
    %6687 = vmatpush1.msra.mxu0 0.0
    %6688 = vmatprep.subr.mxu0 0.0
    %6689 = vmatpush1.msra.mxu0 0.0
    %6690 = vmatprep.subr.mxu0 0.0
    %6691 = vmatpush1.msra.mxu0 0.0
    %6692 = vmatprep.subr.mxu0 0.0
    %6693 = vmatpush1.msra.mxu0 0.0
    %6694 = vmatprep.subr.mxu0 0.0
    %6695 = vmatpush1.msra.mxu0 0.0
    %6696 = vmatprep.subr.mxu0 0.0
    %6697 = vmatpush1.msra.mxu0 0.0
    %6698 = vmatprep.subr.mxu0 0.0
    %6699 = vmatpush1.msra.mxu0 0.0
    %6700 = vmatprep.mubr.f32.mxu0 0.0
    %v6701 = vand.u32 %v4916, 4294901760
    %v6702 = vsub.f32 %v4916, %v6701
    %6703 = vmatmul.mubr.f32.gmra.mrb[0].mxu0 %v6702
    %v6704 = vpop.f32.mrb[0].mxu0
    %v6705 = vadd.f32 %v6623, %v6704
    %v6706 = vpop.f32.mrb[0].mxu0
    %6707 = vmatprep.mubr.f32.mxu0 0.0
    %v6708 = vand.u32 %v4919, 4294901760
    %v6709 = vsub.f32 %v4919, %v6708
    %6710 = vmatmul.mubr.f32.gmra.mrb[0].mxu0 %v6709
    %v6711 = vpop.f32.mrb[0].mxu0
    %v6712 = vadd.f32 %v6629, %v6711
    %v6713 = vpop.f32.mrb[0].mxu0
    %6714 = vdwg.mxu0
    %6715 = vmatprep.subr.mxu0 0.0
    %v6716 = vand.u32 %v6456, 4294901760
    %6717 = vmatpush1.msra.mxu0 %v6716
    %6718 = vmatprep.subr.mxu0 0.0
    %v6719 = vand.u32 %v6457, 4294901760
    %6720 = vmatpush1.msra.mxu0 %v6719
    %6721 = vmatprep.subr.mxu0 0.0
    %6722 = vmatpush1.msra.mxu0 0.0
    %6723 = vmatprep.subr.mxu0 0.0
    %6724 = vmatpush1.msra.mxu0 0.0
    %6725 = vmatprep.subr.mxu0 0.0
    %6726 = vmatpush1.msra.mxu0 0.0
    %6727 = vmatprep.subr.mxu0 0.0
    %6728 = vmatpush1.msra.mxu0 0.0
    %6729 = vmatprep.subr.mxu0 0.0
    %6730 = vmatpush1.msra.mxu0 0.0
    %6731 = vmatprep.subr.mxu0 0.0
    %6732 = vmatpush1.msra.mxu0 0.0
    %6733 = vmatprep.subr.mxu0 0.0
    %6734 = vmatpush1.msra.mxu0 0.0
    %6735 = vmatprep.subr.mxu0 0.0
    %6736 = vmatpush1.msra.mxu0 0.0
    %6737 = vmatprep.subr.mxu0 0.0
    %6738 = vmatpush1.msra.mxu0 0.0
    %6739 = vmatprep.subr.mxu0 0.0
    %6740 = vmatpush1.msra.mxu0 0.0
    %6741 = vmatprep.subr.mxu0 0.0
    %6742 = vmatpush1.msra.mxu0 0.0
    %6743 = vmatprep.subr.mxu0 0.0
    %6744 = vmatpush1.msra.mxu0 0.0
    %6745 = vmatprep.subr.mxu0 0.0
    %6746 = vmatpush1.msra.mxu0 0.0
    %6747 = vmatprep.subr.mxu0 0.0
    %6748 = vmatpush1.msra.mxu0 0.0
    %6749 = vmatprep.subr.mxu0 0.0
    %6750 = vmatpush1.msra.mxu0 0.0
    %6751 = vmatprep.subr.mxu0 0.0
    %6752 = vmatpush1.msra.mxu0 0.0
    %6753 = vmatprep.subr.mxu0 0.0
    %6754 = vmatpush1.msra.mxu0 0.0
    %6755 = vmatprep.subr.mxu0 0.0
    %6756 = vmatpush1.msra.mxu0 0.0
    %6757 = vmatprep.subr.mxu0 0.0
    %6758 = vmatpush1.msra.mxu0 0.0
    %6759 = vmatprep.subr.mxu0 0.0
    %6760 = vmatpush1.msra.mxu0 0.0
    %6761 = vmatprep.subr.mxu0 0.0
    %6762 = vmatpush1.msra.mxu0 0.0
    %6763 = vmatprep.subr.mxu0 0.0
    %6764 = vmatpush1.msra.mxu0 0.0
    %6765 = vmatprep.subr.mxu0 0.0
    %6766 = vmatpush1.msra.mxu0 0.0
    %6767 = vmatprep.subr.mxu0 0.0
    %6768 = vmatpush1.msra.mxu0 0.0
    %6769 = vmatprep.subr.mxu0 0.0
    %6770 = vmatpush1.msra.mxu0 0.0
    %6771 = vmatprep.subr.mxu0 0.0
    %6772 = vmatpush1.msra.mxu0 0.0
    %6773 = vmatprep.subr.mxu0 0.0
    %6774 = vmatpush1.msra.mxu0 0.0
    %6775 = vmatprep.subr.mxu0 0.0
    %6776 = vmatpush1.msra.mxu0 0.0
    %6777 = vmatprep.subr.mxu0 0.0
    %6778 = vmatpush1.msra.mxu0 0.0
    %6779 = vmatprep.subr.mxu0 0.0
    %6780 = vmatpush1.msra.mxu0 0.0
    %6781 = vmatprep.mubr.f32.mxu0 0.0
    %v6782 = vand.u32 %v4916, 4294901760
    %v6783 = vsub.f32 %v4916, %v6782
    %v6784 = vand.u32 %v6783, 4294901760
    %6785 = vmatmul.mubr.f32.gmra.mrb[0].mxu0 %v6784
    %v6786 = vpop.f32.mrb[0].mxu0
    %v6787 = vadd.f32 %v6705, %v6786
    %v6788 = vpop.f32.mrb[0].mxu0
    %6789 = vmatprep.mubr.f32.mxu0 0.0
    %v6790 = vand.u32 %v4919, 4294901760
    %v6791 = vsub.f32 %v4919, %v6790
    %v6792 = vand.u32 %v6791, 4294901760
    %6793 = vmatmul.mubr.f32.gmra.mrb[0].mxu0 %v6792
    %v6794 = vpop.f32.mrb[0].mxu0
    %v6795 = vadd.f32 %v6712, %v6794
    %v6796 = vpop.f32.mrb[0].mxu0
    %6797 = vdwg.mxu0
    %6798 = vmatprep.subr.mxu0 0.0
    %v6799 = vand.u32 %v6456, 4294901760
    %v6800 = vsub.f32 %v6456, %v6799
    %v6801 = vand.u32 %v6800, 4294901760
    %6802 = vmatpush1.msra.mxu0 %v6801
    %6803 = vmatprep.subr.mxu0 0.0
    %v6804 = vand.u32 %v6457, 4294901760
    %v6805 = vsub.f32 %v6457, %v6804
    %v6806 = vand.u32 %v6805, 4294901760
    %6807 = vmatpush1.msra.mxu0 %v6806
    %6808 = vmatprep.subr.mxu0 0.0
    %6809 = vmatpush1.msra.mxu0 0.0
    %6810 = vmatprep.subr.mxu0 0.0
    %6811 = vmatpush1.msra.mxu0 0.0
    %6812 = vmatprep.subr.mxu0 0.0
    %6813 = vmatpush1.msra.mxu0 0.0
    %6814 = vmatprep.subr.mxu0 0.0
    %6815 = vmatpush1.msra.mxu0 0.0
    %6816 = vmatprep.subr.mxu0 0.0
    %6817 = vmatpush1.msra.mxu0 0.0
    %6818 = vmatprep.subr.mxu0 0.0
    %6819 = vmatpush1.msra.mxu0 0.0
    %6820 = vmatprep.subr.mxu0 0.0
    %6821 = vmatpush1.msra.mxu0 0.0
    %6822 = vmatprep.subr.mxu0 0.0
    %6823 = vmatpush1.msra.mxu0 0.0
    %6824 = vmatprep.subr.mxu0 0.0
    %6825 = vmatpush1.msra.mxu0 0.0
    %6826 = vmatprep.subr.mxu0 0.0
    %6827 = vmatpush1.msra.mxu0 0.0
    %6828 = vmatprep.subr.mxu0 0.0
    %6829 = vmatpush1.msra.mxu0 0.0
    %6830 = vmatprep.subr.mxu0 0.0
    %6831 = vmatpush1.msra.mxu0 0.0
    %6832 = vmatprep.subr.mxu0 0.0
    %6833 = vmatpush1.msra.mxu0 0.0
    %6834 = vmatprep.subr.mxu0 0.0
    %6835 = vmatpush1.msra.mxu0 0.0
    %6836 = vmatprep.subr.mxu0 0.0
    %6837 = vmatpush1.msra.mxu0 0.0
    %6838 = vmatprep.subr.mxu0 0.0
    %6839 = vmatpush1.msra.mxu0 0.0
    %6840 = vmatprep.subr.mxu0 0.0
    %6841 = vmatpush1.msra.mxu0 0.0
    %6842 = vmatprep.subr.mxu0 0.0
    %6843 = vmatpush1.msra.mxu0 0.0
    %6844 = vmatprep.subr.mxu0 0.0
    %6845 = vmatpush1.msra.mxu0 0.0
    %6846 = vmatprep.subr.mxu0 0.0
    %6847 = vmatpush1.msra.mxu0 0.0
    %6848 = vmatprep.subr.mxu0 0.0
    %6849 = vmatpush1.msra.mxu0 0.0
    %6850 = vmatprep.subr.mxu0 0.0
    %6851 = vmatpush1.msra.mxu0 0.0
    %6852 = vmatprep.subr.mxu0 0.0
    %6853 = vmatpush1.msra.mxu0 0.0
    %6854 = vmatprep.subr.mxu0 0.0
    %6855 = vmatpush1.msra.mxu0 0.0
    %6856 = vmatprep.subr.mxu0 0.0
    %6857 = vmatpush1.msra.mxu0 0.0
    %6858 = vmatprep.subr.mxu0 0.0
    %6859 = vmatpush1.msra.mxu0 0.0
    %6860 = vmatprep.subr.mxu0 0.0
    %6861 = vmatpush1.msra.mxu0 0.0
    %6862 = vmatprep.subr.mxu0 0.0
    %6863 = vmatpush1.msra.mxu0 0.0
    %6864 = vmatprep.subr.mxu0 0.0
    %6865 = vmatpush1.msra.mxu0 0.0
    %6866 = vmatprep.subr.mxu0 0.0
    %6867 = vmatpush1.msra.mxu0 0.0
    %6868 = vmatprep.mubr.f32.mxu0 0.0
    %v6869 = vand.u32 %v4916, 4294901760
    %6870 = vmatmul.mubr.f32.gmra.mrb[0].mxu0 %v6869
    %v6871 = vpop.f32.mrb[0].mxu0
    %v6872 = vadd.f32 %v6787, %v6871
    %v6873 = vpop.f32.mrb[0].mxu0
    %6874 = vmatprep.mubr.f32.mxu0 0.0
    %v6875 = vand.u32 %v4919, 4294901760
    %6876 = vmatmul.mubr.f32.gmra.mrb[0].mxu0 %v6875
    %v6877 = vpop.f32.mrb[0].mxu0
    %v6878 = vadd.f32 %v6795, %v6877
    %v6879 = vpop.f32.mrb[0].mxu0
    %6880 = vdwg.mxu0
    %6881 = vmatprep.subr.mxu0 0.0
    %v6882 = vand.u32 %v6456, 4294901760
    %6883 = vmatpush1.msra.mxu0 %v6882
    %6884 = vmatprep.subr.mxu0 0.0
    %v6885 = vand.u32 %v6457, 4294901760
    %6886 = vmatpush1.msra.mxu0 %v6885
    %6887 = vmatprep.subr.mxu0 0.0
    %6888 = vmatpush1.msra.mxu0 0.0
    %6889 = vmatprep.subr.mxu0 0.0
    %6890 = vmatpush1.msra.mxu0 0.0
    %6891 = vmatprep.subr.mxu0 0.0
    %6892 = vmatpush1.msra.mxu0 0.0
    %6893 = vmatprep.subr.mxu0 0.0
    %6894 = vmatpush1.msra.mxu0 0.0
    %6895 = vmatprep.subr.mxu0 0.0
    %6896 = vmatpush1.msra.mxu0 0.0
    %6897 = vmatprep.subr.mxu0 0.0
    %6898 = vmatpush1.msra.mxu0 0.0
    %6899 = vmatprep.subr.mxu0 0.0
    %6900 = vmatpush1.msra.mxu0 0.0
    %6901 = vmatprep.subr.mxu0 0.0
    %6902 = vmatpush1.msra.mxu0 0.0
    %6903 = vmatprep.subr.mxu0 0.0
    %6904 = vmatpush1.msra.mxu0 0.0
    %6905 = vmatprep.subr.mxu0 0.0
    %6906 = vmatpush1.msra.mxu0 0.0
    %6907 = vmatprep.subr.mxu0 0.0
    %6908 = vmatpush1.msra.mxu0 0.0
    %6909 = vmatprep.subr.mxu0 0.0
    %6910 = vmatpush1.msra.mxu0 0.0
    %6911 = vmatprep.subr.mxu0 0.0
    %6912 = vmatpush1.msra.mxu0 0.0
    %6913 = vmatprep.subr.mxu0 0.0
    %6914 = vmatpush1.msra.mxu0 0.0
    %6915 = vmatprep.subr.mxu0 0.0
    %6916 = vmatpush1.msra.mxu0 0.0
    %6917 = vmatprep.subr.mxu0 0.0
    %6918 = vmatpush1.msra.mxu0 0.0
    %6919 = vmatprep.subr.mxu0 0.0
    %6920 = vmatpush1.msra.mxu0 0.0
    %6921 = vmatprep.subr.mxu0 0.0
    %6922 = vmatpush1.msra.mxu0 0.0
    %6923 = vmatprep.subr.mxu0 0.0
    %6924 = vmatpush1.msra.mxu0 0.0
    %6925 = vmatprep.subr.mxu0 0.0
    %6926 = vmatpush1.msra.mxu0 0.0
    %6927 = vmatprep.subr.mxu0 0.0
    %6928 = vmatpush1.msra.mxu0 0.0
    %6929 = vmatprep.subr.mxu0 0.0
    %6930 = vmatpush1.msra.mxu0 0.0
    %6931 = vmatprep.subr.mxu0 0.0
    %6932 = vmatpush1.msra.mxu0 0.0
    %6933 = vmatprep.subr.mxu0 0.0
    %6934 = vmatpush1.msra.mxu0 0.0
    %6935 = vmatprep.subr.mxu0 0.0
    %6936 = vmatpush1.msra.mxu0 0.0
    %6937 = vmatprep.subr.mxu0 0.0
    %6938 = vmatpush1.msra.mxu0 0.0
    %6939 = vmatprep.subr.mxu0 0.0
    %6940 = vmatpush1.msra.mxu0 0.0
    %6941 = vmatprep.subr.mxu0 0.0
    %6942 = vmatpush1.msra.mxu0 0.0
    %6943 = vmatprep.subr.mxu0 0.0
    %6944 = vmatpush1.msra.mxu0 0.0
    %6945 = vmatprep.subr.mxu0 0.0
    %6946 = vmatpush1.msra.mxu0 0.0
    %6947 = vmatprep.mubr.f32.mxu0 0.0
    %v6948 = vand.u32 %v4916, 4294901760
    %6949 = vmatmul.mubr.f32.gmra.mrb[0].mxu0 %v6948
    %v6950 = vpop.f32.mrb[0].mxu0
    %v6951 = vadd.f32 %v6872, %v6950
    %v6952 = vpop.f32.mrb[0].mxu0
    %6953 = vmatprep.mubr.f32.mxu0 0.0
    %v6954 = vand.u32 %v4919, 4294901760
    %6955 = vmatmul.mubr.f32.gmra.mrb[0].mxu0 %v6954
    %v6956 = vpop.f32.mrb[0].mxu0
    %v6957 = vadd.f32 %v6878, %v6956
    %v6958 = vpop.f32.mrb[0].mxu0
    %6959 = vdwg.mxu0
    %v6960 = vmul.f32 %v6951, %v6452
    %v6961 = vmul.f32 %v6957, %v6454
    %v6962 = vadd.f32 %v6449, %v6960
    %v6963 = vadd.f32 %v6450, %v6961
    %6964 = vst [vmem:[#allocation2] sm:$0xff] %v6962
    %6965 = vst [vmem:[#allocation2 + $0x8] sm:$0xff] %v6963
    // Predicated region
    $region30: #{tpu_custom_call.1} parent=1 // pred_check
      _
    $region31: #{tpu_custom_call.1} parent=1 // pred_check_branch
      %6967 = sbr.rel (0) target = $region33
    $region32: #{tpu_custom_call.1} parent=1 // pred_region
      %s6969 = ssub.s32 256, 256
      %6970 = vsyncadd [#allocation3], %s6969
      %s6971 = sshll.u32 [#allocation2], 4
      %s6972 = int_to_ptr.vmem [resolvable:$true] %s6971
      %6977 = dma.vmem_to_hbm [thread:$0]  %s6972, 256, %s7, [#allocation3], 128, 128, 8
    $region33: #{tpu_custom_call.1} parent=1 // pred_fallthru
      _
    // Predicated region
    $region34: #{tpu_custom_call.1} parent=1 // pred_check
      _
    $region35: #{tpu_custom_call.1} parent=1 // pred_check_branch
      %6979 = sbr.rel (0) target = $region37
    $region36: #{tpu_custom_call.1} parent=1 // pred_region
      %6980 = dma.done [#allocation3], 256
    $region37: #{tpu_custom_call.1} parent=1 // pred_fallthru
      _
    %6981 = vsyncpa [#allocation3], 1

</llo_original>
